<compile_context>
chip_gen: v6e
topology: v6e:2x2x1
jax: 0.10.0
libtpu: 0.0.40
codegen_flags: <defaults>
</compile_context>

<pallas_src>
import functools

import jax
import jax.numpy as jnp
from jax import lax
from jax.experimental import pallas as pl
from jax.experimental.pallas import tpu as pltpu


def _make_mmcr_kernel(n_aug: int, gram_lanes: int):
    eps = 1e-12
    scale = 0.5 / n_aug

    def kernel(z_ref, zm_ref, cent_ref, gram_ref):
        # z_ref / zm_ref: (n_aug, g, d_pad) — contiguous (g, d_pad) slab per aug.
        # Pass 1: per-row inverse norms + centroid accumulation (no scratch).
        inv_norms = []
        cent_acc = None
        for a in range(n_aug):
            za = z_ref[a].astype(jnp.float32)
            zma = zm_ref[a].astype(jnp.float32)
            # F.normalize(x, dim=-1, eps=1e-12):
            #   x * rsqrt(max(||x||^2, eps^2)) == x / max(||x||_2, eps)
            inv_a = lax.rsqrt(
                jnp.maximum(jnp.sum(za * za, axis=-1, keepdims=True), eps * eps)
            )
            inv_ma = lax.rsqrt(
                jnp.maximum(jnp.sum(zma * zma, axis=-1, keepdims=True), eps * eps)
            )
            term = za * inv_a + zma * inv_ma
            cent_acc = term if cent_acc is None else cent_acc + term
            inv_norms.append(inv_a)
        cent_ref[...] = cent_acc * scale  # lane-dense (g, d_pad) store

        # Pass 2: per-sample Gram of the normalized z, computed from the raw
        # slabs (still resident in the input VMEM buffers):
        #   gram[s, a*n_aug + b] = <zn_a[s], zn_b[s]>
        #                        = <z_a[s], z_b[s]> * inv_a[s] * inv_b[s]
        # Only the upper triangle is computed; all n_aug^2 columns (plus zero
        # lane padding) are assembled into ONE lane-dense tile and stored once.
        cols = [[None] * n_aug for _ in range(n_aug)]
        for a in range(n_aug):
            za = z_ref[a].astype(jnp.float32)
            for b in range(a, n_aug):
                zb = za if b == a else z_ref[b].astype(jnp.float32)
                dot_ab = jnp.sum(za * zb, axis=-1, keepdims=True)  # (g, 1)
                col = dot_ab * inv_norms[a] * inv_norms[b]
                cols[a][b] = col
                cols[b][a] = col
        flat = [cols[a][b] for a in range(n_aug) for b in range(n_aug)]
        n_pad_lanes = gram_lanes - n_aug * n_aug
        if n_pad_lanes > 0:
            g_rows = flat[0].shape[0]
            flat.append(jnp.zeros((g_rows, n_pad_lanes), jnp.float32))
        gram_ref[...] = jnp.concatenate(flat, axis=-1)  # single full-lane store

    return kernel


def _choose_tile_samples(n: int, n_aug: int, d_pad: int, in_bytes: int,
                         tile_samples=None) -> int:
    """Samples per grid step: multiple of 8, ~4 MiB input tile, >= 2 grid steps."""
    if tile_samples is not None:
        if tile_samples <= 0 or tile_samples % 8 != 0:
            raise ValueError("tile_samples must be a positive multiple of 8")
        return tile_samples
    n_pad8 = ((n + 7) // 8) * 8
    # ~4 MiB per input tile (no scratch anymore) amortizes the ~0.35 us/step
    # overhead while keeping double-buffered totals far below v7x's 64 MiB.
    target_bytes = 4 * 1024 * 1024
    g = (target_bytes // (n_aug * d_pad * in_bytes)) // 8 * 8
    g = max(8, min(g, n_pad8))
    # Prefer at least 2 grid steps so the "parallel" axis can shard across
    # the two v7x TensorCores.
    if g >= n_pad8 and n_pad8 > 8:
        g = max(8, ((n_pad8 // 2 + 7) // 8) * 8)
    return g


def _mmcr_pallas_core(z3, zm3, *, n_aug: int, g: int, gram_lanes: int):
    _, n_pad, d_pad = z3.shape
    grid = (n_pad // g,)
    in_bytes = z3.dtype.itemsize

    kernel = _make_mmcr_kernel(n_aug, gram_lanes)

    # VMEM budget from actual usage: 2 double-buffered inputs + 2 (small)
    # double-buffered outputs, no scratch; x2 headroom, never a blind 48 MiB.
    tile_in = n_aug * g * d_pad * in_bytes
    tile_out = g * d_pad * 4 + g * gram_lanes * 4
    est = 2 * 2 * tile_in + 2 * tile_out
    vmem_limit = int(min(max(2 * est, 16 * 1024 * 1024), 60 * 1024 * 1024))

    return pl.pallas_call(
        kernel,
        out_shape=(
            jax.ShapeDtypeStruct((n_pad, d_pad), jnp.float32),       # centroids
            jax.ShapeDtypeStruct((n_pad, gram_lanes), jnp.float32),  # local Grams
        ),
        grid_spec=pltpu.PrefetchScalarGridSpec(
            num_scalar_prefetch=0,
            grid=grid,
            in_specs=[
                pl.BlockSpec((n_aug, g, d_pad), lambda i: (0, i, 0)),
                pl.BlockSpec((n_aug, g, d_pad), lambda i: (0, i, 0)),
            ],
            out_specs=(
                pl.BlockSpec((g, d_pad), lambda i: (i, 0)),
                pl.BlockSpec((g, gram_lanes), lambda i: (i, 0)),
            ),
        ),
        compiler_params=pltpu.CompilerParams(
            dimension_semantics=("parallel",),
            vmem_limit_bytes=vmem_limit,
        ),
    )(z3, zm3)


def mmcr_momentum_loss(z, z_m, *, lambda_coeff: float, n_aug: int, tile_samples=None):
    b, d = z.shape
    assert b % n_aug == 0
    n = b // n_aug

    # bf16 ingest: halve HBM bytes on bandwidth-bound v5e/v6e; math stays f32
    # inside the kernel.  Any other dtype is cast to f32 for the DMA.
    if z.dtype == jnp.bfloat16 and z_m.dtype == jnp.bfloat16:
        in_dtype = jnp.bfloat16
    else:
        in_dtype = jnp.float32
    z_in = z.astype(in_dtype)
    zm_in = z_m.astype(in_dtype)

    d_pad = ((d + 127) // 128) * 128
    in_bytes = 2 if in_dtype == jnp.bfloat16 else 4

    g = _choose_tile_samples(n, n_aug, d_pad, in_bytes, tile_samples)
    n_pad = ((n + g - 1) // g) * g

    # Augmentation-major layout (n_aug, N_pad, D_pad): contiguous per-aug slabs
    # in the kernel (no stride-n_aug sublane gathers).  Zero-padded rows and
    # columns change nothing (zero norms -> zero normalized rows -> zero
    # centroid/Gram rows); padded samples are sliced off below.
    def to_aug_major(x):
        x = x.reshape(n, n_aug, d).transpose(1, 0, 2)
        return jnp.pad(x, ((0, 0), (0, n_pad - n), (0, d_pad - d)))

    z3 = to_aug_major(z_in)
    zm3 = to_aug_major(zm_in)

    gram_lanes = ((n_aug * n_aug + 127) // 128) * 128
    centroids, gram = _mmcr_pallas_core(z3, zm3, n_aug=n_aug, g=g, gram_lanes=gram_lanes)

    centroids = centroids[:n]               # drop padded samples
    gram = gram[:n, : n_aug * n_aug]        # drop padded samples + padded lanes

    # Local nuclear norms: svdvals(z_local) == sqrt(eigvals(z_local^T z_local)),
    # so N tiny symmetric (n_aug x n_aug) eigensolves replace batched SVDs.
    # TODO(synk): forward-equivalent only; if this loss is differentiated, the
    # sqrt(eigvalsh) backward is ill-behaved near zero/degenerate eigenvalues —
    # a custom VJP (or svdvals) would be preferable for training.
    if lambda_coeff == 0:
        local_nuc = jnp.float32(0.0)
    else:
        g_local = gram.reshape(n, n_aug, n_aug)
        evals = jnp.linalg.eigvalsh(g_local)
        local_nuc = jnp.sum(jnp.sqrt(jnp.maximum(evals, 0.0)))

    # Zero (rather than drop) rows with non-finite centroids: zero rows add
    # zero singular values, and the loss stays jax.jit-traceable.
    selected = jnp.all(jnp.isfinite(centroids), axis=1, keepdims=True)
    centroids = jnp.where(selected, centroids, 0.0)

    # TODO(synk): torch.linalg.svdvals has no Pallas equivalent; the small
    # (N, D_pad) global SVD stays in plain XLA.  The distributed all_gather
    # branch is not implemented (single-device path only).
    global_nuc = jnp.sum(jnp.linalg.svd(centroids, compute_uv=False))

    # z_local.size(0) == N in the single-device (non-distributed) path.
    return -1.0 * global_nuc + lambda_coeff * local_nuc / n


def _reference_loss(z, z_m, *, lambda_coeff: float, n_aug: int):
    # Pure-JAX reference mirroring the PyTorch forward (single device).
    eps = 1e-12
    b, d = z.shape
    n = b // n_aug
    zn = z / jnp.maximum(jnp.linalg.norm(z, axis=-1, keepdims=True), eps)
    zmn = z_m / jnp.maximum(jnp.linalg.norm(z_m, axis=-1, keepdims=True), eps)
    z_local = jnp.transpose(zn.reshape(n, n_aug, d), (0, 2, 1))
    z_m_local = jnp.transpose(zmn.reshape(n, n_aug, d), (0, 2, 1))
    if lambda_coeff == 0:
        local_nuc = jnp.float32(0.0)
    else:
        local_nuc = jnp.linalg.svd(z_local, compute_uv=False).sum()
    centroids = 0.5 * (jnp.mean(z_local, axis=-1) + jnp.mean(z_m_local, axis=-1))
    selected = jnp.all(jnp.isfinite(centroids), axis=1, keepdims=True)
    centroids = jnp.where(selected, centroids, 0.0)
    global_nuc = jnp.linalg.svd(centroids, compute_uv=False).sum()
    return -1.0 * global_nuc + lambda_coeff * local_nuc / n


if __name__ == "__main__":
    # Module config (deterministic, no learnable parameters in this module).
    lambda_coeff = 0.005
    n_aug = 4

    # Small shapes: N=16 samples x n_aug=4 augs -> B=64 rows, D=48 features
    # (D pads to 128; the auto tile picker gives g=8 samples/step -> 2 grid steps).
    N, D = 16, 48
    B = N * n_aug

    key = jax.random.PRNGKey(0)
    k1, k2 = jax.random.split(key)
    z = jax.random.normal(k1, (B, D), dtype=jnp.float32)
    z_m = jax.random.normal(k2, (B, D), dtype=jnp.float32)

    loss_fn = jax.jit(
        functools.partial(mmcr_momentum_loss, lambda_coeff=lambda_coeff, n_aug=n_aug)
    )
    loss = jax.block_until_ready(loss_fn(z, z_m))

    ref = jax.block_until_ready(
        _reference_loss(z, z_m, lambda_coeff=lambda_coeff, n_aug=n_aug)
    )
    assert jnp.isfinite(loss), "loss is not finite"
    assert jnp.allclose(loss, ref, rtol=1e-4, atol=1e-4), (loss, ref)

    # bf16-ingest smoke test (half the HBM bytes on v5e/v6e; f32 in-kernel math).
    loss_bf16 = jax.block_until_ready(
        loss_fn(z.astype(jnp.bfloat16), z_m.astype(jnp.bfloat16))
    )
    assert jnp.isfinite(loss_bf16), "bf16-ingest loss is not finite"

    print("KERNEL_OK")
</pallas_src>

<mosaic_0001>
module attributes {stable_mosaic.version = 11 : i64} {
  func.func @kernel(%arg0: i32, %arg1: memref<4x8x128xf32, #tpu.memory_space<vmem>>, %arg2: memref<4x8x128xf32, #tpu.memory_space<vmem>>, %arg3: memref<8x128xf32, #tpu.memory_space<vmem>>, %arg4: memref<8x128xf32, #tpu.memory_space<vmem>>) attributes {dimension_semantics = [#tpu.dimension_semantics<parallel>], iteration_bounds = array<i64: 2>, scalar_prefetch = 0 : i64, scratch_operands = 0 : i64, tpu.core_type = #tpu.core_type<tc>, window_params = [{transform_indices = @transform_0, window_bounds = array<i64: 4, 8, 128>}, {transform_indices = @transform_1, window_bounds = array<i64: 4, 8, 128>}, {transform_indices = @transform_2, window_bounds = array<i64: 8, 128>}, {transform_indices = @transform_3, window_bounds = array<i64: 8, 128>}]} {
    %c0 = arith.constant 0 : index
    %c0_0 = arith.constant 0 : index
    %c0_1 = arith.constant 0 : index
    %0 = vector.load %arg1[%c0, %c0_0, %c0_1] : memref<4x8x128xf32, #tpu.memory_space<vmem>>, vector<1x8x128xf32>
    %1 = vector.shape_cast %0 : vector<1x8x128xf32> to vector<8x128xf32>
    %c0_2 = arith.constant 0 : index
    %c0_3 = arith.constant 0 : index
    %c0_4 = arith.constant 0 : index
    %2 = vector.load %arg2[%c0_2, %c0_3, %c0_4] : memref<4x8x128xf32, #tpu.memory_space<vmem>>, vector<1x8x128xf32>
    %3 = vector.shape_cast %2 : vector<1x8x128xf32> to vector<8x128xf32>
    %4 = arith.mulf %1, %1 : vector<8x128xf32>
    %cst = arith.constant dense<0.000000e+00> : vector<8xf32>
    %5 = vector.multi_reduction <add>, %4, %cst [1] : vector<8x128xf32> to vector<8xf32>
    %6 = vector.shape_cast %5 : vector<8xf32> to vector<8x1xf32>
    %cst_5 = arith.constant 1.000000e-24 : f32
    %7 = vector.broadcast %cst_5 : f32 to vector<8x1xf32>
    %8 = arith.maximumf %6, %7 : vector<8x1xf32>
    %9 = math.rsqrt %8 : vector<8x1xf32>
    %10 = arith.mulf %3, %3 : vector<8x128xf32>
    %cst_6 = arith.constant dense<0.000000e+00> : vector<8xf32>
    %11 = vector.multi_reduction <add>, %10, %cst_6 [1] : vector<8x128xf32> to vector<8xf32>
    %12 = vector.shape_cast %11 : vector<8xf32> to vector<8x1xf32>
    %cst_7 = arith.constant 1.000000e-24 : f32
    %13 = vector.broadcast %cst_7 : f32 to vector<8x1xf32>
    %14 = arith.maximumf %12, %13 : vector<8x1xf32>
    %15 = math.rsqrt %14 : vector<8x1xf32>
    %16 = vector.broadcast %9 : vector<8x1xf32> to vector<8x128xf32>
    %17 = arith.mulf %1, %16 : vector<8x128xf32>
    %18 = vector.broadcast %15 : vector<8x1xf32> to vector<8x128xf32>
    %19 = arith.mulf %3, %18 : vector<8x128xf32>
    %20 = arith.addf %17, %19 : vector<8x128xf32>
    %c1 = arith.constant 1 : index
    %c0_8 = arith.constant 0 : index
    %c0_9 = arith.constant 0 : index
    %21 = vector.load %arg1[%c1, %c0_8, %c0_9] : memref<4x8x128xf32, #tpu.memory_space<vmem>>, vector<1x8x128xf32>
    %22 = vector.shape_cast %21 : vector<1x8x128xf32> to vector<8x128xf32>
    %c1_10 = arith.constant 1 : index
    %c0_11 = arith.constant 0 : index
    %c0_12 = arith.constant 0 : index
    %23 = vector.load %arg2[%c1_10, %c0_11, %c0_12] : memref<4x8x128xf32, #tpu.memory_space<vmem>>, vector<1x8x128xf32>
    %24 = vector.shape_cast %23 : vector<1x8x128xf32> to vector<8x128xf32>
    %25 = arith.mulf %22, %22 : vector<8x128xf32>
    %cst_13 = arith.constant dense<0.000000e+00> : vector<8xf32>
    %26 = vector.multi_reduction <add>, %25, %cst_13 [1] : vector<8x128xf32> to vector<8xf32>
    %27 = vector.shape_cast %26 : vector<8xf32> to vector<8x1xf32>
    %cst_14 = arith.constant 1.000000e-24 : f32
    %28 = vector.broadcast %cst_14 : f32 to vector<8x1xf32>
    %29 = arith.maximumf %27, %28 : vector<8x1xf32>
    %30 = math.rsqrt %29 : vector<8x1xf32>
    %31 = arith.mulf %24, %24 : vector<8x128xf32>
    %cst_15 = arith.constant dense<0.000000e+00> : vector<8xf32>
    %32 = vector.multi_reduction <add>, %31, %cst_15 [1] : vector<8x128xf32> to vector<8xf32>
    %33 = vector.shape_cast %32 : vector<8xf32> to vector<8x1xf32>
    %cst_16 = arith.constant 1.000000e-24 : f32
    %34 = vector.broadcast %cst_16 : f32 to vector<8x1xf32>
    %35 = arith.maximumf %33, %34 : vector<8x1xf32>
    %36 = math.rsqrt %35 : vector<8x1xf32>
    %37 = vector.broadcast %30 : vector<8x1xf32> to vector<8x128xf32>
    %38 = arith.mulf %22, %37 : vector<8x128xf32>
    %39 = vector.broadcast %36 : vector<8x1xf32> to vector<8x128xf32>
    %40 = arith.mulf %24, %39 : vector<8x128xf32>
    %41 = arith.addf %38, %40 : vector<8x128xf32>
    %42 = arith.addf %20, %41 : vector<8x128xf32>
    %c2 = arith.constant 2 : index
    %c0_17 = arith.constant 0 : index
    %c0_18 = arith.constant 0 : index
    %43 = vector.load %arg1[%c2, %c0_17, %c0_18] : memref<4x8x128xf32, #tpu.memory_space<vmem>>, vector<1x8x128xf32>
    %44 = vector.shape_cast %43 : vector<1x8x128xf32> to vector<8x128xf32>
    %c2_19 = arith.constant 2 : index
    %c0_20 = arith.constant 0 : index
    %c0_21 = arith.constant 0 : index
    %45 = vector.load %arg2[%c2_19, %c0_20, %c0_21] : memref<4x8x128xf32, #tpu.memory_space<vmem>>, vector<1x8x128xf32>
    %46 = vector.shape_cast %45 : vector<1x8x128xf32> to vector<8x128xf32>
    %47 = arith.mulf %44, %44 : vector<8x128xf32>
    %cst_22 = arith.constant dense<0.000000e+00> : vector<8xf32>
    %48 = vector.multi_reduction <add>, %47, %cst_22 [1] : vector<8x128xf32> to vector<8xf32>
    %49 = vector.shape_cast %48 : vector<8xf32> to vector<8x1xf32>
    %cst_23 = arith.constant 1.000000e-24 : f32
    %50 = vector.broadcast %cst_23 : f32 to vector<8x1xf32>
    %51 = arith.maximumf %49, %50 : vector<8x1xf32>
    %52 = math.rsqrt %51 : vector<8x1xf32>
    %53 = arith.mulf %46, %46 : vector<8x128xf32>
    %cst_24 = arith.constant dense<0.000000e+00> : vector<8xf32>
    %54 = vector.multi_reduction <add>, %53, %cst_24 [1] : vector<8x128xf32> to vector<8xf32>
    %55 = vector.shape_cast %54 : vector<8xf32> to vector<8x1xf32>
    %cst_25 = arith.constant 1.000000e-24 : f32
    %56 = vector.broadcast %cst_25 : f32 to vector<8x1xf32>
    %57 = arith.maximumf %55, %56 : vector<8x1xf32>
    %58 = math.rsqrt %57 : vector<8x1xf32>
    %59 = vector.broadcast %52 : vector<8x1xf32> to vector<8x128xf32>
    %60 = arith.mulf %44, %59 : vector<8x128xf32>
    %61 = vector.broadcast %58 : vector<8x1xf32> to vector<8x128xf32>
    %62 = arith.mulf %46, %61 : vector<8x128xf32>
    %63 = arith.addf %60, %62 : vector<8x128xf32>
    %64 = arith.addf %42, %63 : vector<8x128xf32>
    %c3 = arith.constant 3 : index
    %c0_26 = arith.constant 0 : index
    %c0_27 = arith.constant 0 : index
    %65 = vector.load %arg1[%c3, %c0_26, %c0_27] : memref<4x8x128xf32, #tpu.memory_space<vmem>>, vector<1x8x128xf32>
    %66 = vector.shape_cast %65 : vector<1x8x128xf32> to vector<8x128xf32>
    %c3_28 = arith.constant 3 : index
    %c0_29 = arith.constant 0 : index
    %c0_30 = arith.constant 0 : index
    %67 = vector.load %arg2[%c3_28, %c0_29, %c0_30] : memref<4x8x128xf32, #tpu.memory_space<vmem>>, vector<1x8x128xf32>
    %68 = vector.shape_cast %67 : vector<1x8x128xf32> to vector<8x128xf32>
    %69 = arith.mulf %66, %66 : vector<8x128xf32>
    %cst_31 = arith.constant dense<0.000000e+00> : vector<8xf32>
    %70 = vector.multi_reduction <add>, %69, %cst_31 [1] : vector<8x128xf32> to vector<8xf32>
    %71 = vector.shape_cast %70 : vector<8xf32> to vector<8x1xf32>
    %cst_32 = arith.constant 1.000000e-24 : f32
    %72 = vector.broadcast %cst_32 : f32 to vector<8x1xf32>
    %73 = arith.maximumf %71, %72 : vector<8x1xf32>
    %74 = math.rsqrt %73 : vector<8x1xf32>
    %75 = arith.mulf %68, %68 : vector<8x128xf32>
    %cst_33 = arith.constant dense<0.000000e+00> : vector<8xf32>
    %76 = vector.multi_reduction <add>, %75, %cst_33 [1] : vector<8x128xf32> to vector<8xf32>
    %77 = vector.shape_cast %76 : vector<8xf32> to vector<8x1xf32>
    %cst_34 = arith.constant 1.000000e-24 : f32
    %78 = vector.broadcast %cst_34 : f32 to vector<8x1xf32>
    %79 = arith.maximumf %77, %78 : vector<8x1xf32>
    %80 = math.rsqrt %79 : vector<8x1xf32>
    %81 = vector.broadcast %74 : vector<8x1xf32> to vector<8x128xf32>
    %82 = arith.mulf %66, %81 : vector<8x128xf32>
    %83 = vector.broadcast %80 : vector<8x1xf32> to vector<8x128xf32>
    %84 = arith.mulf %68, %83 : vector<8x128xf32>
    %85 = arith.addf %82, %84 : vector<8x128xf32>
    %86 = arith.addf %64, %85 : vector<8x128xf32>
    %cst_35 = arith.constant 1.250000e-01 : f32
    %87 = vector.broadcast %cst_35 : f32 to vector<8x128xf32>
    %88 = arith.mulf %86, %87 : vector<8x128xf32>
    %c0_36 = arith.constant 0 : index
    %c0_37 = arith.constant 0 : index
    %89 = vector.load %arg3[%c0_36, %c0_37] : memref<8x128xf32, #tpu.memory_space<vmem>>, vector<8x128xf32>
    tpu.vector_store %arg3[%c0_36, %c0_37], %88 {strides = array<i32>} : memref<8x128xf32, #tpu.memory_space<vmem>>, vector<8x128xf32>,
    %c0_38 = arith.constant 0 : index
    %c0_39 = arith.constant 0 : index
    %c0_40 = arith.constant 0 : index
    %90 = vector.load %arg1[%c0_38, %c0_39, %c0_40] : memref<4x8x128xf32, #tpu.memory_space<vmem>>, vector<1x8x128xf32>
    %91 = vector.shape_cast %90 : vector<1x8x128xf32> to vector<8x128xf32>
    %92 = arith.mulf %91, %91 : vector<8x128xf32>
    %cst_41 = arith.constant dense<0.000000e+00> : vector<8xf32>
    %93 = vector.multi_reduction <add>, %92, %cst_41 [1] : vector<8x128xf32> to vector<8xf32>
    %94 = vector.shape_cast %93 : vector<8xf32> to vector<8x1xf32>
    %95 = arith.mulf %94, %9 : vector<8x1xf32>
    %96 = arith.mulf %95, %9 : vector<8x1xf32>
    %c1_42 = arith.constant 1 : index
    %c0_43 = arith.constant 0 : index
    %c0_44 = arith.constant 0 : index
    %97 = vector.load %arg1[%c1_42, %c0_43, %c0_44] : memref<4x8x128xf32, #tpu.memory_space<vmem>>, vector<1x8x128xf32>
    %98 = vector.shape_cast %97 : vector<1x8x128xf32> to vector<8x128xf32>
    %99 = arith.mulf %91, %98 : vector<8x128xf32>
    %cst_45 = arith.constant dense<0.000000e+00> : vector<8xf32>
    %100 = vector.multi_reduction <add>, %99, %cst_45 [1] : vector<8x128xf32> to vector<8xf32>
    %101 = vector.shape_cast %100 : vector<8xf32> to vector<8x1xf32>
    %102 = arith.mulf %101, %9 : vector<8x1xf32>
    %103 = arith.mulf %102, %30 : vector<8x1xf32>
    %c2_46 = arith.constant 2 : index
    %c0_47 = arith.constant 0 : index
    %c0_48 = arith.constant 0 : index
    %104 = vector.load %arg1[%c2_46, %c0_47, %c0_48] : memref<4x8x128xf32, #tpu.memory_space<vmem>>, vector<1x8x128xf32>
    %105 = vector.shape_cast %104 : vector<1x8x128xf32> to vector<8x128xf32>
    %106 = arith.mulf %91, %105 : vector<8x128xf32>
    %cst_49 = arith.constant dense<0.000000e+00> : vector<8xf32>
    %107 = vector.multi_reduction <add>, %106, %cst_49 [1] : vector<8x128xf32> to vector<8xf32>
    %108 = vector.shape_cast %107 : vector<8xf32> to vector<8x1xf32>
    %109 = arith.mulf %108, %9 : vector<8x1xf32>
    %110 = arith.mulf %109, %52 : vector<8x1xf32>
    %c3_50 = arith.constant 3 : index
    %c0_51 = arith.constant 0 : index
    %c0_52 = arith.constant 0 : index
    %111 = vector.load %arg1[%c3_50, %c0_51, %c0_52] : memref<4x8x128xf32, #tpu.memory_space<vmem>>, vector<1x8x128xf32>
    %112 = vector.shape_cast %111 : vector<1x8x128xf32> to vector<8x128xf32>
    %113 = arith.mulf %91, %112 : vector<8x128xf32>
    %cst_53 = arith.constant dense<0.000000e+00> : vector<8xf32>
    %114 = vector.multi_reduction <add>, %113, %cst_53 [1] : vector<8x128xf32> to vector<8xf32>
    %115 = vector.shape_cast %114 : vector<8xf32> to vector<8x1xf32>
    %116 = arith.mulf %115, %9 : vector<8x1xf32>
    %117 = arith.mulf %116, %74 : vector<8x1xf32>
    %c1_54 = arith.constant 1 : index
    %c0_55 = arith.constant 0 : index
    %c0_56 = arith.constant 0 : index
    %118 = vector.load %arg1[%c1_54, %c0_55, %c0_56] : memref<4x8x128xf32, #tpu.memory_space<vmem>>, vector<1x8x128xf32>
    %119 = vector.shape_cast %118 : vector<1x8x128xf32> to vector<8x128xf32>
    %120 = arith.mulf %119, %119 : vector<8x128xf32>
    %cst_57 = arith.constant dense<0.000000e+00> : vector<8xf32>
    %121 = vector.multi_reduction <add>, %120, %cst_57 [1] : vector<8x128xf32> to vector<8xf32>
    %122 = vector.shape_cast %121 : vector<8xf32> to vector<8x1xf32>
    %123 = arith.mulf %122, %30 : vector<8x1xf32>
    %124 = arith.mulf %123, %30 : vector<8x1xf32>
    %c2_58 = arith.constant 2 : index
    %c0_59 = arith.constant 0 : index
    %c0_60 = arith.constant 0 : index
    %125 = vector.load %arg1[%c2_58, %c0_59, %c0_60] : memref<4x8x128xf32, #tpu.memory_space<vmem>>, vector<1x8x128xf32>
    %126 = vector.shape_cast %125 : vector<1x8x128xf32> to vector<8x128xf32>
    %127 = arith.mulf %119, %126 : vector<8x128xf32>
    %cst_61 = arith.constant dense<0.000000e+00> : vector<8xf32>
    %128 = vector.multi_reduction <add>, %127, %cst_61 [1] : vector<8x128xf32> to vector<8xf32>
    %129 = vector.shape_cast %128 : vector<8xf32> to vector<8x1xf32>
    %130 = arith.mulf %129, %30 : vector<8x1xf32>
    %131 = arith.mulf %130, %52 : vector<8x1xf32>
    %c3_62 = arith.constant 3 : index
    %c0_63 = arith.constant 0 : index
    %c0_64 = arith.constant 0 : index
    %132 = vector.load %arg1[%c3_62, %c0_63, %c0_64] : memref<4x8x128xf32, #tpu.memory_space<vmem>>, vector<1x8x128xf32>
    %133 = vector.shape_cast %132 : vector<1x8x128xf32> to vector<8x128xf32>
    %134 = arith.mulf %119, %133 : vector<8x128xf32>
    %cst_65 = arith.constant dense<0.000000e+00> : vector<8xf32>
    %135 = vector.multi_reduction <add>, %134, %cst_65 [1] : vector<8x128xf32> to vector<8xf32>
    %136 = vector.shape_cast %135 : vector<8xf32> to vector<8x1xf32>
    %137 = arith.mulf %136, %30 : vector<8x1xf32>
    %138 = arith.mulf %137, %74 : vector<8x1xf32>
    %c2_66 = arith.constant 2 : index
    %c0_67 = arith.constant 0 : index
    %c0_68 = arith.constant 0 : index
    %139 = vector.load %arg1[%c2_66, %c0_67, %c0_68] : memref<4x8x128xf32, #tpu.memory_space<vmem>>, vector<1x8x128xf32>
    %140 = vector.shape_cast %139 : vector<1x8x128xf32> to vector<8x128xf32>
    %141 = arith.mulf %140, %140 : vector<8x128xf32>
    %cst_69 = arith.constant dense<0.000000e+00> : vector<8xf32>
    %142 = vector.multi_reduction <add>, %141, %cst_69 [1] : vector<8x128xf32> to vector<8xf32>
    %143 = vector.shape_cast %142 : vector<8xf32> to vector<8x1xf32>
    %144 = arith.mulf %143, %52 : vector<8x1xf32>
    %145 = arith.mulf %144, %52 : vector<8x1xf32>
    %c3_70 = arith.constant 3 : index
    %c0_71 = arith.constant 0 : index
    %c0_72 = arith.constant 0 : index
    %146 = vector.load %arg1[%c3_70, %c0_71, %c0_72] : memref<4x8x128xf32, #tpu.memory_space<vmem>>, vector<1x8x128xf32>
    %147 = vector.shape_cast %146 : vector<1x8x128xf32> to vector<8x128xf32>
    %148 = arith.mulf %140, %147 : vector<8x128xf32>
    %cst_73 = arith.constant dense<0.000000e+00> : vector<8xf32>
    %149 = vector.multi_reduction <add>, %148, %cst_73 [1] : vector<8x128xf32> to vector<8xf32>
    %150 = vector.shape_cast %149 : vector<8xf32> to vector<8x1xf32>
    %151 = arith.mulf %150, %52 : vector<8x1xf32>
    %152 = arith.mulf %151, %74 : vector<8x1xf32>
    %c3_74 = arith.constant 3 : index
    %c0_75 = arith.constant 0 : index
    %c0_76 = arith.constant 0 : index
    %153 = vector.load %arg1[%c3_74, %c0_75, %c0_76] : memref<4x8x128xf32, #tpu.memory_space<vmem>>, vector<1x8x128xf32>
    %154 = vector.shape_cast %153 : vector<1x8x128xf32> to vector<8x128xf32>
    %155 = arith.mulf %154, %154 : vector<8x128xf32>
    %cst_77 = arith.constant dense<0.000000e+00> : vector<8xf32>
    %156 = vector.multi_reduction <add>, %155, %cst_77 [1] : vector<8x128xf32> to vector<8xf32>
    %157 = vector.shape_cast %156 : vector<8xf32> to vector<8x1xf32>
    %158 = arith.mulf %157, %74 : vector<8x1xf32>
    %159 = arith.mulf %158, %74 : vector<8x1xf32>
    %cst_78 = arith.constant 0.000000e+00 : f32
    %160 = vector.broadcast %cst_78 : f32 to vector<8x112xf32>
    %161 = tpu.concatenate %96, %103, %110, %117, %103, %124, %131, %138, %110, %131, %145, %152, %117, %138, %152, %159 in 1 : vector<8x1xf32>, vector<8x1xf32>, vector<8x1xf32>, vector<8x1xf32>, vector<8x1xf32>, vector<8x1xf32>, vector<8x1xf32>, vector<8x1xf32>, vector<8x1xf32>, vector<8x1xf32>, vector<8x1xf32>, vector<8x1xf32>, vector<8x1xf32>, vector<8x1xf32>, vector<8x1xf32>, vector<8x1xf32> -> vector<8x16xf32>
    %162 = tpu.concatenate %161, %160 in 1 : vector<8x16xf32>, vector<8x112xf32> -> vector<8x128xf32>
    %c0_79 = arith.constant 0 : index
    %c0_80 = arith.constant 0 : index
    %163 = vector.load %arg4[%c0_79, %c0_80] : memref<8x128xf32, #tpu.memory_space<vmem>>, vector<8x128xf32>
    tpu.vector_store %arg4[%c0_79, %c0_80], %162 {strides = array<i32>} : memref<8x128xf32, #tpu.memory_space<vmem>>, vector<8x128xf32>,
    return
  }
  func.func @transform_0(%arg0: i32) -> (i32, i32, i32) {
    %c0_i32 = arith.constant 0 : i32
    %c0_i32_0 = arith.constant 0 : i32
    %c0_i32_1 = arith.constant 0 : i32
    return %c0_i32, %arg0, %c0_i32_0 : i32, i32, i32
  }
  func.func @transform_1(%arg0: i32) -> (i32, i32, i32) {
    %c0_i32 = arith.constant 0 : i32
    %c0_i32_0 = arith.constant 0 : i32
    %c0_i32_1 = arith.constant 0 : i32
    return %c0_i32, %arg0, %c0_i32_0 : i32, i32, i32
  }
  func.func @transform_2(%arg0: i32) -> (i32, i32) {
    %c0_i32 = arith.constant 0 : i32
    %c0_i32_0 = arith.constant 0 : i32
    return %arg0, %c0_i32 : i32, i32
  }
  func.func @transform_3(%arg0: i32) -> (i32, i32) {
    %c0_i32 = arith.constant 0 : i32
    %c0_i32_0 = arith.constant 0 : i32
    return %arg0, %c0_i32 : i32, i32
  }
}

</mosaic_0001>

<llo_original>
// kernel: custom-call.25
$region0: #{custom-call.25}
  %s0 = inlined_call_operand.vmem [shape: f32[128,16], index: 0, kind: input, shape index: {}]
  %s1 = inlined_call_operand.vmem [shape: f32[128,16], index: 1, kind: output, shape index: {0}]
  %s2 = inlined_call_operand.hbm [shape: f32[16], index: 2, kind: output, shape index: {1}]
  %3 = xla_tuple %s1, %s2
  $region1: #{custom-call.25} parent=0
    #allocation0 [shape = 'u8[65536]{0}', space=vmem, size = 0x10000, scoped, tag = 'operand span for operand 0']
    #allocation1 [shape = 'u8[65536]{0}', space=vmem, size = 0x10000, scoped, tag = 'operand span for operand 1']
    #allocation2 [shape = 'u8[4096]{0}', space=vmem, size = 0x1000, scoped, tag = 'operand span for operand 2']
    #allocation3 [shape = 'u8[512]{0}', space=vmem, size = 0x400, scoped, tag = 'packed  for operand 2']
    #allocation4 [shape = 's32[1]{0}', space=sflag, size = 0x4, scoped, tag = 'scoped memory for custom-call.25']
    #allocation5 [shape = 'f32[128,128]{1,0}', space=vmem, size = 0x10000, scoped, tag = 'scratch for Householder reflectors']
    %4 = vsyncpa [#allocation4], 0
    // Predicated region
    $region2: #{custom-call.25} parent=1 // pred_check
      _
    $region3: #{custom-call.25} parent=1 // pred_check_branch
      %6 = sbr.rel (0) target = $region5
    $region4: #{custom-call.25} parent=1 // pred_region
      // Predicated region
      $region6: #{custom-call.25} parent=4 // pred_check
        _
      $region7: #{custom-call.25} parent=4 // pred_check_branch
        %8 = sbr.rel (0) target = $region9
      $region8: #{custom-call.25} parent=4 // pred_region
        // Predicated region
        $region21: #{custom-call.25} parent=8 // pred_check
          _
        $region22: #{custom-call.25} parent=8 // pred_check_branch
          %54 = sbr.rel (0) target = $region24
        $region23: #{custom-call.25} parent=8 // pred_region
          loop: start=0, step=1, limit=1
          $region25: #{custom-call.25} parent=23 // loop_pre_header
            _
          $region26: #{custom-call.25} parent=23 // loop_header
            %s56 = sphi 0, %s60
            %p57 = scmp.ge.s32.totalorder %s56, 1
            %s61 = sphi %s0, %s0
            %s62 = sphi [#allocation0], [#allocation0]
          $region27: #{custom-call.25} parent=23 // loop_header_branch
            %59 = sbr.rel (%p57) target = $region31
          $region28: #{custom-call.25} parent=23 // loop_body
            %v63 = vld [vmem:[%s61] sm:$0xff]
            %64 = vst [vmem:[%s62] sm:$0xff] %v63
            %v65 = vld [vmem:[%s61 + $0x8] sm:$0xff]
            %66 = vst [vmem:[%s62 + $0x8] sm:$0xff] %v65
            %v67 = vld [vmem:[%s61 + $0x10] sm:$0xff]
            %68 = vst [vmem:[%s62 + $0x10] sm:$0xff] %v67
            %v69 = vld [vmem:[%s61 + $0x18] sm:$0xff]
            %70 = vst [vmem:[%s62 + $0x18] sm:$0xff] %v69
            %v71 = vld [vmem:[%s61 + $0x20] sm:$0xff]
            %72 = vst [vmem:[%s62 + $0x20] sm:$0xff] %v71
            %v73 = vld [vmem:[%s61 + $0x28] sm:$0xff]
            %74 = vst [vmem:[%s62 + $0x28] sm:$0xff] %v73
            %v75 = vld [vmem:[%s61 + $0x30] sm:$0xff]
            %76 = vst [vmem:[%s62 + $0x30] sm:$0xff] %v75
            %v77 = vld [vmem:[%s61 + $0x38] sm:$0xff]
            %78 = vst [vmem:[%s62 + $0x38] sm:$0xff] %v77
            %v79 = vld [vmem:[%s61 + $0x40] sm:$0xff]
            %80 = vst [vmem:[%s62 + $0x40] sm:$0xff] %v79
            %v81 = vld [vmem:[%s61 + $0x48] sm:$0xff]
            %82 = vst [vmem:[%s62 + $0x48] sm:$0xff] %v81
            %v83 = vld [vmem:[%s61 + $0x50] sm:$0xff]
            %84 = vst [vmem:[%s62 + $0x50] sm:$0xff] %v83
            %v85 = vld [vmem:[%s61 + $0x58] sm:$0xff]
            %86 = vst [vmem:[%s62 + $0x58] sm:$0xff] %v85
            %v87 = vld [vmem:[%s61 + $0x60] sm:$0xff]
            %88 = vst [vmem:[%s62 + $0x60] sm:$0xff] %v87
            %v89 = vld [vmem:[%s61 + $0x68] sm:$0xff]
            %90 = vst [vmem:[%s62 + $0x68] sm:$0xff] %v89
            %v91 = vld [vmem:[%s61 + $0x70] sm:$0xff]
            %92 = vst [vmem:[%s62 + $0x70] sm:$0xff] %v91
            %v93 = vld [vmem:[%s61 + $0x78] sm:$0xff]
            %94 = vst [vmem:[%s62 + $0x78] sm:$0xff] %v93
          $region29: #{custom-call.25} parent=23 // loop_footer
            %s60 = sadd.s32 1, %s56
          $region30: #{custom-call.25} parent=23 // loop_footer_branch
            %55 = sbr.rel target = $region26
          $region31: #{custom-call.25} parent=23 // loop_exit
            _
        $region24: #{custom-call.25} parent=8 // pred_fallthru
          _
        // Predicated region
        $region32: #{custom-call.25} parent=8 // pred_check
          _
        $region33: #{custom-call.25} parent=8 // pred_check_branch
          %96 = sbr.rel target = $region35
        $region34: #{custom-call.25} parent=8 // pred_region
          _
        $region35: #{custom-call.25} parent=8 // pred_fallthru
          _
      $region9: #{custom-call.25} parent=4 // pred_fallthru
        _
      // Predicated region
      $region10: #{custom-call.25} parent=4 // pred_check
        _
      $region11: #{custom-call.25} parent=4 // pred_check_branch
        %10 = sbr.rel target = $region13
      $region12: #{custom-call.25} parent=4 // pred_region
        %s12 = ssub.s32 256, 1
        loop: start=0, step=1, limit=1
        $region14: #{custom-call.25} parent=12 // loop_pre_header
          _
        $region15: #{custom-call.25} parent=12 // loop_header
          %s14 = sphi 0, %s18
          %p15 = scmp.ge.s32.totalorder %s14, 1
          %s19 = sphi %s0, %s0
          %s20 = sphi [#allocation0], [#allocation0]
        $region16: #{custom-call.25} parent=12 // loop_header_branch
          %17 = sbr.rel (%p15) target = $region20
        $region17: #{custom-call.25} parent=12 // loop_body
          %v21 = vld [vmem:[%s19] sm:%s12]
          %22 = vst [vmem:[%s20] sm:%s12] %v21
          %v23 = vld [vmem:[%s19 + $0x8] sm:%s12]
          %24 = vst [vmem:[%s20 + $0x8] sm:%s12] %v23
          %v25 = vld [vmem:[%s19 + $0x10] sm:%s12]
          %26 = vst [vmem:[%s20 + $0x10] sm:%s12] %v25
          %v27 = vld [vmem:[%s19 + $0x18] sm:%s12]
          %28 = vst [vmem:[%s20 + $0x18] sm:%s12] %v27
          %v29 = vld [vmem:[%s19 + $0x20] sm:%s12]
          %30 = vst [vmem:[%s20 + $0x20] sm:%s12] %v29
          %v31 = vld [vmem:[%s19 + $0x28] sm:%s12]
          %32 = vst [vmem:[%s20 + $0x28] sm:%s12] %v31
          %v33 = vld [vmem:[%s19 + $0x30] sm:%s12]
          %34 = vst [vmem:[%s20 + $0x30] sm:%s12] %v33
          %v35 = vld [vmem:[%s19 + $0x38] sm:%s12]
          %36 = vst [vmem:[%s20 + $0x38] sm:%s12] %v35
          %v37 = vld [vmem:[%s19 + $0x40] sm:%s12]
          %38 = vst [vmem:[%s20 + $0x40] sm:%s12] %v37
          %v39 = vld [vmem:[%s19 + $0x48] sm:%s12]
          %40 = vst [vmem:[%s20 + $0x48] sm:%s12] %v39
          %v41 = vld [vmem:[%s19 + $0x50] sm:%s12]
          %42 = vst [vmem:[%s20 + $0x50] sm:%s12] %v41
          %v43 = vld [vmem:[%s19 + $0x58] sm:%s12]
          %44 = vst [vmem:[%s20 + $0x58] sm:%s12] %v43
          %v45 = vld [vmem:[%s19 + $0x60] sm:%s12]
          %46 = vst [vmem:[%s20 + $0x60] sm:%s12] %v45
          %v47 = vld [vmem:[%s19 + $0x68] sm:%s12]
          %48 = vst [vmem:[%s20 + $0x68] sm:%s12] %v47
          %v49 = vld [vmem:[%s19 + $0x70] sm:%s12]
          %50 = vst [vmem:[%s20 + $0x70] sm:%s12] %v49
          %v51 = vld [vmem:[%s19 + $0x78] sm:%s12]
          %52 = vst [vmem:[%s20 + $0x78] sm:%s12] %v51
        $region18: #{custom-call.25} parent=12 // loop_footer
          %s18 = sadd.s32 1, %s14
        $region19: #{custom-call.25} parent=12 // loop_footer_branch
          %13 = sbr.rel target = $region15
        $region20: #{custom-call.25} parent=12 // loop_exit
          _
      $region13: #{custom-call.25} parent=4 // pred_fallthru
        _
    $region5: #{custom-call.25} parent=1 // pred_fallthru
      _
    %97 = vnop
    %v98 = vld [vmem:[#allocation0] sm:$0xff]
    %99 = vst [vmem:[#allocation1] sm:$0xff] %v98
    %s100 = scalar_lea.vmem [#allocation1], 8
    %s101 = scalar_lea.vmem [#allocation0], 8
    %v102 = vld [vmem:[%s101] sm:$0xff]
    %103 = vst [vmem:[%s100] sm:$0xff] %v102
    %s104 = scalar_lea.vmem [#allocation1], 16
    %s105 = scalar_lea.vmem [#allocation0], 16
    %v106 = vld [vmem:[%s105] sm:$0xff]
    %107 = vst [vmem:[%s104] sm:$0xff] %v106
    %s108 = scalar_lea.vmem [#allocation1], 24
    %s109 = scalar_lea.vmem [#allocation0], 24
    %v110 = vld [vmem:[%s109] sm:$0xff]
    %111 = vst [vmem:[%s108] sm:$0xff] %v110
    %s112 = scalar_lea.vmem [#allocation1], 32
    %s113 = scalar_lea.vmem [#allocation0], 32
    %v114 = vld [vmem:[%s113] sm:$0xff]
    %115 = vst [vmem:[%s112] sm:$0xff] %v114
    %s116 = scalar_lea.vmem [#allocation1], 40
    %s117 = scalar_lea.vmem [#allocation0], 40
    %v118 = vld [vmem:[%s117] sm:$0xff]
    %119 = vst [vmem:[%s116] sm:$0xff] %v118
    %s120 = scalar_lea.vmem [#allocation1], 48
    %s121 = scalar_lea.vmem [#allocation0], 48
    %v122 = vld [vmem:[%s121] sm:$0xff]
    %123 = vst [vmem:[%s120] sm:$0xff] %v122
    %s124 = scalar_lea.vmem [#allocation1], 56
    %s125 = scalar_lea.vmem [#allocation0], 56
    %v126 = vld [vmem:[%s125] sm:$0xff]
    %127 = vst [vmem:[%s124] sm:$0xff] %v126
    %s128 = scalar_lea.vmem [#allocation1], 64
    %s129 = scalar_lea.vmem [#allocation0], 64
    %v130 = vld [vmem:[%s129] sm:$0xff]
    %131 = vst [vmem:[%s128] sm:$0xff] %v130
    %s132 = scalar_lea.vmem [#allocation1], 72
    %s133 = scalar_lea.vmem [#allocation0], 72
    %v134 = vld [vmem:[%s133] sm:$0xff]
    %135 = vst [vmem:[%s132] sm:$0xff] %v134
    %s136 = scalar_lea.vmem [#allocation1], 80
    %s137 = scalar_lea.vmem [#allocation0], 80
    %v138 = vld [vmem:[%s137] sm:$0xff]
    %139 = vst [vmem:[%s136] sm:$0xff] %v138
    %s140 = scalar_lea.vmem [#allocation1], 88
    %s141 = scalar_lea.vmem [#allocation0], 88
    %v142 = vld [vmem:[%s141] sm:$0xff]
    %143 = vst [vmem:[%s140] sm:$0xff] %v142
    %s144 = scalar_lea.vmem [#allocation1], 96
    %s145 = scalar_lea.vmem [#allocation0], 96
    %v146 = vld [vmem:[%s145] sm:$0xff]
    %147 = vst [vmem:[%s144] sm:$0xff] %v146
    %s148 = scalar_lea.vmem [#allocation1], 104
    %s149 = scalar_lea.vmem [#allocation0], 104
    %v150 = vld [vmem:[%s149] sm:$0xff]
    %151 = vst [vmem:[%s148] sm:$0xff] %v150
    %s152 = scalar_lea.vmem [#allocation1], 112
    %s153 = scalar_lea.vmem [#allocation0], 112
    %v154 = vld [vmem:[%s153] sm:$0xff]
    %155 = vst [vmem:[%s152] sm:$0xff] %v154
    %s156 = scalar_lea.vmem [#allocation1], 120
    %s157 = scalar_lea.vmem [#allocation0], 120
    %v158 = vld [vmem:[%s157] sm:$0xff]
    %159 = vst [vmem:[%s156] sm:$0xff] %v158
    %160 = vst [vmem:[#allocation2] sm:$0x1] 0.0
    loop: start=0, step=1, limit=16
    $region36: #{custom-call.25} parent=1 // loop_pre_header
      _
    $region37: #{custom-call.25} parent=1 // loop_header
      %s162 = sphi 0, %s166
      %p163 = scmp.ge.s32.totalorder %s162, 16
    $region38: #{custom-call.25} parent=1 // loop_header_branch
      %165 = sbr.rel (%p163) target = $region42
    $region39: #{custom-call.25} parent=1 // loop_body
      %v167 = vld [vmem:[#allocation1] sm:$0xff]
      %v168 = vlaneseq
      %v169 = vshrl.u32 %v168, 7
      %v171 = vstv %s162
      %vm172 = vcmp.gt.s32.totalorder %v169, %v171
      %v173 = vsel %vm172, %v167, 0.0
      %v174 = vmul.f32 %v173, %v173
      %s175 = scalar_lea.vmem [#allocation1], 8
      %v176 = vld [vmem:[%s175] sm:$0xff]
      %v177 = vlaneseq
      %v178 = vshrl.u32 %v177, 7
      %v179 = vadd.s32 %v178, 8
      %v180 = vstv %s162
      %vm181 = vcmp.gt.s32.totalorder %v179, %v180
      %v182 = vsel %vm181, %v176, 0.0
      %v183 = vmul.f32 %v182, %v182
      %v184 = vadd.f32 %v174, %v183
      %s185 = scalar_lea.vmem [#allocation1], 16
      %v186 = vld [vmem:[%s185] sm:$0xff]
      %v187 = vlaneseq
      %v188 = vshrl.u32 %v187, 7
      %v189 = vadd.s32 %v188, 16
      %v190 = vstv %s162
      %vm191 = vcmp.gt.s32.totalorder %v189, %v190
      %v192 = vsel %vm191, %v186, 0.0
      %v193 = vmul.f32 %v192, %v192
      %v194 = vadd.f32 %v184, %v193
      %s195 = scalar_lea.vmem [#allocation1], 24
      %v196 = vld [vmem:[%s195] sm:$0xff]
      %v197 = vlaneseq
      %v198 = vshrl.u32 %v197, 7
      %v199 = vadd.s32 %v198, 24
      %v200 = vstv %s162
      %vm201 = vcmp.gt.s32.totalorder %v199, %v200
      %v202 = vsel %vm201, %v196, 0.0
      %v203 = vmul.f32 %v202, %v202
      %v204 = vadd.f32 %v194, %v203
      %s205 = scalar_lea.vmem [#allocation1], 32
      %v206 = vld [vmem:[%s205] sm:$0xff]
      %v207 = vlaneseq
      %v208 = vshrl.u32 %v207, 7
      %v209 = vadd.s32 %v208, 32
      %v210 = vstv %s162
      %vm211 = vcmp.gt.s32.totalorder %v209, %v210
      %v212 = vsel %vm211, %v206, 0.0
      %v213 = vmul.f32 %v212, %v212
      %v214 = vadd.f32 %v204, %v213
      %s215 = scalar_lea.vmem [#allocation1], 40
      %v216 = vld [vmem:[%s215] sm:$0xff]
      %v217 = vlaneseq
      %v218 = vshrl.u32 %v217, 7
      %v219 = vadd.s32 %v218, 40
      %v220 = vstv %s162
      %vm221 = vcmp.gt.s32.totalorder %v219, %v220
      %v222 = vsel %vm221, %v216, 0.0
      %v223 = vmul.f32 %v222, %v222
      %v224 = vadd.f32 %v214, %v223
      %s225 = scalar_lea.vmem [#allocation1], 48
      %v226 = vld [vmem:[%s225] sm:$0xff]
      %v227 = vlaneseq
      %v228 = vshrl.u32 %v227, 7
      %v229 = vadd.s32 %v228, 48
      %v230 = vstv %s162
      %vm231 = vcmp.gt.s32.totalorder %v229, %v230
      %v232 = vsel %vm231, %v226, 0.0
      %v233 = vmul.f32 %v232, %v232
      %v234 = vadd.f32 %v224, %v233
      %s235 = scalar_lea.vmem [#allocation1], 56
      %v236 = vld [vmem:[%s235] sm:$0xff]
      %v237 = vlaneseq
      %v238 = vshrl.u32 %v237, 7
      %v239 = vadd.s32 %v238, 56
      %v240 = vstv %s162
      %vm241 = vcmp.gt.s32.totalorder %v239, %v240
      %v242 = vsel %vm241, %v236, 0.0
      %v243 = vmul.f32 %v242, %v242
      %v244 = vadd.f32 %v234, %v243
      %s245 = scalar_lea.vmem [#allocation1], 64
      %v246 = vld [vmem:[%s245] sm:$0xff]
      %v247 = vlaneseq
      %v248 = vshrl.u32 %v247, 7
      %v249 = vadd.s32 %v248, 64
      %v250 = vstv %s162
      %vm251 = vcmp.gt.s32.totalorder %v249, %v250
      %v252 = vsel %vm251, %v246, 0.0
      %v253 = vmul.f32 %v252, %v252
      %v254 = vadd.f32 %v244, %v253
      %s255 = scalar_lea.vmem [#allocation1], 72
      %v256 = vld [vmem:[%s255] sm:$0xff]
      %v257 = vlaneseq
      %v258 = vshrl.u32 %v257, 7
      %v259 = vadd.s32 %v258, 72
      %v260 = vstv %s162
      %vm261 = vcmp.gt.s32.totalorder %v259, %v260
      %v262 = vsel %vm261, %v256, 0.0
      %v263 = vmul.f32 %v262, %v262
      %v264 = vadd.f32 %v254, %v263
      %s265 = scalar_lea.vmem [#allocation1], 80
      %v266 = vld [vmem:[%s265] sm:$0xff]
      %v267 = vlaneseq
      %v268 = vshrl.u32 %v267, 7
      %v269 = vadd.s32 %v268, 80
      %v270 = vstv %s162
      %vm271 = vcmp.gt.s32.totalorder %v269, %v270
      %v272 = vsel %vm271, %v266, 0.0
      %v273 = vmul.f32 %v272, %v272
      %v274 = vadd.f32 %v264, %v273
      %s275 = scalar_lea.vmem [#allocation1], 88
      %v276 = vld [vmem:[%s275] sm:$0xff]
      %v277 = vlaneseq
      %v278 = vshrl.u32 %v277, 7
      %v279 = vadd.s32 %v278, 88
      %v280 = vstv %s162
      %vm281 = vcmp.gt.s32.totalorder %v279, %v280
      %v282 = vsel %vm281, %v276, 0.0
      %v283 = vmul.f32 %v282, %v282
      %v284 = vadd.f32 %v274, %v283
      %s285 = scalar_lea.vmem [#allocation1], 96
      %v286 = vld [vmem:[%s285] sm:$0xff]
      %v287 = vlaneseq
      %v288 = vshrl.u32 %v287, 7
      %v289 = vadd.s32 %v288, 96
      %v290 = vstv %s162
      %vm291 = vcmp.gt.s32.totalorder %v289, %v290
      %v292 = vsel %vm291, %v286, 0.0
      %v293 = vmul.f32 %v292, %v292
      %v294 = vadd.f32 %v284, %v293
      %s295 = scalar_lea.vmem [#allocation1], 104
      %v296 = vld [vmem:[%s295] sm:$0xff]
      %v297 = vlaneseq
      %v298 = vshrl.u32 %v297, 7
      %v299 = vadd.s32 %v298, 104
      %v300 = vstv %s162
      %vm301 = vcmp.gt.s32.totalorder %v299, %v300
      %v302 = vsel %vm301, %v296, 0.0
      %v303 = vmul.f32 %v302, %v302
      %v304 = vadd.f32 %v294, %v303
      %s305 = scalar_lea.vmem [#allocation1], 112
      %v306 = vld [vmem:[%s305] sm:$0xff]
      %v307 = vlaneseq
      %v308 = vshrl.u32 %v307, 7
      %v309 = vadd.s32 %v308, 112
      %v310 = vstv %s162
      %vm311 = vcmp.gt.s32.totalorder %v309, %v310
      %v312 = vsel %vm311, %v306, 0.0
      %v313 = vmul.f32 %v312, %v312
      %v314 = vadd.f32 %v304, %v313
      %s315 = scalar_lea.vmem [#allocation1], 120
      %v316 = vld [vmem:[%s315] sm:$0xff]
      %v317 = vlaneseq
      %v318 = vshrl.u32 %v317, 7
      %v319 = vadd.s32 %v318, 120
      %v320 = vstv %s162
      %vm321 = vcmp.gt.s32.totalorder %v319, %v320
      %vm322 = vcmp.lt.s32.totalorder %v319, 128
      %vm323 = vmand %vm321, %vm322
      %v324 = vsel %vm323, %v316, 0.0
      %v325 = vmul.f32 %v324, %v324
      %v326 = vadd.f32 %v314, %v325
      %v327 = vrot.slane %v326, 4
      %v328 = vadd.f32 %v326, %v327
      %v329 = vrot.slane %v328, 2
      %v330 = vadd.f32 %v328, %v329
      %v331 = vrot.slane %v330, 1
      %v332 = vadd.f32 %v330, %v331
      %v333 = vrsqrt.pop %v332
      %v334 = vmul.f32 %v332, %v333
      %vm335 = vcmp.eq.f32.partialorder %v332, inf
      %v336 = vsel %vm335, %v332, %v334
      %vm337 = vcmp.eq.f32.partialorder %v332, 0.0
      %v338 = vand.u32 %v332, 2147483648
      %v339 = vsel %vm337, %v338, %v336
      %vm340 = vcmp.eq.f32.partialorder %v332, 0.0
      %s341 = sshrl.u32 %s162, 3
      %s342 = sand.u32 %s162, 7
      %s343 = smul.addr %s341, 8
      %s344 = sadd.s32 %s342, %s343
      %s345 = scalar_lea.vmem [#allocation1], %s344
      %v346 = vld [vmem:[%s345] ss:$0 sm:$0xff]
      %v347 = vand.u32 2147483647, %v346
      %v348 = vmax.f32 %v347, 0.0
      %v349 = vand.u32 2147483647, %v339
      %v350 = vmax.f32 %v348, %v349
      %v351 = vrcp.pop %v350
      %v352 = vmul.f32 %v347, %v351
      %v353 = vmul.f32 %v352, %v352
      %v354 = vrcp.pop %v350
      %v355 = vmul.f32 0.0, %v354
      %v356 = vmul.f32 %v355, %v355
      %v357 = vadd.f32 %v353, %v356
      %v358 = vrcp.pop %v350
      %v359 = vmul.f32 %v349, %v358
      %v360 = vmul.f32 %v359, %v359
      %v361 = vadd.f32 %v357, %v360
      %vm362 = vcmp.eq.f32.partialorder %v350, 0.0
      %v363 = vrsqrt.pop %v361
      %v364 = vmul.f32 %v361, %v363
      %vm365 = vcmp.eq.f32.partialorder %v361, inf
      %v366 = vsel %vm365, %v361, %v364
      %vm367 = vcmp.eq.f32.partialorder %v361, 0.0
      %v368 = vand.u32 %v361, 2147483648
      %v369 = vsel %vm367, %v368, %v366
      %v370 = vmul.f32 %v350, %v369
      %v371 = vsel %vm362, 0.0, %v370
      %vm372 = vcmp.lt.f32.partialorder %v346, 0.0
      %v373 = vxor.u32 %v371, 2147483648
      %v374 = vsel %vm372, %v371, %v373
      %v375 = vsub.f32 %v374, %v346
      %v376 = vrcp.pop %v374
      %v377 = vmul.f32 %v375, %v376
      %v378 = vsel %vm340, %v346, %v374
      %v379 = vsel %vm340, 0.0, %v377
      %v380 = vsub.f32 %v346, %v378
      %s381 = smov [#allocation1]
      %v382 = vlaneseq
      %v383 = vshrl.u32 %v382, 7
      %v384 = vmov %v383
      %v385 = vld [vmem:[%s381] sm:$0xff]
      %v387 = vstv %s162
      %vm388 = vcmp.gt.s32.totalorder %v384, %v387
      %v389 = vsel %vm388, %v385, 0.0
      %v390 = vrcp.pop %v380
      %v391 = vmul.f32 %v389, %v390
      %v392 = vsel %vm340, 0.0, %v391
      %v393 = vstv %s162
      %v394 = vlaneseq
      %v395 = vand.u32 %v394, 127
      %vm396 = vcmp.eq.s32.totalorder %v395, %v393
      %v397 = vsel %vm396, %v392, 0.0
      %398 = vadd.xlane.f32.xlu0 %v397
      %v399 = vpop.xlane.xlu0 %398
      %400 = vst [vmem:[#allocation5] sm:$0xff] %v399
      %s401 = scalar_lea.vmem %s381, 8
      %v402 = vld [vmem:[%s401] sm:$0xff]
      %v403 = vadd.s32 %v384, 8
      %v404 = vstv %s162
      %vm405 = vcmp.gt.s32.totalorder %v403, %v404
      %v406 = vsel %vm405, %v402, 0.0
      %v407 = vrcp.pop %v380
      %v408 = vmul.f32 %v406, %v407
      %v409 = vsel %vm340, 0.0, %v408
      %v410 = vstv %s162
      %v411 = vlaneseq
      %v412 = vand.u32 %v411, 127
      %vm413 = vcmp.eq.s32.totalorder %v412, %v410
      %v414 = vsel %vm413, %v409, 0.0
      %415 = vadd.xlane.f32.xlu0 %v414
      %v416 = vpop.xlane.xlu0 %415
      %s417 = scalar_lea.vmem [#allocation5], 8
      %418 = vst [vmem:[%s417] sm:$0xff] %v416
      %s419 = scalar_lea.vmem %s381, 16
      %v420 = vld [vmem:[%s419] sm:$0xff]
      %v421 = vadd.s32 %v384, 16
      %v422 = vstv %s162
      %vm423 = vcmp.gt.s32.totalorder %v421, %v422
      %v424 = vsel %vm423, %v420, 0.0
      %v425 = vrcp.pop %v380
      %v426 = vmul.f32 %v424, %v425
      %v427 = vsel %vm340, 0.0, %v426
      %v428 = vstv %s162
      %v429 = vlaneseq
      %v430 = vand.u32 %v429, 127
      %vm431 = vcmp.eq.s32.totalorder %v430, %v428
      %v432 = vsel %vm431, %v427, 0.0
      %433 = vadd.xlane.f32.xlu0 %v432
      %v434 = vpop.xlane.xlu0 %433
      %s435 = scalar_lea.vmem [#allocation5], 16
      %436 = vst [vmem:[%s435] sm:$0xff] %v434
      %s437 = scalar_lea.vmem %s381, 24
      %v438 = vld [vmem:[%s437] sm:$0xff]
      %v439 = vadd.s32 %v384, 24
      %v440 = vstv %s162
      %vm441 = vcmp.gt.s32.totalorder %v439, %v440
      %v442 = vsel %vm441, %v438, 0.0
      %v443 = vrcp.pop %v380
      %v444 = vmul.f32 %v442, %v443
      %v445 = vsel %vm340, 0.0, %v444
      %v446 = vstv %s162
      %v447 = vlaneseq
      %v448 = vand.u32 %v447, 127
      %vm449 = vcmp.eq.s32.totalorder %v448, %v446
      %v450 = vsel %vm449, %v445, 0.0
      %451 = vadd.xlane.f32.xlu0 %v450
      %v452 = vpop.xlane.xlu0 %451
      %s453 = scalar_lea.vmem [#allocation5], 24
      %454 = vst [vmem:[%s453] sm:$0xff] %v452
      %s455 = scalar_lea.vmem %s381, 32
      %v456 = vld [vmem:[%s455] sm:$0xff]
      %v457 = vadd.s32 %v384, 32
      %v458 = vstv %s162
      %vm459 = vcmp.gt.s32.totalorder %v457, %v458
      %v460 = vsel %vm459, %v456, 0.0
      %v461 = vrcp.pop %v380
      %v462 = vmul.f32 %v460, %v461
      %v463 = vsel %vm340, 0.0, %v462
      %v464 = vstv %s162
      %v465 = vlaneseq
      %v466 = vand.u32 %v465, 127
      %vm467 = vcmp.eq.s32.totalorder %v466, %v464
      %v468 = vsel %vm467, %v463, 0.0
      %469 = vadd.xlane.f32.xlu0 %v468
      %v470 = vpop.xlane.xlu0 %469
      %s471 = scalar_lea.vmem [#allocation5], 32
      %472 = vst [vmem:[%s471] sm:$0xff] %v470
      %s473 = scalar_lea.vmem %s381, 40
      %v474 = vld [vmem:[%s473] sm:$0xff]
      %v475 = vadd.s32 %v384, 40
      %v476 = vstv %s162
      %vm477 = vcmp.gt.s32.totalorder %v475, %v476
      %v478 = vsel %vm477, %v474, 0.0
      %v479 = vrcp.pop %v380
      %v480 = vmul.f32 %v478, %v479
      %v481 = vsel %vm340, 0.0, %v480
      %v482 = vstv %s162
      %v483 = vlaneseq
      %v484 = vand.u32 %v483, 127
      %vm485 = vcmp.eq.s32.totalorder %v484, %v482
      %v486 = vsel %vm485, %v481, 0.0
      %487 = vadd.xlane.f32.xlu0 %v486
      %v488 = vpop.xlane.xlu0 %487
      %s489 = scalar_lea.vmem [#allocation5], 40
      %490 = vst [vmem:[%s489] sm:$0xff] %v488
      %s491 = scalar_lea.vmem %s381, 48
      %v492 = vld [vmem:[%s491] sm:$0xff]
      %v493 = vadd.s32 %v384, 48
      %v494 = vstv %s162
      %vm495 = vcmp.gt.s32.totalorder %v493, %v494
      %v496 = vsel %vm495, %v492, 0.0
      %v497 = vrcp.pop %v380
      %v498 = vmul.f32 %v496, %v497
      %v499 = vsel %vm340, 0.0, %v498
      %v500 = vstv %s162
      %v501 = vlaneseq
      %v502 = vand.u32 %v501, 127
      %vm503 = vcmp.eq.s32.totalorder %v502, %v500
      %v504 = vsel %vm503, %v499, 0.0
      %505 = vadd.xlane.f32.xlu0 %v504
      %v506 = vpop.xlane.xlu0 %505
      %s507 = scalar_lea.vmem [#allocation5], 48
      %508 = vst [vmem:[%s507] sm:$0xff] %v506
      %s509 = scalar_lea.vmem %s381, 56
      %v510 = vld [vmem:[%s509] sm:$0xff]
      %v511 = vadd.s32 %v384, 56
      %v512 = vstv %s162
      %vm513 = vcmp.gt.s32.totalorder %v511, %v512
      %v514 = vsel %vm513, %v510, 0.0
      %v515 = vrcp.pop %v380
      %v516 = vmul.f32 %v514, %v515
      %v517 = vsel %vm340, 0.0, %v516
      %v518 = vstv %s162
      %v519 = vlaneseq
      %v520 = vand.u32 %v519, 127
      %vm521 = vcmp.eq.s32.totalorder %v520, %v518
      %v522 = vsel %vm521, %v517, 0.0
      %523 = vadd.xlane.f32.xlu0 %v522
      %v524 = vpop.xlane.xlu0 %523
      %s525 = scalar_lea.vmem [#allocation5], 56
      %526 = vst [vmem:[%s525] sm:$0xff] %v524
      %s527 = scalar_lea.vmem %s381, 64
      %v528 = vld [vmem:[%s527] sm:$0xff]
      %v529 = vadd.s32 %v384, 64
      %v530 = vstv %s162
      %vm531 = vcmp.gt.s32.totalorder %v529, %v530
      %v532 = vsel %vm531, %v528, 0.0
      %v533 = vrcp.pop %v380
      %v534 = vmul.f32 %v532, %v533
      %v535 = vsel %vm340, 0.0, %v534
      %v536 = vstv %s162
      %v537 = vlaneseq
      %v538 = vand.u32 %v537, 127
      %vm539 = vcmp.eq.s32.totalorder %v538, %v536
      %v540 = vsel %vm539, %v535, 0.0
      %541 = vadd.xlane.f32.xlu0 %v540
      %v542 = vpop.xlane.xlu0 %541
      %s543 = scalar_lea.vmem [#allocation5], 64
      %544 = vst [vmem:[%s543] sm:$0xff] %v542
      %s545 = scalar_lea.vmem %s381, 72
      %v546 = vld [vmem:[%s545] sm:$0xff]
      %v547 = vadd.s32 %v384, 72
      %v548 = vstv %s162
      %vm549 = vcmp.gt.s32.totalorder %v547, %v548
      %v550 = vsel %vm549, %v546, 0.0
      %v551 = vrcp.pop %v380
      %v552 = vmul.f32 %v550, %v551
      %v553 = vsel %vm340, 0.0, %v552
      %v554 = vstv %s162
      %v555 = vlaneseq
      %v556 = vand.u32 %v555, 127
      %vm557 = vcmp.eq.s32.totalorder %v556, %v554
      %v558 = vsel %vm557, %v553, 0.0
      %559 = vadd.xlane.f32.xlu0 %v558
      %v560 = vpop.xlane.xlu0 %559
      %s561 = scalar_lea.vmem [#allocation5], 72
      %562 = vst [vmem:[%s561] sm:$0xff] %v560
      %s563 = scalar_lea.vmem %s381, 80
      %v564 = vld [vmem:[%s563] sm:$0xff]
      %v565 = vadd.s32 %v384, 80
      %v566 = vstv %s162
      %vm567 = vcmp.gt.s32.totalorder %v565, %v566
      %v568 = vsel %vm567, %v564, 0.0
      %v569 = vrcp.pop %v380
      %v570 = vmul.f32 %v568, %v569
      %v571 = vsel %vm340, 0.0, %v570
      %v572 = vstv %s162
      %v573 = vlaneseq
      %v574 = vand.u32 %v573, 127
      %vm575 = vcmp.eq.s32.totalorder %v574, %v572
      %v576 = vsel %vm575, %v571, 0.0
      %577 = vadd.xlane.f32.xlu0 %v576
      %v578 = vpop.xlane.xlu0 %577
      %s579 = scalar_lea.vmem [#allocation5], 80
      %580 = vst [vmem:[%s579] sm:$0xff] %v578
      %s581 = scalar_lea.vmem %s381, 88
      %v582 = vld [vmem:[%s581] sm:$0xff]
      %v583 = vadd.s32 %v384, 88
      %v584 = vstv %s162
      %vm585 = vcmp.gt.s32.totalorder %v583, %v584
      %v586 = vsel %vm585, %v582, 0.0
      %v587 = vrcp.pop %v380
      %v588 = vmul.f32 %v586, %v587
      %v589 = vsel %vm340, 0.0, %v588
      %v590 = vstv %s162
      %v591 = vlaneseq
      %v592 = vand.u32 %v591, 127
      %vm593 = vcmp.eq.s32.totalorder %v592, %v590
      %v594 = vsel %vm593, %v589, 0.0
      %595 = vadd.xlane.f32.xlu0 %v594
      %v596 = vpop.xlane.xlu0 %595
      %s597 = scalar_lea.vmem [#allocation5], 88
      %598 = vst [vmem:[%s597] sm:$0xff] %v596
      %s599 = scalar_lea.vmem %s381, 96
      %v600 = vld [vmem:[%s599] sm:$0xff]
      %v601 = vadd.s32 %v384, 96
      %v602 = vstv %s162
      %vm603 = vcmp.gt.s32.totalorder %v601, %v602
      %v604 = vsel %vm603, %v600, 0.0
      %v605 = vrcp.pop %v380
      %v606 = vmul.f32 %v604, %v605
      %v607 = vsel %vm340, 0.0, %v606
      %v608 = vstv %s162
      %v609 = vlaneseq
      %v610 = vand.u32 %v609, 127
      %vm611 = vcmp.eq.s32.totalorder %v610, %v608
      %v612 = vsel %vm611, %v607, 0.0
      %613 = vadd.xlane.f32.xlu0 %v612
      %v614 = vpop.xlane.xlu0 %613
      %s615 = scalar_lea.vmem [#allocation5], 96
      %616 = vst [vmem:[%s615] sm:$0xff] %v614
      %s617 = scalar_lea.vmem %s381, 104
      %v618 = vld [vmem:[%s617] sm:$0xff]
      %v619 = vadd.s32 %v384, 104
      %v620 = vstv %s162
      %vm621 = vcmp.gt.s32.totalorder %v619, %v620
      %v622 = vsel %vm621, %v618, 0.0
      %v623 = vrcp.pop %v380
      %v624 = vmul.f32 %v622, %v623
      %v625 = vsel %vm340, 0.0, %v624
      %v626 = vstv %s162
      %v627 = vlaneseq
      %v628 = vand.u32 %v627, 127
      %vm629 = vcmp.eq.s32.totalorder %v628, %v626
      %v630 = vsel %vm629, %v625, 0.0
      %631 = vadd.xlane.f32.xlu0 %v630
      %v632 = vpop.xlane.xlu0 %631
      %s633 = scalar_lea.vmem [#allocation5], 104
      %634 = vst [vmem:[%s633] sm:$0xff] %v632
      %s635 = scalar_lea.vmem %s381, 112
      %v636 = vld [vmem:[%s635] sm:$0xff]
      %v637 = vadd.s32 %v384, 112
      %v638 = vstv %s162
      %vm639 = vcmp.gt.s32.totalorder %v637, %v638
      %v640 = vsel %vm639, %v636, 0.0
      %v641 = vrcp.pop %v380
      %v642 = vmul.f32 %v640, %v641
      %v643 = vsel %vm340, 0.0, %v642
      %v644 = vstv %s162
      %v645 = vlaneseq
      %v646 = vand.u32 %v645, 127
      %vm647 = vcmp.eq.s32.totalorder %v646, %v644
      %v648 = vsel %vm647, %v643, 0.0
      %649 = vadd.xlane.f32.xlu0 %v648
      %v650 = vpop.xlane.xlu0 %649
      %s651 = scalar_lea.vmem [#allocation5], 112
      %652 = vst [vmem:[%s651] sm:$0xff] %v650
      %s653 = scalar_lea.vmem %s381, 120
      %v654 = vld [vmem:[%s653] sm:$0xff]
      %v655 = vadd.s32 %v384, 120
      %v656 = vstv %s162
      %vm657 = vcmp.gt.s32.totalorder %v655, %v656
      %vm658 = vcmp.lt.s32.totalorder %v655, 128
      %vm659 = vmand %vm657, %vm658
      %v660 = vsel %vm659, %v654, 0.0
      %v661 = vrcp.pop %v380
      %v662 = vmul.f32 %v660, %v661
      %v663 = vsel %vm340, 0.0, %v662
      %v664 = vstv %s162
      %v665 = vlaneseq
      %v666 = vand.u32 %v665, 127
      %vm667 = vcmp.eq.s32.totalorder %v666, %v664
      %v668 = vsel %vm667, %v663, 0.0
      %669 = vadd.xlane.f32.xlu0 %v668
      %v670 = vpop.xlane.xlu0 %669
      %s671 = scalar_lea.vmem [#allocation5], 120
      %672 = vst [vmem:[%s671] sm:$0xff] %v670
      %s673 = scalar_lea.vmem [#allocation5], %s162
      %674 = vst [vmem:[%s673] sm:$0x1] 1.0
      %v675 = vstv %s162
      %v676 = vlaneseq
      %v677 = vand.u32 %v676, 127
      %vm678 = vcmp.eq.s32.totalorder %v677, %v675
      %v679 = vsel %vm678, %v379, 0.0
      %680 = vadd.xlane.f32.xlu0 %v679
      %v681 = vpop.xlane.xlu0 %680
      %v682 = vstv %s162
      %v683 = vlaneseq
      %v684 = vand.u32 %v683, 127
      %vm685 = vcmp.eq.s32.totalorder %v684, %v682
      %v686 = vld [vmem:[#allocation2] ss:$0 sm:$0xff]
      %v687 = vsel %vm685, %v681, %v686
      %688 = vst [vmem:[#allocation2] sm:$0x1] %v687
      %s689 = smov [#allocation1]
      %s690 = smov [#allocation5]
      %v691 = vlaneseq
      %v692 = vshrl.u32 %v691, 7
      %v693 = vmov %v692
      %v695 = vld [vmem:[%s690] sm:$0xff]
      %v696 = vld [vmem:[%s689] sm:$0xff]
      %v697 = vmul.f32 %v695, %v696
      %v698 = vadd.s32 %v693, 8
      %s699 = scalar_lea.vmem %s690, 8
      %v700 = vld [vmem:[%s699] sm:$0xff]
      %s701 = scalar_lea.vmem %s689, 8
      %v702 = vld [vmem:[%s701] sm:$0xff]
      %v703 = vmul.f32 %v700, %v702
      %v704 = vadd.f32 %v697, %v703
      %v705 = vadd.s32 %v693, 16
      %s706 = scalar_lea.vmem %s690, 16
      %v707 = vld [vmem:[%s706] sm:$0xff]
      %s708 = scalar_lea.vmem %s689, 16
      %v709 = vld [vmem:[%s708] sm:$0xff]
      %v710 = vmul.f32 %v707, %v709
      %v711 = vadd.f32 %v704, %v710
      %v712 = vadd.s32 %v693, 24
      %s713 = scalar_lea.vmem %s690, 24
      %v714 = vld [vmem:[%s713] sm:$0xff]
      %s715 = scalar_lea.vmem %s689, 24
      %v716 = vld [vmem:[%s715] sm:$0xff]
      %v717 = vmul.f32 %v714, %v716
      %v718 = vadd.f32 %v711, %v717
      %v719 = vadd.s32 %v693, 32
      %s720 = scalar_lea.vmem %s690, 32
      %v721 = vld [vmem:[%s720] sm:$0xff]
      %s722 = scalar_lea.vmem %s689, 32
      %v723 = vld [vmem:[%s722] sm:$0xff]
      %v724 = vmul.f32 %v721, %v723
      %v725 = vadd.f32 %v718, %v724
      %v726 = vadd.s32 %v693, 40
      %s727 = scalar_lea.vmem %s690, 40
      %v728 = vld [vmem:[%s727] sm:$0xff]
      %s729 = scalar_lea.vmem %s689, 40
      %v730 = vld [vmem:[%s729] sm:$0xff]
      %v731 = vmul.f32 %v728, %v730
      %v732 = vadd.f32 %v725, %v731
      %v733 = vadd.s32 %v693, 48
      %s734 = scalar_lea.vmem %s690, 48
      %v735 = vld [vmem:[%s734] sm:$0xff]
      %s736 = scalar_lea.vmem %s689, 48
      %v737 = vld [vmem:[%s736] sm:$0xff]
      %v738 = vmul.f32 %v735, %v737
      %v739 = vadd.f32 %v732, %v738
      %v740 = vadd.s32 %v693, 56
      %s741 = scalar_lea.vmem %s690, 56
      %v742 = vld [vmem:[%s741] sm:$0xff]
      %s743 = scalar_lea.vmem %s689, 56
      %v744 = vld [vmem:[%s743] sm:$0xff]
      %v745 = vmul.f32 %v742, %v744
      %v746 = vadd.f32 %v739, %v745
      %v747 = vadd.s32 %v693, 64
      %s748 = scalar_lea.vmem %s690, 64
      %v749 = vld [vmem:[%s748] sm:$0xff]
      %s750 = scalar_lea.vmem %s689, 64
      %v751 = vld [vmem:[%s750] sm:$0xff]
      %v752 = vmul.f32 %v749, %v751
      %v753 = vadd.f32 %v746, %v752
      %v754 = vadd.s32 %v693, 72
      %s755 = scalar_lea.vmem %s690, 72
      %v756 = vld [vmem:[%s755] sm:$0xff]
      %s757 = scalar_lea.vmem %s689, 72
      %v758 = vld [vmem:[%s757] sm:$0xff]
      %v759 = vmul.f32 %v756, %v758
      %v760 = vadd.f32 %v753, %v759
      %v761 = vadd.s32 %v693, 80
      %s762 = scalar_lea.vmem %s690, 80
      %v763 = vld [vmem:[%s762] sm:$0xff]
      %s764 = scalar_lea.vmem %s689, 80
      %v765 = vld [vmem:[%s764] sm:$0xff]
      %v766 = vmul.f32 %v763, %v765
      %v767 = vadd.f32 %v760, %v766
      %v768 = vadd.s32 %v693, 88
      %s769 = scalar_lea.vmem %s690, 88
      %v770 = vld [vmem:[%s769] sm:$0xff]
      %s771 = scalar_lea.vmem %s689, 88
      %v772 = vld [vmem:[%s771] sm:$0xff]
      %v773 = vmul.f32 %v770, %v772
      %v774 = vadd.f32 %v767, %v773
      %v775 = vadd.s32 %v693, 96
      %s776 = scalar_lea.vmem %s690, 96
      %v777 = vld [vmem:[%s776] sm:$0xff]
      %s778 = scalar_lea.vmem %s689, 96
      %v779 = vld [vmem:[%s778] sm:$0xff]
      %v780 = vmul.f32 %v777, %v779
      %v781 = vadd.f32 %v774, %v780
      %v782 = vadd.s32 %v693, 104
      %s783 = scalar_lea.vmem %s690, 104
      %v784 = vld [vmem:[%s783] sm:$0xff]
      %s785 = scalar_lea.vmem %s689, 104
      %v786 = vld [vmem:[%s785] sm:$0xff]
      %v787 = vmul.f32 %v784, %v786
      %v788 = vadd.f32 %v781, %v787
      %v789 = vadd.s32 %v693, 112
      %s790 = scalar_lea.vmem %s690, 112
      %v791 = vld [vmem:[%s790] sm:$0xff]
      %s792 = scalar_lea.vmem %s689, 112
      %v793 = vld [vmem:[%s792] sm:$0xff]
      %v794 = vmul.f32 %v791, %v793
      %v795 = vadd.f32 %v788, %v794
      %v796 = vadd.s32 %v693, 120
      %s797 = scalar_lea.vmem %s690, 120
      %v798 = vld [vmem:[%s797] sm:$0xff]
      %s799 = scalar_lea.vmem %s689, 120
      %v800 = vld [vmem:[%s799] sm:$0xff]
      %v801 = vmul.f32 %v798, %v800
      %vm802 = vcmp.lt.s32.totalorder %v796, 128
      %v803 = vsel %vm802, %v801, 0.0
      %v804 = vadd.f32 %v795, %v803
      %v805 = vrot.slane %v804, 4
      %v806 = vadd.f32 %v804, %v805
      %v807 = vrot.slane %v806, 2
      %v808 = vadd.f32 %v806, %v807
      %v809 = vrot.slane %v808, 1
      %v810 = vadd.f32 %v808, %v809
      %s811 = smov %s689
      %s812 = smov %s690
      %v813 = vlaneseq
      %v814 = vshrl.u32 %v813, 7
      %v815 = vmov %v814
      %v816 = vmul.f32 %v810, %v681
      %v818 = vlaneseq
      %v819 = vand.u32 %v818, 127
      %v820 = vld [vmem:[%s812] sm:$0xff]
      %v821 = vmul.f32 %v820, %v816
      %v822 = vld [vmem:[%s811] sm:$0xff]
      %v823 = vstv %s162
      %vm824 = vcmp.gt.s32.totalorder %v819, %v823
      %v825 = vsub.f32 %v822, %v821
      %v826 = vsel %vm824, %v825, %v822
      %v827 = vstv %s162
      %v828 = vlaneseq
      %v829 = vand.u32 %v828, 127
      %vm830 = vcmp.eq.s32.totalorder %v829, %v827
      %v831 = vstv %s162
      %vm832 = vcmp.ge.s32.totalorder %v815, %v831
      %vm833 = vmand %vm830, %vm832
      %v834 = vsel %vm833, %v820, %v826
      %835 = vst [vmem:[%s811] sm:$0xff] %v834
      %v836 = vadd.s32 %v815, 8
      %v837 = vlaneseq
      %v838 = vand.u32 %v837, 127
      %s839 = scalar_lea.vmem %s812, 8
      %v840 = vld [vmem:[%s839] sm:$0xff]
      %v841 = vmul.f32 %v840, %v816
      %s842 = scalar_lea.vmem %s811, 8
      %v843 = vld [vmem:[%s842] sm:$0xff]
      %v844 = vstv %s162
      %vm845 = vcmp.gt.s32.totalorder %v838, %v844
      %v846 = vsub.f32 %v843, %v841
      %v847 = vsel %vm845, %v846, %v843
      %v848 = vstv %s162
      %v849 = vlaneseq
      %v850 = vand.u32 %v849, 127
      %vm851 = vcmp.eq.s32.totalorder %v850, %v848
      %v852 = vstv %s162
      %vm853 = vcmp.ge.s32.totalorder %v836, %v852
      %vm854 = vmand %vm851, %vm853
      %v855 = vsel %vm854, %v840, %v847
      %856 = vst [vmem:[%s842] sm:$0xff] %v855
      %v857 = vadd.s32 %v815, 16
      %v858 = vlaneseq
      %v859 = vand.u32 %v858, 127
      %s860 = scalar_lea.vmem %s812, 16
      %v861 = vld [vmem:[%s860] sm:$0xff]
      %v862 = vmul.f32 %v861, %v816
      %s863 = scalar_lea.vmem %s811, 16
      %v864 = vld [vmem:[%s863] sm:$0xff]
      %v865 = vstv %s162
      %vm866 = vcmp.gt.s32.totalorder %v859, %v865
      %v867 = vsub.f32 %v864, %v862
      %v868 = vsel %vm866, %v867, %v864
      %v869 = vstv %s162
      %v870 = vlaneseq
      %v871 = vand.u32 %v870, 127
      %vm872 = vcmp.eq.s32.totalorder %v871, %v869
      %v873 = vstv %s162
      %vm874 = vcmp.ge.s32.totalorder %v857, %v873
      %vm875 = vmand %vm872, %vm874
      %v876 = vsel %vm875, %v861, %v868
      %877 = vst [vmem:[%s863] sm:$0xff] %v876
      %v878 = vadd.s32 %v815, 24
      %v879 = vlaneseq
      %v880 = vand.u32 %v879, 127
      %s881 = scalar_lea.vmem %s812, 24
      %v882 = vld [vmem:[%s881] sm:$0xff]
      %v883 = vmul.f32 %v882, %v816
      %s884 = scalar_lea.vmem %s811, 24
      %v885 = vld [vmem:[%s884] sm:$0xff]
      %v886 = vstv %s162
      %vm887 = vcmp.gt.s32.totalorder %v880, %v886
      %v888 = vsub.f32 %v885, %v883
      %v889 = vsel %vm887, %v888, %v885
      %v890 = vstv %s162
      %v891 = vlaneseq
      %v892 = vand.u32 %v891, 127
      %vm893 = vcmp.eq.s32.totalorder %v892, %v890
      %v894 = vstv %s162
      %vm895 = vcmp.ge.s32.totalorder %v878, %v894
      %vm896 = vmand %vm893, %vm895
      %v897 = vsel %vm896, %v882, %v889
      %898 = vst [vmem:[%s884] sm:$0xff] %v897
      %v899 = vadd.s32 %v815, 32
      %v900 = vlaneseq
      %v901 = vand.u32 %v900, 127
      %s902 = scalar_lea.vmem %s812, 32
      %v903 = vld [vmem:[%s902] sm:$0xff]
      %v904 = vmul.f32 %v903, %v816
      %s905 = scalar_lea.vmem %s811, 32
      %v906 = vld [vmem:[%s905] sm:$0xff]
      %v907 = vstv %s162
      %vm908 = vcmp.gt.s32.totalorder %v901, %v907
      %v909 = vsub.f32 %v906, %v904
      %v910 = vsel %vm908, %v909, %v906
      %v911 = vstv %s162
      %v912 = vlaneseq
      %v913 = vand.u32 %v912, 127
      %vm914 = vcmp.eq.s32.totalorder %v913, %v911
      %v915 = vstv %s162
      %vm916 = vcmp.ge.s32.totalorder %v899, %v915
      %vm917 = vmand %vm914, %vm916
      %v918 = vsel %vm917, %v903, %v910
      %919 = vst [vmem:[%s905] sm:$0xff] %v918
      %v920 = vadd.s32 %v815, 40
      %v921 = vlaneseq
      %v922 = vand.u32 %v921, 127
      %s923 = scalar_lea.vmem %s812, 40
      %v924 = vld [vmem:[%s923] sm:$0xff]
      %v925 = vmul.f32 %v924, %v816
      %s926 = scalar_lea.vmem %s811, 40
      %v927 = vld [vmem:[%s926] sm:$0xff]
      %v928 = vstv %s162
      %vm929 = vcmp.gt.s32.totalorder %v922, %v928
      %v930 = vsub.f32 %v927, %v925
      %v931 = vsel %vm929, %v930, %v927
      %v932 = vstv %s162
      %v933 = vlaneseq
      %v934 = vand.u32 %v933, 127
      %vm935 = vcmp.eq.s32.totalorder %v934, %v932
      %v936 = vstv %s162
      %vm937 = vcmp.ge.s32.totalorder %v920, %v936
      %vm938 = vmand %vm935, %vm937
      %v939 = vsel %vm938, %v924, %v931
      %940 = vst [vmem:[%s926] sm:$0xff] %v939
      %v941 = vadd.s32 %v815, 48
      %v942 = vlaneseq
      %v943 = vand.u32 %v942, 127
      %s944 = scalar_lea.vmem %s812, 48
      %v945 = vld [vmem:[%s944] sm:$0xff]
      %v946 = vmul.f32 %v945, %v816
      %s947 = scalar_lea.vmem %s811, 48
      %v948 = vld [vmem:[%s947] sm:$0xff]
      %v949 = vstv %s162
      %vm950 = vcmp.gt.s32.totalorder %v943, %v949
      %v951 = vsub.f32 %v948, %v946
      %v952 = vsel %vm950, %v951, %v948
      %v953 = vstv %s162
      %v954 = vlaneseq
      %v955 = vand.u32 %v954, 127
      %vm956 = vcmp.eq.s32.totalorder %v955, %v953
      %v957 = vstv %s162
      %vm958 = vcmp.ge.s32.totalorder %v941, %v957
      %vm959 = vmand %vm956, %vm958
      %v960 = vsel %vm959, %v945, %v952
      %961 = vst [vmem:[%s947] sm:$0xff] %v960
      %v962 = vadd.s32 %v815, 56
      %v963 = vlaneseq
      %v964 = vand.u32 %v963, 127
      %s965 = scalar_lea.vmem %s812, 56
      %v966 = vld [vmem:[%s965] sm:$0xff]
      %v967 = vmul.f32 %v966, %v816
      %s968 = scalar_lea.vmem %s811, 56
      %v969 = vld [vmem:[%s968] sm:$0xff]
      %v970 = vstv %s162
      %vm971 = vcmp.gt.s32.totalorder %v964, %v970
      %v972 = vsub.f32 %v969, %v967
      %v973 = vsel %vm971, %v972, %v969
      %v974 = vstv %s162
      %v975 = vlaneseq
      %v976 = vand.u32 %v975, 127
      %vm977 = vcmp.eq.s32.totalorder %v976, %v974
      %v978 = vstv %s162
      %vm979 = vcmp.ge.s32.totalorder %v962, %v978
      %vm980 = vmand %vm977, %vm979
      %v981 = vsel %vm980, %v966, %v973
      %982 = vst [vmem:[%s968] sm:$0xff] %v981
      %v983 = vadd.s32 %v815, 64
      %v984 = vlaneseq
      %v985 = vand.u32 %v984, 127
      %s986 = scalar_lea.vmem %s812, 64
      %v987 = vld [vmem:[%s986] sm:$0xff]
      %v988 = vmul.f32 %v987, %v816
      %s989 = scalar_lea.vmem %s811, 64
      %v990 = vld [vmem:[%s989] sm:$0xff]
      %v991 = vstv %s162
      %vm992 = vcmp.gt.s32.totalorder %v985, %v991
      %v993 = vsub.f32 %v990, %v988
      %v994 = vsel %vm992, %v993, %v990
      %v995 = vstv %s162
      %v996 = vlaneseq
      %v997 = vand.u32 %v996, 127
      %vm998 = vcmp.eq.s32.totalorder %v997, %v995
      %v999 = vstv %s162
      %vm1000 = vcmp.ge.s32.totalorder %v983, %v999
      %vm1001 = vmand %vm998, %vm1000
      %v1002 = vsel %vm1001, %v987, %v994
      %1003 = vst [vmem:[%s989] sm:$0xff] %v1002
      %v1004 = vadd.s32 %v815, 72
      %v1005 = vlaneseq
      %v1006 = vand.u32 %v1005, 127
      %s1007 = scalar_lea.vmem %s812, 72
      %v1008 = vld [vmem:[%s1007] sm:$0xff]
      %v1009 = vmul.f32 %v1008, %v816
      %s1010 = scalar_lea.vmem %s811, 72
      %v1011 = vld [vmem:[%s1010] sm:$0xff]
      %v1012 = vstv %s162
      %vm1013 = vcmp.gt.s32.totalorder %v1006, %v1012
      %v1014 = vsub.f32 %v1011, %v1009
      %v1015 = vsel %vm1013, %v1014, %v1011
      %v1016 = vstv %s162
      %v1017 = vlaneseq
      %v1018 = vand.u32 %v1017, 127
      %vm1019 = vcmp.eq.s32.totalorder %v1018, %v1016
      %v1020 = vstv %s162
      %vm1021 = vcmp.ge.s32.totalorder %v1004, %v1020
      %vm1022 = vmand %vm1019, %vm1021
      %v1023 = vsel %vm1022, %v1008, %v1015
      %1024 = vst [vmem:[%s1010] sm:$0xff] %v1023
      %v1025 = vadd.s32 %v815, 80
      %v1026 = vlaneseq
      %v1027 = vand.u32 %v1026, 127
      %s1028 = scalar_lea.vmem %s812, 80
      %v1029 = vld [vmem:[%s1028] sm:$0xff]
      %v1030 = vmul.f32 %v1029, %v816
      %s1031 = scalar_lea.vmem %s811, 80
      %v1032 = vld [vmem:[%s1031] sm:$0xff]
      %v1033 = vstv %s162
      %vm1034 = vcmp.gt.s32.totalorder %v1027, %v1033
      %v1035 = vsub.f32 %v1032, %v1030
      %v1036 = vsel %vm1034, %v1035, %v1032
      %v1037 = vstv %s162
      %v1038 = vlaneseq
      %v1039 = vand.u32 %v1038, 127
      %vm1040 = vcmp.eq.s32.totalorder %v1039, %v1037
      %v1041 = vstv %s162
      %vm1042 = vcmp.ge.s32.totalorder %v1025, %v1041
      %vm1043 = vmand %vm1040, %vm1042
      %v1044 = vsel %vm1043, %v1029, %v1036
      %1045 = vst [vmem:[%s1031] sm:$0xff] %v1044
      %v1046 = vadd.s32 %v815, 88
      %v1047 = vlaneseq
      %v1048 = vand.u32 %v1047, 127
      %s1049 = scalar_lea.vmem %s812, 88
      %v1050 = vld [vmem:[%s1049] sm:$0xff]
      %v1051 = vmul.f32 %v1050, %v816
      %s1052 = scalar_lea.vmem %s811, 88
      %v1053 = vld [vmem:[%s1052] sm:$0xff]
      %v1054 = vstv %s162
      %vm1055 = vcmp.gt.s32.totalorder %v1048, %v1054
      %v1056 = vsub.f32 %v1053, %v1051
      %v1057 = vsel %vm1055, %v1056, %v1053
      %v1058 = vstv %s162
      %v1059 = vlaneseq
      %v1060 = vand.u32 %v1059, 127
      %vm1061 = vcmp.eq.s32.totalorder %v1060, %v1058
      %v1062 = vstv %s162
      %vm1063 = vcmp.ge.s32.totalorder %v1046, %v1062
      %vm1064 = vmand %vm1061, %vm1063
      %v1065 = vsel %vm1064, %v1050, %v1057
      %1066 = vst [vmem:[%s1052] sm:$0xff] %v1065
      %v1067 = vadd.s32 %v815, 96
      %v1068 = vlaneseq
      %v1069 = vand.u32 %v1068, 127
      %s1070 = scalar_lea.vmem %s812, 96
      %v1071 = vld [vmem:[%s1070] sm:$0xff]
      %v1072 = vmul.f32 %v1071, %v816
      %s1073 = scalar_lea.vmem %s811, 96
      %v1074 = vld [vmem:[%s1073] sm:$0xff]
      %v1075 = vstv %s162
      %vm1076 = vcmp.gt.s32.totalorder %v1069, %v1075
      %v1077 = vsub.f32 %v1074, %v1072
      %v1078 = vsel %vm1076, %v1077, %v1074
      %v1079 = vstv %s162
      %v1080 = vlaneseq
      %v1081 = vand.u32 %v1080, 127
      %vm1082 = vcmp.eq.s32.totalorder %v1081, %v1079
      %v1083 = vstv %s162
      %vm1084 = vcmp.ge.s32.totalorder %v1067, %v1083
      %vm1085 = vmand %vm1082, %vm1084
      %v1086 = vsel %vm1085, %v1071, %v1078
      %1087 = vst [vmem:[%s1073] sm:$0xff] %v1086
      %v1088 = vadd.s32 %v815, 104
      %v1089 = vlaneseq
      %v1090 = vand.u32 %v1089, 127
      %s1091 = scalar_lea.vmem %s812, 104
      %v1092 = vld [vmem:[%s1091] sm:$0xff]
      %v1093 = vmul.f32 %v1092, %v816
      %s1094 = scalar_lea.vmem %s811, 104
      %v1095 = vld [vmem:[%s1094] sm:$0xff]
      %v1096 = vstv %s162
      %vm1097 = vcmp.gt.s32.totalorder %v1090, %v1096
      %v1098 = vsub.f32 %v1095, %v1093
      %v1099 = vsel %vm1097, %v1098, %v1095
      %v1100 = vstv %s162
      %v1101 = vlaneseq
      %v1102 = vand.u32 %v1101, 127
      %vm1103 = vcmp.eq.s32.totalorder %v1102, %v1100
      %v1104 = vstv %s162
      %vm1105 = vcmp.ge.s32.totalorder %v1088, %v1104
      %vm1106 = vmand %vm1103, %vm1105
      %v1107 = vsel %vm1106, %v1092, %v1099
      %1108 = vst [vmem:[%s1094] sm:$0xff] %v1107
      %v1109 = vadd.s32 %v815, 112
      %v1110 = vlaneseq
      %v1111 = vand.u32 %v1110, 127
      %s1112 = scalar_lea.vmem %s812, 112
      %v1113 = vld [vmem:[%s1112] sm:$0xff]
      %v1114 = vmul.f32 %v1113, %v816
      %s1115 = scalar_lea.vmem %s811, 112
      %v1116 = vld [vmem:[%s1115] sm:$0xff]
      %v1117 = vstv %s162
      %vm1118 = vcmp.gt.s32.totalorder %v1111, %v1117
      %v1119 = vsub.f32 %v1116, %v1114
      %v1120 = vsel %vm1118, %v1119, %v1116
      %v1121 = vstv %s162
      %v1122 = vlaneseq
      %v1123 = vand.u32 %v1122, 127
      %vm1124 = vcmp.eq.s32.totalorder %v1123, %v1121
      %v1125 = vstv %s162
      %vm1126 = vcmp.ge.s32.totalorder %v1109, %v1125
      %vm1127 = vmand %vm1124, %vm1126
      %v1128 = vsel %vm1127, %v1113, %v1120
      %1129 = vst [vmem:[%s1115] sm:$0xff] %v1128
      %v1130 = vadd.s32 %v815, 120
      %v1131 = vlaneseq
      %v1132 = vand.u32 %v1131, 127
      %s1133 = scalar_lea.vmem %s812, 120
      %v1134 = vld [vmem:[%s1133] sm:$0xff]
      %v1135 = vmul.f32 %v1134, %v816
      %s1136 = scalar_lea.vmem %s811, 120
      %v1137 = vld [vmem:[%s1136] sm:$0xff]
      %v1138 = vstv %s162
      %vm1139 = vcmp.gt.s32.totalorder %v1132, %v1138
      %v1140 = vsub.f32 %v1137, %v1135
      %v1141 = vsel %vm1139, %v1140, %v1137
      %v1142 = vstv %s162
      %v1143 = vlaneseq
      %v1144 = vand.u32 %v1143, 127
      %vm1145 = vcmp.eq.s32.totalorder %v1144, %v1142
      %v1146 = vstv %s162
      %vm1147 = vcmp.ge.s32.totalorder %v1130, %v1146
      %vm1148 = vmand %vm1145, %vm1147
      %v1149 = vsel %vm1148, %v1134, %v1141
      %1150 = vst [vmem:[%s1136] sm:$0xff] %v1149
      %s1151 = scalar_lea.vmem %s811, %s162
      %v1152 = vld [vmem:[%s1151] ss:$0 sm:$0xff]
      %v1153 = vstv %s162
      %v1154 = vlaneseq
      %v1155 = vand.u32 %v1154, 127
      %vm1156 = vcmp.eq.s32.totalorder %v1155, %v1153
      %v1157 = vsel %vm1156, %v378, %v1152
      %1158 = vst [vmem:[%s1151] sm:$0x1] %v1157
    $region40: #{custom-call.25} parent=1 // loop_footer
      %s166 = sadd.s32 1, %s162
    $region41: #{custom-call.25} parent=1 // loop_footer_branch
      %161 = sbr.rel target = $region37
    $region42: #{custom-call.25} parent=1 // loop_exit
      _
    %s1160 = sshll.u32 1, 1
    %s1161 = ssub.s32 %s1160, 1
    %v1163 = vld [vmem:[#allocation2] sm:%s1161]
    %s1164 = sshll.u32 1, 1
    %s1165 = ssub.s32 %s1164, 1
    %1166 = vst [vmem:[#allocation3] sm:%s1165] %v1163
    // Predicated region
    $region43: #{custom-call.25} parent=1 // pred_check
      _
    $region44: #{custom-call.25} parent=1 // pred_check_branch
      %1168 = sbr.rel (0) target = $region46
    $region45: #{custom-call.25} parent=1 // pred_region
      // Predicated region
      $region47: #{custom-call.25} parent=45 // pred_check
        _
      $region48: #{custom-call.25} parent=45 // pred_check_branch
        %1170 = sbr.rel (0) target = $region50
      $region49: #{custom-call.25} parent=45 // pred_region
        // Predicated region
        $region62: #{custom-call.25} parent=49 // pred_check
          _
        $region63: #{custom-call.25} parent=49 // pred_check_branch
          %1216 = sbr.rel (0) target = $region65
        $region64: #{custom-call.25} parent=49 // pred_region
          loop: start=0, step=1, limit=1
          $region66: #{custom-call.25} parent=64 // loop_pre_header
            _
          $region67: #{custom-call.25} parent=64 // loop_header
            %s1218 = sphi 0, %s1222
            %p1219 = scmp.ge.s32.totalorder %s1218, 1
            %s1223 = sphi [#allocation1], [#allocation1]
            %s1224 = sphi %s1, %s1
          $region68: #{custom-call.25} parent=64 // loop_header_branch
            %1221 = sbr.rel (%p1219) target = $region72
          $region69: #{custom-call.25} parent=64 // loop_body
            %v1225 = vld [vmem:[%s1223] sm:$0xff]
            %1226 = vst [vmem:[%s1224] sm:$0xff] %v1225
            %v1227 = vld [vmem:[%s1223 + $0x8] sm:$0xff]
            %1228 = vst [vmem:[%s1224 + $0x8] sm:$0xff] %v1227
            %v1229 = vld [vmem:[%s1223 + $0x10] sm:$0xff]
            %1230 = vst [vmem:[%s1224 + $0x10] sm:$0xff] %v1229
            %v1231 = vld [vmem:[%s1223 + $0x18] sm:$0xff]
            %1232 = vst [vmem:[%s1224 + $0x18] sm:$0xff] %v1231
            %v1233 = vld [vmem:[%s1223 + $0x20] sm:$0xff]
            %1234 = vst [vmem:[%s1224 + $0x20] sm:$0xff] %v1233
            %v1235 = vld [vmem:[%s1223 + $0x28] sm:$0xff]
            %1236 = vst [vmem:[%s1224 + $0x28] sm:$0xff] %v1235
            %v1237 = vld [vmem:[%s1223 + $0x30] sm:$0xff]
            %1238 = vst [vmem:[%s1224 + $0x30] sm:$0xff] %v1237
            %v1239 = vld [vmem:[%s1223 + $0x38] sm:$0xff]
            %1240 = vst [vmem:[%s1224 + $0x38] sm:$0xff] %v1239
            %v1241 = vld [vmem:[%s1223 + $0x40] sm:$0xff]
            %1242 = vst [vmem:[%s1224 + $0x40] sm:$0xff] %v1241
            %v1243 = vld [vmem:[%s1223 + $0x48] sm:$0xff]
            %1244 = vst [vmem:[%s1224 + $0x48] sm:$0xff] %v1243
            %v1245 = vld [vmem:[%s1223 + $0x50] sm:$0xff]
            %1246 = vst [vmem:[%s1224 + $0x50] sm:$0xff] %v1245
            %v1247 = vld [vmem:[%s1223 + $0x58] sm:$0xff]
            %1248 = vst [vmem:[%s1224 + $0x58] sm:$0xff] %v1247
            %v1249 = vld [vmem:[%s1223 + $0x60] sm:$0xff]
            %1250 = vst [vmem:[%s1224 + $0x60] sm:$0xff] %v1249
            %v1251 = vld [vmem:[%s1223 + $0x68] sm:$0xff]
            %1252 = vst [vmem:[%s1224 + $0x68] sm:$0xff] %v1251
            %v1253 = vld [vmem:[%s1223 + $0x70] sm:$0xff]
            %1254 = vst [vmem:[%s1224 + $0x70] sm:$0xff] %v1253
            %v1255 = vld [vmem:[%s1223 + $0x78] sm:$0xff]
            %1256 = vst [vmem:[%s1224 + $0x78] sm:$0xff] %v1255
          $region70: #{custom-call.25} parent=64 // loop_footer
            %s1222 = sadd.s32 1, %s1218
          $region71: #{custom-call.25} parent=64 // loop_footer_branch
            %1217 = sbr.rel target = $region67
          $region72: #{custom-call.25} parent=64 // loop_exit
            _
        $region65: #{custom-call.25} parent=49 // pred_fallthru
          _
        // Predicated region
        $region73: #{custom-call.25} parent=49 // pred_check
          _
        $region74: #{custom-call.25} parent=49 // pred_check_branch
          %1258 = sbr.rel target = $region76
        $region75: #{custom-call.25} parent=49 // pred_region
          _
        $region76: #{custom-call.25} parent=49 // pred_fallthru
          _
      $region50: #{custom-call.25} parent=45 // pred_fallthru
        _
      // Predicated region
      $region51: #{custom-call.25} parent=45 // pred_check
        _
      $region52: #{custom-call.25} parent=45 // pred_check_branch
        %1172 = sbr.rel target = $region54
      $region53: #{custom-call.25} parent=45 // pred_region
        %s1174 = ssub.s32 256, 1
        loop: start=0, step=1, limit=1
        $region55: #{custom-call.25} parent=53 // loop_pre_header
          _
        $region56: #{custom-call.25} parent=53 // loop_header
          %s1176 = sphi 0, %s1180
          %p1177 = scmp.ge.s32.totalorder %s1176, 1
          %s1181 = sphi [#allocation1], [#allocation1]
          %s1182 = sphi %s1, %s1
        $region57: #{custom-call.25} parent=53 // loop_header_branch
          %1179 = sbr.rel (%p1177) target = $region61
        $region58: #{custom-call.25} parent=53 // loop_body
          %v1183 = vld [vmem:[%s1181] sm:%s1174]
          %1184 = vst [vmem:[%s1182] sm:%s1174] %v1183
          %v1185 = vld [vmem:[%s1181 + $0x8] sm:%s1174]
          %1186 = vst [vmem:[%s1182 + $0x8] sm:%s1174] %v1185
          %v1187 = vld [vmem:[%s1181 + $0x10] sm:%s1174]
          %1188 = vst [vmem:[%s1182 + $0x10] sm:%s1174] %v1187
          %v1189 = vld [vmem:[%s1181 + $0x18] sm:%s1174]
          %1190 = vst [vmem:[%s1182 + $0x18] sm:%s1174] %v1189
          %v1191 = vld [vmem:[%s1181 + $0x20] sm:%s1174]
          %1192 = vst [vmem:[%s1182 + $0x20] sm:%s1174] %v1191
          %v1193 = vld [vmem:[%s1181 + $0x28] sm:%s1174]
          %1194 = vst [vmem:[%s1182 + $0x28] sm:%s1174] %v1193
          %v1195 = vld [vmem:[%s1181 + $0x30] sm:%s1174]
          %1196 = vst [vmem:[%s1182 + $0x30] sm:%s1174] %v1195
          %v1197 = vld [vmem:[%s1181 + $0x38] sm:%s1174]
          %1198 = vst [vmem:[%s1182 + $0x38] sm:%s1174] %v1197
          %v1199 = vld [vmem:[%s1181 + $0x40] sm:%s1174]
          %1200 = vst [vmem:[%s1182 + $0x40] sm:%s1174] %v1199
          %v1201 = vld [vmem:[%s1181 + $0x48] sm:%s1174]
          %1202 = vst [vmem:[%s1182 + $0x48] sm:%s1174] %v1201
          %v1203 = vld [vmem:[%s1181 + $0x50] sm:%s1174]
          %1204 = vst [vmem:[%s1182 + $0x50] sm:%s1174] %v1203
          %v1205 = vld [vmem:[%s1181 + $0x58] sm:%s1174]
          %1206 = vst [vmem:[%s1182 + $0x58] sm:%s1174] %v1205
          %v1207 = vld [vmem:[%s1181 + $0x60] sm:%s1174]
          %1208 = vst [vmem:[%s1182 + $0x60] sm:%s1174] %v1207
          %v1209 = vld [vmem:[%s1181 + $0x68] sm:%s1174]
          %1210 = vst [vmem:[%s1182 + $0x68] sm:%s1174] %v1209
          %v1211 = vld [vmem:[%s1181 + $0x70] sm:%s1174]
          %1212 = vst [vmem:[%s1182 + $0x70] sm:%s1174] %v1211
          %v1213 = vld [vmem:[%s1181 + $0x78] sm:%s1174]
          %1214 = vst [vmem:[%s1182 + $0x78] sm:%s1174] %v1213
        $region59: #{custom-call.25} parent=53 // loop_footer
          %s1180 = sadd.s32 1, %s1176
        $region60: #{custom-call.25} parent=53 // loop_footer_branch
          %1175 = sbr.rel target = $region56
        $region61: #{custom-call.25} parent=53 // loop_exit
          _
      $region54: #{custom-call.25} parent=45 // pred_fallthru
        _
    $region46: #{custom-call.25} parent=1 // pred_fallthru
      _
    %1259 = vnop
    // Predicated region
    $region77: #{custom-call.25} parent=1 // pred_check
      _
    $region78: #{custom-call.25} parent=1 // pred_check_branch
      %1261 = sbr.rel (0) target = $region80
    $region79: #{custom-call.25} parent=1 // pred_region
      %s1263 = ssub.s32 16, 16
      %1264 = vsyncadd [#allocation4], %s1263
      %s1266 = sshll.u32 [#allocation3], 4
      %s1267 = int_to_ptr.vmem [resolvable:$true] %s1266
      %1269 = dma.vmem_to_hbm [thread:$0]  %s1267, 16, %s2, [#allocation4]
    $region80: #{custom-call.25} parent=1 // pred_fallthru
      _
    // Predicated region
    $region81: #{custom-call.25} parent=1 // pred_check
      _
    $region82: #{custom-call.25} parent=1 // pred_check_branch
      %1271 = sbr.rel (0) target = $region84
    $region83: #{custom-call.25} parent=1 // pred_region
      %1272 = dma.done [#allocation4], 16
    $region84: #{custom-call.25} parent=1 // pred_fallthru
      _
    %1273 = vsyncpa [#allocation4], 1

// kernel: custom-call.62
$region0: #{custom-call.62}
  %s0 = inlined_call_operand.vmem [shape: f32[32,16], index: 0, kind: input, shape index: {}]
  %s1 = inlined_call_operand.vmem [shape: f32[32,16], index: 1, kind: output, shape index: {0}]
  %s2 = inlined_call_operand.vmem [shape: f32[16], index: 2, kind: output, shape index: {1}]
  %3 = xla_tuple %s1, %s2
  $region1: #{custom-call.62} parent=0
    #allocation0 [shape = 'u8[16384]{0}', space=vmem, size = 0x4000, scoped, tag = 'operand span for operand 0']
    #allocation1 [shape = 'u8[16384]{0}', space=vmem, size = 0x4000, scoped, tag = 'operand span for operand 1']
    #allocation2 [shape = 'u8[4096]{0}', space=vmem, size = 0x1000, scoped, tag = 'operand span for operand 2']
    #allocation3 [shape = 'u8[512]{0}', space=vmem, size = 0x400, scoped, tag = 'packed  for operand 2']
    #allocation4 [shape = 'f32[32,128]{1,0}', space=vmem, size = 0x4000, scoped, tag = 'scratch for Householder reflectors']
    // Predicated region
    $region2: #{custom-call.62} parent=1 // pred_check
      _
    $region3: #{custom-call.62} parent=1 // pred_check_branch
      %5 = sbr.rel (0) target = $region5
    $region4: #{custom-call.62} parent=1 // pred_region
      // Predicated region
      $region6: #{custom-call.62} parent=4 // pred_check
        _
      $region7: #{custom-call.62} parent=4 // pred_check_branch
        %7 = sbr.rel (0) target = $region9
      $region8: #{custom-call.62} parent=4 // pred_region
        // Predicated region
        $region21: #{custom-call.62} parent=8 // pred_check
          _
        $region22: #{custom-call.62} parent=8 // pred_check_branch
          %29 = sbr.rel (0) target = $region24
        $region23: #{custom-call.62} parent=8 // pred_region
          loop: start=0, step=1, limit=1
          $region25: #{custom-call.62} parent=23 // loop_pre_header
            _
          $region26: #{custom-call.62} parent=23 // loop_header
            %s31 = sphi 0, %s35
            %p32 = scmp.ge.s32.totalorder %s31, 1
            %s36 = sphi %s0, %s0
            %s37 = sphi [#allocation0], [#allocation0]
          $region27: #{custom-call.62} parent=23 // loop_header_branch
            %34 = sbr.rel (%p32) target = $region31
          $region28: #{custom-call.62} parent=23 // loop_body
            %v38 = vld [vmem:[%s36] sm:$0xff]
            %39 = vst [vmem:[%s37] sm:$0xff] %v38
            %v40 = vld [vmem:[%s36 + $0x8] sm:$0xff]
            %41 = vst [vmem:[%s37 + $0x8] sm:$0xff] %v40
            %v42 = vld [vmem:[%s36 + $0x10] sm:$0xff]
            %43 = vst [vmem:[%s37 + $0x10] sm:$0xff] %v42
            %v44 = vld [vmem:[%s36 + $0x18] sm:$0xff]
            %45 = vst [vmem:[%s37 + $0x18] sm:$0xff] %v44
          $region29: #{custom-call.62} parent=23 // loop_footer
            %s35 = sadd.s32 1, %s31
          $region30: #{custom-call.62} parent=23 // loop_footer_branch
            %30 = sbr.rel target = $region26
          $region31: #{custom-call.62} parent=23 // loop_exit
            _
        $region24: #{custom-call.62} parent=8 // pred_fallthru
          _
        // Predicated region
        $region32: #{custom-call.62} parent=8 // pred_check
          _
        $region33: #{custom-call.62} parent=8 // pred_check_branch
          %47 = sbr.rel target = $region35
        $region34: #{custom-call.62} parent=8 // pred_region
          _
        $region35: #{custom-call.62} parent=8 // pred_fallthru
          _
      $region9: #{custom-call.62} parent=4 // pred_fallthru
        _
      // Predicated region
      $region10: #{custom-call.62} parent=4 // pred_check
        _
      $region11: #{custom-call.62} parent=4 // pred_check_branch
        %9 = sbr.rel target = $region13
      $region12: #{custom-call.62} parent=4 // pred_region
        %s11 = ssub.s32 256, 1
        loop: start=0, step=1, limit=1
        $region14: #{custom-call.62} parent=12 // loop_pre_header
          _
        $region15: #{custom-call.62} parent=12 // loop_header
          %s13 = sphi 0, %s17
          %p14 = scmp.ge.s32.totalorder %s13, 1
          %s18 = sphi %s0, %s0
          %s19 = sphi [#allocation0], [#allocation0]
        $region16: #{custom-call.62} parent=12 // loop_header_branch
          %16 = sbr.rel (%p14) target = $region20
        $region17: #{custom-call.62} parent=12 // loop_body
          %v20 = vld [vmem:[%s18] sm:%s11]
          %21 = vst [vmem:[%s19] sm:%s11] %v20
          %v22 = vld [vmem:[%s18 + $0x8] sm:%s11]
          %23 = vst [vmem:[%s19 + $0x8] sm:%s11] %v22
          %v24 = vld [vmem:[%s18 + $0x10] sm:%s11]
          %25 = vst [vmem:[%s19 + $0x10] sm:%s11] %v24
          %v26 = vld [vmem:[%s18 + $0x18] sm:%s11]
          %27 = vst [vmem:[%s19 + $0x18] sm:%s11] %v26
        $region18: #{custom-call.62} parent=12 // loop_footer
          %s17 = sadd.s32 1, %s13
        $region19: #{custom-call.62} parent=12 // loop_footer_branch
          %12 = sbr.rel target = $region15
        $region20: #{custom-call.62} parent=12 // loop_exit
          _
      $region13: #{custom-call.62} parent=4 // pred_fallthru
        _
    $region5: #{custom-call.62} parent=1 // pred_fallthru
      _
    %48 = vnop
    %v49 = vld [vmem:[#allocation0] sm:$0xff]
    %50 = vst [vmem:[#allocation1] sm:$0xff] %v49
    %s51 = scalar_lea.vmem [#allocation1], 8
    %s52 = scalar_lea.vmem [#allocation0], 8
    %v53 = vld [vmem:[%s52] sm:$0xff]
    %54 = vst [vmem:[%s51] sm:$0xff] %v53
    %s55 = scalar_lea.vmem [#allocation1], 16
    %s56 = scalar_lea.vmem [#allocation0], 16
    %v57 = vld [vmem:[%s56] sm:$0xff]
    %58 = vst [vmem:[%s55] sm:$0xff] %v57
    %s59 = scalar_lea.vmem [#allocation1], 24
    %s60 = scalar_lea.vmem [#allocation0], 24
    %v61 = vld [vmem:[%s60] sm:$0xff]
    %62 = vst [vmem:[%s59] sm:$0xff] %v61
    %63 = vst [vmem:[#allocation2] sm:$0x1] 0.0
    loop: start=0, step=1, limit=16
    $region36: #{custom-call.62} parent=1 // loop_pre_header
      _
    $region37: #{custom-call.62} parent=1 // loop_header
      %s65 = sphi 0, %s69
      %p66 = scmp.ge.s32.totalorder %s65, 16
    $region38: #{custom-call.62} parent=1 // loop_header_branch
      %68 = sbr.rel (%p66) target = $region42
    $region39: #{custom-call.62} parent=1 // loop_body
      %v70 = vld [vmem:[#allocation1] sm:$0xff]
      %v71 = vlaneseq
      %v72 = vshrl.u32 %v71, 7
      %v74 = vstv %s65
      %vm75 = vcmp.gt.s32.totalorder %v72, %v74
      %v76 = vsel %vm75, %v70, 0.0
      %v77 = vmul.f32 %v76, %v76
      %s78 = scalar_lea.vmem [#allocation1], 8
      %v79 = vld [vmem:[%s78] sm:$0xff]
      %v80 = vlaneseq
      %v81 = vshrl.u32 %v80, 7
      %v82 = vadd.s32 %v81, 8
      %v83 = vstv %s65
      %vm84 = vcmp.gt.s32.totalorder %v82, %v83
      %v85 = vsel %vm84, %v79, 0.0
      %v86 = vmul.f32 %v85, %v85
      %v87 = vadd.f32 %v77, %v86
      %s88 = scalar_lea.vmem [#allocation1], 16
      %v89 = vld [vmem:[%s88] sm:$0xff]
      %v90 = vlaneseq
      %v91 = vshrl.u32 %v90, 7
      %v92 = vadd.s32 %v91, 16
      %v93 = vstv %s65
      %vm94 = vcmp.gt.s32.totalorder %v92, %v93
      %v95 = vsel %vm94, %v89, 0.0
      %v96 = vmul.f32 %v95, %v95
      %v97 = vadd.f32 %v87, %v96
      %s98 = scalar_lea.vmem [#allocation1], 24
      %v99 = vld [vmem:[%s98] sm:$0xff]
      %v100 = vlaneseq
      %v101 = vshrl.u32 %v100, 7
      %v102 = vadd.s32 %v101, 24
      %v103 = vstv %s65
      %vm104 = vcmp.gt.s32.totalorder %v102, %v103
      %vm105 = vcmp.lt.s32.totalorder %v102, 32
      %vm106 = vmand %vm104, %vm105
      %v107 = vsel %vm106, %v99, 0.0
      %v108 = vmul.f32 %v107, %v107
      %v109 = vadd.f32 %v97, %v108
      %v110 = vrot.slane %v109, 4
      %v111 = vadd.f32 %v109, %v110
      %v112 = vrot.slane %v111, 2
      %v113 = vadd.f32 %v111, %v112
      %v114 = vrot.slane %v113, 1
      %v115 = vadd.f32 %v113, %v114
      %v116 = vrsqrt.pop %v115
      %v117 = vmul.f32 %v115, %v116
      %vm118 = vcmp.eq.f32.partialorder %v115, inf
      %v119 = vsel %vm118, %v115, %v117
      %vm120 = vcmp.eq.f32.partialorder %v115, 0.0
      %v121 = vand.u32 %v115, 2147483648
      %v122 = vsel %vm120, %v121, %v119
      %vm123 = vcmp.eq.f32.partialorder %v115, 0.0
      %s124 = sshrl.u32 %s65, 3
      %s125 = sand.u32 %s65, 7
      %s126 = smul.addr %s124, 8
      %s127 = sadd.s32 %s125, %s126
      %s128 = scalar_lea.vmem [#allocation1], %s127
      %v129 = vld [vmem:[%s128] ss:$0 sm:$0xff]
      %v130 = vand.u32 2147483647, %v129
      %v131 = vmax.f32 %v130, 0.0
      %v132 = vand.u32 2147483647, %v122
      %v133 = vmax.f32 %v131, %v132
      %v134 = vrcp.pop %v133
      %v135 = vmul.f32 %v130, %v134
      %v136 = vmul.f32 %v135, %v135
      %v137 = vrcp.pop %v133
      %v138 = vmul.f32 0.0, %v137
      %v139 = vmul.f32 %v138, %v138
      %v140 = vadd.f32 %v136, %v139
      %v141 = vrcp.pop %v133
      %v142 = vmul.f32 %v132, %v141
      %v143 = vmul.f32 %v142, %v142
      %v144 = vadd.f32 %v140, %v143
      %vm145 = vcmp.eq.f32.partialorder %v133, 0.0
      %v146 = vrsqrt.pop %v144
      %v147 = vmul.f32 %v144, %v146
      %vm148 = vcmp.eq.f32.partialorder %v144, inf
      %v149 = vsel %vm148, %v144, %v147
      %vm150 = vcmp.eq.f32.partialorder %v144, 0.0
      %v151 = vand.u32 %v144, 2147483648
      %v152 = vsel %vm150, %v151, %v149
      %v153 = vmul.f32 %v133, %v152
      %v154 = vsel %vm145, 0.0, %v153
      %vm155 = vcmp.lt.f32.partialorder %v129, 0.0
      %v156 = vxor.u32 %v154, 2147483648
      %v157 = vsel %vm155, %v154, %v156
      %v158 = vsub.f32 %v157, %v129
      %v159 = vrcp.pop %v157
      %v160 = vmul.f32 %v158, %v159
      %v161 = vsel %vm123, %v129, %v157
      %v162 = vsel %vm123, 0.0, %v160
      %v163 = vsub.f32 %v129, %v161
      %s164 = smov [#allocation1]
      %v165 = vlaneseq
      %v166 = vshrl.u32 %v165, 7
      %v167 = vmov %v166
      %v168 = vld [vmem:[%s164] sm:$0xff]
      %v170 = vstv %s65
      %vm171 = vcmp.gt.s32.totalorder %v167, %v170
      %v172 = vsel %vm171, %v168, 0.0
      %v173 = vrcp.pop %v163
      %v174 = vmul.f32 %v172, %v173
      %v175 = vsel %vm123, 0.0, %v174
      %v176 = vstv %s65
      %v177 = vlaneseq
      %v178 = vand.u32 %v177, 127
      %vm179 = vcmp.eq.s32.totalorder %v178, %v176
      %v180 = vsel %vm179, %v175, 0.0
      %181 = vadd.xlane.f32.xlu0 %v180
      %v182 = vpop.xlane.xlu0 %181
      %183 = vst [vmem:[#allocation4] sm:$0xff] %v182
      %s184 = scalar_lea.vmem %s164, 8
      %v185 = vld [vmem:[%s184] sm:$0xff]
      %v186 = vadd.s32 %v167, 8
      %v187 = vstv %s65
      %vm188 = vcmp.gt.s32.totalorder %v186, %v187
      %v189 = vsel %vm188, %v185, 0.0
      %v190 = vrcp.pop %v163
      %v191 = vmul.f32 %v189, %v190
      %v192 = vsel %vm123, 0.0, %v191
      %v193 = vstv %s65
      %v194 = vlaneseq
      %v195 = vand.u32 %v194, 127
      %vm196 = vcmp.eq.s32.totalorder %v195, %v193
      %v197 = vsel %vm196, %v192, 0.0
      %198 = vadd.xlane.f32.xlu0 %v197
      %v199 = vpop.xlane.xlu0 %198
      %s200 = scalar_lea.vmem [#allocation4], 8
      %201 = vst [vmem:[%s200] sm:$0xff] %v199
      %s202 = scalar_lea.vmem %s164, 16
      %v203 = vld [vmem:[%s202] sm:$0xff]
      %v204 = vadd.s32 %v167, 16
      %v205 = vstv %s65
      %vm206 = vcmp.gt.s32.totalorder %v204, %v205
      %v207 = vsel %vm206, %v203, 0.0
      %v208 = vrcp.pop %v163
      %v209 = vmul.f32 %v207, %v208
      %v210 = vsel %vm123, 0.0, %v209
      %v211 = vstv %s65
      %v212 = vlaneseq
      %v213 = vand.u32 %v212, 127
      %vm214 = vcmp.eq.s32.totalorder %v213, %v211
      %v215 = vsel %vm214, %v210, 0.0
      %216 = vadd.xlane.f32.xlu0 %v215
      %v217 = vpop.xlane.xlu0 %216
      %s218 = scalar_lea.vmem [#allocation4], 16
      %219 = vst [vmem:[%s218] sm:$0xff] %v217
      %s220 = scalar_lea.vmem %s164, 24
      %v221 = vld [vmem:[%s220] sm:$0xff]
      %v222 = vadd.s32 %v167, 24
      %v223 = vstv %s65
      %vm224 = vcmp.gt.s32.totalorder %v222, %v223
      %vm225 = vcmp.lt.s32.totalorder %v222, 32
      %vm226 = vmand %vm224, %vm225
      %v227 = vsel %vm226, %v221, 0.0
      %v228 = vrcp.pop %v163
      %v229 = vmul.f32 %v227, %v228
      %v230 = vsel %vm123, 0.0, %v229
      %v231 = vstv %s65
      %v232 = vlaneseq
      %v233 = vand.u32 %v232, 127
      %vm234 = vcmp.eq.s32.totalorder %v233, %v231
      %v235 = vsel %vm234, %v230, 0.0
      %236 = vadd.xlane.f32.xlu0 %v235
      %v237 = vpop.xlane.xlu0 %236
      %s238 = scalar_lea.vmem [#allocation4], 24
      %239 = vst [vmem:[%s238] sm:$0xff] %v237
      %s240 = scalar_lea.vmem [#allocation4], %s65
      %241 = vst [vmem:[%s240] sm:$0x1] 1.0
      %v242 = vstv %s65
      %v243 = vlaneseq
      %v244 = vand.u32 %v243, 127
      %vm245 = vcmp.eq.s32.totalorder %v244, %v242
      %v246 = vsel %vm245, %v162, 0.0
      %247 = vadd.xlane.f32.xlu0 %v246
      %v248 = vpop.xlane.xlu0 %247
      %v249 = vstv %s65
      %v250 = vlaneseq
      %v251 = vand.u32 %v250, 127
      %vm252 = vcmp.eq.s32.totalorder %v251, %v249
      %v253 = vld [vmem:[#allocation2] ss:$0 sm:$0xff]
      %v254 = vsel %vm252, %v248, %v253
      %255 = vst [vmem:[#allocation2] sm:$0x1] %v254
      %s256 = smov [#allocation1]
      %s257 = smov [#allocation4]
      %v258 = vlaneseq
      %v259 = vshrl.u32 %v258, 7
      %v260 = vmov %v259
      %v262 = vld [vmem:[%s257] sm:$0xff]
      %v263 = vld [vmem:[%s256] sm:$0xff]
      %v264 = vmul.f32 %v262, %v263
      %v265 = vadd.s32 %v260, 8
      %s266 = scalar_lea.vmem %s257, 8
      %v267 = vld [vmem:[%s266] sm:$0xff]
      %s268 = scalar_lea.vmem %s256, 8
      %v269 = vld [vmem:[%s268] sm:$0xff]
      %v270 = vmul.f32 %v267, %v269
      %v271 = vadd.f32 %v264, %v270
      %v272 = vadd.s32 %v260, 16
      %s273 = scalar_lea.vmem %s257, 16
      %v274 = vld [vmem:[%s273] sm:$0xff]
      %s275 = scalar_lea.vmem %s256, 16
      %v276 = vld [vmem:[%s275] sm:$0xff]
      %v277 = vmul.f32 %v274, %v276
      %v278 = vadd.f32 %v271, %v277
      %v279 = vadd.s32 %v260, 24
      %s280 = scalar_lea.vmem %s257, 24
      %v281 = vld [vmem:[%s280] sm:$0xff]
      %s282 = scalar_lea.vmem %s256, 24
      %v283 = vld [vmem:[%s282] sm:$0xff]
      %v284 = vmul.f32 %v281, %v283
      %vm285 = vcmp.lt.s32.totalorder %v279, 32
      %v286 = vsel %vm285, %v284, 0.0
      %v287 = vadd.f32 %v278, %v286
      %v288 = vrot.slane %v287, 4
      %v289 = vadd.f32 %v287, %v288
      %v290 = vrot.slane %v289, 2
      %v291 = vadd.f32 %v289, %v290
      %v292 = vrot.slane %v291, 1
      %v293 = vadd.f32 %v291, %v292
      %s294 = smov %s256
      %s295 = smov %s257
      %v296 = vlaneseq
      %v297 = vshrl.u32 %v296, 7
      %v298 = vmov %v297
      %v299 = vmul.f32 %v293, %v248
      %v301 = vlaneseq
      %v302 = vand.u32 %v301, 127
      %v303 = vld [vmem:[%s295] sm:$0xff]
      %v304 = vmul.f32 %v303, %v299
      %v305 = vld [vmem:[%s294] sm:$0xff]
      %v306 = vstv %s65
      %vm307 = vcmp.gt.s32.totalorder %v302, %v306
      %v308 = vsub.f32 %v305, %v304
      %v309 = vsel %vm307, %v308, %v305
      %v310 = vstv %s65
      %v311 = vlaneseq
      %v312 = vand.u32 %v311, 127
      %vm313 = vcmp.eq.s32.totalorder %v312, %v310
      %v314 = vstv %s65
      %vm315 = vcmp.ge.s32.totalorder %v298, %v314
      %vm316 = vmand %vm313, %vm315
      %v317 = vsel %vm316, %v303, %v309
      %318 = vst [vmem:[%s294] sm:$0xff] %v317
      %v319 = vadd.s32 %v298, 8
      %v320 = vlaneseq
      %v321 = vand.u32 %v320, 127
      %s322 = scalar_lea.vmem %s295, 8
      %v323 = vld [vmem:[%s322] sm:$0xff]
      %v324 = vmul.f32 %v323, %v299
      %s325 = scalar_lea.vmem %s294, 8
      %v326 = vld [vmem:[%s325] sm:$0xff]
      %v327 = vstv %s65
      %vm328 = vcmp.gt.s32.totalorder %v321, %v327
      %v329 = vsub.f32 %v326, %v324
      %v330 = vsel %vm328, %v329, %v326
      %v331 = vstv %s65
      %v332 = vlaneseq
      %v333 = vand.u32 %v332, 127
      %vm334 = vcmp.eq.s32.totalorder %v333, %v331
      %v335 = vstv %s65
      %vm336 = vcmp.ge.s32.totalorder %v319, %v335
      %vm337 = vmand %vm334, %vm336
      %v338 = vsel %vm337, %v323, %v330
      %339 = vst [vmem:[%s325] sm:$0xff] %v338
      %v340 = vadd.s32 %v298, 16
      %v341 = vlaneseq
      %v342 = vand.u32 %v341, 127
      %s343 = scalar_lea.vmem %s295, 16
      %v344 = vld [vmem:[%s343] sm:$0xff]
      %v345 = vmul.f32 %v344, %v299
      %s346 = scalar_lea.vmem %s294, 16
      %v347 = vld [vmem:[%s346] sm:$0xff]
      %v348 = vstv %s65
      %vm349 = vcmp.gt.s32.totalorder %v342, %v348
      %v350 = vsub.f32 %v347, %v345
      %v351 = vsel %vm349, %v350, %v347
      %v352 = vstv %s65
      %v353 = vlaneseq
      %v354 = vand.u32 %v353, 127
      %vm355 = vcmp.eq.s32.totalorder %v354, %v352
      %v356 = vstv %s65
      %vm357 = vcmp.ge.s32.totalorder %v340, %v356
      %vm358 = vmand %vm355, %vm357
      %v359 = vsel %vm358, %v344, %v351
      %360 = vst [vmem:[%s346] sm:$0xff] %v359
      %v361 = vadd.s32 %v298, 24
      %v362 = vlaneseq
      %v363 = vand.u32 %v362, 127
      %s364 = scalar_lea.vmem %s295, 24
      %v365 = vld [vmem:[%s364] sm:$0xff]
      %v366 = vmul.f32 %v365, %v299
      %s367 = scalar_lea.vmem %s294, 24
      %v368 = vld [vmem:[%s367] sm:$0xff]
      %v369 = vstv %s65
      %vm370 = vcmp.gt.s32.totalorder %v363, %v369
      %v371 = vsub.f32 %v368, %v366
      %v372 = vsel %vm370, %v371, %v368
      %v373 = vstv %s65
      %v374 = vlaneseq
      %v375 = vand.u32 %v374, 127
      %vm376 = vcmp.eq.s32.totalorder %v375, %v373
      %v377 = vstv %s65
      %vm378 = vcmp.ge.s32.totalorder %v361, %v377
      %vm379 = vmand %vm376, %vm378
      %v380 = vsel %vm379, %v365, %v372
      %381 = vst [vmem:[%s367] sm:$0xff] %v380
      %s382 = scalar_lea.vmem %s294, %s65
      %v383 = vld [vmem:[%s382] ss:$0 sm:$0xff]
      %v384 = vstv %s65
      %v385 = vlaneseq
      %v386 = vand.u32 %v385, 127
      %vm387 = vcmp.eq.s32.totalorder %v386, %v384
      %v388 = vsel %vm387, %v161, %v383
      %389 = vst [vmem:[%s382] sm:$0x1] %v388
    $region40: #{custom-call.62} parent=1 // loop_footer
      %s69 = sadd.s32 1, %s65
    $region41: #{custom-call.62} parent=1 // loop_footer_branch
      %64 = sbr.rel target = $region37
    $region42: #{custom-call.62} parent=1 // loop_exit
      _
    %s391 = sshll.u32 1, 1
    %s392 = ssub.s32 %s391, 1
    %v394 = vld [vmem:[#allocation2] sm:%s392]
    %s395 = sshll.u32 1, 1
    %s396 = ssub.s32 %s395, 1
    %397 = vst [vmem:[#allocation3] sm:%s396] %v394
    // Predicated region
    $region43: #{custom-call.62} parent=1 // pred_check
      _
    $region44: #{custom-call.62} parent=1 // pred_check_branch
      %399 = sbr.rel (0) target = $region46
    $region45: #{custom-call.62} parent=1 // pred_region
      // Predicated region
      $region47: #{custom-call.62} parent=45 // pred_check
        _
      $region48: #{custom-call.62} parent=45 // pred_check_branch
        %401 = sbr.rel (0) target = $region50
      $region49: #{custom-call.62} parent=45 // pred_region
        // Predicated region
        $region62: #{custom-call.62} parent=49 // pred_check
          _
        $region63: #{custom-call.62} parent=49 // pred_check_branch
          %423 = sbr.rel (0) target = $region65
        $region64: #{custom-call.62} parent=49 // pred_region
          loop: start=0, step=1, limit=1
          $region66: #{custom-call.62} parent=64 // loop_pre_header
            _
          $region67: #{custom-call.62} parent=64 // loop_header
            %s425 = sphi 0, %s429
            %p426 = scmp.ge.s32.totalorder %s425, 1
            %s430 = sphi [#allocation1], [#allocation1]
            %s431 = sphi %s1, %s1
          $region68: #{custom-call.62} parent=64 // loop_header_branch
            %428 = sbr.rel (%p426) target = $region72
          $region69: #{custom-call.62} parent=64 // loop_body
            %v432 = vld [vmem:[%s430] sm:$0xff]
            %433 = vst [vmem:[%s431] sm:$0xff] %v432
            %v434 = vld [vmem:[%s430 + $0x8] sm:$0xff]
            %435 = vst [vmem:[%s431 + $0x8] sm:$0xff] %v434
            %v436 = vld [vmem:[%s430 + $0x10] sm:$0xff]
            %437 = vst [vmem:[%s431 + $0x10] sm:$0xff] %v436
            %v438 = vld [vmem:[%s430 + $0x18] sm:$0xff]
            %439 = vst [vmem:[%s431 + $0x18] sm:$0xff] %v438
          $region70: #{custom-call.62} parent=64 // loop_footer
            %s429 = sadd.s32 1, %s425
          $region71: #{custom-call.62} parent=64 // loop_footer_branch
            %424 = sbr.rel target = $region67
          $region72: #{custom-call.62} parent=64 // loop_exit
            _
        $region65: #{custom-call.62} parent=49 // pred_fallthru
          _
        // Predicated region
        $region73: #{custom-call.62} parent=49 // pred_check
          _
        $region74: #{custom-call.62} parent=49 // pred_check_branch
          %441 = sbr.rel target = $region76
        $region75: #{custom-call.62} parent=49 // pred_region
          _
        $region76: #{custom-call.62} parent=49 // pred_fallthru
          _
      $region50: #{custom-call.62} parent=45 // pred_fallthru
        _
      // Predicated region
      $region51: #{custom-call.62} parent=45 // pred_check
        _
      $region52: #{custom-call.62} parent=45 // pred_check_branch
        %403 = sbr.rel target = $region54
      $region53: #{custom-call.62} parent=45 // pred_region
        %s405 = ssub.s32 256, 1
        loop: start=0, step=1, limit=1
        $region55: #{custom-call.62} parent=53 // loop_pre_header
          _
        $region56: #{custom-call.62} parent=53 // loop_header
          %s407 = sphi 0, %s411
          %p408 = scmp.ge.s32.totalorder %s407, 1
          %s412 = sphi [#allocation1], [#allocation1]
          %s413 = sphi %s1, %s1
        $region57: #{custom-call.62} parent=53 // loop_header_branch
          %410 = sbr.rel (%p408) target = $region61
        $region58: #{custom-call.62} parent=53 // loop_body
          %v414 = vld [vmem:[%s412] sm:%s405]
          %415 = vst [vmem:[%s413] sm:%s405] %v414
          %v416 = vld [vmem:[%s412 + $0x8] sm:%s405]
          %417 = vst [vmem:[%s413 + $0x8] sm:%s405] %v416
          %v418 = vld [vmem:[%s412 + $0x10] sm:%s405]
          %419 = vst [vmem:[%s413 + $0x10] sm:%s405] %v418
          %v420 = vld [vmem:[%s412 + $0x18] sm:%s405]
          %421 = vst [vmem:[%s413 + $0x18] sm:%s405] %v420
        $region59: #{custom-call.62} parent=53 // loop_footer
          %s411 = sadd.s32 1, %s407
        $region60: #{custom-call.62} parent=53 // loop_footer_branch
          %406 = sbr.rel target = $region56
        $region61: #{custom-call.62} parent=53 // loop_exit
          _
      $region54: #{custom-call.62} parent=45 // pred_fallthru
        _
    $region46: #{custom-call.62} parent=1 // pred_fallthru
      _
    %442 = vnop
    // Predicated region
    $region77: #{custom-call.62} parent=1 // pred_check
      _
    $region78: #{custom-call.62} parent=1 // pred_check_branch
      %444 = sbr.rel (0) target = $region80
    $region79: #{custom-call.62} parent=1 // pred_region
      // Predicated region
      $region81: #{custom-call.62} parent=79 // pred_check
        _
      $region82: #{custom-call.62} parent=79 // pred_check_branch
        %446 = sbr.rel (0) target = $region84
      $region83: #{custom-call.62} parent=79 // pred_region
        // Predicated region
        $region85: #{custom-call.62} parent=83 // pred_check
          _
        $region86: #{custom-call.62} parent=83 // pred_check_branch
          %448 = sbr.rel target = $region88
        $region87: #{custom-call.62} parent=83 // pred_region
          // Predicated region
          $region100: #{custom-call.62} parent=87 // pred_check
            _
          $region101: #{custom-call.62} parent=87 // pred_check_branch
            %464 = sbr.rel (0) target = $region103
          $region102: #{custom-call.62} parent=87 // pred_region
            %s466 = ssub.s32 2, 1
            loop: start=0, step=1, limit=1
            $region104: #{custom-call.62} parent=102 // loop_pre_header
              _
            $region105: #{custom-call.62} parent=102 // loop_header
              %s468 = sphi 0, %s472
              %p469 = scmp.ge.s32.totalorder %s468, 1
              %s473 = sphi [#allocation3], [#allocation3]
              %s474 = sphi %s2, %s2
            $region106: #{custom-call.62} parent=102 // loop_header_branch
              %471 = sbr.rel (%p469) target = $region110
            $region107: #{custom-call.62} parent=102 // loop_body
              %v475 = vld [vmem:[%s473] sm:%s466]
              %476 = vst [vmem:[%s474] sm:%s466] %v475
            $region108: #{custom-call.62} parent=102 // loop_footer
              %s472 = sadd.s32 1, %s468
            $region109: #{custom-call.62} parent=102 // loop_footer_branch
              %467 = sbr.rel target = $region105
            $region110: #{custom-call.62} parent=102 // loop_exit
              _
          $region103: #{custom-call.62} parent=87 // pred_fallthru
            _
        $region88: #{custom-call.62} parent=83 // pred_fallthru
          _
        // Predicated region
        $region89: #{custom-call.62} parent=83 // pred_check
          _
        $region90: #{custom-call.62} parent=83 // pred_check_branch
          %450 = sbr.rel (0) target = $region92
        $region91: #{custom-call.62} parent=83 // pred_region
          %s452 = ssub.s32 2, 1
          loop: start=0, step=1, limit=1
          $region93: #{custom-call.62} parent=91 // loop_pre_header
            _
          $region94: #{custom-call.62} parent=91 // loop_header
            %s454 = sphi 0, %s458
            %p455 = scmp.ge.s32.totalorder %s454, 1
            %s459 = sphi [#allocation3], [#allocation3]
            %s460 = sphi %s2, %s2
          $region95: #{custom-call.62} parent=91 // loop_header_branch
            %457 = sbr.rel (%p455) target = $region99
          $region96: #{custom-call.62} parent=91 // loop_body
            %v461 = vld [vmem:[%s459] sm:%s452]
            %462 = vst [vmem:[%s460] sm:%s452] %v461
          $region97: #{custom-call.62} parent=91 // loop_footer
            %s458 = sadd.s32 1, %s454
          $region98: #{custom-call.62} parent=91 // loop_footer_branch
            %453 = sbr.rel target = $region94
          $region99: #{custom-call.62} parent=91 // loop_exit
            _
        $region92: #{custom-call.62} parent=83 // pred_fallthru
          _
      $region84: #{custom-call.62} parent=79 // pred_fallthru
        _
      %477 = vnop
    $region80: #{custom-call.62} parent=1 // pred_fallthru
      _
    // Predicated region
    $region111: #{custom-call.62} parent=1 // pred_check
      _
    $region112: #{custom-call.62} parent=1 // pred_check_branch
      %479 = sbr.rel (0) target = $region114
    $region113: #{custom-call.62} parent=1 // pred_region
      _
    $region114: #{custom-call.62} parent=1 // pred_fallthru
      _

// kernel: custom-call.63
$region0: #{custom-call.63}
  %s0 = inlined_call_operand.vmem [shape: f32[16,16], index: 0, kind: input, shape index: {}]
  %s1 = inlined_call_operand.vmem [shape: f32[16,16], index: 1, kind: output, shape index: {}]
  $region1: #{custom-call.63} parent=0
    #allocation0 [shape = 'u8[8192]{0}', space=vmem, size = 0x2000, scoped, tag = 'operand span for operand 0']
    #allocation1 [shape = 'u8[8192]{0}', space=vmem, size = 0x2000, scoped, tag = 'operand span for operand 1']
    %p3 = scmp.gt.s32.totalorder 16, 0
    // Predicated region
    $region2: #{custom-call.63} parent=1 // pred_check
      %p4 = pneg %p3
    $region3: #{custom-call.63} parent=1 // pred_check_branch
      %6 = sbr.rel (%p4) target = $region5
    $region4: #{custom-call.63} parent=1 // pred_region
      %s7 = sshra.s32 16, 3
      %p8 = scmp.gt.s32.totalorder %s7, 0
      // Predicated region
      $region6: #{custom-call.63} parent=4 // pred_check
        %p9 = pneg %p8
      $region7: #{custom-call.63} parent=4 // pred_check_branch
        %11 = sbr.rel (%p9) target = $region9
      $region8: #{custom-call.63} parent=4 // pred_region
        %s12 = ssub.s32 %s7, 1
        %s13 = smul.u32 %s12, 128
        %s14 = sshra.s32 %s13, 4
        %s15 = scalar_lea.vmem %s0, %s14
        %v16 = vld [vmem:[%s0] sm:$0xff]
        // While loop
        $region10: #{custom-call.63} parent=8 // loop_pre_header
          _
        $region11: #{custom-call.63} parent=8 // loop_header
          %s17 = sphi %s0, %s39
          %s18 = sphi [#allocation0], %s40
          %v19 = vphi %v16, %v41
          %s20 = ssub.s32 %s15, 64
          %p21 = scmp.gt.s32.totalorder %s17, %s20
        $region12: #{custom-call.63} parent=8 // loop_header_branch
          %23 = sbr.rel (%p21) target = $region16
        $region13: #{custom-call.63} parent=8 // loop_body
          %24 = vst [vmem:[%s18] sm:$0xff] %v19
          %v25 = vld [vmem:[%s17 + $0x8] sm:$0xff]
          %26 = vst [vmem:[%s18 + $0x8] sm:$0xff] %v25
          %v27 = vld [vmem:[%s17 + $0x10] sm:$0xff]
          %28 = vst [vmem:[%s18 + $0x10] sm:$0xff] %v27
          %v29 = vld [vmem:[%s17 + $0x18] sm:$0xff]
          %30 = vst [vmem:[%s18 + $0x18] sm:$0xff] %v29
          %v31 = vld [vmem:[%s17 + $0x20] sm:$0xff]
          %32 = vst [vmem:[%s18 + $0x20] sm:$0xff] %v31
          %v33 = vld [vmem:[%s17 + $0x28] sm:$0xff]
          %34 = vst [vmem:[%s18 + $0x28] sm:$0xff] %v33
          %v35 = vld [vmem:[%s17 + $0x30] sm:$0xff]
          %36 = vst [vmem:[%s18 + $0x30] sm:$0xff] %v35
          %v37 = vld [vmem:[%s17 + $0x38] sm:$0xff]
          %38 = vst [vmem:[%s18 + $0x38] sm:$0xff] %v37
        $region14: #{custom-call.63} parent=8 // loop_footer
          %s39 = scalar_lea.vmem %s17, 64
          %s40 = scalar_lea.vmem %s18, 64
          %v41 = vld [vmem:[%s17 + $0x40] sm:$0xff]
        $region15: #{custom-call.63} parent=8 // loop_footer_branch
          %42 = sbr.rel target = $region11
        $region16: #{custom-call.63} parent=8 // loop_exit
          _
        // While loop
        $region17: #{custom-call.63} parent=8 // loop_pre_header
          _
        $region18: #{custom-call.63} parent=8 // loop_header
          %s43 = sphi %s17, %s51
          %s44 = sphi %s18, %s52
          %v45 = vphi %v19, %v45
          %p46 = scmp.gt.s32.totalorder %s43, %s15
        $region19: #{custom-call.63} parent=8 // loop_header_branch
          %48 = sbr.rel (%p46) target = $region23
        $region20: #{custom-call.63} parent=8 // loop_body
          %v49 = vld [vmem:[%s43] sm:$0xff]
          %50 = vst [vmem:[%s44] sm:$0xff] %v49
        $region21: #{custom-call.63} parent=8 // loop_footer
          %s51 = scalar_lea.vmem %s43, 8
          %s52 = scalar_lea.vmem %s44, 8
        $region22: #{custom-call.63} parent=8 // loop_footer_branch
          %53 = sbr.rel target = $region18
        $region23: #{custom-call.63} parent=8 // loop_exit
          _
      $region9: #{custom-call.63} parent=4 // pred_fallthru
        _
      %s54 = sand.u32 16, 7
      %s55 = sshll.u32 1, %s54
      %s56 = ssub.s32 %s55, 1
      %s57 = smul.u32 %s7, 128
      %s58 = sshra.s32 %s57, 4
      %s59 = scalar_lea.vmem [#allocation0], %s58
      %s60 = smul.u32 %s7, 128
      %s61 = sshra.s32 %s60, 4
      %s62 = scalar_lea.vmem %s0, %s61
      %v63 = vld [vmem:[%s62] sm:%s56]
      %64 = vst [vmem:[%s59] sm:%s56] %v63
    $region5: #{custom-call.63} parent=1 // pred_fallthru
      _
    %v65 = vlaneseq
    %v66 = vand.u32 %v65, 127
    %v67 = vlaneseq
    %v68 = vshrl.u32 %v67, 7
    %vm70 = vcmp.eq.s32.totalorder %v66, %v68
    %v71 = vld [vmem:[#allocation0] sm:$0xff]
    %v72 = vlaneseq
    %v73 = vand.u32 %v72, 127
    %vm74 = vcmp.eq.s32.totalorder %v73, 0
    %v75 = vsel %vm74, %v71, 1.0
    %v76 = vsel %vm70, %v75, 0.0
    %v77 = vlaneseq
    %v78 = vand.u32 %v77, 127
    %v79 = vlaneseq
    %v80 = vshrl.u32 %v79, 7
    %v81 = vadd.s32 %v80, 8
    %vm82 = vcmp.eq.s32.totalorder %v78, %v81
    %v83 = vsel %vm82, 1.0, 0.0
    %s84 = scalar_lea.vmem [#allocation0], 1
    %v85 = vld [vmem:[%s84] ss:$0 sm:$0xff]
    %vm86 = vcmask 130048
    %v87 = vsel %vm86, %v85, 0.0
    %v88 = vlaneseq
    %v89 = vand.u32 %v88, 127
    %vm90 = vcmp.eq.s32.totalorder %v89, 1
    %v91 = vmul.f32 %v87, %v76
    %92 = vadd.xlane.f32.xlu0 %v91
    %v93 = vpop.xlane.xlu0 %92
    %v94 = vsel %vm90, %v93, %v76
    %s95 = scalar_lea.vmem [#allocation0], 2
    %v96 = vld [vmem:[%s95] ss:$0 sm:$0xff]
    %vm97 = vcmask 130048
    %v98 = vsel %vm97, %v96, 0.0
    %v99 = vlaneseq
    %v100 = vand.u32 %v99, 127
    %vm101 = vcmp.eq.s32.totalorder %v100, 2
    %v102 = vmul.f32 %v98, %v94
    %103 = vadd.xlane.f32.xlu0 %v102
    %v104 = vpop.xlane.xlu0 %103
    %v105 = vsel %vm101, %v104, %v94
    %s106 = scalar_lea.vmem [#allocation0], 3
    %v107 = vld [vmem:[%s106] ss:$0 sm:$0xff]
    %vm108 = vcmask 130048
    %v109 = vsel %vm108, %v107, 0.0
    %v110 = vlaneseq
    %v111 = vand.u32 %v110, 127
    %vm112 = vcmp.eq.s32.totalorder %v111, 3
    %v113 = vmul.f32 %v109, %v105
    %114 = vadd.xlane.f32.xlu0 %v113
    %v115 = vpop.xlane.xlu0 %114
    %v116 = vsel %vm112, %v115, %v105
    %s117 = scalar_lea.vmem [#allocation0], 4
    %v118 = vld [vmem:[%s117] ss:$0 sm:$0xff]
    %vm119 = vcmask 130048
    %v120 = vsel %vm119, %v118, 0.0
    %v121 = vlaneseq
    %v122 = vand.u32 %v121, 127
    %vm123 = vcmp.eq.s32.totalorder %v122, 4
    %v124 = vmul.f32 %v120, %v116
    %125 = vadd.xlane.f32.xlu0 %v124
    %v126 = vpop.xlane.xlu0 %125
    %v127 = vsel %vm123, %v126, %v116
    %s128 = scalar_lea.vmem [#allocation0], 5
    %v129 = vld [vmem:[%s128] ss:$0 sm:$0xff]
    %vm130 = vcmask 130048
    %v131 = vsel %vm130, %v129, 0.0
    %v132 = vlaneseq
    %v133 = vand.u32 %v132, 127
    %vm134 = vcmp.eq.s32.totalorder %v133, 5
    %v135 = vmul.f32 %v131, %v127
    %136 = vadd.xlane.f32.xlu0 %v135
    %v137 = vpop.xlane.xlu0 %136
    %v138 = vsel %vm134, %v137, %v127
    %s139 = scalar_lea.vmem [#allocation0], 6
    %v140 = vld [vmem:[%s139] ss:$0 sm:$0xff]
    %vm141 = vcmask 130048
    %v142 = vsel %vm141, %v140, 0.0
    %v143 = vlaneseq
    %v144 = vand.u32 %v143, 127
    %vm145 = vcmp.eq.s32.totalorder %v144, 6
    %v146 = vmul.f32 %v142, %v138
    %147 = vadd.xlane.f32.xlu0 %v146
    %v148 = vpop.xlane.xlu0 %147
    %v149 = vsel %vm145, %v148, %v138
    %s150 = scalar_lea.vmem [#allocation0], 7
    %v151 = vld [vmem:[%s150] ss:$0 sm:$0xff]
    %vm152 = vcmask 130048
    %v153 = vsel %vm152, %v151, 0.0
    %v154 = vlaneseq
    %v155 = vand.u32 %v154, 127
    %vm156 = vcmp.eq.s32.totalorder %v155, 7
    %v157 = vmul.f32 %v153, %v149
    %158 = vadd.xlane.f32.xlu0 %v157
    %v159 = vpop.xlane.xlu0 %158
    %v160 = vsel %vm156, %v159, %v149
    %s161 = scalar_lea.vmem [#allocation0], 8
    %v162 = vld [vmem:[%s161] ss:$0 sm:$0xff]
    %vm163 = vcmask 130048
    %v164 = vsel %vm163, %v162, 0.0
    %v165 = vlaneseq
    %v166 = vand.u32 %v165, 127
    %vm167 = vcmp.eq.s32.totalorder %v166, 8
    %v168 = vmul.f32 %v164, %v160
    %169 = vadd.xlane.f32.xlu0 %v168
    %v170 = vpop.xlane.xlu0 %169
    %v171 = vsel %vm167, %v170, %v160
    %v172 = vmul.f32 %v164, %v83
    %173 = vadd.xlane.f32.xlu0 %v172
    %v174 = vpop.xlane.xlu0 %173
    %v175 = vsel %vm167, %v174, %v83
    %s176 = scalar_lea.vmem [#allocation0], 9
    %v177 = vld [vmem:[%s176] ss:$0 sm:$0xff]
    %vm178 = vcmask 130048
    %v179 = vsel %vm178, %v177, 0.0
    %v180 = vlaneseq
    %v181 = vand.u32 %v180, 127
    %vm182 = vcmp.eq.s32.totalorder %v181, 9
    %v183 = vmul.f32 %v179, %v171
    %184 = vadd.xlane.f32.xlu0 %v183
    %v185 = vpop.xlane.xlu0 %184
    %v186 = vsel %vm182, %v185, %v171
    %v187 = vmul.f32 %v179, %v175
    %188 = vadd.xlane.f32.xlu0 %v187
    %v189 = vpop.xlane.xlu0 %188
    %v190 = vsel %vm182, %v189, %v175
    %s191 = scalar_lea.vmem [#allocation0], 10
    %v192 = vld [vmem:[%s191] ss:$0 sm:$0xff]
    %vm193 = vcmask 130048
    %v194 = vsel %vm193, %v192, 0.0
    %v195 = vlaneseq
    %v196 = vand.u32 %v195, 127
    %vm197 = vcmp.eq.s32.totalorder %v196, 10
    %v198 = vmul.f32 %v194, %v186
    %199 = vadd.xlane.f32.xlu0 %v198
    %v200 = vpop.xlane.xlu0 %199
    %v201 = vsel %vm197, %v200, %v186
    %v202 = vmul.f32 %v194, %v190
    %203 = vadd.xlane.f32.xlu0 %v202
    %v204 = vpop.xlane.xlu0 %203
    %v205 = vsel %vm197, %v204, %v190
    %s206 = scalar_lea.vmem [#allocation0], 11
    %v207 = vld [vmem:[%s206] ss:$0 sm:$0xff]
    %vm208 = vcmask 130048
    %v209 = vsel %vm208, %v207, 0.0
    %v210 = vlaneseq
    %v211 = vand.u32 %v210, 127
    %vm212 = vcmp.eq.s32.totalorder %v211, 11
    %v213 = vmul.f32 %v209, %v201
    %214 = vadd.xlane.f32.xlu0 %v213
    %v215 = vpop.xlane.xlu0 %214
    %v216 = vsel %vm212, %v215, %v201
    %v217 = vmul.f32 %v209, %v205
    %218 = vadd.xlane.f32.xlu0 %v217
    %v219 = vpop.xlane.xlu0 %218
    %v220 = vsel %vm212, %v219, %v205
    %s221 = scalar_lea.vmem [#allocation0], 12
    %v222 = vld [vmem:[%s221] ss:$0 sm:$0xff]
    %vm223 = vcmask 130048
    %v224 = vsel %vm223, %v222, 0.0
    %v225 = vlaneseq
    %v226 = vand.u32 %v225, 127
    %vm227 = vcmp.eq.s32.totalorder %v226, 12
    %v228 = vmul.f32 %v224, %v216
    %229 = vadd.xlane.f32.xlu0 %v228
    %v230 = vpop.xlane.xlu0 %229
    %v231 = vsel %vm227, %v230, %v216
    %v232 = vmul.f32 %v224, %v220
    %233 = vadd.xlane.f32.xlu0 %v232
    %v234 = vpop.xlane.xlu0 %233
    %v235 = vsel %vm227, %v234, %v220
    %s236 = scalar_lea.vmem [#allocation0], 13
    %v237 = vld [vmem:[%s236] ss:$0 sm:$0xff]
    %vm238 = vcmask 130048
    %v239 = vsel %vm238, %v237, 0.0
    %v240 = vlaneseq
    %v241 = vand.u32 %v240, 127
    %vm242 = vcmp.eq.s32.totalorder %v241, 13
    %v243 = vmul.f32 %v239, %v231
    %244 = vadd.xlane.f32.xlu0 %v243
    %v245 = vpop.xlane.xlu0 %244
    %v246 = vsel %vm242, %v245, %v231
    %v247 = vmul.f32 %v239, %v235
    %248 = vadd.xlane.f32.xlu0 %v247
    %v249 = vpop.xlane.xlu0 %248
    %v250 = vsel %vm242, %v249, %v235
    %s251 = scalar_lea.vmem [#allocation0], 14
    %v252 = vld [vmem:[%s251] ss:$0 sm:$0xff]
    %vm253 = vcmask 130048
    %v254 = vsel %vm253, %v252, 0.0
    %v255 = vlaneseq
    %v256 = vand.u32 %v255, 127
    %vm257 = vcmp.eq.s32.totalorder %v256, 14
    %v258 = vmul.f32 %v254, %v246
    %259 = vadd.xlane.f32.xlu0 %v258
    %v260 = vpop.xlane.xlu0 %259
    %v261 = vsel %vm257, %v260, %v246
    %v262 = vmul.f32 %v254, %v250
    %263 = vadd.xlane.f32.xlu0 %v262
    %v264 = vpop.xlane.xlu0 %263
    %v265 = vsel %vm257, %v264, %v250
    %s266 = scalar_lea.vmem [#allocation0], 15
    %v267 = vld [vmem:[%s266] ss:$0 sm:$0xff]
    %vm268 = vcmask 130048
    %v269 = vsel %vm268, %v267, 0.0
    %v270 = vlaneseq
    %v271 = vand.u32 %v270, 127
    %vm272 = vcmp.eq.s32.totalorder %v271, 15
    %v273 = vmul.f32 %v269, %v261
    %274 = vadd.xlane.f32.xlu0 %v273
    %v275 = vpop.xlane.xlu0 %274
    %v276 = vsel %vm272, %v275, %v261
    %v277 = vmul.f32 %v269, %v265
    %278 = vadd.xlane.f32.xlu0 %v277
    %v279 = vpop.xlane.xlu0 %278
    %v280 = vsel %vm272, %v279, %v265
    %281 = vst [vmem:[#allocation1] sm:$0xff] %v276
    %s282 = scalar_lea.vmem [#allocation1], 8
    %283 = vst [vmem:[%s282] sm:$0xff] %v280
    %p285 = scmp.gt.s32.totalorder 16, 0
    // Predicated region
    $region24: #{custom-call.63} parent=1 // pred_check
      %p286 = pneg %p285
    $region25: #{custom-call.63} parent=1 // pred_check_branch
      %288 = sbr.rel (%p286) target = $region27
    $region26: #{custom-call.63} parent=1 // pred_region
      %s289 = sshra.s32 16, 3
      %p290 = scmp.gt.s32.totalorder %s289, 0
      // Predicated region
      $region28: #{custom-call.63} parent=26 // pred_check
        %p291 = pneg %p290
      $region29: #{custom-call.63} parent=26 // pred_check_branch
        %293 = sbr.rel (%p291) target = $region31
      $region30: #{custom-call.63} parent=26 // pred_region
        %s294 = ssub.s32 %s289, 1
        %s295 = smul.u32 %s294, 128
        %s296 = sshra.s32 %s295, 4
        %s297 = scalar_lea.vmem [#allocation1], %s296
        %v298 = vld [vmem:[#allocation1] sm:$0xff]
        // While loop
        $region32: #{custom-call.63} parent=30 // loop_pre_header
          _
        $region33: #{custom-call.63} parent=30 // loop_header
          %s299 = sphi [#allocation1], %s321
          %s300 = sphi %s1, %s322
          %v301 = vphi %v298, %v323
          %s302 = ssub.s32 %s297, 64
          %p303 = scmp.gt.s32.totalorder %s299, %s302
        $region34: #{custom-call.63} parent=30 // loop_header_branch
          %305 = sbr.rel (%p303) target = $region38
        $region35: #{custom-call.63} parent=30 // loop_body
          %306 = vst [vmem:[%s300] sm:$0xff] %v301
          %v307 = vld [vmem:[%s299 + $0x8] sm:$0xff]
          %308 = vst [vmem:[%s300 + $0x8] sm:$0xff] %v307
          %v309 = vld [vmem:[%s299 + $0x10] sm:$0xff]
          %310 = vst [vmem:[%s300 + $0x10] sm:$0xff] %v309
          %v311 = vld [vmem:[%s299 + $0x18] sm:$0xff]
          %312 = vst [vmem:[%s300 + $0x18] sm:$0xff] %v311
          %v313 = vld [vmem:[%s299 + $0x20] sm:$0xff]
          %314 = vst [vmem:[%s300 + $0x20] sm:$0xff] %v313
          %v315 = vld [vmem:[%s299 + $0x28] sm:$0xff]
          %316 = vst [vmem:[%s300 + $0x28] sm:$0xff] %v315
          %v317 = vld [vmem:[%s299 + $0x30] sm:$0xff]
          %318 = vst [vmem:[%s300 + $0x30] sm:$0xff] %v317
          %v319 = vld [vmem:[%s299 + $0x38] sm:$0xff]
          %320 = vst [vmem:[%s300 + $0x38] sm:$0xff] %v319
        $region36: #{custom-call.63} parent=30 // loop_footer
          %s321 = scalar_lea.vmem %s299, 64
          %s322 = scalar_lea.vmem %s300, 64
          %v323 = vld [vmem:[%s299 + $0x40] sm:$0xff]
        $region37: #{custom-call.63} parent=30 // loop_footer_branch
          %324 = sbr.rel target = $region33
        $region38: #{custom-call.63} parent=30 // loop_exit
          _
        // While loop
        $region39: #{custom-call.63} parent=30 // loop_pre_header
          _
        $region40: #{custom-call.63} parent=30 // loop_header
          %s325 = sphi %s299, %s333
          %s326 = sphi %s300, %s334
          %v327 = vphi %v301, %v327
          %p328 = scmp.gt.s32.totalorder %s325, %s297
        $region41: #{custom-call.63} parent=30 // loop_header_branch
          %330 = sbr.rel (%p328) target = $region45
        $region42: #{custom-call.63} parent=30 // loop_body
          %v331 = vld [vmem:[%s325] sm:$0xff]
          %332 = vst [vmem:[%s326] sm:$0xff] %v331
        $region43: #{custom-call.63} parent=30 // loop_footer
          %s333 = scalar_lea.vmem %s325, 8
          %s334 = scalar_lea.vmem %s326, 8
        $region44: #{custom-call.63} parent=30 // loop_footer_branch
          %335 = sbr.rel target = $region40
        $region45: #{custom-call.63} parent=30 // loop_exit
          _
      $region31: #{custom-call.63} parent=26 // pred_fallthru
        _
      %s336 = sand.u32 16, 7
      %s337 = sshll.u32 1, %s336
      %s338 = ssub.s32 %s337, 1
      %s339 = smul.u32 %s289, 128
      %s340 = sshra.s32 %s339, 4
      %s341 = scalar_lea.vmem %s1, %s340
      %s342 = smul.u32 %s289, 128
      %s343 = sshra.s32 %s342, 4
      %s344 = scalar_lea.vmem [#allocation1], %s343
      %v345 = vld [vmem:[%s344] sm:%s338]
      %346 = vst [vmem:[%s341] sm:%s338] %v345
    $region27: #{custom-call.63} parent=1 // pred_fallthru
      _

// kernel: custom-call.60
$region0: #{custom-call.60}
  %s0 = inlined_call_operand.vmem [shape: f32[16,16], index: 0, kind: input, shape index: {}]
  %s1 = inlined_call_operand.vmem [shape: f32[16,16], index: 1, kind: output, shape index: {}]
  $region1: #{custom-call.60} parent=0
    #allocation0 [shape = 'u8[8192]{0}', space=vmem, size = 0x2000, scoped, tag = 'operand span for operand 0']
    #allocation1 [shape = 'u8[8192]{0}', space=vmem, size = 0x2000, scoped, tag = 'operand span for operand 1']
    // Predicated region
    $region2: #{custom-call.60} parent=1 // pred_check
      _
    $region3: #{custom-call.60} parent=1 // pred_check_branch
      %3 = sbr.rel (0) target = $region5
    $region4: #{custom-call.60} parent=1 // pred_region
      // Predicated region
      $region6: #{custom-call.60} parent=4 // pred_check
        _
      $region7: #{custom-call.60} parent=4 // pred_check_branch
        %5 = sbr.rel (0) target = $region9
      $region8: #{custom-call.60} parent=4 // pred_region
        // Predicated region
        $region21: #{custom-call.60} parent=8 // pred_check
          _
        $region22: #{custom-call.60} parent=8 // pred_check_branch
          %23 = sbr.rel (0) target = $region24
        $region23: #{custom-call.60} parent=8 // pred_region
          loop: start=0, step=1, limit=1
          $region25: #{custom-call.60} parent=23 // loop_pre_header
            _
          $region26: #{custom-call.60} parent=23 // loop_header
            %s25 = sphi 0, %s29
            %p26 = scmp.ge.s32.totalorder %s25, 1
            %s30 = sphi %s0, %s0
            %s31 = sphi [#allocation0], [#allocation0]
          $region27: #{custom-call.60} parent=23 // loop_header_branch
            %28 = sbr.rel (%p26) target = $region31
          $region28: #{custom-call.60} parent=23 // loop_body
            %v32 = vld [vmem:[%s30] sm:$0xff]
            %33 = vst [vmem:[%s31] sm:$0xff] %v32
            %v34 = vld [vmem:[%s30 + $0x8] sm:$0xff]
            %35 = vst [vmem:[%s31 + $0x8] sm:$0xff] %v34
          $region29: #{custom-call.60} parent=23 // loop_footer
            %s29 = sadd.s32 1, %s25
          $region30: #{custom-call.60} parent=23 // loop_footer_branch
            %24 = sbr.rel target = $region26
          $region31: #{custom-call.60} parent=23 // loop_exit
            _
        $region24: #{custom-call.60} parent=8 // pred_fallthru
          _
        // Predicated region
        $region32: #{custom-call.60} parent=8 // pred_check
          _
        $region33: #{custom-call.60} parent=8 // pred_check_branch
          %37 = sbr.rel target = $region35
        $region34: #{custom-call.60} parent=8 // pred_region
          _
        $region35: #{custom-call.60} parent=8 // pred_fallthru
          _
      $region9: #{custom-call.60} parent=4 // pred_fallthru
        _
      // Predicated region
      $region10: #{custom-call.60} parent=4 // pred_check
        _
      $region11: #{custom-call.60} parent=4 // pred_check_branch
        %7 = sbr.rel target = $region13
      $region12: #{custom-call.60} parent=4 // pred_region
        %s9 = ssub.s32 256, 1
        loop: start=0, step=1, limit=1
        $region14: #{custom-call.60} parent=12 // loop_pre_header
          _
        $region15: #{custom-call.60} parent=12 // loop_header
          %s11 = sphi 0, %s15
          %p12 = scmp.ge.s32.totalorder %s11, 1
          %s16 = sphi %s0, %s0
          %s17 = sphi [#allocation0], [#allocation0]
        $region16: #{custom-call.60} parent=12 // loop_header_branch
          %14 = sbr.rel (%p12) target = $region20
        $region17: #{custom-call.60} parent=12 // loop_body
          %v18 = vld [vmem:[%s16] sm:%s9]
          %19 = vst [vmem:[%s17] sm:%s9] %v18
          %v20 = vld [vmem:[%s16 + $0x8] sm:%s9]
          %21 = vst [vmem:[%s17 + $0x8] sm:%s9] %v20
        $region18: #{custom-call.60} parent=12 // loop_footer
          %s15 = sadd.s32 1, %s11
        $region19: #{custom-call.60} parent=12 // loop_footer_branch
          %10 = sbr.rel target = $region15
        $region20: #{custom-call.60} parent=12 // loop_exit
          _
      $region13: #{custom-call.60} parent=4 // pred_fallthru
        _
    $region5: #{custom-call.60} parent=1 // pred_fallthru
      _
    %38 = vnop
    %39 = vst [vmem:[#allocation1] sm:$0xff] 0.0
    %s40 = scalar_lea.vmem [#allocation1], 8
    %41 = vst [vmem:[%s40] sm:$0xff] 0.0
    %vm42 = vcmask 7168
    %v43 = vld [vmem:[#allocation1] ss:$0 sm:$0xff]
    %v44 = vld [vmem:[#allocation0] ss:$0 sm:$0xff]
    %v45 = vmul.f32 %v43, %v43
    %46 = vadd.xlane.f32.xlu0 %v45
    %v47 = vpop.xlane.xlu0 %46
    %v48 = vsub.f32 %v44, %v47
    %v49 = vrsqrt.pop %v48
    %v50 = vld [vmem:[#allocation0] sm:$0xff]
    %v51 = vld [vmem:[#allocation1] sm:$0xff]
    %v52 = vmul.f32 %v51, %v43
    %53 = vadd.xlane.f32.xlu0 %v52
    %v54 = vpop.xlane.xlu0 %53
    %v55 = vsub.f32 %v50, %v54
    %v56 = vmul.f32 %v55, %v49
    %v57 = vsel %vm42, %v56, 0.0
    %v58 = vadd.f32 %v51, %v57
    %59 = vst [vmem:[#allocation1] sm:$0xff] %v58
    %s60 = scalar_lea.vmem [#allocation0], 8
    %v61 = vld [vmem:[%s60] sm:$0xff]
    %s62 = scalar_lea.vmem [#allocation1], 8
    %v63 = vld [vmem:[%s62] sm:$0xff]
    %v64 = vmul.f32 %v63, %v43
    %65 = vadd.xlane.f32.xlu0 %v64
    %v66 = vpop.xlane.xlu0 %65
    %v67 = vsub.f32 %v61, %v66
    %v68 = vmul.f32 %v67, %v49
    %v69 = vsel %vm42, %v68, 0.0
    %v70 = vadd.f32 %v63, %v69
    %s71 = scalar_lea.vmem [#allocation1], 8
    %72 = vst [vmem:[%s71] sm:$0xff] %v70
    %vm73 = vcmask 15368
    %s74 = scalar_lea.vmem [#allocation1], 1
    %v75 = vld [vmem:[%s74] ss:$0 sm:$0xff]
    %s76 = scalar_lea.vmem [#allocation0], 1
    %v77 = vld [vmem:[%s76] ss:$0 sm:$0xff]
    %v78 = vmul.f32 %v75, %v75
    %79 = vadd.xlane.f32.xlu0 %v78
    %v80 = vpop.xlane.xlu0 %79
    %v81 = vsub.f32 %v77, %v80
    %v82 = vrsqrt.pop %v81
    %v83 = vld [vmem:[#allocation0] sm:$0xff]
    %v84 = vld [vmem:[#allocation1] sm:$0xff]
    %v85 = vmul.f32 %v84, %v75
    %86 = vadd.xlane.f32.xlu0 %v85
    %v87 = vpop.xlane.xlu0 %86
    %v88 = vsub.f32 %v83, %v87
    %v89 = vmul.f32 %v88, %v82
    %vm90 = vcmask 1047553
    %vm91 = vmand %vm73, %vm90
    %v92 = vsel %vm91, %v89, 0.0
    %v93 = vadd.f32 %v84, %v92
    %94 = vst [vmem:[#allocation1] sm:$0xff] %v93
    %s95 = scalar_lea.vmem [#allocation0], 8
    %v96 = vld [vmem:[%s95] sm:$0xff]
    %s97 = scalar_lea.vmem [#allocation1], 8
    %v98 = vld [vmem:[%s97] sm:$0xff]
    %v99 = vmul.f32 %v98, %v75
    %100 = vadd.xlane.f32.xlu0 %v99
    %v101 = vpop.xlane.xlu0 %100
    %v102 = vsub.f32 %v96, %v101
    %v103 = vmul.f32 %v102, %v82
    %v104 = vsel %vm73, %v103, 0.0
    %v105 = vadd.f32 %v98, %v104
    %s106 = scalar_lea.vmem [#allocation1], 8
    %107 = vst [vmem:[%s106] sm:$0xff] %v105
    %vm108 = vcmask 23568
    %s109 = scalar_lea.vmem [#allocation1], 2
    %v110 = vld [vmem:[%s109] ss:$0 sm:$0xff]
    %s111 = scalar_lea.vmem [#allocation0], 2
    %v112 = vld [vmem:[%s111] ss:$0 sm:$0xff]
    %v113 = vmul.f32 %v110, %v110
    %114 = vadd.xlane.f32.xlu0 %v113
    %v115 = vpop.xlane.xlu0 %114
    %v116 = vsub.f32 %v112, %v115
    %v117 = vrsqrt.pop %v116
    %v118 = vld [vmem:[#allocation0] sm:$0xff]
    %v119 = vld [vmem:[#allocation1] sm:$0xff]
    %v120 = vmul.f32 %v119, %v110
    %121 = vadd.xlane.f32.xlu0 %v120
    %v122 = vpop.xlane.xlu0 %121
    %v123 = vsub.f32 %v118, %v122
    %v124 = vmul.f32 %v123, %v117
    %vm125 = vcmask 1047554
    %vm126 = vmand %vm108, %vm125
    %v127 = vsel %vm126, %v124, 0.0
    %v128 = vadd.f32 %v119, %v127
    %129 = vst [vmem:[#allocation1] sm:$0xff] %v128
    %s130 = scalar_lea.vmem [#allocation0], 8
    %v131 = vld [vmem:[%s130] sm:$0xff]
    %s132 = scalar_lea.vmem [#allocation1], 8
    %v133 = vld [vmem:[%s132] sm:$0xff]
    %v134 = vmul.f32 %v133, %v110
    %135 = vadd.xlane.f32.xlu0 %v134
    %v136 = vpop.xlane.xlu0 %135
    %v137 = vsub.f32 %v131, %v136
    %v138 = vmul.f32 %v137, %v117
    %v139 = vsel %vm108, %v138, 0.0
    %v140 = vadd.f32 %v133, %v139
    %s141 = scalar_lea.vmem [#allocation1], 8
    %142 = vst [vmem:[%s141] sm:$0xff] %v140
    %vm143 = vcmask 31768
    %s144 = scalar_lea.vmem [#allocation1], 3
    %v145 = vld [vmem:[%s144] ss:$0 sm:$0xff]
    %s146 = scalar_lea.vmem [#allocation0], 3
    %v147 = vld [vmem:[%s146] ss:$0 sm:$0xff]
    %v148 = vmul.f32 %v145, %v145
    %149 = vadd.xlane.f32.xlu0 %v148
    %v150 = vpop.xlane.xlu0 %149
    %v151 = vsub.f32 %v147, %v150
    %v152 = vrsqrt.pop %v151
    %v153 = vld [vmem:[#allocation0] sm:$0xff]
    %v154 = vld [vmem:[#allocation1] sm:$0xff]
    %v155 = vmul.f32 %v154, %v145
    %156 = vadd.xlane.f32.xlu0 %v155
    %v157 = vpop.xlane.xlu0 %156
    %v158 = vsub.f32 %v153, %v157
    %v159 = vmul.f32 %v158, %v152
    %vm160 = vcmask 1047555
    %vm161 = vmand %vm143, %vm160
    %v162 = vsel %vm161, %v159, 0.0
    %v163 = vadd.f32 %v154, %v162
    %164 = vst [vmem:[#allocation1] sm:$0xff] %v163
    %s165 = scalar_lea.vmem [#allocation0], 8
    %v166 = vld [vmem:[%s165] sm:$0xff]
    %s167 = scalar_lea.vmem [#allocation1], 8
    %v168 = vld [vmem:[%s167] sm:$0xff]
    %v169 = vmul.f32 %v168, %v145
    %170 = vadd.xlane.f32.xlu0 %v169
    %v171 = vpop.xlane.xlu0 %170
    %v172 = vsub.f32 %v166, %v171
    %v173 = vmul.f32 %v172, %v152
    %v174 = vsel %vm143, %v173, 0.0
    %v175 = vadd.f32 %v168, %v174
    %s176 = scalar_lea.vmem [#allocation1], 8
    %177 = vst [vmem:[%s176] sm:$0xff] %v175
    %vm178 = vcmask 39968
    %s179 = scalar_lea.vmem [#allocation1], 4
    %v180 = vld [vmem:[%s179] ss:$0 sm:$0xff]
    %s181 = scalar_lea.vmem [#allocation0], 4
    %v182 = vld [vmem:[%s181] ss:$0 sm:$0xff]
    %v183 = vmul.f32 %v180, %v180
    %184 = vadd.xlane.f32.xlu0 %v183
    %v185 = vpop.xlane.xlu0 %184
    %v186 = vsub.f32 %v182, %v185
    %v187 = vrsqrt.pop %v186
    %v188 = vld [vmem:[#allocation0] sm:$0xff]
    %v189 = vld [vmem:[#allocation1] sm:$0xff]
    %v190 = vmul.f32 %v189, %v180
    %191 = vadd.xlane.f32.xlu0 %v190
    %v192 = vpop.xlane.xlu0 %191
    %v193 = vsub.f32 %v188, %v192
    %v194 = vmul.f32 %v193, %v187
    %vm195 = vcmask 1047556
    %vm196 = vmand %vm178, %vm195
    %v197 = vsel %vm196, %v194, 0.0
    %v198 = vadd.f32 %v189, %v197
    %199 = vst [vmem:[#allocation1] sm:$0xff] %v198
    %s200 = scalar_lea.vmem [#allocation0], 8
    %v201 = vld [vmem:[%s200] sm:$0xff]
    %s202 = scalar_lea.vmem [#allocation1], 8
    %v203 = vld [vmem:[%s202] sm:$0xff]
    %v204 = vmul.f32 %v203, %v180
    %205 = vadd.xlane.f32.xlu0 %v204
    %v206 = vpop.xlane.xlu0 %205
    %v207 = vsub.f32 %v201, %v206
    %v208 = vmul.f32 %v207, %v187
    %v209 = vsel %vm178, %v208, 0.0
    %v210 = vadd.f32 %v203, %v209
    %s211 = scalar_lea.vmem [#allocation1], 8
    %212 = vst [vmem:[%s211] sm:$0xff] %v210
    %vm213 = vcmask 48168
    %s214 = scalar_lea.vmem [#allocation1], 5
    %v215 = vld [vmem:[%s214] ss:$0 sm:$0xff]
    %s216 = scalar_lea.vmem [#allocation0], 5
    %v217 = vld [vmem:[%s216] ss:$0 sm:$0xff]
    %v218 = vmul.f32 %v215, %v215
    %219 = vadd.xlane.f32.xlu0 %v218
    %v220 = vpop.xlane.xlu0 %219
    %v221 = vsub.f32 %v217, %v220
    %v222 = vrsqrt.pop %v221
    %v223 = vld [vmem:[#allocation0] sm:$0xff]
    %v224 = vld [vmem:[#allocation1] sm:$0xff]
    %v225 = vmul.f32 %v224, %v215
    %226 = vadd.xlane.f32.xlu0 %v225
    %v227 = vpop.xlane.xlu0 %226
    %v228 = vsub.f32 %v223, %v227
    %v229 = vmul.f32 %v228, %v222
    %vm230 = vcmask 1047557
    %vm231 = vmand %vm213, %vm230
    %v232 = vsel %vm231, %v229, 0.0
    %v233 = vadd.f32 %v224, %v232
    %234 = vst [vmem:[#allocation1] sm:$0xff] %v233
    %s235 = scalar_lea.vmem [#allocation0], 8
    %v236 = vld [vmem:[%s235] sm:$0xff]
    %s237 = scalar_lea.vmem [#allocation1], 8
    %v238 = vld [vmem:[%s237] sm:$0xff]
    %v239 = vmul.f32 %v238, %v215
    %240 = vadd.xlane.f32.xlu0 %v239
    %v241 = vpop.xlane.xlu0 %240
    %v242 = vsub.f32 %v236, %v241
    %v243 = vmul.f32 %v242, %v222
    %v244 = vsel %vm213, %v243, 0.0
    %v245 = vadd.f32 %v238, %v244
    %s246 = scalar_lea.vmem [#allocation1], 8
    %247 = vst [vmem:[%s246] sm:$0xff] %v245
    %vm248 = vcmask 56368
    %s249 = scalar_lea.vmem [#allocation1], 6
    %v250 = vld [vmem:[%s249] ss:$0 sm:$0xff]
    %s251 = scalar_lea.vmem [#allocation0], 6
    %v252 = vld [vmem:[%s251] ss:$0 sm:$0xff]
    %v253 = vmul.f32 %v250, %v250
    %254 = vadd.xlane.f32.xlu0 %v253
    %v255 = vpop.xlane.xlu0 %254
    %v256 = vsub.f32 %v252, %v255
    %v257 = vrsqrt.pop %v256
    %v258 = vld [vmem:[#allocation0] sm:$0xff]
    %v259 = vld [vmem:[#allocation1] sm:$0xff]
    %v260 = vmul.f32 %v259, %v250
    %261 = vadd.xlane.f32.xlu0 %v260
    %v262 = vpop.xlane.xlu0 %261
    %v263 = vsub.f32 %v258, %v262
    %v264 = vmul.f32 %v263, %v257
    %vm265 = vcmask 1047558
    %vm266 = vmand %vm248, %vm265
    %v267 = vsel %vm266, %v264, 0.0
    %v268 = vadd.f32 %v259, %v267
    %269 = vst [vmem:[#allocation1] sm:$0xff] %v268
    %s270 = scalar_lea.vmem [#allocation0], 8
    %v271 = vld [vmem:[%s270] sm:$0xff]
    %s272 = scalar_lea.vmem [#allocation1], 8
    %v273 = vld [vmem:[%s272] sm:$0xff]
    %v274 = vmul.f32 %v273, %v250
    %275 = vadd.xlane.f32.xlu0 %v274
    %v276 = vpop.xlane.xlu0 %275
    %v277 = vsub.f32 %v271, %v276
    %v278 = vmul.f32 %v277, %v257
    %v279 = vsel %vm248, %v278, 0.0
    %v280 = vadd.f32 %v273, %v279
    %s281 = scalar_lea.vmem [#allocation1], 8
    %282 = vst [vmem:[%s281] sm:$0xff] %v280
    %vm283 = vcmask 64568
    %s284 = scalar_lea.vmem [#allocation1], 7
    %v285 = vld [vmem:[%s284] ss:$0 sm:$0xff]
    %s286 = scalar_lea.vmem [#allocation0], 7
    %v287 = vld [vmem:[%s286] ss:$0 sm:$0xff]
    %v288 = vmul.f32 %v285, %v285
    %289 = vadd.xlane.f32.xlu0 %v288
    %v290 = vpop.xlane.xlu0 %289
    %v291 = vsub.f32 %v287, %v290
    %v292 = vrsqrt.pop %v291
    %v293 = vld [vmem:[#allocation0] sm:$0xff]
    %v294 = vld [vmem:[#allocation1] sm:$0xff]
    %v295 = vmul.f32 %v294, %v285
    %296 = vadd.xlane.f32.xlu0 %v295
    %v297 = vpop.xlane.xlu0 %296
    %v298 = vsub.f32 %v293, %v297
    %v299 = vmul.f32 %v298, %v292
    %vm300 = vcmask 1047559
    %vm301 = vmand %vm283, %vm300
    %v302 = vsel %vm301, %v299, 0.0
    %v303 = vadd.f32 %v294, %v302
    %304 = vst [vmem:[#allocation1] sm:$0xff] %v303
    %s305 = scalar_lea.vmem [#allocation0], 8
    %v306 = vld [vmem:[%s305] sm:$0xff]
    %s307 = scalar_lea.vmem [#allocation1], 8
    %v308 = vld [vmem:[%s307] sm:$0xff]
    %v309 = vmul.f32 %v308, %v285
    %310 = vadd.xlane.f32.xlu0 %v309
    %v311 = vpop.xlane.xlu0 %310
    %v312 = vsub.f32 %v306, %v311
    %v313 = vmul.f32 %v312, %v292
    %v314 = vsel %vm283, %v313, 0.0
    %v315 = vadd.f32 %v308, %v314
    %s316 = scalar_lea.vmem [#allocation1], 8
    %317 = vst [vmem:[%s316] sm:$0xff] %v315
    %vm318 = vcmask 72768
    %s319 = scalar_lea.vmem [#allocation1], 8
    %v320 = vld [vmem:[%s319] ss:$0 sm:$0xff]
    %s321 = scalar_lea.vmem [#allocation0], 8
    %v322 = vld [vmem:[%s321] ss:$0 sm:$0xff]
    %v323 = vmul.f32 %v320, %v320
    %324 = vadd.xlane.f32.xlu0 %v323
    %v325 = vpop.xlane.xlu0 %324
    %v326 = vsub.f32 %v322, %v325
    %v327 = vrsqrt.pop %v326
    %s328 = scalar_lea.vmem [#allocation0], 8
    %v329 = vld [vmem:[%s328] sm:$0xff]
    %s330 = scalar_lea.vmem [#allocation1], 8
    %v331 = vld [vmem:[%s330] sm:$0xff]
    %v332 = vmul.f32 %v331, %v320
    %333 = vadd.xlane.f32.xlu0 %v332
    %v334 = vpop.xlane.xlu0 %333
    %v335 = vsub.f32 %v329, %v334
    %v336 = vmul.f32 %v335, %v327
    %v337 = vsel %vm318, %v336, 0.0
    %v338 = vadd.f32 %v331, %v337
    %s339 = scalar_lea.vmem [#allocation1], 8
    %340 = vst [vmem:[%s339] sm:$0xff] %v338
    %vm341 = vcmask 80968
    %s342 = scalar_lea.vmem [#allocation1], 9
    %v343 = vld [vmem:[%s342] ss:$0 sm:$0xff]
    %s344 = scalar_lea.vmem [#allocation0], 9
    %v345 = vld [vmem:[%s344] ss:$0 sm:$0xff]
    %v346 = vmul.f32 %v343, %v343
    %347 = vadd.xlane.f32.xlu0 %v346
    %v348 = vpop.xlane.xlu0 %347
    %v349 = vsub.f32 %v345, %v348
    %v350 = vrsqrt.pop %v349
    %s351 = scalar_lea.vmem [#allocation0], 8
    %v352 = vld [vmem:[%s351] sm:$0xff]
    %s353 = scalar_lea.vmem [#allocation1], 8
    %v354 = vld [vmem:[%s353] sm:$0xff]
    %v355 = vmul.f32 %v354, %v343
    %356 = vadd.xlane.f32.xlu0 %v355
    %v357 = vpop.xlane.xlu0 %356
    %v358 = vsub.f32 %v352, %v357
    %v359 = vmul.f32 %v358, %v350
    %vm360 = vcmask 1047553
    %vm361 = vmand %vm341, %vm360
    %v362 = vsel %vm361, %v359, 0.0
    %v363 = vadd.f32 %v354, %v362
    %s364 = scalar_lea.vmem [#allocation1], 8
    %365 = vst [vmem:[%s364] sm:$0xff] %v363
    %vm366 = vcmask 89168
    %s367 = scalar_lea.vmem [#allocation1], 10
    %v368 = vld [vmem:[%s367] ss:$0 sm:$0xff]
    %s369 = scalar_lea.vmem [#allocation0], 10
    %v370 = vld [vmem:[%s369] ss:$0 sm:$0xff]
    %v371 = vmul.f32 %v368, %v368
    %372 = vadd.xlane.f32.xlu0 %v371
    %v373 = vpop.xlane.xlu0 %372
    %v374 = vsub.f32 %v370, %v373
    %v375 = vrsqrt.pop %v374
    %s376 = scalar_lea.vmem [#allocation0], 8
    %v377 = vld [vmem:[%s376] sm:$0xff]
    %s378 = scalar_lea.vmem [#allocation1], 8
    %v379 = vld [vmem:[%s378] sm:$0xff]
    %v380 = vmul.f32 %v379, %v368
    %381 = vadd.xlane.f32.xlu0 %v380
    %v382 = vpop.xlane.xlu0 %381
    %v383 = vsub.f32 %v377, %v382
    %v384 = vmul.f32 %v383, %v375
    %vm385 = vcmask 1047554
    %vm386 = vmand %vm366, %vm385
    %v387 = vsel %vm386, %v384, 0.0
    %v388 = vadd.f32 %v379, %v387
    %s389 = scalar_lea.vmem [#allocation1], 8
    %390 = vst [vmem:[%s389] sm:$0xff] %v388
    %vm391 = vcmask 97368
    %s392 = scalar_lea.vmem [#allocation1], 11
    %v393 = vld [vmem:[%s392] ss:$0 sm:$0xff]
    %s394 = scalar_lea.vmem [#allocation0], 11
    %v395 = vld [vmem:[%s394] ss:$0 sm:$0xff]
    %v396 = vmul.f32 %v393, %v393
    %397 = vadd.xlane.f32.xlu0 %v396
    %v398 = vpop.xlane.xlu0 %397
    %v399 = vsub.f32 %v395, %v398
    %v400 = vrsqrt.pop %v399
    %s401 = scalar_lea.vmem [#allocation0], 8
    %v402 = vld [vmem:[%s401] sm:$0xff]
    %s403 = scalar_lea.vmem [#allocation1], 8
    %v404 = vld [vmem:[%s403] sm:$0xff]
    %v405 = vmul.f32 %v404, %v393
    %406 = vadd.xlane.f32.xlu0 %v405
    %v407 = vpop.xlane.xlu0 %406
    %v408 = vsub.f32 %v402, %v407
    %v409 = vmul.f32 %v408, %v400
    %vm410 = vcmask 1047555
    %vm411 = vmand %vm391, %vm410
    %v412 = vsel %vm411, %v409, 0.0
    %v413 = vadd.f32 %v404, %v412
    %s414 = scalar_lea.vmem [#allocation1], 8
    %415 = vst [vmem:[%s414] sm:$0xff] %v413
    %vm416 = vcmask 105568
    %s417 = scalar_lea.vmem [#allocation1], 12
    %v418 = vld [vmem:[%s417] ss:$0 sm:$0xff]
    %s419 = scalar_lea.vmem [#allocation0], 12
    %v420 = vld [vmem:[%s419] ss:$0 sm:$0xff]
    %v421 = vmul.f32 %v418, %v418
    %422 = vadd.xlane.f32.xlu0 %v421
    %v423 = vpop.xlane.xlu0 %422
    %v424 = vsub.f32 %v420, %v423
    %v425 = vrsqrt.pop %v424
    %s426 = scalar_lea.vmem [#allocation0], 8
    %v427 = vld [vmem:[%s426] sm:$0xff]
    %s428 = scalar_lea.vmem [#allocation1], 8
    %v429 = vld [vmem:[%s428] sm:$0xff]
    %v430 = vmul.f32 %v429, %v418
    %431 = vadd.xlane.f32.xlu0 %v430
    %v432 = vpop.xlane.xlu0 %431
    %v433 = vsub.f32 %v427, %v432
    %v434 = vmul.f32 %v433, %v425
    %vm435 = vcmask 1047556
    %vm436 = vmand %vm416, %vm435
    %v437 = vsel %vm436, %v434, 0.0
    %v438 = vadd.f32 %v429, %v437
    %s439 = scalar_lea.vmem [#allocation1], 8
    %440 = vst [vmem:[%s439] sm:$0xff] %v438
    %vm441 = vcmask 113768
    %s442 = scalar_lea.vmem [#allocation1], 13
    %v443 = vld [vmem:[%s442] ss:$0 sm:$0xff]
    %s444 = scalar_lea.vmem [#allocation0], 13
    %v445 = vld [vmem:[%s444] ss:$0 sm:$0xff]
    %v446 = vmul.f32 %v443, %v443
    %447 = vadd.xlane.f32.xlu0 %v446
    %v448 = vpop.xlane.xlu0 %447
    %v449 = vsub.f32 %v445, %v448
    %v450 = vrsqrt.pop %v449
    %s451 = scalar_lea.vmem [#allocation0], 8
    %v452 = vld [vmem:[%s451] sm:$0xff]
    %s453 = scalar_lea.vmem [#allocation1], 8
    %v454 = vld [vmem:[%s453] sm:$0xff]
    %v455 = vmul.f32 %v454, %v443
    %456 = vadd.xlane.f32.xlu0 %v455
    %v457 = vpop.xlane.xlu0 %456
    %v458 = vsub.f32 %v452, %v457
    %v459 = vmul.f32 %v458, %v450
    %vm460 = vcmask 1047557
    %vm461 = vmand %vm441, %vm460
    %v462 = vsel %vm461, %v459, 0.0
    %v463 = vadd.f32 %v454, %v462
    %s464 = scalar_lea.vmem [#allocation1], 8
    %465 = vst [vmem:[%s464] sm:$0xff] %v463
    %vm466 = vcmask 121968
    %s467 = scalar_lea.vmem [#allocation1], 14
    %v468 = vld [vmem:[%s467] ss:$0 sm:$0xff]
    %s469 = scalar_lea.vmem [#allocation0], 14
    %v470 = vld [vmem:[%s469] ss:$0 sm:$0xff]
    %v471 = vmul.f32 %v468, %v468
    %472 = vadd.xlane.f32.xlu0 %v471
    %v473 = vpop.xlane.xlu0 %472
    %v474 = vsub.f32 %v470, %v473
    %v475 = vrsqrt.pop %v474
    %s476 = scalar_lea.vmem [#allocation0], 8
    %v477 = vld [vmem:[%s476] sm:$0xff]
    %s478 = scalar_lea.vmem [#allocation1], 8
    %v479 = vld [vmem:[%s478] sm:$0xff]
    %v480 = vmul.f32 %v479, %v468
    %481 = vadd.xlane.f32.xlu0 %v480
    %v482 = vpop.xlane.xlu0 %481
    %v483 = vsub.f32 %v477, %v482
    %v484 = vmul.f32 %v483, %v475
    %vm485 = vcmask 1047558
    %vm486 = vmand %vm466, %vm485
    %v487 = vsel %vm486, %v484, 0.0
    %v488 = vadd.f32 %v479, %v487
    %s489 = scalar_lea.vmem [#allocation1], 8
    %490 = vst [vmem:[%s489] sm:$0xff] %v488
    %vm491 = vcmask 130168
    %s492 = scalar_lea.vmem [#allocation1], 15
    %v493 = vld [vmem:[%s492] ss:$0 sm:$0xff]
    %s494 = scalar_lea.vmem [#allocation0], 15
    %v495 = vld [vmem:[%s494] ss:$0 sm:$0xff]
    %v496 = vmul.f32 %v493, %v493
    %497 = vadd.xlane.f32.xlu0 %v496
    %v498 = vpop.xlane.xlu0 %497
    %v499 = vsub.f32 %v495, %v498
    %v500 = vrsqrt.pop %v499
    %s501 = scalar_lea.vmem [#allocation0], 8
    %v502 = vld [vmem:[%s501] sm:$0xff]
    %s503 = scalar_lea.vmem [#allocation1], 8
    %v504 = vld [vmem:[%s503] sm:$0xff]
    %v505 = vmul.f32 %v504, %v493
    %506 = vadd.xlane.f32.xlu0 %v505
    %v507 = vpop.xlane.xlu0 %506
    %v508 = vsub.f32 %v502, %v507
    %v509 = vmul.f32 %v508, %v500
    %vm510 = vcmask 1047559
    %vm511 = vmand %vm491, %vm510
    %v512 = vsel %vm511, %v509, 0.0
    %v513 = vadd.f32 %v504, %v512
    %s514 = scalar_lea.vmem [#allocation1], 8
    %515 = vst [vmem:[%s514] sm:$0xff] %v513
    // Predicated region
    $region36: #{custom-call.60} parent=1 // pred_check
      _
    $region37: #{custom-call.60} parent=1 // pred_check_branch
      %517 = sbr.rel (0) target = $region39
    $region38: #{custom-call.60} parent=1 // pred_region
      // Predicated region
      $region40: #{custom-call.60} parent=38 // pred_check
        _
      $region41: #{custom-call.60} parent=38 // pred_check_branch
        %519 = sbr.rel (0) target = $region43
      $region42: #{custom-call.60} parent=38 // pred_region
        // Predicated region
        $region55: #{custom-call.60} parent=42 // pred_check
          _
        $region56: #{custom-call.60} parent=42 // pred_check_branch
          %537 = sbr.rel (0) target = $region58
        $region57: #{custom-call.60} parent=42 // pred_region
          loop: start=0, step=1, limit=1
          $region59: #{custom-call.60} parent=57 // loop_pre_header
            _
          $region60: #{custom-call.60} parent=57 // loop_header
            %s539 = sphi 0, %s543
            %p540 = scmp.ge.s32.totalorder %s539, 1
            %s544 = sphi [#allocation1], [#allocation1]
            %s545 = sphi %s1, %s1
          $region61: #{custom-call.60} parent=57 // loop_header_branch
            %542 = sbr.rel (%p540) target = $region65
          $region62: #{custom-call.60} parent=57 // loop_body
            %v546 = vld [vmem:[%s544] sm:$0xff]
            %547 = vst [vmem:[%s545] sm:$0xff] %v546
            %v548 = vld [vmem:[%s544 + $0x8] sm:$0xff]
            %549 = vst [vmem:[%s545 + $0x8] sm:$0xff] %v548
          $region63: #{custom-call.60} parent=57 // loop_footer
            %s543 = sadd.s32 1, %s539
          $region64: #{custom-call.60} parent=57 // loop_footer_branch
            %538 = sbr.rel target = $region60
          $region65: #{custom-call.60} parent=57 // loop_exit
            _
        $region58: #{custom-call.60} parent=42 // pred_fallthru
          _
        // Predicated region
        $region66: #{custom-call.60} parent=42 // pred_check
          _
        $region67: #{custom-call.60} parent=42 // pred_check_branch
          %551 = sbr.rel target = $region69
        $region68: #{custom-call.60} parent=42 // pred_region
          _
        $region69: #{custom-call.60} parent=42 // pred_fallthru
          _
      $region43: #{custom-call.60} parent=38 // pred_fallthru
        _
      // Predicated region
      $region44: #{custom-call.60} parent=38 // pred_check
        _
      $region45: #{custom-call.60} parent=38 // pred_check_branch
        %521 = sbr.rel target = $region47
      $region46: #{custom-call.60} parent=38 // pred_region
        %s523 = ssub.s32 256, 1
        loop: start=0, step=1, limit=1
        $region48: #{custom-call.60} parent=46 // loop_pre_header
          _
        $region49: #{custom-call.60} parent=46 // loop_header
          %s525 = sphi 0, %s529
          %p526 = scmp.ge.s32.totalorder %s525, 1
          %s530 = sphi [#allocation1], [#allocation1]
          %s531 = sphi %s1, %s1
        $region50: #{custom-call.60} parent=46 // loop_header_branch
          %528 = sbr.rel (%p526) target = $region54
        $region51: #{custom-call.60} parent=46 // loop_body
          %v532 = vld [vmem:[%s530] sm:%s523]
          %533 = vst [vmem:[%s531] sm:%s523] %v532
          %v534 = vld [vmem:[%s530 + $0x8] sm:%s523]
          %535 = vst [vmem:[%s531 + $0x8] sm:%s523] %v534
        $region52: #{custom-call.60} parent=46 // loop_footer
          %s529 = sadd.s32 1, %s525
        $region53: #{custom-call.60} parent=46 // loop_footer_branch
          %524 = sbr.rel target = $region49
        $region54: #{custom-call.60} parent=46 // loop_exit
          _
      $region47: #{custom-call.60} parent=38 // pred_fallthru
        _
    $region39: #{custom-call.60} parent=1 // pred_fallthru
      _
    %552 = vnop

// kernel: custom-call.61
$region0: #{custom-call.61}
  %s0 = inlined_call_operand.vmem [shape: f32[1,16,16], index: 0, kind: input, shape index: {}]
  %s1 = inlined_call_operand.vmem [shape: f32[1,16,16], index: 1, kind: output, shape index: {}]
  $region1: #{custom-call.61} parent=0
    #allocation0 [shape = 'u8[8192]{0}', space=vmem, size = 0x2000, scoped, tag = 'operand span for operand 0']
    #allocation1 [shape = 'u8[8192]{0}', space=vmem, size = 0x2000, scoped, tag = 'operand span for operand 1']
    #allocation2 [shape = 'f32[16,16]{1,0}', space=vmem, size = 0x2000, scoped, tag = 'rescaled input a']
    // Predicated region
    $region2: #{custom-call.61} parent=1 // pred_check
      _
    $region3: #{custom-call.61} parent=1 // pred_check_branch
      %3 = sbr.rel (0) target = $region5
    $region4: #{custom-call.61} parent=1 // pred_region
      // Predicated region
      $region6: #{custom-call.61} parent=4 // pred_check
        _
      $region7: #{custom-call.61} parent=4 // pred_check_branch
        %5 = sbr.rel (0) target = $region9
      $region8: #{custom-call.61} parent=4 // pred_region
        // Predicated region
        $region21: #{custom-call.61} parent=8 // pred_check
          _
        $region22: #{custom-call.61} parent=8 // pred_check_branch
          %23 = sbr.rel (0) target = $region24
        $region23: #{custom-call.61} parent=8 // pred_region
          loop: start=0, step=1, limit=1
          $region25: #{custom-call.61} parent=23 // loop_pre_header
            _
          $region26: #{custom-call.61} parent=23 // loop_header
            %s25 = sphi 0, %s29
            %p26 = scmp.ge.s32.totalorder %s25, 1
            %s30 = sphi %s0, %s0
            %s31 = sphi [#allocation0], [#allocation0]
          $region27: #{custom-call.61} parent=23 // loop_header_branch
            %28 = sbr.rel (%p26) target = $region31
          $region28: #{custom-call.61} parent=23 // loop_body
            %v32 = vld [vmem:[%s30] sm:$0xff]
            %33 = vst [vmem:[%s31] sm:$0xff] %v32
            %v34 = vld [vmem:[%s30 + $0x8] sm:$0xff]
            %35 = vst [vmem:[%s31 + $0x8] sm:$0xff] %v34
          $region29: #{custom-call.61} parent=23 // loop_footer
            %s29 = sadd.s32 1, %s25
          $region30: #{custom-call.61} parent=23 // loop_footer_branch
            %24 = sbr.rel target = $region26
          $region31: #{custom-call.61} parent=23 // loop_exit
            _
        $region24: #{custom-call.61} parent=8 // pred_fallthru
          _
        // Predicated region
        $region32: #{custom-call.61} parent=8 // pred_check
          _
        $region33: #{custom-call.61} parent=8 // pred_check_branch
          %37 = sbr.rel target = $region35
        $region34: #{custom-call.61} parent=8 // pred_region
          _
        $region35: #{custom-call.61} parent=8 // pred_fallthru
          _
      $region9: #{custom-call.61} parent=4 // pred_fallthru
        _
      // Predicated region
      $region10: #{custom-call.61} parent=4 // pred_check
        _
      $region11: #{custom-call.61} parent=4 // pred_check_branch
        %7 = sbr.rel target = $region13
      $region12: #{custom-call.61} parent=4 // pred_region
        %s9 = ssub.s32 256, 1
        loop: start=0, step=1, limit=1
        $region14: #{custom-call.61} parent=12 // loop_pre_header
          _
        $region15: #{custom-call.61} parent=12 // loop_header
          %s11 = sphi 0, %s15
          %p12 = scmp.ge.s32.totalorder %s11, 1
          %s16 = sphi %s0, %s0
          %s17 = sphi [#allocation0], [#allocation0]
        $region16: #{custom-call.61} parent=12 // loop_header_branch
          %14 = sbr.rel (%p12) target = $region20
        $region17: #{custom-call.61} parent=12 // loop_body
          %v18 = vld [vmem:[%s16] sm:%s9]
          %19 = vst [vmem:[%s17] sm:%s9] %v18
          %v20 = vld [vmem:[%s16 + $0x8] sm:%s9]
          %21 = vst [vmem:[%s17 + $0x8] sm:%s9] %v20
        $region18: #{custom-call.61} parent=12 // loop_footer
          %s15 = sadd.s32 1, %s11
        $region19: #{custom-call.61} parent=12 // loop_footer_branch
          %10 = sbr.rel target = $region15
        $region20: #{custom-call.61} parent=12 // loop_exit
          _
      $region13: #{custom-call.61} parent=4 // pred_fallthru
        _
    $region5: #{custom-call.61} parent=1 // pred_fallthru
      _
    %38 = vnop
    %v39 = vlaneseq
    %v40 = vand.u32 %v39, 127
    %vm41 = vcmp.lt.s32.totalorder %v40, 16
    %v42 = vlaneseq
    %v43 = vshrl.u32 %v42, 7
    %vm45 = vcmp.eq.s32.totalorder %v43, %v40
    %v46 = vld [vmem:[#allocation0] sm:$0xff]
    %v47 = vsel %vm45, %v46, 0.0
    %48 = vadd.xlane.f32.xlu0 %v47
    %v49 = vpop.xlane.xlu0 %48
    %vm50 = vcmp.ge.s32.totalorder %v43, %v40
    %vm51 = vmand %vm50, %vm41
    %v52 = vsel %vm51, %v46, 0.0
    %v53 = vrcp.pop %v49
    %v54 = vmul.f32 %v52, %v53
    %55 = vst [vmem:[#allocation2] sm:$0xff] %v54
    %s56 = scalar_lea.vmem [#allocation0], 8
    %s57 = scalar_lea.vmem [#allocation2], 8
    %v58 = vlaneseq
    %v59 = vshrl.u32 %v58, 7
    %v60 = vadd.s32 %v59, 8
    %vm61 = vcmp.eq.s32.totalorder %v60, %v40
    %v62 = vld [vmem:[%s56] sm:$0xff]
    %v63 = vsel %vm61, %v62, 0.0
    %64 = vadd.xlane.f32.xlu0 %v63
    %v65 = vpop.xlane.xlu0 %64
    %vm66 = vcmp.ge.s32.totalorder %v60, %v40
    %vm67 = vmand %vm66, %vm41
    %v68 = vsel %vm67, %v62, 0.0
    %v69 = vrcp.pop %v65
    %v70 = vmul.f32 %v68, %v69
    %71 = vst [vmem:[%s57] sm:$0xff] %v70
    %v72 = vlaneseq
    %v73 = vand.u32 %v72, 127
    %v74 = vlaneseq
    %v75 = vshrl.u32 %v74, 7
    %vm77 = vcmp.eq.s32.totalorder %v73, %v75
    %v78 = vlaneseq
    %v79 = vand.u32 %v78, 127
    %vm80 = vcmp.eq.s32.totalorder %v79, 0
    %v81 = vsel %vm80, 1.0, -1.0
    %v82 = vsel %vm77, %v81, 0.0
    %v83 = vlaneseq
    %v84 = vand.u32 %v83, 127
    %v85 = vlaneseq
    %v86 = vshrl.u32 %v85, 7
    %v87 = vadd.s32 %v86, 8
    %vm88 = vcmp.eq.s32.totalorder %v84, %v87
    %v89 = vsel %vm88, -1.0, 0.0
    %s90 = scalar_lea.vmem [#allocation2], 1
    %v91 = vld [vmem:[%s90] ss:$0 sm:$0xff]
    %v92 = vxor.u32 %v91, 2147483648
    %v93 = vlaneseq
    %v94 = vand.u32 %v93, 127
    %vm95 = vcmp.eq.s32.totalorder %v94, 1
    %v96 = vmul.f32 %v92, %v82
    %97 = vadd.xlane.f32.xlu0 %v96
    %v98 = vpop.xlane.xlu0 %97
    %v99 = vsel %vm95, %v98, %v82
    %s100 = scalar_lea.vmem [#allocation2], 2
    %v101 = vld [vmem:[%s100] ss:$0 sm:$0xff]
    %v102 = vxor.u32 %v101, 2147483648
    %v103 = vlaneseq
    %v104 = vand.u32 %v103, 127
    %vm105 = vcmp.eq.s32.totalorder %v104, 2
    %v106 = vmul.f32 %v102, %v99
    %107 = vadd.xlane.f32.xlu0 %v106
    %v108 = vpop.xlane.xlu0 %107
    %v109 = vsel %vm105, %v108, %v99
    %s110 = scalar_lea.vmem [#allocation2], 3
    %v111 = vld [vmem:[%s110] ss:$0 sm:$0xff]
    %v112 = vxor.u32 %v111, 2147483648
    %v113 = vlaneseq
    %v114 = vand.u32 %v113, 127
    %vm115 = vcmp.eq.s32.totalorder %v114, 3
    %v116 = vmul.f32 %v112, %v109
    %117 = vadd.xlane.f32.xlu0 %v116
    %v118 = vpop.xlane.xlu0 %117
    %v119 = vsel %vm115, %v118, %v109
    %s120 = scalar_lea.vmem [#allocation2], 4
    %v121 = vld [vmem:[%s120] ss:$0 sm:$0xff]
    %v122 = vxor.u32 %v121, 2147483648
    %v123 = vlaneseq
    %v124 = vand.u32 %v123, 127
    %vm125 = vcmp.eq.s32.totalorder %v124, 4
    %v126 = vmul.f32 %v122, %v119
    %127 = vadd.xlane.f32.xlu0 %v126
    %v128 = vpop.xlane.xlu0 %127
    %v129 = vsel %vm125, %v128, %v119
    %s130 = scalar_lea.vmem [#allocation2], 5
    %v131 = vld [vmem:[%s130] ss:$0 sm:$0xff]
    %v132 = vxor.u32 %v131, 2147483648
    %v133 = vlaneseq
    %v134 = vand.u32 %v133, 127
    %vm135 = vcmp.eq.s32.totalorder %v134, 5
    %v136 = vmul.f32 %v132, %v129
    %137 = vadd.xlane.f32.xlu0 %v136
    %v138 = vpop.xlane.xlu0 %137
    %v139 = vsel %vm135, %v138, %v129
    %s140 = scalar_lea.vmem [#allocation2], 6
    %v141 = vld [vmem:[%s140] ss:$0 sm:$0xff]
    %v142 = vxor.u32 %v141, 2147483648
    %v143 = vlaneseq
    %v144 = vand.u32 %v143, 127
    %vm145 = vcmp.eq.s32.totalorder %v144, 6
    %v146 = vmul.f32 %v142, %v139
    %147 = vadd.xlane.f32.xlu0 %v146
    %v148 = vpop.xlane.xlu0 %147
    %v149 = vsel %vm145, %v148, %v139
    %s150 = scalar_lea.vmem [#allocation2], 7
    %v151 = vld [vmem:[%s150] ss:$0 sm:$0xff]
    %v152 = vxor.u32 %v151, 2147483648
    %v153 = vlaneseq
    %v154 = vand.u32 %v153, 127
    %vm155 = vcmp.eq.s32.totalorder %v154, 7
    %v156 = vmul.f32 %v152, %v149
    %157 = vadd.xlane.f32.xlu0 %v156
    %v158 = vpop.xlane.xlu0 %157
    %v159 = vsel %vm155, %v158, %v149
    %s160 = scalar_lea.vmem [#allocation2], 8
    %v161 = vld [vmem:[%s160] ss:$0 sm:$0xff]
    %v162 = vxor.u32 %v161, 2147483648
    %v163 = vlaneseq
    %v164 = vand.u32 %v163, 127
    %vm165 = vcmp.eq.s32.totalorder %v164, 8
    %v166 = vmul.f32 %v162, %v159
    %167 = vadd.xlane.f32.xlu0 %v166
    %v168 = vpop.xlane.xlu0 %167
    %v169 = vsel %vm165, %v168, %v159
    %v170 = vmul.f32 %v162, %v89
    %171 = vadd.xlane.f32.xlu0 %v170
    %v172 = vpop.xlane.xlu0 %171
    %v173 = vsel %vm165, %v172, %v89
    %s174 = scalar_lea.vmem [#allocation2], 9
    %v175 = vld [vmem:[%s174] ss:$0 sm:$0xff]
    %v176 = vxor.u32 %v175, 2147483648
    %v177 = vlaneseq
    %v178 = vand.u32 %v177, 127
    %vm179 = vcmp.eq.s32.totalorder %v178, 9
    %v180 = vmul.f32 %v176, %v169
    %181 = vadd.xlane.f32.xlu0 %v180
    %v182 = vpop.xlane.xlu0 %181
    %v183 = vsel %vm179, %v182, %v169
    %v184 = vmul.f32 %v176, %v173
    %185 = vadd.xlane.f32.xlu0 %v184
    %v186 = vpop.xlane.xlu0 %185
    %v187 = vsel %vm179, %v186, %v173
    %s188 = scalar_lea.vmem [#allocation2], 10
    %v189 = vld [vmem:[%s188] ss:$0 sm:$0xff]
    %v190 = vxor.u32 %v189, 2147483648
    %v191 = vlaneseq
    %v192 = vand.u32 %v191, 127
    %vm193 = vcmp.eq.s32.totalorder %v192, 10
    %v194 = vmul.f32 %v190, %v183
    %195 = vadd.xlane.f32.xlu0 %v194
    %v196 = vpop.xlane.xlu0 %195
    %v197 = vsel %vm193, %v196, %v183
    %v198 = vmul.f32 %v190, %v187
    %199 = vadd.xlane.f32.xlu0 %v198
    %v200 = vpop.xlane.xlu0 %199
    %v201 = vsel %vm193, %v200, %v187
    %s202 = scalar_lea.vmem [#allocation2], 11
    %v203 = vld [vmem:[%s202] ss:$0 sm:$0xff]
    %v204 = vxor.u32 %v203, 2147483648
    %v205 = vlaneseq
    %v206 = vand.u32 %v205, 127
    %vm207 = vcmp.eq.s32.totalorder %v206, 11
    %v208 = vmul.f32 %v204, %v197
    %209 = vadd.xlane.f32.xlu0 %v208
    %v210 = vpop.xlane.xlu0 %209
    %v211 = vsel %vm207, %v210, %v197
    %v212 = vmul.f32 %v204, %v201
    %213 = vadd.xlane.f32.xlu0 %v212
    %v214 = vpop.xlane.xlu0 %213
    %v215 = vsel %vm207, %v214, %v201
    %s216 = scalar_lea.vmem [#allocation2], 12
    %v217 = vld [vmem:[%s216] ss:$0 sm:$0xff]
    %v218 = vxor.u32 %v217, 2147483648
    %v219 = vlaneseq
    %v220 = vand.u32 %v219, 127
    %vm221 = vcmp.eq.s32.totalorder %v220, 12
    %v222 = vmul.f32 %v218, %v211
    %223 = vadd.xlane.f32.xlu0 %v222
    %v224 = vpop.xlane.xlu0 %223
    %v225 = vsel %vm221, %v224, %v211
    %v226 = vmul.f32 %v218, %v215
    %227 = vadd.xlane.f32.xlu0 %v226
    %v228 = vpop.xlane.xlu0 %227
    %v229 = vsel %vm221, %v228, %v215
    %s230 = scalar_lea.vmem [#allocation2], 13
    %v231 = vld [vmem:[%s230] ss:$0 sm:$0xff]
    %v232 = vxor.u32 %v231, 2147483648
    %v233 = vlaneseq
    %v234 = vand.u32 %v233, 127
    %vm235 = vcmp.eq.s32.totalorder %v234, 13
    %v236 = vmul.f32 %v232, %v225
    %237 = vadd.xlane.f32.xlu0 %v236
    %v238 = vpop.xlane.xlu0 %237
    %v239 = vsel %vm235, %v238, %v225
    %v240 = vmul.f32 %v232, %v229
    %241 = vadd.xlane.f32.xlu0 %v240
    %v242 = vpop.xlane.xlu0 %241
    %v243 = vsel %vm235, %v242, %v229
    %s244 = scalar_lea.vmem [#allocation2], 14
    %v245 = vld [vmem:[%s244] ss:$0 sm:$0xff]
    %v246 = vxor.u32 %v245, 2147483648
    %v247 = vlaneseq
    %v248 = vand.u32 %v247, 127
    %vm249 = vcmp.eq.s32.totalorder %v248, 14
    %v250 = vmul.f32 %v246, %v239
    %251 = vadd.xlane.f32.xlu0 %v250
    %v252 = vpop.xlane.xlu0 %251
    %v253 = vsel %vm249, %v252, %v239
    %v254 = vmul.f32 %v246, %v243
    %255 = vadd.xlane.f32.xlu0 %v254
    %v256 = vpop.xlane.xlu0 %255
    %v257 = vsel %vm249, %v256, %v243
    %s258 = scalar_lea.vmem [#allocation2], 15
    %v259 = vld [vmem:[%s258] ss:$0 sm:$0xff]
    %v260 = vxor.u32 %v259, 2147483648
    %v261 = vlaneseq
    %v262 = vand.u32 %v261, 127
    %vm263 = vcmp.eq.s32.totalorder %v262, 15
    %v264 = vmul.f32 %v260, %v253
    %265 = vadd.xlane.f32.xlu0 %v264
    %v266 = vpop.xlane.xlu0 %265
    %v267 = vsel %vm263, %v266, %v253
    %v268 = vmul.f32 %v260, %v257
    %269 = vadd.xlane.f32.xlu0 %v268
    %v270 = vpop.xlane.xlu0 %269
    %v271 = vsel %vm263, %v270, %v257
    %v272 = vrcp.pop %v49
    %v273 = vmul.f32 %v267, %v272
    %vm274 = vweird.f32 %v49
    %v275 = vsel %vm274, %v267, %v273
    %276 = vst [vmem:[#allocation1] sm:$0xff] %v275
    %v277 = vrcp.pop %v65
    %v278 = vmul.f32 %v271, %v277
    %vm279 = vweird.f32 %v65
    %v280 = vsel %vm279, %v271, %v278
    %s281 = scalar_lea.vmem [#allocation1], 8
    %282 = vst [vmem:[%s281] sm:$0xff] %v280
    // Predicated region
    $region36: #{custom-call.61} parent=1 // pred_check
      _
    $region37: #{custom-call.61} parent=1 // pred_check_branch
      %284 = sbr.rel (0) target = $region39
    $region38: #{custom-call.61} parent=1 // pred_region
      // Predicated region
      $region40: #{custom-call.61} parent=38 // pred_check
        _
      $region41: #{custom-call.61} parent=38 // pred_check_branch
        %286 = sbr.rel (0) target = $region43
      $region42: #{custom-call.61} parent=38 // pred_region
        // Predicated region
        $region55: #{custom-call.61} parent=42 // pred_check
          _
        $region56: #{custom-call.61} parent=42 // pred_check_branch
          %304 = sbr.rel (0) target = $region58
        $region57: #{custom-call.61} parent=42 // pred_region
          loop: start=0, step=1, limit=1
          $region59: #{custom-call.61} parent=57 // loop_pre_header
            _
          $region60: #{custom-call.61} parent=57 // loop_header
            %s306 = sphi 0, %s310
            %p307 = scmp.ge.s32.totalorder %s306, 1
            %s311 = sphi [#allocation1], [#allocation1]
            %s312 = sphi %s1, %s1
          $region61: #{custom-call.61} parent=57 // loop_header_branch
            %309 = sbr.rel (%p307) target = $region65
          $region62: #{custom-call.61} parent=57 // loop_body
            %v313 = vld [vmem:[%s311] sm:$0xff]
            %314 = vst [vmem:[%s312] sm:$0xff] %v313
            %v315 = vld [vmem:[%s311 + $0x8] sm:$0xff]
            %316 = vst [vmem:[%s312 + $0x8] sm:$0xff] %v315
          $region63: #{custom-call.61} parent=57 // loop_footer
            %s310 = sadd.s32 1, %s306
          $region64: #{custom-call.61} parent=57 // loop_footer_branch
            %305 = sbr.rel target = $region60
          $region65: #{custom-call.61} parent=57 // loop_exit
            _
        $region58: #{custom-call.61} parent=42 // pred_fallthru
          _
        // Predicated region
        $region66: #{custom-call.61} parent=42 // pred_check
          _
        $region67: #{custom-call.61} parent=42 // pred_check_branch
          %318 = sbr.rel target = $region69
        $region68: #{custom-call.61} parent=42 // pred_region
          _
        $region69: #{custom-call.61} parent=42 // pred_fallthru
          _
      $region43: #{custom-call.61} parent=38 // pred_fallthru
        _
      // Predicated region
      $region44: #{custom-call.61} parent=38 // pred_check
        _
      $region45: #{custom-call.61} parent=38 // pred_check_branch
        %288 = sbr.rel target = $region47
      $region46: #{custom-call.61} parent=38 // pred_region
        %s290 = ssub.s32 256, 1
        loop: start=0, step=1, limit=1
        $region48: #{custom-call.61} parent=46 // loop_pre_header
          _
        $region49: #{custom-call.61} parent=46 // loop_header
          %s292 = sphi 0, %s296
          %p293 = scmp.ge.s32.totalorder %s292, 1
          %s297 = sphi [#allocation1], [#allocation1]
          %s298 = sphi %s1, %s1
        $region50: #{custom-call.61} parent=46 // loop_header_branch
          %295 = sbr.rel (%p293) target = $region54
        $region51: #{custom-call.61} parent=46 // loop_body
          %v299 = vld [vmem:[%s297] sm:%s290]
          %300 = vst [vmem:[%s298] sm:%s290] %v299
          %v301 = vld [vmem:[%s297 + $0x8] sm:%s290]
          %302 = vst [vmem:[%s298 + $0x8] sm:%s290] %v301
        $region52: #{custom-call.61} parent=46 // loop_footer
          %s296 = sadd.s32 1, %s292
        $region53: #{custom-call.61} parent=46 // loop_footer_branch
          %291 = sbr.rel target = $region49
        $region54: #{custom-call.61} parent=46 // loop_exit
          _
      $region47: #{custom-call.61} parent=38 // pred_fallthru
        _
    $region39: #{custom-call.61} parent=1 // pred_fallthru
      _
    %319 = vnop

// kernel: custom-call.27
$region0: #{custom-call.27}
  %s0 = inlined_call_operand.vmem [shape: f32[8,8], index: 0, kind: input, shape index: {}]
  %s1 = inlined_call_operand.vmem [shape: f32[8,8], index: 1, kind: input, shape index: {}]
  %s2 = inlined_call_operand.vmem [shape: f32[8,8], index: 2, kind: input, shape index: {}]
  %s3 = inlined_call_operand.vmem [shape: f32[8,8], index: 3, kind: input, shape index: {}]
  %s4 = inlined_call_operand.vmem [shape: f32[8], index: 4, kind: output, shape index: {0}]
  %s5 = inlined_call_operand.vmem [shape: f32[8], index: 5, kind: output, shape index: {1}]
  %s6 = inlined_call_operand.hbm [shape: f32[8,8], index: 6, kind: output, shape index: {2}]
  %s7 = inlined_call_operand.hbm [shape: f32[8,8], index: 7, kind: output, shape index: {3}]
  %s8 = inlined_call_operand.hbm [shape: f32[8,8], index: 8, kind: output, shape index: {4}]
  %s9 = inlined_call_operand.hbm [shape: f32[8,8], index: 9, kind: output, shape index: {5}]
  %10 = xla_tuple %s4, %s5, %s6, %s7, %s8, %s9
  $region1: #{custom-call.27} parent=0
    #allocation0 [shape = 'u8[4096]{0}', space=vmem, size = 0x1000, scoped, tag = 'operand span for operand 0']
    #allocation1 [shape = 'u8[4096]{0}', space=vmem, size = 0x1000, scoped, tag = 'operand span for operand 1']
    #allocation2 [shape = 'u8[4096]{0}', space=vmem, size = 0x1000, scoped, tag = 'operand span for operand 2']
    #allocation3 [shape = 'u8[4096]{0}', space=vmem, size = 0x1000, scoped, tag = 'operand span for operand 3']
    #allocation4 [shape = 'u8[4096]{0}', space=vmem, size = 0x1000, scoped, tag = 'operand span for operand 4']
    #allocation5 [shape = 'u8[512]{0}', space=vmem, size = 0x400, scoped, tag = 'packed  for operand 4']
    #allocation6 [shape = 'u8[4096]{0}', space=vmem, size = 0x1000, scoped, tag = 'operand span for operand 5']
    #allocation7 [shape = 'u8[512]{0}', space=vmem, size = 0x400, scoped, tag = 'packed  for operand 5']
    #allocation8 [shape = 'u8[4096]{0}', space=vmem, size = 0x1000, scoped, tag = 'operand span for operand 6']
    #allocation9 [shape = 's32[1]{0}', space=sflag, size = 0x4, scoped, tag = 'scoped memory for custom-call.27']
    #allocation10 [shape = 'u8[4096]{0}', space=vmem, size = 0x1000, scoped, tag = 'operand span for operand 7']
    #allocation11 [shape = 's32[1]{0}', space=sflag, size = 0x4, scoped, tag = 'scoped memory for custom-call.27']
    #allocation12 [shape = 'u8[4096]{0}', space=vmem, size = 0x1000, scoped, tag = 'operand span for operand 8']
    #allocation13 [shape = 'u8[4096]{0}', space=vmem, size = 0x1000, scoped, tag = 'operand span for operand 9']
    #allocation14 [shape = 's32[1]{0}', space=sflag, size = 0x4, scoped, tag = 'scoped memory for custom-call.27']
    #allocation15 [shape = 'f32[8,8]{1,0}', space=vmem, size = 0x1000, scoped, tag = 'a top-left matrix']
    #allocation16 [shape = 'f32[8,8]{1,0}', space=vmem, size = 0x1000, scoped, tag = 'a top-right matrix']
    #allocation17 [shape = 'f32[8,8]{1,0}', space=vmem, size = 0x1000, scoped, tag = 'a bottom-left matrix']
    #allocation18 [shape = 'f32[8,8]{1,0}', space=vmem, size = 0x1000, scoped, tag = 'a bottom-right matrix']
    %11 = vsyncpa [#allocation9], 0
    %12 = vsyncpa [#allocation11], 0
    %13 = vsyncpa [#allocation14], 0
    %p15 = scmp.gt.s32.totalorder 8, 0
    // Predicated region
    $region2: #{custom-call.27} parent=1 // pred_check
      %p16 = pneg %p15
    $region3: #{custom-call.27} parent=1 // pred_check_branch
      %18 = sbr.rel (%p16) target = $region5
    $region4: #{custom-call.27} parent=1 // pred_region
      %s19 = sshra.s32 8, 3
      %p20 = scmp.gt.s32.totalorder %s19, 0
      // Predicated region
      $region6: #{custom-call.27} parent=4 // pred_check
        %p21 = pneg %p20
      $region7: #{custom-call.27} parent=4 // pred_check_branch
        %23 = sbr.rel (%p21) target = $region9
      $region8: #{custom-call.27} parent=4 // pred_region
        %s24 = ssub.s32 %s19, 1
        %s25 = smul.u32 %s24, 128
        %s26 = sshra.s32 %s25, 4
        %s27 = scalar_lea.vmem %s0, %s26
        %v28 = vld [vmem:[%s0] sm:$0xff]
        // While loop
        $region10: #{custom-call.27} parent=8 // loop_pre_header
          _
        $region11: #{custom-call.27} parent=8 // loop_header
          %s29 = sphi %s0, %s51
          %s30 = sphi [#allocation0], %s52
          %v31 = vphi %v28, %v53
          %s32 = ssub.s32 %s27, 64
          %p33 = scmp.gt.s32.totalorder %s29, %s32
        $region12: #{custom-call.27} parent=8 // loop_header_branch
          %35 = sbr.rel (%p33) target = $region16
        $region13: #{custom-call.27} parent=8 // loop_body
          %36 = vst [vmem:[%s30] sm:$0xff] %v31
          %v37 = vld [vmem:[%s29 + $0x8] sm:$0xff]
          %38 = vst [vmem:[%s30 + $0x8] sm:$0xff] %v37
          %v39 = vld [vmem:[%s29 + $0x10] sm:$0xff]
          %40 = vst [vmem:[%s30 + $0x10] sm:$0xff] %v39
          %v41 = vld [vmem:[%s29 + $0x18] sm:$0xff]
          %42 = vst [vmem:[%s30 + $0x18] sm:$0xff] %v41
          %v43 = vld [vmem:[%s29 + $0x20] sm:$0xff]
          %44 = vst [vmem:[%s30 + $0x20] sm:$0xff] %v43
          %v45 = vld [vmem:[%s29 + $0x28] sm:$0xff]
          %46 = vst [vmem:[%s30 + $0x28] sm:$0xff] %v45
          %v47 = vld [vmem:[%s29 + $0x30] sm:$0xff]
          %48 = vst [vmem:[%s30 + $0x30] sm:$0xff] %v47
          %v49 = vld [vmem:[%s29 + $0x38] sm:$0xff]
          %50 = vst [vmem:[%s30 + $0x38] sm:$0xff] %v49
        $region14: #{custom-call.27} parent=8 // loop_footer
          %s51 = scalar_lea.vmem %s29, 64
          %s52 = scalar_lea.vmem %s30, 64
          %v53 = vld [vmem:[%s29 + $0x40] sm:$0xff]
        $region15: #{custom-call.27} parent=8 // loop_footer_branch
          %54 = sbr.rel target = $region11
        $region16: #{custom-call.27} parent=8 // loop_exit
          _
        // While loop
        $region17: #{custom-call.27} parent=8 // loop_pre_header
          _
        $region18: #{custom-call.27} parent=8 // loop_header
          %s55 = sphi %s29, %s63
          %s56 = sphi %s30, %s64
          %v57 = vphi %v31, %v57
          %p58 = scmp.gt.s32.totalorder %s55, %s27
        $region19: #{custom-call.27} parent=8 // loop_header_branch
          %60 = sbr.rel (%p58) target = $region23
        $region20: #{custom-call.27} parent=8 // loop_body
          %v61 = vld [vmem:[%s55] sm:$0xff]
          %62 = vst [vmem:[%s56] sm:$0xff] %v61
        $region21: #{custom-call.27} parent=8 // loop_footer
          %s63 = scalar_lea.vmem %s55, 8
          %s64 = scalar_lea.vmem %s56, 8
        $region22: #{custom-call.27} parent=8 // loop_footer_branch
          %65 = sbr.rel target = $region18
        $region23: #{custom-call.27} parent=8 // loop_exit
          _
      $region9: #{custom-call.27} parent=4 // pred_fallthru
        _
      %s66 = sand.u32 8, 7
      %s67 = sshll.u32 1, %s66
      %s68 = ssub.s32 %s67, 1
      %s69 = smul.u32 %s19, 128
      %s70 = sshra.s32 %s69, 4
      %s71 = scalar_lea.vmem [#allocation0], %s70
      %s72 = smul.u32 %s19, 128
      %s73 = sshra.s32 %s72, 4
      %s74 = scalar_lea.vmem %s0, %s73
      %v75 = vld [vmem:[%s74] sm:%s68]
      %76 = vst [vmem:[%s71] sm:%s68] %v75
    $region5: #{custom-call.27} parent=1 // pred_fallthru
      _
    %p78 = scmp.gt.s32.totalorder 8, 0
    // Predicated region
    $region24: #{custom-call.27} parent=1 // pred_check
      %p79 = pneg %p78
    $region25: #{custom-call.27} parent=1 // pred_check_branch
      %81 = sbr.rel (%p79) target = $region27
    $region26: #{custom-call.27} parent=1 // pred_region
      %s82 = sshra.s32 8, 3
      %p83 = scmp.gt.s32.totalorder %s82, 0
      // Predicated region
      $region28: #{custom-call.27} parent=26 // pred_check
        %p84 = pneg %p83
      $region29: #{custom-call.27} parent=26 // pred_check_branch
        %86 = sbr.rel (%p84) target = $region31
      $region30: #{custom-call.27} parent=26 // pred_region
        %s87 = ssub.s32 %s82, 1
        %s88 = smul.u32 %s87, 128
        %s89 = sshra.s32 %s88, 4
        %s90 = scalar_lea.vmem %s1, %s89
        %v91 = vld [vmem:[%s1] sm:$0xff]
        // While loop
        $region32: #{custom-call.27} parent=30 // loop_pre_header
          _
        $region33: #{custom-call.27} parent=30 // loop_header
          %s92 = sphi %s1, %s114
          %s93 = sphi [#allocation1], %s115
          %v94 = vphi %v91, %v116
          %s95 = ssub.s32 %s90, 64
          %p96 = scmp.gt.s32.totalorder %s92, %s95
        $region34: #{custom-call.27} parent=30 // loop_header_branch
          %98 = sbr.rel (%p96) target = $region38
        $region35: #{custom-call.27} parent=30 // loop_body
          %99 = vst [vmem:[%s93] sm:$0xff] %v94
          %v100 = vld [vmem:[%s92 + $0x8] sm:$0xff]
          %101 = vst [vmem:[%s93 + $0x8] sm:$0xff] %v100
          %v102 = vld [vmem:[%s92 + $0x10] sm:$0xff]
          %103 = vst [vmem:[%s93 + $0x10] sm:$0xff] %v102
          %v104 = vld [vmem:[%s92 + $0x18] sm:$0xff]
          %105 = vst [vmem:[%s93 + $0x18] sm:$0xff] %v104
          %v106 = vld [vmem:[%s92 + $0x20] sm:$0xff]
          %107 = vst [vmem:[%s93 + $0x20] sm:$0xff] %v106
          %v108 = vld [vmem:[%s92 + $0x28] sm:$0xff]
          %109 = vst [vmem:[%s93 + $0x28] sm:$0xff] %v108
          %v110 = vld [vmem:[%s92 + $0x30] sm:$0xff]
          %111 = vst [vmem:[%s93 + $0x30] sm:$0xff] %v110
          %v112 = vld [vmem:[%s92 + $0x38] sm:$0xff]
          %113 = vst [vmem:[%s93 + $0x38] sm:$0xff] %v112
        $region36: #{custom-call.27} parent=30 // loop_footer
          %s114 = scalar_lea.vmem %s92, 64
          %s115 = scalar_lea.vmem %s93, 64
          %v116 = vld [vmem:[%s92 + $0x40] sm:$0xff]
        $region37: #{custom-call.27} parent=30 // loop_footer_branch
          %117 = sbr.rel target = $region33
        $region38: #{custom-call.27} parent=30 // loop_exit
          _
        // While loop
        $region39: #{custom-call.27} parent=30 // loop_pre_header
          _
        $region40: #{custom-call.27} parent=30 // loop_header
          %s118 = sphi %s92, %s126
          %s119 = sphi %s93, %s127
          %v120 = vphi %v94, %v120
          %p121 = scmp.gt.s32.totalorder %s118, %s90
        $region41: #{custom-call.27} parent=30 // loop_header_branch
          %123 = sbr.rel (%p121) target = $region45
        $region42: #{custom-call.27} parent=30 // loop_body
          %v124 = vld [vmem:[%s118] sm:$0xff]
          %125 = vst [vmem:[%s119] sm:$0xff] %v124
        $region43: #{custom-call.27} parent=30 // loop_footer
          %s126 = scalar_lea.vmem %s118, 8
          %s127 = scalar_lea.vmem %s119, 8
        $region44: #{custom-call.27} parent=30 // loop_footer_branch
          %128 = sbr.rel target = $region40
        $region45: #{custom-call.27} parent=30 // loop_exit
          _
      $region31: #{custom-call.27} parent=26 // pred_fallthru
        _
      %s129 = sand.u32 8, 7
      %s130 = sshll.u32 1, %s129
      %s131 = ssub.s32 %s130, 1
      %s132 = smul.u32 %s82, 128
      %s133 = sshra.s32 %s132, 4
      %s134 = scalar_lea.vmem [#allocation1], %s133
      %s135 = smul.u32 %s82, 128
      %s136 = sshra.s32 %s135, 4
      %s137 = scalar_lea.vmem %s1, %s136
      %v138 = vld [vmem:[%s137] sm:%s131]
      %139 = vst [vmem:[%s134] sm:%s131] %v138
    $region27: #{custom-call.27} parent=1 // pred_fallthru
      _
    %p141 = scmp.gt.s32.totalorder 8, 0
    // Predicated region
    $region46: #{custom-call.27} parent=1 // pred_check
      %p142 = pneg %p141
    $region47: #{custom-call.27} parent=1 // pred_check_branch
      %144 = sbr.rel (%p142) target = $region49
    $region48: #{custom-call.27} parent=1 // pred_region
      %s145 = sshra.s32 8, 3
      %p146 = scmp.gt.s32.totalorder %s145, 0
      // Predicated region
      $region50: #{custom-call.27} parent=48 // pred_check
        %p147 = pneg %p146
      $region51: #{custom-call.27} parent=48 // pred_check_branch
        %149 = sbr.rel (%p147) target = $region53
      $region52: #{custom-call.27} parent=48 // pred_region
        %s150 = ssub.s32 %s145, 1
        %s151 = smul.u32 %s150, 128
        %s152 = sshra.s32 %s151, 4
        %s153 = scalar_lea.vmem %s2, %s152
        %v154 = vld [vmem:[%s2] sm:$0xff]
        // While loop
        $region54: #{custom-call.27} parent=52 // loop_pre_header
          _
        $region55: #{custom-call.27} parent=52 // loop_header
          %s155 = sphi %s2, %s177
          %s156 = sphi [#allocation2], %s178
          %v157 = vphi %v154, %v179
          %s158 = ssub.s32 %s153, 64
          %p159 = scmp.gt.s32.totalorder %s155, %s158
        $region56: #{custom-call.27} parent=52 // loop_header_branch
          %161 = sbr.rel (%p159) target = $region60
        $region57: #{custom-call.27} parent=52 // loop_body
          %162 = vst [vmem:[%s156] sm:$0xff] %v157
          %v163 = vld [vmem:[%s155 + $0x8] sm:$0xff]
          %164 = vst [vmem:[%s156 + $0x8] sm:$0xff] %v163
          %v165 = vld [vmem:[%s155 + $0x10] sm:$0xff]
          %166 = vst [vmem:[%s156 + $0x10] sm:$0xff] %v165
          %v167 = vld [vmem:[%s155 + $0x18] sm:$0xff]
          %168 = vst [vmem:[%s156 + $0x18] sm:$0xff] %v167
          %v169 = vld [vmem:[%s155 + $0x20] sm:$0xff]
          %170 = vst [vmem:[%s156 + $0x20] sm:$0xff] %v169
          %v171 = vld [vmem:[%s155 + $0x28] sm:$0xff]
          %172 = vst [vmem:[%s156 + $0x28] sm:$0xff] %v171
          %v173 = vld [vmem:[%s155 + $0x30] sm:$0xff]
          %174 = vst [vmem:[%s156 + $0x30] sm:$0xff] %v173
          %v175 = vld [vmem:[%s155 + $0x38] sm:$0xff]
          %176 = vst [vmem:[%s156 + $0x38] sm:$0xff] %v175
        $region58: #{custom-call.27} parent=52 // loop_footer
          %s177 = scalar_lea.vmem %s155, 64
          %s178 = scalar_lea.vmem %s156, 64
          %v179 = vld [vmem:[%s155 + $0x40] sm:$0xff]
        $region59: #{custom-call.27} parent=52 // loop_footer_branch
          %180 = sbr.rel target = $region55
        $region60: #{custom-call.27} parent=52 // loop_exit
          _
        // While loop
        $region61: #{custom-call.27} parent=52 // loop_pre_header
          _
        $region62: #{custom-call.27} parent=52 // loop_header
          %s181 = sphi %s155, %s189
          %s182 = sphi %s156, %s190
          %v183 = vphi %v157, %v183
          %p184 = scmp.gt.s32.totalorder %s181, %s153
        $region63: #{custom-call.27} parent=52 // loop_header_branch
          %186 = sbr.rel (%p184) target = $region67
        $region64: #{custom-call.27} parent=52 // loop_body
          %v187 = vld [vmem:[%s181] sm:$0xff]
          %188 = vst [vmem:[%s182] sm:$0xff] %v187
        $region65: #{custom-call.27} parent=52 // loop_footer
          %s189 = scalar_lea.vmem %s181, 8
          %s190 = scalar_lea.vmem %s182, 8
        $region66: #{custom-call.27} parent=52 // loop_footer_branch
          %191 = sbr.rel target = $region62
        $region67: #{custom-call.27} parent=52 // loop_exit
          _
      $region53: #{custom-call.27} parent=48 // pred_fallthru
        _
      %s192 = sand.u32 8, 7
      %s193 = sshll.u32 1, %s192
      %s194 = ssub.s32 %s193, 1
      %s195 = smul.u32 %s145, 128
      %s196 = sshra.s32 %s195, 4
      %s197 = scalar_lea.vmem [#allocation2], %s196
      %s198 = smul.u32 %s145, 128
      %s199 = sshra.s32 %s198, 4
      %s200 = scalar_lea.vmem %s2, %s199
      %v201 = vld [vmem:[%s200] sm:%s194]
      %202 = vst [vmem:[%s197] sm:%s194] %v201
    $region49: #{custom-call.27} parent=1 // pred_fallthru
      _
    %p204 = scmp.gt.s32.totalorder 8, 0
    // Predicated region
    $region68: #{custom-call.27} parent=1 // pred_check
      %p205 = pneg %p204
    $region69: #{custom-call.27} parent=1 // pred_check_branch
      %207 = sbr.rel (%p205) target = $region71
    $region70: #{custom-call.27} parent=1 // pred_region
      %s208 = sshra.s32 8, 3
      %p209 = scmp.gt.s32.totalorder %s208, 0
      // Predicated region
      $region72: #{custom-call.27} parent=70 // pred_check
        %p210 = pneg %p209
      $region73: #{custom-call.27} parent=70 // pred_check_branch
        %212 = sbr.rel (%p210) target = $region75
      $region74: #{custom-call.27} parent=70 // pred_region
        %s213 = ssub.s32 %s208, 1
        %s214 = smul.u32 %s213, 128
        %s215 = sshra.s32 %s214, 4
        %s216 = scalar_lea.vmem %s3, %s215
        %v217 = vld [vmem:[%s3] sm:$0xff]
        // While loop
        $region76: #{custom-call.27} parent=74 // loop_pre_header
          _
        $region77: #{custom-call.27} parent=74 // loop_header
          %s218 = sphi %s3, %s240
          %s219 = sphi [#allocation3], %s241
          %v220 = vphi %v217, %v242
          %s221 = ssub.s32 %s216, 64
          %p222 = scmp.gt.s32.totalorder %s218, %s221
        $region78: #{custom-call.27} parent=74 // loop_header_branch
          %224 = sbr.rel (%p222) target = $region82
        $region79: #{custom-call.27} parent=74 // loop_body
          %225 = vst [vmem:[%s219] sm:$0xff] %v220
          %v226 = vld [vmem:[%s218 + $0x8] sm:$0xff]
          %227 = vst [vmem:[%s219 + $0x8] sm:$0xff] %v226
          %v228 = vld [vmem:[%s218 + $0x10] sm:$0xff]
          %229 = vst [vmem:[%s219 + $0x10] sm:$0xff] %v228
          %v230 = vld [vmem:[%s218 + $0x18] sm:$0xff]
          %231 = vst [vmem:[%s219 + $0x18] sm:$0xff] %v230
          %v232 = vld [vmem:[%s218 + $0x20] sm:$0xff]
          %233 = vst [vmem:[%s219 + $0x20] sm:$0xff] %v232
          %v234 = vld [vmem:[%s218 + $0x28] sm:$0xff]
          %235 = vst [vmem:[%s219 + $0x28] sm:$0xff] %v234
          %v236 = vld [vmem:[%s218 + $0x30] sm:$0xff]
          %237 = vst [vmem:[%s219 + $0x30] sm:$0xff] %v236
          %v238 = vld [vmem:[%s218 + $0x38] sm:$0xff]
          %239 = vst [vmem:[%s219 + $0x38] sm:$0xff] %v238
        $region80: #{custom-call.27} parent=74 // loop_footer
          %s240 = scalar_lea.vmem %s218, 64
          %s241 = scalar_lea.vmem %s219, 64
          %v242 = vld [vmem:[%s218 + $0x40] sm:$0xff]
        $region81: #{custom-call.27} parent=74 // loop_footer_branch
          %243 = sbr.rel target = $region77
        $region82: #{custom-call.27} parent=74 // loop_exit
          _
        // While loop
        $region83: #{custom-call.27} parent=74 // loop_pre_header
          _
        $region84: #{custom-call.27} parent=74 // loop_header
          %s244 = sphi %s218, %s252
          %s245 = sphi %s219, %s253
          %v246 = vphi %v220, %v246
          %p247 = scmp.gt.s32.totalorder %s244, %s216
        $region85: #{custom-call.27} parent=74 // loop_header_branch
          %249 = sbr.rel (%p247) target = $region89
        $region86: #{custom-call.27} parent=74 // loop_body
          %v250 = vld [vmem:[%s244] sm:$0xff]
          %251 = vst [vmem:[%s245] sm:$0xff] %v250
        $region87: #{custom-call.27} parent=74 // loop_footer
          %s252 = scalar_lea.vmem %s244, 8
          %s253 = scalar_lea.vmem %s245, 8
        $region88: #{custom-call.27} parent=74 // loop_footer_branch
          %254 = sbr.rel target = $region84
        $region89: #{custom-call.27} parent=74 // loop_exit
          _
      $region75: #{custom-call.27} parent=70 // pred_fallthru
        _
      %s255 = sand.u32 8, 7
      %s256 = sshll.u32 1, %s255
      %s257 = ssub.s32 %s256, 1
      %s258 = smul.u32 %s208, 128
      %s259 = sshra.s32 %s258, 4
      %s260 = scalar_lea.vmem [#allocation3], %s259
      %s261 = smul.u32 %s208, 128
      %s262 = sshra.s32 %s261, 4
      %s263 = scalar_lea.vmem %s3, %s262
      %v264 = vld [vmem:[%s263] sm:%s257]
      %265 = vst [vmem:[%s260] sm:%s257] %v264
    $region71: #{custom-call.27} parent=1 // pred_fallthru
      _
    %s266 = smov [#allocation15]
    %v267 = vld [vmem:[#allocation0] sm:$0xff]
    %268 = vst [vmem:[%s266] sm:$0xff] %v267
    %s269 = smov [#allocation16]
    %v270 = vld [vmem:[#allocation1] sm:$0xff]
    %271 = vst [vmem:[%s269] sm:$0xff] %v270
    %s272 = smov [#allocation17]
    %v273 = vld [vmem:[#allocation2] sm:$0xff]
    %274 = vst [vmem:[%s272] sm:$0xff] %v273
    %s275 = smov [#allocation18]
    %v276 = vld [vmem:[#allocation3] sm:$0xff]
    %277 = vst [vmem:[%s275] sm:$0xff] %v276
    %278 = vst [vmem:[#allocation8] sm:$0xff] 0.0
    %279 = vst [vmem:[#allocation10] sm:$0xff] 0.0
    %280 = vst [vmem:[#allocation12] sm:$0xff] 0.0
    %281 = vst [vmem:[#allocation13] sm:$0xff] 0.0
    %s282 = smov [#allocation8]
    %v283 = vlaneseq
    %v284 = vand.u32 %v283, 127
    %v285 = vmov %v284
    %v286 = vlaneseq
    %v287 = vshrl.u32 %v286, 7
    %v288 = vmov %v287
    %v289 = vld [vmem:[%s282] sm:$0xff]
    %vm292 = vcmp.eq.s32.totalorder %v288, %v285
    %v293 = vsel %vm292, 1.0, %v289
    %294 = vst [vmem:[%s282] sm:$0xff] %v293
    %s295 = smov [#allocation13]
    %v296 = vlaneseq
    %v297 = vand.u32 %v296, 127
    %v298 = vmov %v297
    %v299 = vlaneseq
    %v300 = vshrl.u32 %v299, 7
    %v301 = vmov %v300
    %v302 = vld [vmem:[%s295] sm:$0xff]
    %vm305 = vcmp.eq.s32.totalorder %v301, %v298
    %v306 = vsel %vm305, 1.0, %v302
    %307 = vst [vmem:[%s295] sm:$0xff] %v306
    // While loop
    $region90: #{custom-call.27} parent=1 // loop_pre_header
      _
    $region91: #{custom-call.27} parent=1 // loop_header
      %s309 = sphi 0, %s851
      %v310 = vlaneseq
      %v311 = vand.u32 %v310, 127
      %v312 = vmov %v311
      %v313 = vlaneseq
      %v314 = vshrl.u32 %v313, 7
      %v315 = vmov %v314
      %s316 = smov [#allocation15]
      %v317 = vlaneseq
      %v318 = vand.u32 %v317, 127
      %vm319 = vcmp.ge.s32.totalorder %v318, 0
      %vm320 = vcmp.lt.s32.totalorder %v318, 8
      %vm321 = vmand %vm319, %vm320
      %v322 = vld [vmem:[%s316] sm:$0xff]
      %v323 = vsel %vm321, %v322, 0.0
      %v324 = vmul.f32 %v323, %v323
      %vm327 = vcmp.eq.s32.totalorder %v315, %v312
      %v328 = vsel %vm327, 0.0, %v324
      %v329 = vlaneseq
      %v330 = vand.u32 %v329, 127
      %v331 = vmov %v330
      %v332 = vlaneseq
      %v333 = vshrl.u32 %v332, 7
      %v334 = vmov %v333
      %s335 = smov [#allocation16]
      %v336 = vlaneseq
      %v337 = vand.u32 %v336, 127
      %vm338 = vcmp.ge.s32.totalorder %v337, 0
      %vm339 = vcmp.lt.s32.totalorder %v337, 8
      %vm340 = vmand %vm338, %vm339
      %v341 = vld [vmem:[%s335] sm:$0xff]
      %v342 = vsel %vm340, %v341, 0.0
      %v343 = vmul.f32 %v342, %v342
      %v344 = vadd.f32 %v328, %v343
      %v345 = vadd.f32 %v324, %v343
      %v346 = vlaneseq
      %v347 = vand.u32 %v346, 127
      %v348 = vmov %v347
      %v349 = vlaneseq
      %v350 = vshrl.u32 %v349, 7
      %v351 = vmov %v350
      %s352 = smov [#allocation17]
      %v353 = vlaneseq
      %v354 = vand.u32 %v353, 127
      %vm355 = vcmp.ge.s32.totalorder %v354, 0
      %vm356 = vcmp.lt.s32.totalorder %v354, 8
      %vm357 = vmand %vm355, %vm356
      %v358 = vld [vmem:[%s352] sm:$0xff]
      %v359 = vsel %vm357, %v358, 0.0
      %v360 = vmul.f32 %v359, %v359
      %v361 = vadd.f32 %v344, %v360
      %v362 = vadd.f32 %v345, %v360
      %v363 = vlaneseq
      %v364 = vand.u32 %v363, 127
      %v365 = vmov %v364
      %v366 = vlaneseq
      %v367 = vshrl.u32 %v366, 7
      %v368 = vmov %v367
      %s369 = smov [#allocation18]
      %v370 = vlaneseq
      %v371 = vand.u32 %v370, 127
      %vm372 = vcmp.ge.s32.totalorder %v371, 0
      %vm373 = vcmp.lt.s32.totalorder %v371, 8
      %vm374 = vmand %vm372, %vm373
      %v375 = vld [vmem:[%s369] sm:$0xff]
      %v376 = vsel %vm374, %v375, 0.0
      %v377 = vmul.f32 %v376, %v376
      %vm380 = vcmp.eq.s32.totalorder %v368, %v365
      %v381 = vsel %vm380, 0.0, %v377
      %v382 = vadd.f32 %v361, %v381
      %v383 = vadd.f32 %v362, %v377
      %384 = vadd.xlane.f32.xlu0 %v383
      %v385 = vpop.xlane.xlu0 %384
      %v386 = vrot.slane %v385, 4
      %v387 = vadd.f32 %v385, %v386
      %v388 = vrot.slane %v387, 2
      %v389 = vadd.f32 %v387, %v388
      %v390 = vrot.slane %v389, 1
      %v391 = vadd.f32 %v389, %v390
      %392 = vadd.xlane.f32.xlu0 %v382
      %v393 = vpop.xlane.xlu0 %392
      %v394 = vrot.slane %v393, 4
      %v395 = vadd.f32 %v393, %v394
      %v396 = vrot.slane %v395, 2
      %v397 = vadd.f32 %v395, %v396
      %v398 = vrot.slane %v397, 1
      %v399 = vadd.f32 %v397, %v398
      %s400 = vtos %v399
      %s401 = vtos %v391
      %s402 = smul.f32 1e-10, %s401
      %p403 = scmp.le.f32.partialorder %s400, %s402
      %p404 = scmp.ge.s32.totalorder %s309, 15
      %p405 = por %p403, %p404
    $region92: #{custom-call.27} parent=1 // loop_header_branch
      %853 = sbr.rel (%p405) target = $region96
    $region93: #{custom-call.27} parent=1 // loop_body
      loop: start=0, step=1, limit=15
      $region97: #{custom-call.27} parent=93 // loop_pre_header
        _
      $region98: #{custom-call.27} parent=93 // loop_header
        %s407 = sphi 0, %s411
        %p408 = scmp.ge.s32.totalorder %s407, 15
      $region99: #{custom-call.27} parent=93 // loop_header_branch
        %410 = sbr.rel (%p408) target = $region103
      $region100: #{custom-call.27} parent=93 // loop_body
        #allocation19 [shape = 'f32[1024]{0}', space=vmem, size = 0x1000, scoped, tag = 'a_tl_diag vmem']
        #allocation20 [shape = 'f32[1024]{0}', space=vmem, size = 0x1000, scoped, tag = 'a_tr_diag vmem']
        #allocation21 [shape = 'f32[1024]{0}', space=vmem, size = 0x1000, scoped, tag = 'a_br_diag vmem']
        #allocation22 [shape = 'f32[1024]{0}', space=vmem, size = 0x1000, scoped, tag = 'rt1 vmem']
        #allocation23 [shape = 'f32[1024]{0}', space=vmem, size = 0x1000, scoped, tag = 'rt2 vmem']
        #allocation24 [shape = 'f32[1024]{0}', space=vmem, size = 0x1000, scoped, tag = 'c vmem']
        #allocation25 [shape = 'f32[1024]{0}', space=vmem, size = 0x1000, scoped, tag = 's vmem']
        #allocation26 [shape = 'f32[4096]{0}', space=vmem, size = 0x4000, scoped, tag = 'c broadcast']
        #allocation27 [shape = 'f32[4096]{0}', space=vmem, size = 0x4000, scoped, tag = 's broadcast']
        %s412 = smov [#allocation15]
        %s413 = smov [#allocation19]
        %v414 = vlaneseq
        %v415 = vand.u32 %v414, 127
        %v416 = vmov %v415
        %v417 = vlaneseq
        %v418 = vshrl.u32 %v417, 7
        %v419 = vmov %v418
        %v420 = vld [vmem:[%s412] sm:$0xff]
        %vm423 = vcmp.eq.s32.totalorder %v419, %v416
        %v424 = vsel %vm423, %v420, 0.0
        %v425 = vrot.slane %v424, 4
        %v426 = vadd.f32 %v424, %v425
        %v427 = vrot.slane %v426, 2
        %v428 = vadd.f32 %v426, %v427
        %v429 = vrot.slane %v428, 1
        %v430 = vadd.f32 %v428, %v429
        %431 = vst [vmem:[%s413] sm:$0x1] %v430
        %s432 = smov [#allocation16]
        %s433 = smov [#allocation20]
        %v434 = vlaneseq
        %v435 = vand.u32 %v434, 127
        %v436 = vmov %v435
        %v437 = vlaneseq
        %v438 = vshrl.u32 %v437, 7
        %v439 = vmov %v438
        %v440 = vld [vmem:[%s432] sm:$0xff]
        %vm443 = vcmp.eq.s32.totalorder %v439, %v436
        %v444 = vsel %vm443, %v440, 0.0
        %v445 = vrot.slane %v444, 4
        %v446 = vadd.f32 %v444, %v445
        %v447 = vrot.slane %v446, 2
        %v448 = vadd.f32 %v446, %v447
        %v449 = vrot.slane %v448, 1
        %v450 = vadd.f32 %v448, %v449
        %451 = vst [vmem:[%s433] sm:$0x1] %v450
        %s452 = smov [#allocation18]
        %s453 = smov [#allocation21]
        %v454 = vlaneseq
        %v455 = vand.u32 %v454, 127
        %v456 = vmov %v455
        %v457 = vlaneseq
        %v458 = vshrl.u32 %v457, 7
        %v459 = vmov %v458
        %v460 = vld [vmem:[%s452] sm:$0xff]
        %vm463 = vcmp.eq.s32.totalorder %v459, %v456
        %v464 = vsel %vm463, %v460, 0.0
        %v465 = vrot.slane %v464, 4
        %v466 = vadd.f32 %v464, %v465
        %v467 = vrot.slane %v466, 2
        %v468 = vadd.f32 %v466, %v467
        %v469 = vrot.slane %v468, 1
        %v470 = vadd.f32 %v468, %v469
        %471 = vst [vmem:[%s453] sm:$0x1] %v470
        %s472 = smov [#allocation24]
        %s473 = smov [#allocation25]
        %s474 = smov [#allocation19]
        %v475 = vld [vmem:[%s474] sm:$0xff]
        %s476 = smov [#allocation20]
        %v477 = vld [vmem:[%s476] sm:$0xff]
        %s478 = smov [#allocation21]
        %v479 = vld [vmem:[%s478] sm:$0xff]
        %v480 = vsub.f32 %v479, %v475
        %v481 = vmul.f32 2.0, %v477
        %v482 = vrcp.pop %v481
        %v483 = vmul.f32 %v480, %v482
        %vm484 = vcmp.ge.f32.partialorder %v483, 0.0
        %v485 = vmul.f32 %v483, %v483
        %v486 = vadd.f32 1.0, %v485
        %v487 = vrsqrt.pop %v486
        %v488 = vmul.f32 %v486, %v487
        %vm489 = vcmp.eq.f32.partialorder %v486, inf
        %v490 = vsel %vm489, %v486, %v488
        %vm491 = vcmp.eq.f32.partialorder %v486, 0.0
        %v492 = vand.u32 %v486, 2147483648
        %v493 = vsel %vm491, %v492, %v490
        %v494 = vxor.u32 %v493, 2147483648
        %v495 = vsel %vm484, %v493, %v494
        %v496 = vadd.f32 %v483, %v495
        %v497 = vrcp.pop %v496
        %v498 = vand.u32 2147483647, %v475
        %v499 = vand.u32 2147483647, %v477
        %v500 = vand.u32 2147483647, %v479
        %v501 = vmin.f32 %v498, %v500
        %v502 = vmul.f32 1.1920929e-08, %v501
        %vm503 = vcmp.le.f32.partialorder %v499, %v502
        %v504 = vsel %vm503, 0.0, %v497
        %v505 = vmul.f32 %v504, %v504
        %v506 = vadd.f32 1.0, %v505
        %v507 = vrsqrt.pop %v506
        %v508 = vmul.f32 %v504, %v507
        %v509 = vmul.f32 %v504, %v477
        %v510 = vsub.f32 %v475, %v509
        %v511 = vmul.f32 %v504, %v477
        %v512 = vadd.f32 %v479, %v511
        %s513 = smov [#allocation22]
        %514 = vst [vmem:[%s513] sm:$0xff] %v510
        %s515 = smov [#allocation23]
        %516 = vst [vmem:[%s515] sm:$0xff] %v512
        %s517 = smov %s472
        %518 = vst [vmem:[%s517] sm:$0xff] %v507
        %s519 = smov %s473
        %520 = vst [vmem:[%s519] sm:$0xff] %v508
        %s521 = smov [#allocation24]
        %v522 = vld [vmem:[%s521] ss:$0 sm:$0xff]
        %v523 = vlaneseq
        %v524 = vand.u32 %v523, 127
        %v525 = vmov %v524
        %v526 = vlaneseq
        %v527 = vshrl.u32 %v526, 7
        %v528 = vmov %v527
        %vm530 = vcmp.eq.s32.totalorder %v528, %v525
        %v531 = vsel %vm530, %v522, 0.0
        %532 = vadd.xlane.f32.xlu0 %v531
        %v533 = vpop.xlane.xlu0 %532
        %s534 = smov [#allocation26]
        %535 = vst [vmem:[%s534] sm:$0xff] %v533
        %s536 = smov [#allocation25]
        %v537 = vld [vmem:[%s536] ss:$0 sm:$0xff]
        %v538 = vlaneseq
        %v539 = vand.u32 %v538, 127
        %v540 = vmov %v539
        %v541 = vlaneseq
        %v542 = vshrl.u32 %v541, 7
        %v543 = vmov %v542
        %vm545 = vcmp.eq.s32.totalorder %v543, %v540
        %v546 = vsel %vm545, %v537, 0.0
        %547 = vadd.xlane.f32.xlu0 %v546
        %v548 = vpop.xlane.xlu0 %547
        %s549 = smov [#allocation27]
        %550 = vst [vmem:[%s549] sm:$0xff] %v548
        %s551 = smov [#allocation26]
        %v552 = vld [vmem:[%s551] sm:$0xff]
        %s553 = smov [#allocation27]
        %v554 = vld [vmem:[%s553] sm:$0xff]
        %s555 = smov [#allocation15]
        %s556 = smov [#allocation16]
        %s557 = smov [#allocation17]
        %s558 = smov [#allocation18]
        %v559 = vld [vmem:[%s555] sm:$0xff]
        %v560 = vld [vmem:[%s556] sm:$0xff]
        %v561 = vld [vmem:[%s557] sm:$0xff]
        %v562 = vld [vmem:[%s558] sm:$0xff]
        %v563 = vmul.f32 %v552, %v559
        %v564 = vmul.f32 %v554, %v561
        %v565 = vsub.f32 %v563, %v564
        %v566 = vmul.f32 %v552, %v560
        %v567 = vmul.f32 %v554, %v562
        %v568 = vsub.f32 %v566, %v567
        %v569 = vmul.f32 %v554, %v559
        %v570 = vmul.f32 %v552, %v561
        %v571 = vadd.f32 %v569, %v570
        %v572 = vmul.f32 %v554, %v560
        %v573 = vmul.f32 %v552, %v562
        %v574 = vadd.f32 %v572, %v573
        %575 = vst [vmem:[%s555] sm:$0xff] %v565
        %576 = vst [vmem:[%s556] sm:$0xff] %v568
        %577 = vst [vmem:[%s557] sm:$0xff] %v571
        %578 = vst [vmem:[%s558] sm:$0xff] %v574
        %s579 = smov [#allocation24]
        %v580 = vld [vmem:[%s579] ss:$0 sm:$0xff]
        %s581 = smov [#allocation25]
        %v582 = vld [vmem:[%s581] ss:$0 sm:$0xff]
        %s583 = smov [#allocation15]
        %s584 = smov [#allocation16]
        %s585 = smov [#allocation17]
        %s586 = smov [#allocation18]
        %v587 = vld [vmem:[%s583] sm:$0xff]
        %v588 = vld [vmem:[%s584] sm:$0xff]
        %v589 = vld [vmem:[%s585] sm:$0xff]
        %v590 = vld [vmem:[%s586] sm:$0xff]
        %v591 = vmul.f32 %v580, %v587
        %v592 = vmul.f32 %v582, %v588
        %v593 = vsub.f32 %v591, %v592
        %v594 = vmul.f32 %v582, %v587
        %v595 = vmul.f32 %v580, %v588
        %v596 = vadd.f32 %v594, %v595
        %v597 = vmul.f32 %v580, %v589
        %v598 = vmul.f32 %v582, %v590
        %v599 = vsub.f32 %v597, %v598
        %v600 = vmul.f32 %v582, %v589
        %v601 = vmul.f32 %v580, %v590
        %v602 = vadd.f32 %v600, %v601
        %603 = vst [vmem:[%s583] sm:$0xff] %v593
        %604 = vst [vmem:[%s584] sm:$0xff] %v596
        %605 = vst [vmem:[%s585] sm:$0xff] %v599
        %606 = vst [vmem:[%s586] sm:$0xff] %v602
        %s607 = smov [#allocation15]
        %s608 = smov [#allocation22]
        %v609 = vlaneseq
        %v610 = vand.u32 %v609, 127
        %v611 = vmov %v610
        %v612 = vlaneseq
        %v613 = vshrl.u32 %v612, 7
        %v614 = vmov %v613
        %v615 = vld [vmem:[%s608] ss:$0 sm:$0xff]
        %v616 = vld [vmem:[%s607] sm:$0xff]
        %vm619 = vcmp.eq.s32.totalorder %v614, %v611
        %v620 = vsel %vm619, %v615, %v616
        %621 = vst [vmem:[%s607] sm:$0xff] %v620
        %s622 = smov [#allocation16]
        %v623 = vlaneseq
        %v624 = vand.u32 %v623, 127
        %v625 = vmov %v624
        %v626 = vlaneseq
        %v627 = vshrl.u32 %v626, 7
        %v628 = vmov %v627
        %v629 = vld [vmem:[%s622] sm:$0xff]
        %vm632 = vcmp.eq.s32.totalorder %v628, %v625
        %v633 = vsel %vm632, 0.0, %v629
        %634 = vst [vmem:[%s622] sm:$0xff] %v633
        %s635 = smov [#allocation17]
        %v636 = vlaneseq
        %v637 = vand.u32 %v636, 127
        %v638 = vmov %v637
        %v639 = vlaneseq
        %v640 = vshrl.u32 %v639, 7
        %v641 = vmov %v640
        %v642 = vld [vmem:[%s635] sm:$0xff]
        %vm645 = vcmp.eq.s32.totalorder %v641, %v638
        %v646 = vsel %vm645, 0.0, %v642
        %647 = vst [vmem:[%s635] sm:$0xff] %v646
        %s648 = smov [#allocation18]
        %s649 = smov [#allocation23]
        %v650 = vlaneseq
        %v651 = vand.u32 %v650, 127
        %v652 = vmov %v651
        %v653 = vlaneseq
        %v654 = vshrl.u32 %v653, 7
        %v655 = vmov %v654
        %v656 = vld [vmem:[%s649] ss:$0 sm:$0xff]
        %v657 = vld [vmem:[%s648] sm:$0xff]
        %vm660 = vcmp.eq.s32.totalorder %v655, %v652
        %v661 = vsel %vm660, %v656, %v657
        %662 = vst [vmem:[%s648] sm:$0xff] %v661
        %s663 = smov [#allocation15]
        %s664 = smov [#allocation16]
        %v665 = vld [vmem:[%s664] sm:$0xff]
        %666 = vrot.lane.b32.xlu0 %v665, 1
        %v667 = vpop.permute.xlu0 %666
        %v668 = vld [vmem:[%s663] sm:$0xff]
        %v669 = vld [vmem:[%s663] sm:$0xff]
        %670 = vrot.lane.b32.xlu0 %v669, 1
        %v671 = vpop.permute.xlu0 %670
        %v672 = vlaneseq
        %v673 = vand.u32 %v672, 127
        %vm674 = vcmp.eq.s32.totalorder %v673, 0
        %v675 = vsel %vm674, %v669, %v671
        %v676 = vlaneseq
        %v677 = vand.u32 %v676, 127
        %vm678 = vcmp.eq.s32.totalorder %v677, 1
        %v679 = vsel %vm678, %v667, %v675
        %v680 = vlaneseq
        %v681 = vand.u32 %v680, 127
        %vm682 = vcmp.ge.s32.totalorder %v681, 0
        %vm683 = vcmp.lt.s32.totalorder %v681, 8
        %vm684 = vmand %vm682, %vm683
        %v685 = vsel %vm684, %v679, 0.0
        %v686 = vld [vmem:[%s664] sm:$0xff]
        %687 = vrot.lane.b32.xlu0 %v686, 127
        %v688 = vpop.permute.xlu0 %687
        %v689 = vlaneseq
        %v690 = vand.u32 %v689, 127
        %vm691 = vcmp.eq.s32.totalorder %v690, 7
        %v692 = vsel %vm691, %v668, %v688
        %693 = vst [vmem:[%s663] sm:$0xff] %v685
        %694 = vst [vmem:[%s664] sm:$0xff] %v692
        %s695 = smov [#allocation17]
        %s696 = smov [#allocation18]
        %v697 = vld [vmem:[%s696] sm:$0xff]
        %698 = vrot.lane.b32.xlu0 %v697, 1
        %v699 = vpop.permute.xlu0 %698
        %v700 = vld [vmem:[%s695] sm:$0xff]
        %v701 = vld [vmem:[%s695] sm:$0xff]
        %702 = vrot.lane.b32.xlu0 %v701, 1
        %v703 = vpop.permute.xlu0 %702
        %v704 = vlaneseq
        %v705 = vand.u32 %v704, 127
        %vm706 = vcmp.eq.s32.totalorder %v705, 0
        %v707 = vsel %vm706, %v701, %v703
        %v708 = vlaneseq
        %v709 = vand.u32 %v708, 127
        %vm710 = vcmp.eq.s32.totalorder %v709, 1
        %v711 = vsel %vm710, %v699, %v707
        %v712 = vlaneseq
        %v713 = vand.u32 %v712, 127
        %vm714 = vcmp.ge.s32.totalorder %v713, 0
        %vm715 = vcmp.lt.s32.totalorder %v713, 8
        %vm716 = vmand %vm714, %vm715
        %v717 = vsel %vm716, %v711, 0.0
        %v718 = vld [vmem:[%s696] sm:$0xff]
        %719 = vrot.lane.b32.xlu0 %v718, 127
        %v720 = vpop.permute.xlu0 %719
        %v721 = vlaneseq
        %v722 = vand.u32 %v721, 127
        %vm723 = vcmp.eq.s32.totalorder %v722, 7
        %v724 = vsel %vm723, %v700, %v720
        %725 = vst [vmem:[%s695] sm:$0xff] %v717
        %726 = vst [vmem:[%s696] sm:$0xff] %v724
        %s727 = smov [#allocation15]
        %s728 = smov [#allocation17]
        %v729 = vld [vmem:[%s727] ss:$0 sm:$0xff]
        %s731 = scalar_lea.vmem %s727, 4294967295
        %v732 = vld [vmem:[%s731] sm:$0xfe]
        %v733 = vlaneseq
        %v734 = vshrl.u32 %v733, 7
        %vm735 = vcmp.eq.s32.totalorder %v734, 0
        %v736 = vsel %vm735, %v729, %v732
        %s737 = scalar_lea.vmem %s727, 7
        %v738 = vld [vmem:[%s737] ss:$0 sm:$0xff]
        %739 = vst [vmem:[%s727] sm:$0xff] %v736
        %v740 = vld [vmem:[%s728] ss:$0 sm:$0xff]
        %s741 = scalar_lea.vmem %s727, 1
        %742 = vst [vmem:[%s741] sm:$0x1] %v740
        %s743 = scalar_lea.vmem %s728, 1
        %v744 = vld [vmem:[%s743] sm:$0x7f]
        %v745 = vlaneseq
        %v746 = vshrl.u32 %v745, 7
        %vm747 = vcmp.eq.s32.totalorder %v746, 7
        %v748 = vsel %vm747, %v738, %v744
        %v749 = vld [vmem:[%s728] ss:$0 sm:$0xff]
        %750 = vst [vmem:[%s728] sm:$0xff] %v748
        %s751 = smov [#allocation16]
        %s752 = smov [#allocation18]
        %v753 = vld [vmem:[%s751] ss:$0 sm:$0xff]
        %s755 = scalar_lea.vmem %s751, 4294967295
        %v756 = vld [vmem:[%s755] sm:$0xfe]
        %v757 = vlaneseq
        %v758 = vshrl.u32 %v757, 7
        %vm759 = vcmp.eq.s32.totalorder %v758, 0
        %v760 = vsel %vm759, %v753, %v756
        %s761 = scalar_lea.vmem %s751, 7
        %v762 = vld [vmem:[%s761] ss:$0 sm:$0xff]
        %763 = vst [vmem:[%s751] sm:$0xff] %v760
        %v764 = vld [vmem:[%s752] ss:$0 sm:$0xff]
        %s765 = scalar_lea.vmem %s751, 1
        %766 = vst [vmem:[%s765] sm:$0x1] %v764
        %s767 = scalar_lea.vmem %s752, 1
        %v768 = vld [vmem:[%s767] sm:$0x7f]
        %v769 = vlaneseq
        %v770 = vshrl.u32 %v769, 7
        %vm771 = vcmp.eq.s32.totalorder %v770, 7
        %v772 = vsel %vm771, %v762, %v768
        %v773 = vld [vmem:[%s752] ss:$0 sm:$0xff]
        %774 = vst [vmem:[%s752] sm:$0xff] %v772
        %s775 = smov [#allocation26]
        %v776 = vld [vmem:[%s775] sm:$0xff]
        %s777 = smov [#allocation27]
        %v778 = vld [vmem:[%s777] sm:$0xff]
        %s779 = smov [#allocation8]
        %s780 = smov [#allocation10]
        %s781 = smov [#allocation12]
        %s782 = smov [#allocation13]
        %v783 = vld [vmem:[%s779] sm:$0xff]
        %v784 = vld [vmem:[%s780] sm:$0xff]
        %v785 = vld [vmem:[%s781] sm:$0xff]
        %v786 = vld [vmem:[%s782] sm:$0xff]
        %v787 = vmul.f32 %v776, %v783
        %v788 = vmul.f32 %v778, %v785
        %v789 = vsub.f32 %v787, %v788
        %v790 = vmul.f32 %v776, %v784
        %v791 = vmul.f32 %v778, %v786
        %v792 = vsub.f32 %v790, %v791
        %v793 = vmul.f32 %v778, %v783
        %v794 = vmul.f32 %v776, %v785
        %v795 = vadd.f32 %v793, %v794
        %v796 = vmul.f32 %v778, %v784
        %v797 = vmul.f32 %v776, %v786
        %v798 = vadd.f32 %v796, %v797
        %799 = vst [vmem:[%s779] sm:$0xff] %v789
        %800 = vst [vmem:[%s780] sm:$0xff] %v792
        %801 = vst [vmem:[%s781] sm:$0xff] %v795
        %802 = vst [vmem:[%s782] sm:$0xff] %v798
        %s803 = smov [#allocation8]
        %s804 = smov [#allocation12]
        %v805 = vld [vmem:[%s803] ss:$0 sm:$0xff]
        %s807 = scalar_lea.vmem %s803, 4294967295
        %v808 = vld [vmem:[%s807] sm:$0xfe]
        %v809 = vlaneseq
        %v810 = vshrl.u32 %v809, 7
        %vm811 = vcmp.eq.s32.totalorder %v810, 0
        %v812 = vsel %vm811, %v805, %v808
        %s813 = scalar_lea.vmem %s803, 7
        %v814 = vld [vmem:[%s813] ss:$0 sm:$0xff]
        %815 = vst [vmem:[%s803] sm:$0xff] %v812
        %v816 = vld [vmem:[%s804] ss:$0 sm:$0xff]
        %s817 = scalar_lea.vmem %s803, 1
        %818 = vst [vmem:[%s817] sm:$0x1] %v816
        %s819 = scalar_lea.vmem %s804, 1
        %v820 = vld [vmem:[%s819] sm:$0x7f]
        %v821 = vlaneseq
        %v822 = vshrl.u32 %v821, 7
        %vm823 = vcmp.eq.s32.totalorder %v822, 7
        %v824 = vsel %vm823, %v814, %v820
        %v825 = vld [vmem:[%s804] ss:$0 sm:$0xff]
        %826 = vst [vmem:[%s804] sm:$0xff] %v824
        %s827 = smov [#allocation10]
        %s828 = smov [#allocation13]
        %v829 = vld [vmem:[%s827] ss:$0 sm:$0xff]
        %s831 = scalar_lea.vmem %s827, 4294967295
        %v832 = vld [vmem:[%s831] sm:$0xfe]
        %v833 = vlaneseq
        %v834 = vshrl.u32 %v833, 7
        %vm835 = vcmp.eq.s32.totalorder %v834, 0
        %v836 = vsel %vm835, %v829, %v832
        %s837 = scalar_lea.vmem %s827, 7
        %v838 = vld [vmem:[%s837] ss:$0 sm:$0xff]
        %839 = vst [vmem:[%s827] sm:$0xff] %v836
        %v840 = vld [vmem:[%s828] ss:$0 sm:$0xff]
        %s841 = scalar_lea.vmem %s827, 1
        %842 = vst [vmem:[%s841] sm:$0x1] %v840
        %s843 = scalar_lea.vmem %s828, 1
        %v844 = vld [vmem:[%s843] sm:$0x7f]
        %v845 = vlaneseq
        %v846 = vshrl.u32 %v845, 7
        %vm847 = vcmp.eq.s32.totalorder %v846, 7
        %v848 = vsel %vm847, %v838, %v844
        %v849 = vld [vmem:[%s828] ss:$0 sm:$0xff]
        %850 = vst [vmem:[%s828] sm:$0xff] %v848
      $region101: #{custom-call.27} parent=93 // loop_footer
        %s411 = sadd.s32 1, %s407
      $region102: #{custom-call.27} parent=93 // loop_footer_branch
        %406 = sbr.rel target = $region98
      $region103: #{custom-call.27} parent=93 // loop_exit
        _
      %s851 = sadd.s32 %s309, 1
    $region94: #{custom-call.27} parent=1 // loop_footer
      _
    $region95: #{custom-call.27} parent=1 // loop_footer_branch
      %308 = sbr.rel target = $region91
    $region96: #{custom-call.27} parent=1 // loop_exit
      _
    %s854 = smov [#allocation15]
    %s855 = smov [#allocation4]
    %v856 = vlaneseq
    %v857 = vand.u32 %v856, 127
    %v858 = vmov %v857
    %v859 = vlaneseq
    %v860 = vshrl.u32 %v859, 7
    %v861 = vmov %v860
    %v862 = vld [vmem:[%s854] sm:$0xff]
    %vm865 = vcmp.eq.s32.totalorder %v861, %v858
    %v866 = vsel %vm865, %v862, 0.0
    %v867 = vrot.slane %v866, 4
    %v868 = vadd.f32 %v866, %v867
    %v869 = vrot.slane %v868, 2
    %v870 = vadd.f32 %v868, %v869
    %v871 = vrot.slane %v870, 1
    %v872 = vadd.f32 %v870, %v871
    %873 = vst [vmem:[%s855] sm:$0x1] %v872
    %s874 = smov [#allocation18]
    %s875 = smov [#allocation6]
    %v876 = vlaneseq
    %v877 = vand.u32 %v876, 127
    %v878 = vmov %v877
    %v879 = vlaneseq
    %v880 = vshrl.u32 %v879, 7
    %v881 = vmov %v880
    %v882 = vld [vmem:[%s874] sm:$0xff]
    %vm885 = vcmp.eq.s32.totalorder %v881, %v878
    %v886 = vsel %vm885, %v882, 0.0
    %v887 = vrot.slane %v886, 4
    %v888 = vadd.f32 %v886, %v887
    %v889 = vrot.slane %v888, 2
    %v890 = vadd.f32 %v888, %v889
    %v891 = vrot.slane %v890, 1
    %v892 = vadd.f32 %v890, %v891
    %893 = vst [vmem:[%s875] sm:$0x1] %v892
    %s895 = sshll.u32 1, 1
    %s896 = ssub.s32 %s895, 1
    %v898 = vld [vmem:[#allocation4] sm:%s896]
    %s899 = sshll.u32 1, 1
    %s900 = ssub.s32 %s899, 1
    %901 = vst [vmem:[#allocation5] sm:%s900] %v898
    %s903 = sshll.u32 1, 1
    %s904 = ssub.s32 %s903, 1
    %v906 = vld [vmem:[#allocation6] sm:%s904]
    %s907 = sshll.u32 1, 1
    %s908 = ssub.s32 %s907, 1
    %909 = vst [vmem:[#allocation7] sm:%s908] %v906
    // Predicated region
    $region104: #{custom-call.27} parent=1 // pred_check
      _
    $region105: #{custom-call.27} parent=1 // pred_check_branch
      %911 = sbr.rel (0) target = $region107
    $region106: #{custom-call.27} parent=1 // pred_region
      %p913 = scmp.gt.s32.totalorder 1, 0
      // Predicated region
      $region108: #{custom-call.27} parent=106 // pred_check
        %p914 = pneg %p913
      $region109: #{custom-call.27} parent=106 // pred_check_branch
        %916 = sbr.rel (%p914) target = $region111
      $region110: #{custom-call.27} parent=106 // pred_region
        %s917 = sshra.s32 1, 3
        %p918 = scmp.gt.s32.totalorder %s917, 0
        // Predicated region
        $region112: #{custom-call.27} parent=110 // pred_check
          %p919 = pneg %p918
        $region113: #{custom-call.27} parent=110 // pred_check_branch
          %921 = sbr.rel (%p919) target = $region115
        $region114: #{custom-call.27} parent=110 // pred_region
          %s922 = ssub.s32 %s917, 1
          %s923 = smul.u32 %s922, 128
          %s924 = sshra.s32 %s923, 4
          %s925 = scalar_lea.vmem [#allocation5], %s924
          %v926 = vld [vmem:[#allocation5] sm:$0xff]
          // While loop
          $region116: #{custom-call.27} parent=114 // loop_pre_header
            _
          $region117: #{custom-call.27} parent=114 // loop_header
            %s927 = sphi [#allocation5], %s949
            %s928 = sphi %s4, %s950
            %v929 = vphi %v926, %v951
            %s930 = ssub.s32 %s925, 64
            %p931 = scmp.gt.s32.totalorder %s927, %s930
          $region118: #{custom-call.27} parent=114 // loop_header_branch
            %933 = sbr.rel (%p931) target = $region122
          $region119: #{custom-call.27} parent=114 // loop_body
            %934 = vst [vmem:[%s928] sm:$0xff] %v929
            %v935 = vld [vmem:[%s927 + $0x8] sm:$0xff]
            %936 = vst [vmem:[%s928 + $0x8] sm:$0xff] %v935
            %v937 = vld [vmem:[%s927 + $0x10] sm:$0xff]
            %938 = vst [vmem:[%s928 + $0x10] sm:$0xff] %v937
            %v939 = vld [vmem:[%s927 + $0x18] sm:$0xff]
            %940 = vst [vmem:[%s928 + $0x18] sm:$0xff] %v939
            %v941 = vld [vmem:[%s927 + $0x20] sm:$0xff]
            %942 = vst [vmem:[%s928 + $0x20] sm:$0xff] %v941
            %v943 = vld [vmem:[%s927 + $0x28] sm:$0xff]
            %944 = vst [vmem:[%s928 + $0x28] sm:$0xff] %v943
            %v945 = vld [vmem:[%s927 + $0x30] sm:$0xff]
            %946 = vst [vmem:[%s928 + $0x30] sm:$0xff] %v945
            %v947 = vld [vmem:[%s927 + $0x38] sm:$0xff]
            %948 = vst [vmem:[%s928 + $0x38] sm:$0xff] %v947
          $region120: #{custom-call.27} parent=114 // loop_footer
            %s949 = scalar_lea.vmem %s927, 64
            %s950 = scalar_lea.vmem %s928, 64
            %v951 = vld [vmem:[%s927 + $0x40] sm:$0xff]
          $region121: #{custom-call.27} parent=114 // loop_footer_branch
            %952 = sbr.rel target = $region117
          $region122: #{custom-call.27} parent=114 // loop_exit
            _
          // While loop
          $region123: #{custom-call.27} parent=114 // loop_pre_header
            _
          $region124: #{custom-call.27} parent=114 // loop_header
            %s953 = sphi %s927, %s961
            %s954 = sphi %s928, %s962
            %v955 = vphi %v929, %v955
            %p956 = scmp.gt.s32.totalorder %s953, %s925
          $region125: #{custom-call.27} parent=114 // loop_header_branch
            %958 = sbr.rel (%p956) target = $region129
          $region126: #{custom-call.27} parent=114 // loop_body
            %v959 = vld [vmem:[%s953] sm:$0xff]
            %960 = vst [vmem:[%s954] sm:$0xff] %v959
          $region127: #{custom-call.27} parent=114 // loop_footer
            %s961 = scalar_lea.vmem %s953, 8
            %s962 = scalar_lea.vmem %s954, 8
          $region128: #{custom-call.27} parent=114 // loop_footer_branch
            %963 = sbr.rel target = $region124
          $region129: #{custom-call.27} parent=114 // loop_exit
            _
        $region115: #{custom-call.27} parent=110 // pred_fallthru
          _
        %s964 = sand.u32 1, 7
        %s965 = sshll.u32 1, %s964
        %s966 = ssub.s32 %s965, 1
        %s967 = smul.u32 %s917, 128
        %s968 = sshra.s32 %s967, 4
        %s969 = scalar_lea.vmem %s4, %s968
        %s970 = smul.u32 %s917, 128
        %s971 = sshra.s32 %s970, 4
        %s972 = scalar_lea.vmem [#allocation5], %s971
        %v973 = vld [vmem:[%s972] sm:%s966]
        %974 = vst [vmem:[%s969] sm:%s966] %v973
      $region111: #{custom-call.27} parent=106 // pred_fallthru
        _
    $region107: #{custom-call.27} parent=1 // pred_fallthru
      _
    // Predicated region
    $region130: #{custom-call.27} parent=1 // pred_check
      _
    $region131: #{custom-call.27} parent=1 // pred_check_branch
      %976 = sbr.rel (0) target = $region133
    $region132: #{custom-call.27} parent=1 // pred_region
      %p978 = scmp.gt.s32.totalorder 1, 0
      // Predicated region
      $region134: #{custom-call.27} parent=132 // pred_check
        %p979 = pneg %p978
      $region135: #{custom-call.27} parent=132 // pred_check_branch
        %981 = sbr.rel (%p979) target = $region137
      $region136: #{custom-call.27} parent=132 // pred_region
        %s982 = sshra.s32 1, 3
        %p983 = scmp.gt.s32.totalorder %s982, 0
        // Predicated region
        $region138: #{custom-call.27} parent=136 // pred_check
          %p984 = pneg %p983
        $region139: #{custom-call.27} parent=136 // pred_check_branch
          %986 = sbr.rel (%p984) target = $region141
        $region140: #{custom-call.27} parent=136 // pred_region
          %s987 = ssub.s32 %s982, 1
          %s988 = smul.u32 %s987, 128
          %s989 = sshra.s32 %s988, 4
          %s990 = scalar_lea.vmem [#allocation7], %s989
          %v991 = vld [vmem:[#allocation7] sm:$0xff]
          // While loop
          $region142: #{custom-call.27} parent=140 // loop_pre_header
            _
          $region143: #{custom-call.27} parent=140 // loop_header
            %s992 = sphi [#allocation7], %s1014
            %s993 = sphi %s5, %s1015
            %v994 = vphi %v991, %v1016
            %s995 = ssub.s32 %s990, 64
            %p996 = scmp.gt.s32.totalorder %s992, %s995
          $region144: #{custom-call.27} parent=140 // loop_header_branch
            %998 = sbr.rel (%p996) target = $region148
          $region145: #{custom-call.27} parent=140 // loop_body
            %999 = vst [vmem:[%s993] sm:$0xff] %v994
            %v1000 = vld [vmem:[%s992 + $0x8] sm:$0xff]
            %1001 = vst [vmem:[%s993 + $0x8] sm:$0xff] %v1000
            %v1002 = vld [vmem:[%s992 + $0x10] sm:$0xff]
            %1003 = vst [vmem:[%s993 + $0x10] sm:$0xff] %v1002
            %v1004 = vld [vmem:[%s992 + $0x18] sm:$0xff]
            %1005 = vst [vmem:[%s993 + $0x18] sm:$0xff] %v1004
            %v1006 = vld [vmem:[%s992 + $0x20] sm:$0xff]
            %1007 = vst [vmem:[%s993 + $0x20] sm:$0xff] %v1006
            %v1008 = vld [vmem:[%s992 + $0x28] sm:$0xff]
            %1009 = vst [vmem:[%s993 + $0x28] sm:$0xff] %v1008
            %v1010 = vld [vmem:[%s992 + $0x30] sm:$0xff]
            %1011 = vst [vmem:[%s993 + $0x30] sm:$0xff] %v1010
            %v1012 = vld [vmem:[%s992 + $0x38] sm:$0xff]
            %1013 = vst [vmem:[%s993 + $0x38] sm:$0xff] %v1012
          $region146: #{custom-call.27} parent=140 // loop_footer
            %s1014 = scalar_lea.vmem %s992, 64
            %s1015 = scalar_lea.vmem %s993, 64
            %v1016 = vld [vmem:[%s992 + $0x40] sm:$0xff]
          $region147: #{custom-call.27} parent=140 // loop_footer_branch
            %1017 = sbr.rel target = $region143
          $region148: #{custom-call.27} parent=140 // loop_exit
            _
          // While loop
          $region149: #{custom-call.27} parent=140 // loop_pre_header
            _
          $region150: #{custom-call.27} parent=140 // loop_header
            %s1018 = sphi %s992, %s1026
            %s1019 = sphi %s993, %s1027
            %v1020 = vphi %v994, %v1020
            %p1021 = scmp.gt.s32.totalorder %s1018, %s990
          $region151: #{custom-call.27} parent=140 // loop_header_branch
            %1023 = sbr.rel (%p1021) target = $region155
          $region152: #{custom-call.27} parent=140 // loop_body
            %v1024 = vld [vmem:[%s1018] sm:$0xff]
            %1025 = vst [vmem:[%s1019] sm:$0xff] %v1024
          $region153: #{custom-call.27} parent=140 // loop_footer
            %s1026 = scalar_lea.vmem %s1018, 8
            %s1027 = scalar_lea.vmem %s1019, 8
          $region154: #{custom-call.27} parent=140 // loop_footer_branch
            %1028 = sbr.rel target = $region150
          $region155: #{custom-call.27} parent=140 // loop_exit
            _
        $region141: #{custom-call.27} parent=136 // pred_fallthru
          _
        %s1029 = sand.u32 1, 7
        %s1030 = sshll.u32 1, %s1029
        %s1031 = ssub.s32 %s1030, 1
        %s1032 = smul.u32 %s982, 128
        %s1033 = sshra.s32 %s1032, 4
        %s1034 = scalar_lea.vmem %s5, %s1033
        %s1035 = smul.u32 %s982, 128
        %s1036 = sshra.s32 %s1035, 4
        %s1037 = scalar_lea.vmem [#allocation7], %s1036
        %v1038 = vld [vmem:[%s1037] sm:%s1031]
        %1039 = vst [vmem:[%s1034] sm:%s1031] %v1038
      $region137: #{custom-call.27} parent=132 // pred_fallthru
        _
    $region133: #{custom-call.27} parent=1 // pred_fallthru
      _
    %s1041 = ssub.s32 128, 128
    %1042 = vsyncadd [#allocation9], %s1041
    %s1043 = sshll.u32 [#allocation8], 4
    %s1044 = int_to_ptr.vmem [resolvable:$true] %s1043
    %1046 = dma.vmem_to_hbm [thread:$0]  %s1044, 128, %s6, [#allocation9]
    %s1048 = ssub.s32 128, 128
    %1049 = vsyncadd [#allocation11], %s1048
    %s1050 = sshll.u32 [#allocation10], 4
    %s1051 = int_to_ptr.vmem [resolvable:$true] %s1050
    %1053 = dma.vmem_to_hbm [thread:$0]  %s1051, 128, %s7, [#allocation11]
    %s1055 = ssub.s32 128, 128
    %1056 = vsyncadd [#allocation11], %s1055
    %s1057 = sshll.u32 [#allocation12], 4
    %s1058 = int_to_ptr.vmem [resolvable:$true] %s1057
    %1060 = dma.vmem_to_hbm [thread:$0]  %s1058, 128, %s8, [#allocation11]
    %s1062 = ssub.s32 128, 128
    %1063 = vsyncadd [#allocation14], %s1062
    %s1064 = sshll.u32 [#allocation13], 4
    %s1065 = int_to_ptr.vmem [resolvable:$true] %s1064
    %1067 = dma.vmem_to_hbm [thread:$0]  %s1065, 128, %s9, [#allocation14]
    // Predicated region
    $region156: #{custom-call.27} parent=1 // pred_check
      _
    $region157: #{custom-call.27} parent=1 // pred_check_branch
      %1069 = sbr.rel (0) target = $region159
    $region158: #{custom-call.27} parent=1 // pred_region
      _
    $region159: #{custom-call.27} parent=1 // pred_fallthru
      _
    // Predicated region
    $region160: #{custom-call.27} parent=1 // pred_check
      _
    $region161: #{custom-call.27} parent=1 // pred_check_branch
      %1071 = sbr.rel (0) target = $region163
    $region162: #{custom-call.27} parent=1 // pred_region
      _
    $region163: #{custom-call.27} parent=1 // pred_fallthru
      _
    %1072 = dma.done [#allocation9], 128
    %1073 = dma.done [#allocation11], 128
    %1074 = dma.done [#allocation11], 128
    %1075 = dma.done [#allocation14], 128
    %1076 = vsyncpa [#allocation9], 1
    %1077 = vsyncpa [#allocation11], 1
    %1078 = vsyncpa [#allocation14], 1

// kernel: mmcr_momentum_loss.1
$region0: #{mmcr_momentum_loss.1}
  #allocation0 [shape = 'u32[]', space=smem, size = 0x4, offset = 0x4, fixed_abs, tag = 'smem constant byte address 0x4 - core index']
  #allocation1 [shape = 'u32[144,128]{1,0:T(1,128)}', space=vmem, size = 0x12000, scoped, tag = 'internal scratch']
  %s0 = inlined_call_operand.vmem [shape: f32[4,16,128], index: 0, kind: input, shape index: {}]
  %s1 = inlined_call_operand.vmem [shape: f32[4,16,128], index: 1, kind: input, shape index: {}]
  %s2 = inlined_call_operand.vmem [shape: f32[16,128], index: 2, kind: output, shape index: {0}]
  %s3 = inlined_call_operand.vmem [shape: f32[16,128], index: 3, kind: output, shape index: {1}]
  %4 = xla_tuple %s2, %s3
  %s5 = sld [smem:[#allocation0]]
  $region125: #{mmcr_momentum_loss.1} parent=0
    _
  %s7 = ssub.s32 1, %s5
  %s8 = scalar_select 0, %s7, %s5
  $region1: #{mmcr_momentum_loss.1} parent=0
    #allocation2 [shape = 'u8[32768]{0}', space=vmem, size = 0x8000, scoped, tag = 'input window, operand 0']
    #allocation3 [shape = 'u8[32768]{0}', space=vmem, size = 0x8000, scoped, tag = 'input window, operand 1']
    loop: start=0, step=1, limit=4
    $region2: #{mmcr_momentum_loss.1} parent=1 // loop_pre_header
      _
    $region3: #{mmcr_momentum_loss.1} parent=1 // loop_header
      %s10 = sphi 0, %s14
      %p11 = scmp.ge.s32.totalorder %s10, 4
      %s20 = sphi 0, %s22
      %s23 = sphi 0, %s20
      %s24 = sphi 0, %s23
      %s40 = sphi 0, %s24
      %s46 = sphi 0, %s48
      %s49 = sphi 0, %s46
      %s50 = sphi 0, %s49
      %s66 = sphi 0, %s50
      %s72 = sphi 0, %s74
      %s75 = sphi 0, %s72
      %s76 = sphi 0, %s75
      %s92 = sphi 0, %s76
      %s98 = sphi 0, %s100
      %s101 = sphi 0, %s98
      %s102 = sphi 0, %s101
      %s118 = sphi 0, %s102
    $region4: #{mmcr_momentum_loss.1} parent=1 // loop_header_branch
      %13 = sbr.rel (%p11) target = $region8
    $region5: #{mmcr_momentum_loss.1} parent=1 // loop_body
      %s15 = ssub.s32 %s10, 1
      %s16 = ssub.s32 %s10, 2
      %s17 = sadd.s32 %s10, 1
      %s18 = ssub.s32 %s10, %s17
      %p19 = scmp.eq.s32.totalorder %s18, 0
      %s21 = sadd.s32 %s20, 1
      %s22 = scalar_select %p19, %s20, %s21
      %p25 = pneg %p19
      %p26 = scmp.eq.s32.totalorder %s10, 1
      %p27 = por %p25, %p26
      %p28 = scmp.ne.s32.totalorder %s20, %s23
      %p29 = scmp.eq.s32.totalorder %s10, 0
      %p30 = por %p28, %p29
      %p31 = scmp.ne.s32.totalorder %s20, %s23
      %p32 = scmp.eq.s32.totalorder %s15, 1
      %p33 = por %p31, %p32
      %p34 = scmp.ne.s32.totalorder %s23, %s24
      %p35 = scmp.eq.s32.totalorder %s15, 0
      %p36 = por %p34, %p35
      %p37 = scmp.ne.s32.totalorder %s23, %s24
      %p38 = scmp.eq.s32.totalorder %s16, 1
      %p39 = por %p37, %p38
      %p41 = scmp.ne.s32.totalorder %s24, %s40
      %p42 = scmp.eq.s32.totalorder %s16, 0
      %p43 = por %p41, %p42
      %s44 = ssub.s32 %s10, %s17
      %p45 = scmp.eq.s32.totalorder %s44, 0
      %s47 = sadd.s32 %s46, 1
      %s48 = scalar_select %p45, %s46, %s47
      %p51 = pneg %p45
      %p52 = scmp.eq.s32.totalorder %s10, 1
      %p53 = por %p51, %p52
      %p54 = scmp.ne.s32.totalorder %s46, %s49
      %p55 = scmp.eq.s32.totalorder %s10, 0
      %p56 = por %p54, %p55
      %p57 = scmp.ne.s32.totalorder %s46, %s49
      %p58 = scmp.eq.s32.totalorder %s15, 1
      %p59 = por %p57, %p58
      %p60 = scmp.ne.s32.totalorder %s49, %s50
      %p61 = scmp.eq.s32.totalorder %s15, 0
      %p62 = por %p60, %p61
      %p63 = scmp.ne.s32.totalorder %s49, %s50
      %p64 = scmp.eq.s32.totalorder %s16, 1
      %p65 = por %p63, %p64
      %p67 = scmp.ne.s32.totalorder %s50, %s66
      %p68 = scmp.eq.s32.totalorder %s16, 0
      %p69 = por %p67, %p68
      %s70 = ssub.s32 %s10, %s17
      %p71 = scmp.eq.s32.totalorder %s70, 0
      %s73 = sadd.s32 %s72, 1
      %s74 = scalar_select %p71, %s72, %s73
      %p77 = pneg %p71
      %p78 = scmp.eq.s32.totalorder %s10, 1
      %p79 = por %p77, %p78
      %p80 = scmp.ne.s32.totalorder %s72, %s75
      %p81 = scmp.eq.s32.totalorder %s10, 0
      %p82 = por %p80, %p81
      %p83 = scmp.ne.s32.totalorder %s72, %s75
      %p84 = scmp.eq.s32.totalorder %s15, 1
      %p85 = por %p83, %p84
      %p86 = scmp.ne.s32.totalorder %s75, %s76
      %p87 = scmp.eq.s32.totalorder %s15, 0
      %p88 = por %p86, %p87
      %p89 = scmp.ne.s32.totalorder %s75, %s76
      %p90 = scmp.eq.s32.totalorder %s16, 1
      %p91 = por %p89, %p90
      %p93 = scmp.ne.s32.totalorder %s76, %s92
      %p94 = scmp.eq.s32.totalorder %s16, 0
      %p95 = por %p93, %p94
      %s96 = ssub.s32 %s10, %s17
      %p97 = scmp.eq.s32.totalorder %s96, 0
      %s99 = sadd.s32 %s98, 1
      %s100 = scalar_select %p97, %s98, %s99
      %p103 = pneg %p97
      %p104 = scmp.eq.s32.totalorder %s10, 1
      %p105 = por %p103, %p104
      %p106 = scmp.ne.s32.totalorder %s98, %s101
      %p107 = scmp.eq.s32.totalorder %s10, 0
      %p108 = por %p106, %p107
      %p109 = scmp.ne.s32.totalorder %s98, %s101
      %p110 = scmp.eq.s32.totalorder %s15, 1
      %p111 = por %p109, %p110
      %p112 = scmp.ne.s32.totalorder %s101, %s102
      %p113 = scmp.eq.s32.totalorder %s15, 0
      %p114 = por %p112, %p113
      %p115 = scmp.ne.s32.totalorder %s101, %s102
      %p116 = scmp.eq.s32.totalorder %s16, 1
      %p117 = por %p115, %p116
      %p119 = scmp.ne.s32.totalorder %s102, %s118
      %p120 = scmp.eq.s32.totalorder %s16, 0
      %p121 = por %p119, %p120
      %p122 = scmp.le.s32.totalorder 1, %s10
      %p123 = scmp.lt.s32.totalorder %s10, 3
      %p124 = pnand %p122, %p123
      %p125 = pneg %p124
      // Predicated region
      $region9: #{mmcr_momentum_loss.1} parent=5 // pred_check
        _
      $region10: #{mmcr_momentum_loss.1} parent=5 // pred_check_branch
        %127 = sbr.rel (%p124) target = $region12
      $region11: #{mmcr_momentum_loss.1} parent=5 // pred_region
        %s128 = ssub.s32 %s10, 1
      $region12: #{mmcr_momentum_loss.1} parent=5 // pred_fallthru
        _
      %p129 = scmp.lt.s32.totalorder %s10, 2
      // Predicated region
      $region13: #{mmcr_momentum_loss.1} parent=5 // pred_check
        %p130 = pneg %p129
      $region14: #{mmcr_momentum_loss.1} parent=5 // pred_check_branch
        %132 = sbr.rel (%p130) target = $region16
      $region15: #{mmcr_momentum_loss.1} parent=5 // pred_region
        // Predicated region
        $region17: #{mmcr_momentum_loss.1} parent=15 // pred_check
          %p133 = pneg %p30
        $region18: #{mmcr_momentum_loss.1} parent=15 // pred_check_branch
          %135 = sbr.rel (%p133) target = $region20
        $region19: #{mmcr_momentum_loss.1} parent=15 // pred_region
          %s136 = sand.u32 %s20, 1
          %s137 = sand.u32 %s20, 1
          %s138 = smul.addr %s137, 32
          %s139 = scalar_lea.vmem [#allocation2], %s138
          %s140 = smul.addr %s10, 8
          %s141 = scalar_lea.vmem %s0, %s140
          // Predicated region
          $region21: #{mmcr_momentum_loss.1} parent=19 // pred_check
            _
          $region22: #{mmcr_momentum_loss.1} parent=19 // pred_check_branch
            %143 = sbr.rel (0) target = $region24
          $region23: #{mmcr_momentum_loss.1} parent=19 // pred_region
            // Predicated region
            $region25: #{mmcr_momentum_loss.1} parent=23 // pred_check
              _
            $region26: #{mmcr_momentum_loss.1} parent=23 // pred_check_branch
              %145 = sbr.rel (0) target = $region28
            $region27: #{mmcr_momentum_loss.1} parent=23 // pred_region
              // Predicated region
              $region40: #{mmcr_momentum_loss.1} parent=27 // pred_check
                _
              $region41: #{mmcr_momentum_loss.1} parent=27 // pred_check_branch
                %167 = sbr.rel (0) target = $region43
              $region42: #{mmcr_momentum_loss.1} parent=27 // pred_region
                loop: start=0, step=1, limit=1
                $region44: #{mmcr_momentum_loss.1} parent=42 // loop_pre_header
                  _
                $region45: #{mmcr_momentum_loss.1} parent=42 // loop_header
                  %s169 = sphi 0, %s173
                  %p170 = scmp.ge.s32.totalorder %s169, 1
                  %s174 = sphi %s141, %s141
                  %s175 = sphi %s139, %s139
                $region46: #{mmcr_momentum_loss.1} parent=42 // loop_header_branch
                  %172 = sbr.rel (%p170) target = $region50
                $region47: #{mmcr_momentum_loss.1} parent=42 // loop_body
                  %v176 = vld [vmem:[%s174] sm:$0xff]
                  %177 = vst [vmem:[%s175] sm:$0xff] %v176
                  %v178 = vld [vmem:[%s174 + $0x10] sm:$0xff]
                  %179 = vst [vmem:[%s175 + $0x8] sm:$0xff] %v178
                  %v180 = vld [vmem:[%s174 + $0x20] sm:$0xff]
                  %181 = vst [vmem:[%s175 + $0x10] sm:$0xff] %v180
                  %v182 = vld [vmem:[%s174 + $0x30] sm:$0xff]
                  %183 = vst [vmem:[%s175 + $0x18] sm:$0xff] %v182
                $region48: #{mmcr_momentum_loss.1} parent=42 // loop_footer
                  %s173 = sadd.s32 1, %s169
                $region49: #{mmcr_momentum_loss.1} parent=42 // loop_footer_branch
                  %168 = sbr.rel target = $region45
                $region50: #{mmcr_momentum_loss.1} parent=42 // loop_exit
                  _
              $region43: #{mmcr_momentum_loss.1} parent=27 // pred_fallthru
                _
              // Predicated region
              $region51: #{mmcr_momentum_loss.1} parent=27 // pred_check
                _
              $region52: #{mmcr_momentum_loss.1} parent=27 // pred_check_branch
                %185 = sbr.rel target = $region54
              $region53: #{mmcr_momentum_loss.1} parent=27 // pred_region
                _
              $region54: #{mmcr_momentum_loss.1} parent=27 // pred_fallthru
                _
            $region28: #{mmcr_momentum_loss.1} parent=23 // pred_fallthru
              _
            // Predicated region
            $region29: #{mmcr_momentum_loss.1} parent=23 // pred_check
              _
            $region30: #{mmcr_momentum_loss.1} parent=23 // pred_check_branch
              %147 = sbr.rel target = $region32
            $region31: #{mmcr_momentum_loss.1} parent=23 // pred_region
              %s149 = ssub.s32 256, 1
              loop: start=0, step=1, limit=1
              $region33: #{mmcr_momentum_loss.1} parent=31 // loop_pre_header
                _
              $region34: #{mmcr_momentum_loss.1} parent=31 // loop_header
                %s151 = sphi 0, %s155
                %p152 = scmp.ge.s32.totalorder %s151, 1
                %s156 = sphi %s141, %s141
                %s157 = sphi %s139, %s139
              $region35: #{mmcr_momentum_loss.1} parent=31 // loop_header_branch
                %154 = sbr.rel (%p152) target = $region39
              $region36: #{mmcr_momentum_loss.1} parent=31 // loop_body
                %v158 = vld [vmem:[%s156] sm:%s149]
                %159 = vst [vmem:[%s157] sm:%s149] %v158
                %v160 = vld [vmem:[%s156 + $0x10] sm:%s149]
                %161 = vst [vmem:[%s157 + $0x8] sm:%s149] %v160
                %v162 = vld [vmem:[%s156 + $0x20] sm:%s149]
                %163 = vst [vmem:[%s157 + $0x10] sm:%s149] %v162
                %v164 = vld [vmem:[%s156 + $0x30] sm:%s149]
                %165 = vst [vmem:[%s157 + $0x18] sm:%s149] %v164
              $region37: #{mmcr_momentum_loss.1} parent=31 // loop_footer
                %s155 = sadd.s32 1, %s151
              $region38: #{mmcr_momentum_loss.1} parent=31 // loop_footer_branch
                %150 = sbr.rel target = $region34
              $region39: #{mmcr_momentum_loss.1} parent=31 // loop_exit
                _
            $region32: #{mmcr_momentum_loss.1} parent=23 // pred_fallthru
              _
          $region24: #{mmcr_momentum_loss.1} parent=19 // pred_fallthru
            _
          %186 = vnop
        $region20: #{mmcr_momentum_loss.1} parent=15 // pred_fallthru
          _
        // Predicated region
        $region55: #{mmcr_momentum_loss.1} parent=15 // pred_check
          %p187 = pneg %p56
        $region56: #{mmcr_momentum_loss.1} parent=15 // pred_check_branch
          %189 = sbr.rel (%p187) target = $region58
        $region57: #{mmcr_momentum_loss.1} parent=15 // pred_region
          %s190 = sand.u32 %s46, 1
          %s191 = sand.u32 %s46, 1
          %s192 = smul.addr %s191, 32
          %s193 = scalar_lea.vmem [#allocation3], %s192
          %s194 = smul.addr %s10, 8
          %s195 = scalar_lea.vmem %s1, %s194
          // Predicated region
          $region59: #{mmcr_momentum_loss.1} parent=57 // pred_check
            _
          $region60: #{mmcr_momentum_loss.1} parent=57 // pred_check_branch
            %197 = sbr.rel (0) target = $region62
          $region61: #{mmcr_momentum_loss.1} parent=57 // pred_region
            // Predicated region
            $region63: #{mmcr_momentum_loss.1} parent=61 // pred_check
              _
            $region64: #{mmcr_momentum_loss.1} parent=61 // pred_check_branch
              %199 = sbr.rel (0) target = $region66
            $region65: #{mmcr_momentum_loss.1} parent=61 // pred_region
              // Predicated region
              $region78: #{mmcr_momentum_loss.1} parent=65 // pred_check
                _
              $region79: #{mmcr_momentum_loss.1} parent=65 // pred_check_branch
                %221 = sbr.rel (0) target = $region81
              $region80: #{mmcr_momentum_loss.1} parent=65 // pred_region
                loop: start=0, step=1, limit=1
                $region82: #{mmcr_momentum_loss.1} parent=80 // loop_pre_header
                  _
                $region83: #{mmcr_momentum_loss.1} parent=80 // loop_header
                  %s223 = sphi 0, %s227
                  %p224 = scmp.ge.s32.totalorder %s223, 1
                  %s228 = sphi %s195, %s195
                  %s229 = sphi %s193, %s193
                $region84: #{mmcr_momentum_loss.1} parent=80 // loop_header_branch
                  %226 = sbr.rel (%p224) target = $region88
                $region85: #{mmcr_momentum_loss.1} parent=80 // loop_body
                  %v230 = vld [vmem:[%s228] sm:$0xff]
                  %231 = vst [vmem:[%s229] sm:$0xff] %v230
                  %v232 = vld [vmem:[%s228 + $0x10] sm:$0xff]
                  %233 = vst [vmem:[%s229 + $0x8] sm:$0xff] %v232
                  %v234 = vld [vmem:[%s228 + $0x20] sm:$0xff]
                  %235 = vst [vmem:[%s229 + $0x10] sm:$0xff] %v234
                  %v236 = vld [vmem:[%s228 + $0x30] sm:$0xff]
                  %237 = vst [vmem:[%s229 + $0x18] sm:$0xff] %v236
                $region86: #{mmcr_momentum_loss.1} parent=80 // loop_footer
                  %s227 = sadd.s32 1, %s223
                $region87: #{mmcr_momentum_loss.1} parent=80 // loop_footer_branch
                  %222 = sbr.rel target = $region83
                $region88: #{mmcr_momentum_loss.1} parent=80 // loop_exit
                  _
              $region81: #{mmcr_momentum_loss.1} parent=65 // pred_fallthru
                _
              // Predicated region
              $region89: #{mmcr_momentum_loss.1} parent=65 // pred_check
                _
              $region90: #{mmcr_momentum_loss.1} parent=65 // pred_check_branch
                %239 = sbr.rel target = $region92
              $region91: #{mmcr_momentum_loss.1} parent=65 // pred_region
                _
              $region92: #{mmcr_momentum_loss.1} parent=65 // pred_fallthru
                _
            $region66: #{mmcr_momentum_loss.1} parent=61 // pred_fallthru
              _
            // Predicated region
            $region67: #{mmcr_momentum_loss.1} parent=61 // pred_check
              _
            $region68: #{mmcr_momentum_loss.1} parent=61 // pred_check_branch
              %201 = sbr.rel target = $region70
            $region69: #{mmcr_momentum_loss.1} parent=61 // pred_region
              %s203 = ssub.s32 256, 1
              loop: start=0, step=1, limit=1
              $region71: #{mmcr_momentum_loss.1} parent=69 // loop_pre_header
                _
              $region72: #{mmcr_momentum_loss.1} parent=69 // loop_header
                %s205 = sphi 0, %s209
                %p206 = scmp.ge.s32.totalorder %s205, 1
                %s210 = sphi %s195, %s195
                %s211 = sphi %s193, %s193
              $region73: #{mmcr_momentum_loss.1} parent=69 // loop_header_branch
                %208 = sbr.rel (%p206) target = $region77
              $region74: #{mmcr_momentum_loss.1} parent=69 // loop_body
                %v212 = vld [vmem:[%s210] sm:%s203]
                %213 = vst [vmem:[%s211] sm:%s203] %v212
                %v214 = vld [vmem:[%s210 + $0x10] sm:%s203]
                %215 = vst [vmem:[%s211 + $0x8] sm:%s203] %v214
                %v216 = vld [vmem:[%s210 + $0x20] sm:%s203]
                %217 = vst [vmem:[%s211 + $0x10] sm:%s203] %v216
                %v218 = vld [vmem:[%s210 + $0x30] sm:%s203]
                %219 = vst [vmem:[%s211 + $0x18] sm:%s203] %v218
              $region75: #{mmcr_momentum_loss.1} parent=69 // loop_footer
                %s209 = sadd.s32 1, %s205
              $region76: #{mmcr_momentum_loss.1} parent=69 // loop_footer_branch
                %204 = sbr.rel target = $region72
              $region77: #{mmcr_momentum_loss.1} parent=69 // loop_exit
                _
            $region70: #{mmcr_momentum_loss.1} parent=61 // pred_fallthru
              _
          $region62: #{mmcr_momentum_loss.1} parent=57 // pred_fallthru
            _
          %240 = vnop
        $region58: #{mmcr_momentum_loss.1} parent=15 // pred_fallthru
          _
      $region16: #{mmcr_momentum_loss.1} parent=5 // pred_fallthru
        _
      %p241 = scmp.le.s32.totalorder 1, %s10
      %p242 = scmp.lt.s32.totalorder %s10, 3
      %p243 = pnand %p241, %p242
      %p244 = pneg %p243
      // Predicated region
      $region93: #{mmcr_momentum_loss.1} parent=5 // pred_check
        _
      $region94: #{mmcr_momentum_loss.1} parent=5 // pred_check_branch
        %246 = sbr.rel (%p243) target = $region96
      $region95: #{mmcr_momentum_loss.1} parent=5 // pred_region
        %s247 = ssub.s32 %s10, 1
        %s248 = sand.u32 %s23, 1
        %s249 = sand.u32 %s23, 1
        %s250 = smul.addr %s249, 32
        %s251 = scalar_lea.vmem [#allocation2], %s250
        // Predicated region
        $region97: #{mmcr_momentum_loss.1} parent=95 // pred_check
          %p252 = pneg %p36
        $region98: #{mmcr_momentum_loss.1} parent=95 // pred_check_branch
          %254 = sbr.rel (%p252) target = $region100
        $region99: #{mmcr_momentum_loss.1} parent=95 // pred_region
          _
        $region100: #{mmcr_momentum_loss.1} parent=95 // pred_fallthru
          _
        %s255 = sand.u32 %s49, 1
        %s256 = sand.u32 %s49, 1
        %s257 = smul.addr %s256, 32
        %s258 = scalar_lea.vmem [#allocation3], %s257
        // Predicated region
        $region101: #{mmcr_momentum_loss.1} parent=95 // pred_check
          %p259 = pneg %p62
        $region102: #{mmcr_momentum_loss.1} parent=95 // pred_check_branch
          %261 = sbr.rel (%p259) target = $region104
        $region103: #{mmcr_momentum_loss.1} parent=95 // pred_region
          _
        $region104: #{mmcr_momentum_loss.1} parent=95 // pred_fallthru
          _
        %s262 = sand.u32 %s23, 1
        %s263 = sand.u32 %s23, 1
        %s264 = smul.addr %s263, 32
        %s265 = scalar_lea.vmem [#allocation2], %s264
        %p266 = pneg %p36
        %p267 = pneg %p33
        %s268 = sand.u32 %s49, 1
        %s269 = sand.u32 %s49, 1
        %s270 = smul.addr %s269, 32
        %s271 = scalar_lea.vmem [#allocation3], %s270
        %p272 = pneg %p62
        %p273 = pneg %p59
        %p274 = pneg %p88
        %p275 = pneg %p85
        %p276 = scmp.lt.s32.totalorder %s15, 1
        %s277 = scalar_select %p276, %s15, 1
        %s278 = smul.addr %s277, 8
        %s279 = scalar_lea.vmem %s2, %s278
        %p280 = pneg %p114
        %p281 = pneg %p111
        %p282 = scmp.lt.s32.totalorder %s15, 1
        %s283 = scalar_select %p282, %s15, 1
        %s284 = smul.addr %s283, 8
        %s285 = scalar_lea.vmem %s3, %s284
        %p286 = scmp.lt.s32.totalorder %s15, 1
        %s287 = scalar_select %p286, %s15, 1
        %s288 = smul.addr %s287, 8
        %s289 = scalar_lea.vmem %s2, %s288
        %p290 = scmp.lt.s32.totalorder %s15, 1
        %s291 = scalar_select %p290, %s15, 1
        %s292 = smul.addr %s291, 8
        %s293 = scalar_lea.vmem %s3, %s292
        %v294 = vld [vmem:[%s251] sm:$0xff]
        %v295 = vld [vmem:[%s258] sm:$0xff]
        %v296 = vmul.f32 %v294, %v294
        %297 = vadd.xlane.f32.xlu0 %v296
        %v298 = vpop.xlane.xlu0 %297
        %v299 = vmax.f32 %v298, 1e-24
        %v300 = vrsqrt.pop %v299
        %v301 = vmul.f32 %v295, %v295
        %302 = vadd.xlane.f32.xlu0 %v301
        %v303 = vpop.xlane.xlu0 %302
        %v304 = vmax.f32 %v303, 1e-24
        %v305 = vrsqrt.pop %v304
        %v306 = vmul.f32 %v294, %v300
        %v307 = vmul.f32 %v295, %v305
        %v308 = vadd.f32 %v306, %v307
        %s309 = scalar_lea.vmem %s251, 8 [#allocation2]
        %v310 = vld [vmem:[%s309] sm:$0xff]
        %s311 = scalar_lea.vmem %s258, 8 [#allocation3]
        %v312 = vld [vmem:[%s311] sm:$0xff]
        %v313 = vmul.f32 %v310, %v310
        %314 = vadd.xlane.f32.xlu0 %v313
        %v315 = vpop.xlane.xlu0 %314
        %v316 = vmax.f32 %v315, 1e-24
        %v317 = vrsqrt.pop %v316
        %v318 = vmul.f32 %v312, %v312
        %319 = vadd.xlane.f32.xlu0 %v318
        %v320 = vpop.xlane.xlu0 %319
        %v321 = vmax.f32 %v320, 1e-24
        %v322 = vrsqrt.pop %v321
        %v323 = vmul.f32 %v310, %v317
        %v324 = vmul.f32 %v312, %v322
        %v325 = vadd.f32 %v323, %v324
        %v326 = vadd.f32 %v308, %v325
        %s327 = scalar_lea.vmem %s251, 16 [#allocation2]
        %v328 = vld [vmem:[%s327] sm:$0xff]
        %s329 = scalar_lea.vmem %s258, 16 [#allocation3]
        %v330 = vld [vmem:[%s329] sm:$0xff]
        %v331 = vmul.f32 %v328, %v328
        %332 = vadd.xlane.f32.xlu0 %v331
        %v333 = vpop.xlane.xlu0 %332
        %v334 = vmax.f32 %v333, 1e-24
        %v335 = vrsqrt.pop %v334
        %v336 = vmul.f32 %v330, %v330
        %337 = vadd.xlane.f32.xlu0 %v336
        %v338 = vpop.xlane.xlu0 %337
        %v339 = vmax.f32 %v338, 1e-24
        %v340 = vrsqrt.pop %v339
        %v341 = vmul.f32 %v328, %v335
        %v342 = vmul.f32 %v330, %v340
        %v343 = vadd.f32 %v341, %v342
        %v344 = vadd.f32 %v326, %v343
        %s345 = scalar_lea.vmem %s251, 24 [#allocation2]
        %v346 = vld [vmem:[%s345] sm:$0xff]
        %s347 = scalar_lea.vmem %s258, 24 [#allocation3]
        %v348 = vld [vmem:[%s347] sm:$0xff]
        %v349 = vmul.f32 %v346, %v346
        %350 = vadd.xlane.f32.xlu0 %v349
        %v351 = vpop.xlane.xlu0 %350
        %v352 = vmax.f32 %v351, 1e-24
        %v353 = vrsqrt.pop %v352
        %v354 = vmul.f32 %v348, %v348
        %355 = vadd.xlane.f32.xlu0 %v354
        %v356 = vpop.xlane.xlu0 %355
        %v357 = vmax.f32 %v356, 1e-24
        %v358 = vrsqrt.pop %v357
        %v359 = vmul.f32 %v346, %v353
        %v360 = vmul.f32 %v348, %v358
        %v361 = vadd.f32 %v359, %v360
        %v362 = vadd.f32 %v344, %v361
        %v363 = vmul.f32 %v362, 0.125
        %364 = vst [vmem:[%s289] sm:$0xff] %v363
        %v365 = vld [vmem:[%s251] sm:$0xff]
        %v366 = vmul.f32 %v365, %v365
        %367 = vadd.xlane.f32.xlu0 %v366
        %v368 = vpop.xlane.xlu0 %367
        %v369 = vmul.f32 %v368, %v300
        %v370 = vmul.f32 %v369, %v300
        %v371 = vld [vmem:[%s309] sm:$0xff]
        %v372 = vmul.f32 %v365, %v371
        %373 = vadd.xlane.f32.xlu0 %v372
        %v374 = vpop.xlane.xlu0 %373
        %v375 = vmul.f32 %v374, %v300
        %v376 = vmul.f32 %v375, %v317
        %v377 = vld [vmem:[%s327] sm:$0xff]
        %v378 = vmul.f32 %v365, %v377
        %379 = vadd.xlane.f32.xlu0 %v378
        %v380 = vpop.xlane.xlu0 %379
        %v381 = vmul.f32 %v380, %v300
        %v382 = vmul.f32 %v381, %v335
        %v383 = vld [vmem:[%s345] sm:$0xff]
        %v384 = vmul.f32 %v365, %v383
        %385 = vadd.xlane.f32.xlu0 %v384
        %v386 = vpop.xlane.xlu0 %385
        %v387 = vmul.f32 %v386, %v300
        %v388 = vmul.f32 %v387, %v353
        %v389 = vmul.f32 %v371, %v371
        %390 = vadd.xlane.f32.xlu0 %v389
        %v391 = vpop.xlane.xlu0 %390
        %v392 = vmul.f32 %v391, %v317
        %v393 = vmul.f32 %v392, %v317
        %v394 = vmul.f32 %v371, %v377
        %395 = vadd.xlane.f32.xlu0 %v394
        %v396 = vpop.xlane.xlu0 %395
        %v397 = vmul.f32 %v396, %v317
        %v398 = vmul.f32 %v397, %v335
        %v399 = vmul.f32 %v371, %v383
        %400 = vadd.xlane.f32.xlu0 %v399
        %v401 = vpop.xlane.xlu0 %400
        %v402 = vmul.f32 %v401, %v317
        %v403 = vmul.f32 %v402, %v353
        %v404 = vmul.f32 %v377, %v377
        %405 = vadd.xlane.f32.xlu0 %v404
        %v406 = vpop.xlane.xlu0 %405
        %v407 = vmul.f32 %v406, %v335
        %v408 = vmul.f32 %v407, %v335
        %v409 = vmul.f32 %v377, %v383
        %410 = vadd.xlane.f32.xlu0 %v409
        %v411 = vpop.xlane.xlu0 %410
        %v412 = vmul.f32 %v411, %v335
        %v413 = vmul.f32 %v412, %v353
        %v414 = vmul.f32 %v383, %v383
        %415 = vadd.xlane.f32.xlu0 %v414
        %v416 = vpop.xlane.xlu0 %415
        %v417 = vmul.f32 %v416, %v353
        %v418 = vmul.f32 %v417, %v353
        %vm419 = vcmask 7168
        %v420 = vsel %vm419, %v370, %v376
        %vm421 = vcmask 15360
        %v422 = vsel %vm421, %v420, %v382
        %vm423 = vcmask 23552
        %v424 = vsel %vm423, %v422, %v388
        %vm425 = vcmask 31744
        %v426 = vsel %vm425, %v424, %v376
        %vm427 = vcmask 39936
        %v428 = vsel %vm427, %v426, %v393
        %vm429 = vcmask 48128
        %v430 = vsel %vm429, %v428, %v398
        %vm431 = vcmask 56320
        %v432 = vsel %vm431, %v430, %v403
        %vm433 = vcmask 64512
        %v434 = vsel %vm433, %v432, %v382
        %vm435 = vcmask 72704
        %v436 = vsel %vm435, %v434, %v398
        %vm437 = vcmask 80896
        %v438 = vsel %vm437, %v436, %v408
        %vm439 = vcmask 89088
        %v440 = vsel %vm439, %v438, %v413
        %vm441 = vcmask 97280
        %v442 = vsel %vm441, %v440, %v388
        %vm443 = vcmask 105472
        %v444 = vsel %vm443, %v442, %v403
        %vm445 = vcmask 113664
        %v446 = vsel %vm445, %v444, %v413
        %vm447 = vcmask 121856
        %v448 = vsel %vm447, %v446, %v418
        %vm449 = vcmask 130048
        %v450 = vsel %vm449, %v448, 0.0
        %451 = vst [vmem:[%s293] sm:$0xff] %v450
        %p452 = scmp.lt.s32.totalorder %s15, 1
        %s453 = scalar_select %p452, %s15, 1
        %s454 = smul.addr %s453, 8
        %s455 = scalar_lea.vmem %s2, %s454
        %p456 = scmp.lt.s32.totalorder %s15, 1
        %s457 = scalar_select %p456, %s15, 1
        %s458 = smul.addr %s457, 8
        %s459 = scalar_lea.vmem %s3, %s458
        // Predicated region
        $region105: #{mmcr_momentum_loss.1} parent=95 // pred_check
          %p460 = pneg %p85
        $region106: #{mmcr_momentum_loss.1} parent=95 // pred_check_branch
          %462 = sbr.rel (%p460) target = $region108
        $region107: #{mmcr_momentum_loss.1} parent=95 // pred_region
          _
        $region108: #{mmcr_momentum_loss.1} parent=95 // pred_fallthru
          _
        // Predicated region
        $region109: #{mmcr_momentum_loss.1} parent=95 // pred_check
          %p463 = pneg %p111
        $region110: #{mmcr_momentum_loss.1} parent=95 // pred_check_branch
          %465 = sbr.rel (%p463) target = $region112
        $region111: #{mmcr_momentum_loss.1} parent=95 // pred_region
          _
        $region112: #{mmcr_momentum_loss.1} parent=95 // pred_fallthru
          _
      $region96: #{mmcr_momentum_loss.1} parent=5 // pred_fallthru
        _
      %p466 = scmp.le.s32.totalorder 2, %s10
      // Predicated region
      $region113: #{mmcr_momentum_loss.1} parent=5 // pred_check
        %p467 = pneg %p466
      $region114: #{mmcr_momentum_loss.1} parent=5 // pred_check_branch
        %469 = sbr.rel (%p467) target = $region116
      $region115: #{mmcr_momentum_loss.1} parent=5 // pred_region
        %s470 = ssub.s32 %s10, 2
        // Predicated region
        $region117: #{mmcr_momentum_loss.1} parent=115 // pred_check
          %p471 = pneg %p91
        $region118: #{mmcr_momentum_loss.1} parent=115 // pred_check_branch
          %473 = sbr.rel (%p471) target = $region120
        $region119: #{mmcr_momentum_loss.1} parent=115 // pred_region
          %p474 = scmp.lt.s32.totalorder %s16, 1
          %s475 = scalar_select %p474, %s16, 1
          %s476 = smul.addr %s475, 8
          %s477 = scalar_lea.vmem %s2, %s476
        $region120: #{mmcr_momentum_loss.1} parent=115 // pred_fallthru
          _
        // Predicated region
        $region121: #{mmcr_momentum_loss.1} parent=115 // pred_check
          %p478 = pneg %p117
        $region122: #{mmcr_momentum_loss.1} parent=115 // pred_check_branch
          %480 = sbr.rel (%p478) target = $region124
        $region123: #{mmcr_momentum_loss.1} parent=115 // pred_region
          %p481 = scmp.lt.s32.totalorder %s16, 1
          %s482 = scalar_select %p481, %s16, 1
          %s483 = smul.addr %s482, 8
          %s484 = scalar_lea.vmem %s3, %s483
        $region124: #{mmcr_momentum_loss.1} parent=115 // pred_fallthru
          _
      $region116: #{mmcr_momentum_loss.1} parent=5 // pred_fallthru
        _
    $region6: #{mmcr_momentum_loss.1} parent=1 // loop_footer
      %s14 = sadd.s32 1, %s10
    $region7: #{mmcr_momentum_loss.1} parent=1 // loop_footer_branch
      %9 = sbr.rel target = $region3
    $region8: #{mmcr_momentum_loss.1} parent=1 // loop_exit
      _

// kernel: reverse
$region0: #{reverse}
  %s0 = inlined_call_operand.vmem [shape: f32[16], index: 0, kind: input, shape index: {}]
  %s1 = inlined_call_operand.vmem [shape: f32[16], index: 1, kind: output, shape index: {}]
  %v2 = vlaneseq
  %v3 = vsub.s32 15, %v2
  %4 = vset.pattern.permute.xlu0 %v3
  $region1: #{reverse} parent=0
    #allocation0 [shape = 'u8[8192]{0}', space=vmem, size = 0x2000, scoped, tag = 'operand span for operand 0']
    #allocation1 [shape = 'u8[1024]{0}', space=vmem, size = 0x400, scoped, tag = 'packed  for operand 0']
    #allocation2 [shape = 'u8[4096]{0}', space=vmem, size = 0x1000, scoped, tag = 'operand span for operand 1']
    #allocation3 [shape = 'u8[512]{0}', space=vmem, size = 0x400, scoped, tag = 'packed  for operand 1']
    %s5 = scalar_lea.vmem [#allocation1], 1
    // Predicated region
    $region2: #{reverse} parent=1 // pred_check
      _
    $region3: #{reverse} parent=1 // pred_check_branch
      %7 = sbr.rel (0) target = $region5
    $region4: #{reverse} parent=1 // pred_region
      // Predicated region
      $region6: #{reverse} parent=4 // pred_check
        _
      $region7: #{reverse} parent=4 // pred_check_branch
        %9 = sbr.rel target = $region9
      $region8: #{reverse} parent=4 // pred_region
        // Predicated region
        $region21: #{reverse} parent=8 // pred_check
          _
        $region22: #{reverse} parent=8 // pred_check_branch
          %25 = sbr.rel (0) target = $region24
        $region23: #{reverse} parent=8 // pred_region
          %s27 = ssub.s32 2, 1
          loop: start=0, step=1, limit=1
          $region25: #{reverse} parent=23 // loop_pre_header
            _
          $region26: #{reverse} parent=23 // loop_header
            %s29 = sphi 0, %s33
            %p30 = scmp.ge.s32.totalorder %s29, 1
            %s34 = sphi %s0, %s0
            %s35 = sphi %s5, %s5
          $region27: #{reverse} parent=23 // loop_header_branch
            %32 = sbr.rel (%p30) target = $region31
          $region28: #{reverse} parent=23 // loop_body
            %v36 = vld [vmem:[%s34] sm:%s27]
            %37 = vst [vmem:[%s35] sm:%s27] %v36
          $region29: #{reverse} parent=23 // loop_footer
            %s33 = sadd.s32 1, %s29
          $region30: #{reverse} parent=23 // loop_footer_branch
            %28 = sbr.rel target = $region26
          $region31: #{reverse} parent=23 // loop_exit
            _
        $region24: #{reverse} parent=8 // pred_fallthru
          _
      $region9: #{reverse} parent=4 // pred_fallthru
        _
      // Predicated region
      $region10: #{reverse} parent=4 // pred_check
        _
      $region11: #{reverse} parent=4 // pred_check_branch
        %11 = sbr.rel (0) target = $region13
      $region12: #{reverse} parent=4 // pred_region
        %s13 = ssub.s32 2, 1
        loop: start=0, step=1, limit=1
        $region14: #{reverse} parent=12 // loop_pre_header
          _
        $region15: #{reverse} parent=12 // loop_header
          %s15 = sphi 0, %s19
          %p16 = scmp.ge.s32.totalorder %s15, 1
          %s20 = sphi %s0, %s0
          %s21 = sphi %s5, %s5
        $region16: #{reverse} parent=12 // loop_header_branch
          %18 = sbr.rel (%p16) target = $region20
        $region17: #{reverse} parent=12 // loop_body
          %v22 = vld [vmem:[%s20] sm:%s13]
          %23 = vst [vmem:[%s21] sm:%s13] %v22
        $region18: #{reverse} parent=12 // loop_footer
          %s19 = sadd.s32 1, %s15
        $region19: #{reverse} parent=12 // loop_footer_branch
          %14 = sbr.rel target = $region15
        $region20: #{reverse} parent=12 // loop_exit
          _
      $region13: #{reverse} parent=4 // pred_fallthru
        _
    $region5: #{reverse} parent=1 // pred_fallthru
      _
    %38 = vnop
    %s40 = sshll.u32 1, 1
    %s41 = ssub.s32 %s40, 1
    %s42 = scalar_lea.vmem [#allocation1], 1
    %v43 = vld [vmem:[%s42] sm:%s41]
    %s44 = scalar_lea.vmem [#allocation0], 8
    %45 = vst [vmem:[%s44] sm:%s41] %v43
    %v46 = vld [vmem:[#allocation1] sm:%s41]
    %47 = vst [vmem:[#allocation0] sm:%s41] %v46
    %s48 = scalar_lea.vmem [#allocation0], 7
    %v49 = vld [vmem:[%s48] ss:$-1 sm:$0xff]
    %v50 = vrot.slane %v49, 7
    %51 = vperm.xlu0 %4, %v50
    %v52 = vpop.permute.xlu0 %51
    %53 = vst [vmem:[#allocation2] sm:$0xff] %v52
    %s54 = scalar_lea.vmem [#allocation0], 8
    %s55 = scalar_lea.vmem %s54, 7 [#allocation0]
    %v56 = vld [vmem:[%s55] ss:$-1 sm:$0xff]
    %v57 = vrot.slane %v56, 7
    %58 = vperm.xlu0 %4, %v57
    %v59 = vpop.permute.xlu0 %58
    %v60 = vlaneseq
    %v61 = vshrl.u32 %v60, 7
    %vm62 = vcmp.lt.s32.totalorder %v61, 1
    %63 = vst.msk [vmem:[#allocation2] sm:$0xff] %vm62, %v59
    %s65 = sshll.u32 1, 1
    %s66 = ssub.s32 %s65, 1
    %v68 = vld [vmem:[#allocation2] sm:%s66]
    %s69 = sshll.u32 1, 1
    %s70 = ssub.s32 %s69, 1
    %71 = vst [vmem:[#allocation3] sm:%s70] %v68
    // Predicated region
    $region32: #{reverse} parent=1 // pred_check
      _
    $region33: #{reverse} parent=1 // pred_check_branch
      %73 = sbr.rel (0) target = $region35
    $region34: #{reverse} parent=1 // pred_region
      // Predicated region
      $region36: #{reverse} parent=34 // pred_check
        _
      $region37: #{reverse} parent=34 // pred_check_branch
        %75 = sbr.rel target = $region39
      $region38: #{reverse} parent=34 // pred_region
        // Predicated region
        $region51: #{reverse} parent=38 // pred_check
          _
        $region52: #{reverse} parent=38 // pred_check_branch
          %91 = sbr.rel (0) target = $region54
        $region53: #{reverse} parent=38 // pred_region
          %s93 = ssub.s32 2, 1
          loop: start=0, step=1, limit=1
          $region55: #{reverse} parent=53 // loop_pre_header
            _
          $region56: #{reverse} parent=53 // loop_header
            %s95 = sphi 0, %s99
            %p96 = scmp.ge.s32.totalorder %s95, 1
            %s100 = sphi [#allocation3], [#allocation3]
            %s101 = sphi %s1, %s1
          $region57: #{reverse} parent=53 // loop_header_branch
            %98 = sbr.rel (%p96) target = $region61
          $region58: #{reverse} parent=53 // loop_body
            %v102 = vld [vmem:[%s100] sm:%s93]
            %103 = vst [vmem:[%s101] sm:%s93] %v102
          $region59: #{reverse} parent=53 // loop_footer
            %s99 = sadd.s32 1, %s95
          $region60: #{reverse} parent=53 // loop_footer_branch
            %94 = sbr.rel target = $region56
          $region61: #{reverse} parent=53 // loop_exit
            _
        $region54: #{reverse} parent=38 // pred_fallthru
          _
      $region39: #{reverse} parent=34 // pred_fallthru
        _
      // Predicated region
      $region40: #{reverse} parent=34 // pred_check
        _
      $region41: #{reverse} parent=34 // pred_check_branch
        %77 = sbr.rel (0) target = $region43
      $region42: #{reverse} parent=34 // pred_region
        %s79 = ssub.s32 2, 1
        loop: start=0, step=1, limit=1
        $region44: #{reverse} parent=42 // loop_pre_header
          _
        $region45: #{reverse} parent=42 // loop_header
          %s81 = sphi 0, %s85
          %p82 = scmp.ge.s32.totalorder %s81, 1
          %s86 = sphi [#allocation3], [#allocation3]
          %s87 = sphi %s1, %s1
        $region46: #{reverse} parent=42 // loop_header_branch
          %84 = sbr.rel (%p82) target = $region50
        $region47: #{reverse} parent=42 // loop_body
          %v88 = vld [vmem:[%s86] sm:%s79]
          %89 = vst [vmem:[%s87] sm:%s79] %v88
        $region48: #{reverse} parent=42 // loop_footer
          %s85 = sadd.s32 1, %s81
        $region49: #{reverse} parent=42 // loop_footer_branch
          %80 = sbr.rel target = $region45
        $region50: #{reverse} parent=42 // loop_exit
          _
      $region43: #{reverse} parent=34 // pred_fallthru
        _
    $region35: #{reverse} parent=1 // pred_fallthru
      _
    %104 = vnop

// kernel: custom-call.28
$region0: #{custom-call.28}
  %s0 = inlined_call_operand.vmem [shape: f32[16,2,2], index: 0, kind: input, shape index: {}]
  %s1 = inlined_call_operand.vmem [shape: f32[16,2,2], index: 1, kind: input, shape index: {}]
  %s2 = inlined_call_operand.vmem [shape: f32[16,2,2], index: 2, kind: input, shape index: {}]
  %s3 = inlined_call_operand.vmem [shape: f32[16,2,2], index: 3, kind: input, shape index: {}]
  %s4 = inlined_call_operand.vmem [shape: f32[16,2], index: 4, kind: output, shape index: {0}]
  %s5 = inlined_call_operand.vmem [shape: f32[16,2], index: 5, kind: output, shape index: {1}]
  %s6 = inlined_call_operand.hbm [shape: f32[16,2,2], index: 6, kind: output, shape index: {2}]
  %s7 = inlined_call_operand.hbm [shape: f32[16,2,2], index: 7, kind: output, shape index: {3}]
  %s8 = inlined_call_operand.hbm [shape: f32[16,2,2], index: 8, kind: output, shape index: {4}]
  %s9 = inlined_call_operand.hbm [shape: f32[16,2,2], index: 9, kind: output, shape index: {5}]
  %10 = xla_tuple %s4, %s5, %s6, %s7, %s8, %s9
  $region1: #{custom-call.28} parent=0
    #allocation0 [shape = 'u8[4096]{0}', space=vmem, size = 0x1000, scoped, tag = 'operand span for operand 0']
    #allocation1 [shape = 'u8[2048]{0}', space=vmem, size = 0x800, scoped, tag = 'packed  for operand 0']
    #allocation2 [shape = 'u8[4096]{0}', space=vmem, size = 0x1000, scoped, tag = 'operand span for operand 1']
    #allocation3 [shape = 'u8[2048]{0}', space=vmem, size = 0x800, scoped, tag = 'packed  for operand 1']
    #allocation4 [shape = 'u8[4096]{0}', space=vmem, size = 0x1000, scoped, tag = 'operand span for operand 2']
    #allocation5 [shape = 'u8[2048]{0}', space=vmem, size = 0x800, scoped, tag = 'packed  for operand 2']
    #allocation6 [shape = 'u8[4096]{0}', space=vmem, size = 0x1000, scoped, tag = 'operand span for operand 3']
    #allocation7 [shape = 'u8[2048]{0}', space=vmem, size = 0x800, scoped, tag = 'packed  for operand 3']
    #allocation8 [shape = 'u8[8192]{0}', space=vmem, size = 0x2000, scoped, tag = 'operand span for operand 4']
    #allocation9 [shape = 'u8[8192]{0}', space=vmem, size = 0x2000, scoped, tag = 'operand span for operand 5']
    #allocation10 [shape = 'u8[4096]{0}', space=vmem, size = 0x1000, scoped, tag = 'operand span for operand 6']
    #allocation11 [shape = 'u8[2048]{0}', space=vmem, size = 0x800, scoped, tag = 'packed  for operand 6']
    #allocation12 [shape = 's32[2]{0}', space=sflag, size = 0x8, scoped, tag = 'scoped memory for custom-call.28']
    #allocation13 [shape = 'u8[4096]{0}', space=vmem, size = 0x1000, scoped, tag = 'operand span for operand 7']
    #allocation14 [shape = 'u8[2048]{0}', space=vmem, size = 0x800, scoped, tag = 'packed  for operand 7']
    #allocation15 [shape = 's32[2]{0}', space=sflag, size = 0x8, scoped, tag = 'scoped memory for custom-call.28']
    #allocation16 [shape = 'u8[4096]{0}', space=vmem, size = 0x1000, scoped, tag = 'operand span for operand 8']
    #allocation17 [shape = 'u8[2048]{0}', space=vmem, size = 0x800, scoped, tag = 'packed  for operand 8']
    #allocation18 [shape = 'u8[4096]{0}', space=vmem, size = 0x1000, scoped, tag = 'operand span for operand 9']
    #allocation19 [shape = 'u8[2048]{0}', space=vmem, size = 0x800, scoped, tag = 'packed  for operand 9']
    #allocation20 [shape = 's32[2]{0}', space=sflag, size = 0x8, scoped, tag = 'scoped memory for custom-call.28']
    %11 = vsyncpa [#allocation12], 0
    %s12 = scalar_lea.sflag [#allocation12], 1
    %13 = vsyncpa %s12, 0
    %14 = vsyncpa [#allocation15], 0
    %s15 = scalar_lea.sflag [#allocation15], 1
    %16 = vsyncpa %s15, 0
    %17 = vsyncpa [#allocation20], 0
    %s18 = scalar_lea.sflag [#allocation20], 1
    %19 = vsyncpa %s18, 0
    loop: start=0, step=1, limit=18
    $region2: #{custom-call.28} parent=1 // loop_pre_header
      _
    $region3: #{custom-call.28} parent=1 // loop_header
      %s21 = sphi 0, %s25
      %p22 = scmp.ge.s32.totalorder %s21, 18
      %s33 = sphi 0, %s35
      %s36 = sphi 0, %s33
      %s37 = sphi 0, %s36
      %s53 = sphi 0, %s37
      %s61 = sphi 0, %s63
      %s64 = sphi 0, %s61
      %s65 = sphi 0, %s64
      %s81 = sphi 0, %s65
    $region4: #{custom-call.28} parent=1 // loop_header_branch
      %24 = sbr.rel (%p22) target = $region8
    $region5: #{custom-call.28} parent=1 // loop_body
      %s26 = ssub.s32 %s21, 1
      %s27 = ssub.s32 %s21, 2
      %s28 = sadd.s32 %s21, 1
      %s29 = sshrl.u32 %s21, 3
      %s30 = sshrl.u32 %s28, 3
      %s31 = ssub.s32 %s29, %s30
      %p32 = scmp.eq.s32.totalorder %s31, 0
      %s34 = sadd.s32 %s33, 1
      %s35 = scalar_select %p32, %s33, %s34
      %p38 = pneg %p32
      %p39 = scmp.eq.s32.totalorder %s21, 15
      %p40 = por %p38, %p39
      %p41 = scmp.ne.s32.totalorder %s33, %s36
      %p42 = scmp.eq.s32.totalorder %s21, 0
      %p43 = por %p41, %p42
      %p44 = scmp.ne.s32.totalorder %s33, %s36
      %p45 = scmp.eq.s32.totalorder %s26, 15
      %p46 = por %p44, %p45
      %p47 = scmp.ne.s32.totalorder %s36, %s37
      %p48 = scmp.eq.s32.totalorder %s26, 0
      %p49 = por %p47, %p48
      %p50 = scmp.ne.s32.totalorder %s36, %s37
      %p51 = scmp.eq.s32.totalorder %s27, 15
      %p52 = por %p50, %p51
      %p54 = scmp.ne.s32.totalorder %s37, %s53
      %p55 = scmp.eq.s32.totalorder %s27, 0
      %p56 = por %p54, %p55
      %s57 = sshrl.u32 %s21, 3
      %s58 = sshrl.u32 %s28, 3
      %s59 = ssub.s32 %s57, %s58
      %p60 = scmp.eq.s32.totalorder %s59, 0
      %s62 = sadd.s32 %s61, 1
      %s63 = scalar_select %p60, %s61, %s62
      %p66 = pneg %p60
      %p67 = scmp.eq.s32.totalorder %s21, 15
      %p68 = por %p66, %p67
      %p69 = scmp.ne.s32.totalorder %s61, %s64
      %p70 = scmp.eq.s32.totalorder %s21, 0
      %p71 = por %p69, %p70
      %p72 = scmp.ne.s32.totalorder %s61, %s64
      %p73 = scmp.eq.s32.totalorder %s26, 15
      %p74 = por %p72, %p73
      %p75 = scmp.ne.s32.totalorder %s64, %s65
      %p76 = scmp.eq.s32.totalorder %s26, 0
      %p77 = por %p75, %p76
      %p78 = scmp.ne.s32.totalorder %s64, %s65
      %p79 = scmp.eq.s32.totalorder %s27, 15
      %p80 = por %p78, %p79
      %p82 = scmp.ne.s32.totalorder %s65, %s81
      %p83 = scmp.eq.s32.totalorder %s27, 0
      %p84 = por %p82, %p83
      %p85 = scmp.le.s32.totalorder 1, %s21
      %p86 = scmp.lt.s32.totalorder %s21, 17
      %p87 = pnand %p85, %p86
      %p88 = pneg %p87
      // Predicated region
      $region9: #{custom-call.28} parent=5 // pred_check
        _
      $region10: #{custom-call.28} parent=5 // pred_check_branch
        %90 = sbr.rel (%p87) target = $region12
      $region11: #{custom-call.28} parent=5 // pred_region
        %s91 = ssub.s32 %s21, 1
      $region12: #{custom-call.28} parent=5 // pred_fallthru
        _
      %p92 = scmp.lt.s32.totalorder %s21, 16
      // Predicated region
      $region13: #{custom-call.28} parent=5 // pred_check
        %p93 = pneg %p92
      $region14: #{custom-call.28} parent=5 // pred_check_branch
        %95 = sbr.rel (%p93) target = $region16
      $region15: #{custom-call.28} parent=5 // pred_region
        %s96 = sand.u32 %s21, 1
        %s97 = sand.u32 %s21, 1
        %s98 = smul.addr %s97, 2
        %s99 = scalar_lea.vmem [#allocation1], %s98
        %s100 = smul.addr %s21, 2
        %s101 = scalar_lea.vmem %s0, %s100
        // Predicated region
        $region17: #{custom-call.28} parent=15 // pred_check
          _
        $region18: #{custom-call.28} parent=15 // pred_check_branch
          %103 = sbr.rel (0) target = $region20
        $region19: #{custom-call.28} parent=15 // pred_region
          // Predicated region
          $region21: #{custom-call.28} parent=19 // pred_check
            _
          $region22: #{custom-call.28} parent=19 // pred_check_branch
            %105 = sbr.rel target = $region24
          $region23: #{custom-call.28} parent=19 // pred_region
            // Predicated region
            $region36: #{custom-call.28} parent=23 // pred_check
              _
            $region37: #{custom-call.28} parent=23 // pred_check_branch
              %121 = sbr.rel (0) target = $region39
            $region38: #{custom-call.28} parent=23 // pred_region
              %s123 = ssub.s32 4, 1
              loop: start=0, step=1, limit=1
              $region40: #{custom-call.28} parent=38 // loop_pre_header
                _
              $region41: #{custom-call.28} parent=38 // loop_header
                %s125 = sphi 0, %s129
                %p126 = scmp.ge.s32.totalorder %s125, 1
                %s130 = sphi %s101, %s101
                %s131 = sphi %s99, %s99
              $region42: #{custom-call.28} parent=38 // loop_header_branch
                %128 = sbr.rel (%p126) target = $region46
              $region43: #{custom-call.28} parent=38 // loop_body
                %v132 = vld [vmem:[%s130] sm:%s123]
                %133 = vst [vmem:[%s131] sm:%s123] %v132
              $region44: #{custom-call.28} parent=38 // loop_footer
                %s129 = sadd.s32 1, %s125
              $region45: #{custom-call.28} parent=38 // loop_footer_branch
                %124 = sbr.rel target = $region41
              $region46: #{custom-call.28} parent=38 // loop_exit
                _
            $region39: #{custom-call.28} parent=23 // pred_fallthru
              _
          $region24: #{custom-call.28} parent=19 // pred_fallthru
            _
          // Predicated region
          $region25: #{custom-call.28} parent=19 // pred_check
            _
          $region26: #{custom-call.28} parent=19 // pred_check_branch
            %107 = sbr.rel (0) target = $region28
          $region27: #{custom-call.28} parent=19 // pred_region
            %s109 = ssub.s32 4, 1
            loop: start=0, step=1, limit=1
            $region29: #{custom-call.28} parent=27 // loop_pre_header
              _
            $region30: #{custom-call.28} parent=27 // loop_header
              %s111 = sphi 0, %s115
              %p112 = scmp.ge.s32.totalorder %s111, 1
              %s116 = sphi %s101, %s101
              %s117 = sphi %s99, %s99
            $region31: #{custom-call.28} parent=27 // loop_header_branch
              %114 = sbr.rel (%p112) target = $region35
            $region32: #{custom-call.28} parent=27 // loop_body
              %v118 = vld [vmem:[%s116] sm:%s109]
              %119 = vst [vmem:[%s117] sm:%s109] %v118
            $region33: #{custom-call.28} parent=27 // loop_footer
              %s115 = sadd.s32 1, %s111
            $region34: #{custom-call.28} parent=27 // loop_footer_branch
              %110 = sbr.rel target = $region30
            $region35: #{custom-call.28} parent=27 // loop_exit
              _
          $region28: #{custom-call.28} parent=19 // pred_fallthru
            _
        $region20: #{custom-call.28} parent=15 // pred_fallthru
          _
        %134 = vnop
        %s135 = sand.u32 %s21, 1
        %s136 = sand.u32 %s21, 1
        %s137 = smul.addr %s136, 2
        %s138 = scalar_lea.vmem [#allocation3], %s137
        %s139 = smul.addr %s21, 2
        %s140 = scalar_lea.vmem %s1, %s139
        // Predicated region
        $region47: #{custom-call.28} parent=15 // pred_check
          _
        $region48: #{custom-call.28} parent=15 // pred_check_branch
          %142 = sbr.rel (0) target = $region50
        $region49: #{custom-call.28} parent=15 // pred_region
          // Predicated region
          $region51: #{custom-call.28} parent=49 // pred_check
            _
          $region52: #{custom-call.28} parent=49 // pred_check_branch
            %144 = sbr.rel target = $region54
          $region53: #{custom-call.28} parent=49 // pred_region
            // Predicated region
            $region66: #{custom-call.28} parent=53 // pred_check
              _
            $region67: #{custom-call.28} parent=53 // pred_check_branch
              %160 = sbr.rel (0) target = $region69
            $region68: #{custom-call.28} parent=53 // pred_region
              %s162 = ssub.s32 4, 1
              loop: start=0, step=1, limit=1
              $region70: #{custom-call.28} parent=68 // loop_pre_header
                _
              $region71: #{custom-call.28} parent=68 // loop_header
                %s164 = sphi 0, %s168
                %p165 = scmp.ge.s32.totalorder %s164, 1
                %s169 = sphi %s140, %s140
                %s170 = sphi %s138, %s138
              $region72: #{custom-call.28} parent=68 // loop_header_branch
                %167 = sbr.rel (%p165) target = $region76
              $region73: #{custom-call.28} parent=68 // loop_body
                %v171 = vld [vmem:[%s169] sm:%s162]
                %172 = vst [vmem:[%s170] sm:%s162] %v171
              $region74: #{custom-call.28} parent=68 // loop_footer
                %s168 = sadd.s32 1, %s164
              $region75: #{custom-call.28} parent=68 // loop_footer_branch
                %163 = sbr.rel target = $region71
              $region76: #{custom-call.28} parent=68 // loop_exit
                _
            $region69: #{custom-call.28} parent=53 // pred_fallthru
              _
          $region54: #{custom-call.28} parent=49 // pred_fallthru
            _
          // Predicated region
          $region55: #{custom-call.28} parent=49 // pred_check
            _
          $region56: #{custom-call.28} parent=49 // pred_check_branch
            %146 = sbr.rel (0) target = $region58
          $region57: #{custom-call.28} parent=49 // pred_region
            %s148 = ssub.s32 4, 1
            loop: start=0, step=1, limit=1
            $region59: #{custom-call.28} parent=57 // loop_pre_header
              _
            $region60: #{custom-call.28} parent=57 // loop_header
              %s150 = sphi 0, %s154
              %p151 = scmp.ge.s32.totalorder %s150, 1
              %s155 = sphi %s140, %s140
              %s156 = sphi %s138, %s138
            $region61: #{custom-call.28} parent=57 // loop_header_branch
              %153 = sbr.rel (%p151) target = $region65
            $region62: #{custom-call.28} parent=57 // loop_body
              %v157 = vld [vmem:[%s155] sm:%s148]
              %158 = vst [vmem:[%s156] sm:%s148] %v157
            $region63: #{custom-call.28} parent=57 // loop_footer
              %s154 = sadd.s32 1, %s150
            $region64: #{custom-call.28} parent=57 // loop_footer_branch
              %149 = sbr.rel target = $region60
            $region65: #{custom-call.28} parent=57 // loop_exit
              _
          $region58: #{custom-call.28} parent=49 // pred_fallthru
            _
        $region50: #{custom-call.28} parent=15 // pred_fallthru
          _
        %173 = vnop
        %s174 = sand.u32 %s21, 1
        %s175 = sand.u32 %s21, 1
        %s176 = smul.addr %s175, 2
        %s177 = scalar_lea.vmem [#allocation5], %s176
        %s178 = smul.addr %s21, 2
        %s179 = scalar_lea.vmem %s2, %s178
        // Predicated region
        $region77: #{custom-call.28} parent=15 // pred_check
          _
        $region78: #{custom-call.28} parent=15 // pred_check_branch
          %181 = sbr.rel (0) target = $region80
        $region79: #{custom-call.28} parent=15 // pred_region
          // Predicated region
          $region81: #{custom-call.28} parent=79 // pred_check
            _
          $region82: #{custom-call.28} parent=79 // pred_check_branch
            %183 = sbr.rel target = $region84
          $region83: #{custom-call.28} parent=79 // pred_region
            // Predicated region
            $region96: #{custom-call.28} parent=83 // pred_check
              _
            $region97: #{custom-call.28} parent=83 // pred_check_branch
              %199 = sbr.rel (0) target = $region99
            $region98: #{custom-call.28} parent=83 // pred_region
              %s201 = ssub.s32 4, 1
              loop: start=0, step=1, limit=1
              $region100: #{custom-call.28} parent=98 // loop_pre_header
                _
              $region101: #{custom-call.28} parent=98 // loop_header
                %s203 = sphi 0, %s207
                %p204 = scmp.ge.s32.totalorder %s203, 1
                %s208 = sphi %s179, %s179
                %s209 = sphi %s177, %s177
              $region102: #{custom-call.28} parent=98 // loop_header_branch
                %206 = sbr.rel (%p204) target = $region106
              $region103: #{custom-call.28} parent=98 // loop_body
                %v210 = vld [vmem:[%s208] sm:%s201]
                %211 = vst [vmem:[%s209] sm:%s201] %v210
              $region104: #{custom-call.28} parent=98 // loop_footer
                %s207 = sadd.s32 1, %s203
              $region105: #{custom-call.28} parent=98 // loop_footer_branch
                %202 = sbr.rel target = $region101
              $region106: #{custom-call.28} parent=98 // loop_exit
                _
            $region99: #{custom-call.28} parent=83 // pred_fallthru
              _
          $region84: #{custom-call.28} parent=79 // pred_fallthru
            _
          // Predicated region
          $region85: #{custom-call.28} parent=79 // pred_check
            _
          $region86: #{custom-call.28} parent=79 // pred_check_branch
            %185 = sbr.rel (0) target = $region88
          $region87: #{custom-call.28} parent=79 // pred_region
            %s187 = ssub.s32 4, 1
            loop: start=0, step=1, limit=1
            $region89: #{custom-call.28} parent=87 // loop_pre_header
              _
            $region90: #{custom-call.28} parent=87 // loop_header
              %s189 = sphi 0, %s193
              %p190 = scmp.ge.s32.totalorder %s189, 1
              %s194 = sphi %s179, %s179
              %s195 = sphi %s177, %s177
            $region91: #{custom-call.28} parent=87 // loop_header_branch
              %192 = sbr.rel (%p190) target = $region95
            $region92: #{custom-call.28} parent=87 // loop_body
              %v196 = vld [vmem:[%s194] sm:%s187]
              %197 = vst [vmem:[%s195] sm:%s187] %v196
            $region93: #{custom-call.28} parent=87 // loop_footer
              %s193 = sadd.s32 1, %s189
            $region94: #{custom-call.28} parent=87 // loop_footer_branch
              %188 = sbr.rel target = $region90
            $region95: #{custom-call.28} parent=87 // loop_exit
              _
          $region88: #{custom-call.28} parent=79 // pred_fallthru
            _
        $region80: #{custom-call.28} parent=15 // pred_fallthru
          _
        %212 = vnop
        %s213 = sand.u32 %s21, 1
        %s214 = sand.u32 %s21, 1
        %s215 = smul.addr %s214, 2
        %s216 = scalar_lea.vmem [#allocation7], %s215
        %s217 = smul.addr %s21, 2
        %s218 = scalar_lea.vmem %s3, %s217
        // Predicated region
        $region107: #{custom-call.28} parent=15 // pred_check
          _
        $region108: #{custom-call.28} parent=15 // pred_check_branch
          %220 = sbr.rel (0) target = $region110
        $region109: #{custom-call.28} parent=15 // pred_region
          // Predicated region
          $region111: #{custom-call.28} parent=109 // pred_check
            _
          $region112: #{custom-call.28} parent=109 // pred_check_branch
            %222 = sbr.rel target = $region114
          $region113: #{custom-call.28} parent=109 // pred_region
            // Predicated region
            $region126: #{custom-call.28} parent=113 // pred_check
              _
            $region127: #{custom-call.28} parent=113 // pred_check_branch
              %238 = sbr.rel (0) target = $region129
            $region128: #{custom-call.28} parent=113 // pred_region
              %s240 = ssub.s32 4, 1
              loop: start=0, step=1, limit=1
              $region130: #{custom-call.28} parent=128 // loop_pre_header
                _
              $region131: #{custom-call.28} parent=128 // loop_header
                %s242 = sphi 0, %s246
                %p243 = scmp.ge.s32.totalorder %s242, 1
                %s247 = sphi %s218, %s218
                %s248 = sphi %s216, %s216
              $region132: #{custom-call.28} parent=128 // loop_header_branch
                %245 = sbr.rel (%p243) target = $region136
              $region133: #{custom-call.28} parent=128 // loop_body
                %v249 = vld [vmem:[%s247] sm:%s240]
                %250 = vst [vmem:[%s248] sm:%s240] %v249
              $region134: #{custom-call.28} parent=128 // loop_footer
                %s246 = sadd.s32 1, %s242
              $region135: #{custom-call.28} parent=128 // loop_footer_branch
                %241 = sbr.rel target = $region131
              $region136: #{custom-call.28} parent=128 // loop_exit
                _
            $region129: #{custom-call.28} parent=113 // pred_fallthru
              _
          $region114: #{custom-call.28} parent=109 // pred_fallthru
            _
          // Predicated region
          $region115: #{custom-call.28} parent=109 // pred_check
            _
          $region116: #{custom-call.28} parent=109 // pred_check_branch
            %224 = sbr.rel (0) target = $region118
          $region117: #{custom-call.28} parent=109 // pred_region
            %s226 = ssub.s32 4, 1
            loop: start=0, step=1, limit=1
            $region119: #{custom-call.28} parent=117 // loop_pre_header
              _
            $region120: #{custom-call.28} parent=117 // loop_header
              %s228 = sphi 0, %s232
              %p229 = scmp.ge.s32.totalorder %s228, 1
              %s233 = sphi %s218, %s218
              %s234 = sphi %s216, %s216
            $region121: #{custom-call.28} parent=117 // loop_header_branch
              %231 = sbr.rel (%p229) target = $region125
            $region122: #{custom-call.28} parent=117 // loop_body
              %v235 = vld [vmem:[%s233] sm:%s226]
              %236 = vst [vmem:[%s234] sm:%s226] %v235
            $region123: #{custom-call.28} parent=117 // loop_footer
              %s232 = sadd.s32 1, %s228
            $region124: #{custom-call.28} parent=117 // loop_footer_branch
              %227 = sbr.rel target = $region120
            $region125: #{custom-call.28} parent=117 // loop_exit
              _
          $region118: #{custom-call.28} parent=109 // pred_fallthru
            _
        $region110: #{custom-call.28} parent=15 // pred_fallthru
          _
        %251 = vnop
      $region16: #{custom-call.28} parent=5 // pred_fallthru
        _
      %p252 = scmp.le.s32.totalorder 1, %s21
      %p253 = scmp.lt.s32.totalorder %s21, 17
      %p254 = pnand %p252, %p253
      %p255 = pneg %p254
      // Predicated region
      $region137: #{custom-call.28} parent=5 // pred_check
        _
      $region138: #{custom-call.28} parent=5 // pred_check_branch
        %257 = sbr.rel (%p254) target = $region140
      $region139: #{custom-call.28} parent=5 // pred_region
        #allocation21 [shape = 'f32[2,2]{1,0}', space=vmem, size = 0x1000, scoped, tag = 'a top-left matrix']
        #allocation22 [shape = 'f32[2,2]{1,0}', space=vmem, size = 0x1000, scoped, tag = 'a top-right matrix']
        #allocation23 [shape = 'f32[2,2]{1,0}', space=vmem, size = 0x1000, scoped, tag = 'a bottom-left matrix']
        #allocation24 [shape = 'f32[2,2]{1,0}', space=vmem, size = 0x1000, scoped, tag = 'a bottom-right matrix']
        %s258 = ssub.s32 %s21, 1
        %s259 = sand.u32 %s26, 1
        %s260 = sand.u32 %s26, 1
        %s261 = smul.addr %s260, 2
        %s262 = scalar_lea.vmem [#allocation1], %s261
        %s263 = sand.u32 %s26, 1
        %s264 = sand.u32 %s26, 1
        %s265 = smul.addr %s264, 2
        %s266 = scalar_lea.vmem [#allocation3], %s265
        %s267 = sand.u32 %s26, 1
        %s268 = sand.u32 %s26, 1
        %s269 = smul.addr %s268, 2
        %s270 = scalar_lea.vmem [#allocation5], %s269
        %s271 = sand.u32 %s26, 1
        %s272 = sand.u32 %s26, 1
        %s273 = smul.addr %s272, 2
        %s274 = scalar_lea.vmem [#allocation7], %s273
        %s275 = sand.u32 %s26, 1
        %s276 = sand.u32 %s26, 1
        %s277 = smul.addr %s276, 2
        %s278 = scalar_lea.vmem [#allocation1], %s277
        %s279 = sand.u32 %s26, 1
        %s280 = sand.u32 %s26, 1
        %s281 = smul.addr %s280, 2
        %s282 = scalar_lea.vmem [#allocation3], %s281
        %s283 = sand.u32 %s26, 1
        %s284 = sand.u32 %s26, 1
        %s285 = smul.addr %s284, 2
        %s286 = scalar_lea.vmem [#allocation5], %s285
        %s287 = sand.u32 %s26, 1
        %s288 = sand.u32 %s26, 1
        %s289 = smul.addr %s288, 2
        %s290 = scalar_lea.vmem [#allocation7], %s289
        %p291 = pneg %p49
        %p292 = pneg %p46
        %s293 = sand.u32 %s36, 1
        %s294 = sand.u32 %s36, 1
        %s295 = smul.addr %s294, 8
        %s296 = scalar_lea.vmem [#allocation8], %s295
        %p297 = pneg %p77
        %p298 = pneg %p74
        %s299 = sand.u32 %s64, 1
        %s300 = sand.u32 %s64, 1
        %s301 = smul.addr %s300, 8
        %s302 = scalar_lea.vmem [#allocation9], %s301
        %s303 = sand.u32 %s26, 1
        %s304 = scalar_lea.sflag [#allocation12], %s303
        %s305 = sand.u32 %s26, 1
        %s306 = smul.addr %s305, 2
        %s307 = scalar_lea.vmem [#allocation11], %s306
        %s308 = sand.u32 %s26, 1
        %s309 = scalar_lea.sflag [#allocation15], %s308
        %s310 = sand.u32 %s26, 1
        %s311 = smul.addr %s310, 2
        %s312 = scalar_lea.vmem [#allocation14], %s311
        %s313 = sand.u32 %s26, 1
        %s314 = scalar_lea.sflag [#allocation15], %s313
        %s315 = sand.u32 %s26, 1
        %s316 = smul.addr %s315, 2
        %s317 = scalar_lea.vmem [#allocation17], %s316
        %s318 = sand.u32 %s26, 1
        %s319 = scalar_lea.sflag [#allocation20], %s318
        %s320 = sand.u32 %s26, 1
        %s321 = smul.addr %s320, 2
        %s322 = scalar_lea.vmem [#allocation19], %s321
        %s324 = sshll.u32 1, 2
        %s325 = ssub.s32 %s324, 1
        %v326 = vld [vmem:[%s278] sm:%s325]
        %327 = vst [vmem:[#allocation0] sm:%s325] %v326
        %s329 = sshll.u32 1, 2
        %s330 = ssub.s32 %s329, 1
        %v331 = vld [vmem:[%s282] sm:%s330]
        %332 = vst [vmem:[#allocation2] sm:%s330] %v331
        %s334 = sshll.u32 1, 2
        %s335 = ssub.s32 %s334, 1
        %v336 = vld [vmem:[%s286] sm:%s335]
        %337 = vst [vmem:[#allocation4] sm:%s335] %v336
        %s339 = sshll.u32 1, 2
        %s340 = ssub.s32 %s339, 1
        %v341 = vld [vmem:[%s290] sm:%s340]
        %342 = vst [vmem:[#allocation6] sm:%s340] %v341
        %s343 = sshrl.u32 %s26, 3
        %s344 = sshrl.u32 %s26, 3
        %s345 = smov [#allocation21]
        %v346 = vld [vmem:[#allocation0] sm:$0xff]
        %347 = vst [vmem:[%s345] sm:$0xff] %v346
        %s348 = smov [#allocation22]
        %v349 = vld [vmem:[#allocation2] sm:$0xff]
        %350 = vst [vmem:[%s348] sm:$0xff] %v349
        %s351 = smov [#allocation23]
        %v352 = vld [vmem:[#allocation4] sm:$0xff]
        %353 = vst [vmem:[%s351] sm:$0xff] %v352
        %s354 = smov [#allocation24]
        %v355 = vld [vmem:[#allocation6] sm:$0xff]
        %356 = vst [vmem:[%s354] sm:$0xff] %v355
        %357 = vst [vmem:[#allocation10] sm:$0xff] 0.0
        %358 = vst [vmem:[#allocation13] sm:$0xff] 0.0
        %359 = vst [vmem:[#allocation16] sm:$0xff] 0.0
        %360 = vst [vmem:[#allocation18] sm:$0xff] 0.0
        %s361 = smov [#allocation10]
        %v362 = vlaneseq
        %v363 = vand.u32 %v362, 127
        %v364 = vmov %v363
        %v365 = vlaneseq
        %v366 = vshrl.u32 %v365, 7
        %v367 = vmov %v366
        %v368 = vld [vmem:[%s361] sm:$0x3]
        %vm371 = vcmp.eq.s32.totalorder %v367, %v364
        %v372 = vsel %vm371, 1.0, %v368
        %373 = vst [vmem:[%s361] sm:$0x3] %v372
        %s374 = smov [#allocation18]
        %v375 = vlaneseq
        %v376 = vand.u32 %v375, 127
        %v377 = vmov %v376
        %v378 = vlaneseq
        %v379 = vshrl.u32 %v378, 7
        %v380 = vmov %v379
        %v381 = vld [vmem:[%s374] sm:$0x3]
        %vm384 = vcmp.eq.s32.totalorder %v380, %v377
        %v385 = vsel %vm384, 1.0, %v381
        %386 = vst [vmem:[%s374] sm:$0x3] %v385
        // While loop
        $region141: #{custom-call.28} parent=139 // loop_pre_header
          _
        $region142: #{custom-call.28} parent=139 // loop_header
          %s388 = sphi 0, %s930
          %v389 = vlaneseq
          %v390 = vand.u32 %v389, 127
          %v391 = vmov %v390
          %v392 = vlaneseq
          %v393 = vshrl.u32 %v392, 7
          %v394 = vmov %v393
          %s395 = smov [#allocation21]
          %v396 = vlaneseq
          %v397 = vand.u32 %v396, 127
          %vm398 = vcmp.ge.s32.totalorder %v397, 0
          %vm399 = vcmp.lt.s32.totalorder %v397, 2
          %vm400 = vmand %vm398, %vm399
          %v401 = vld [vmem:[%s395] sm:$0x3]
          %v402 = vsel %vm400, %v401, 0.0
          %v403 = vmul.f32 %v402, %v402
          %vm406 = vcmp.eq.s32.totalorder %v394, %v391
          %v407 = vsel %vm406, 0.0, %v403
          %v408 = vlaneseq
          %v409 = vand.u32 %v408, 127
          %v410 = vmov %v409
          %v411 = vlaneseq
          %v412 = vshrl.u32 %v411, 7
          %v413 = vmov %v412
          %s414 = smov [#allocation22]
          %v415 = vlaneseq
          %v416 = vand.u32 %v415, 127
          %vm417 = vcmp.ge.s32.totalorder %v416, 0
          %vm418 = vcmp.lt.s32.totalorder %v416, 2
          %vm419 = vmand %vm417, %vm418
          %v420 = vld [vmem:[%s414] sm:$0x3]
          %v421 = vsel %vm419, %v420, 0.0
          %v422 = vmul.f32 %v421, %v421
          %v423 = vadd.f32 %v407, %v422
          %v424 = vadd.f32 %v403, %v422
          %v425 = vlaneseq
          %v426 = vand.u32 %v425, 127
          %v427 = vmov %v426
          %v428 = vlaneseq
          %v429 = vshrl.u32 %v428, 7
          %v430 = vmov %v429
          %s431 = smov [#allocation23]
          %v432 = vlaneseq
          %v433 = vand.u32 %v432, 127
          %vm434 = vcmp.ge.s32.totalorder %v433, 0
          %vm435 = vcmp.lt.s32.totalorder %v433, 2
          %vm436 = vmand %vm434, %vm435
          %v437 = vld [vmem:[%s431] sm:$0x3]
          %v438 = vsel %vm436, %v437, 0.0
          %v439 = vmul.f32 %v438, %v438
          %v440 = vadd.f32 %v423, %v439
          %v441 = vadd.f32 %v424, %v439
          %v442 = vlaneseq
          %v443 = vand.u32 %v442, 127
          %v444 = vmov %v443
          %v445 = vlaneseq
          %v446 = vshrl.u32 %v445, 7
          %v447 = vmov %v446
          %s448 = smov [#allocation24]
          %v449 = vlaneseq
          %v450 = vand.u32 %v449, 127
          %vm451 = vcmp.ge.s32.totalorder %v450, 0
          %vm452 = vcmp.lt.s32.totalorder %v450, 2
          %vm453 = vmand %vm451, %vm452
          %v454 = vld [vmem:[%s448] sm:$0x3]
          %v455 = vsel %vm453, %v454, 0.0
          %v456 = vmul.f32 %v455, %v455
          %vm459 = vcmp.eq.s32.totalorder %v447, %v444
          %v460 = vsel %vm459, 0.0, %v456
          %v461 = vadd.f32 %v440, %v460
          %v462 = vadd.f32 %v441, %v456
          %463 = vadd.xlane.f32.xlu0 %v462
          %v464 = vpop.xlane.xlu0 %463
          %v465 = vrot.slane %v464, 4
          %v466 = vadd.f32 %v464, %v465
          %v467 = vrot.slane %v466, 2
          %v468 = vadd.f32 %v466, %v467
          %v469 = vrot.slane %v468, 1
          %v470 = vadd.f32 %v468, %v469
          %471 = vadd.xlane.f32.xlu0 %v461
          %v472 = vpop.xlane.xlu0 %471
          %v473 = vrot.slane %v472, 4
          %v474 = vadd.f32 %v472, %v473
          %v475 = vrot.slane %v474, 2
          %v476 = vadd.f32 %v474, %v475
          %v477 = vrot.slane %v476, 1
          %v478 = vadd.f32 %v476, %v477
          %s479 = vtos %v478
          %s480 = vtos %v470
          %s481 = smul.f32 1e-10, %s480
          %p482 = scmp.le.f32.partialorder %s479, %s481
          %p483 = scmp.ge.s32.totalorder %s388, 15
          %p484 = por %p482, %p483
        $region143: #{custom-call.28} parent=139 // loop_header_branch
          %932 = sbr.rel (%p484) target = $region147
        $region144: #{custom-call.28} parent=139 // loop_body
          loop: start=0, step=1, limit=3
          $region148: #{custom-call.28} parent=144 // loop_pre_header
            _
          $region149: #{custom-call.28} parent=144 // loop_header
            %s486 = sphi 0, %s490
            %p487 = scmp.ge.s32.totalorder %s486, 3
          $region150: #{custom-call.28} parent=144 // loop_header_branch
            %489 = sbr.rel (%p487) target = $region154
          $region151: #{custom-call.28} parent=144 // loop_body
            #allocation25 [shape = 'f32[1024]{0}', space=vmem, size = 0x1000, scoped, tag = 'a_tl_diag vmem']
            #allocation26 [shape = 'f32[1024]{0}', space=vmem, size = 0x1000, scoped, tag = 'a_tr_diag vmem']
            #allocation27 [shape = 'f32[1024]{0}', space=vmem, size = 0x1000, scoped, tag = 'a_br_diag vmem']
            #allocation28 [shape = 'f32[1024]{0}', space=vmem, size = 0x1000, scoped, tag = 'rt1 vmem']
            #allocation29 [shape = 'f32[1024]{0}', space=vmem, size = 0x1000, scoped, tag = 'rt2 vmem']
            #allocation30 [shape = 'f32[1024]{0}', space=vmem, size = 0x1000, scoped, tag = 'c vmem']
            #allocation31 [shape = 'f32[1024]{0}', space=vmem, size = 0x1000, scoped, tag = 's vmem']
            #allocation32 [shape = 'f32[4096]{0}', space=vmem, size = 0x4000, scoped, tag = 'c broadcast']
            #allocation33 [shape = 'f32[4096]{0}', space=vmem, size = 0x4000, scoped, tag = 's broadcast']
            %s491 = smov [#allocation21]
            %s492 = smov [#allocation25]
            %v493 = vlaneseq
            %v494 = vand.u32 %v493, 127
            %v495 = vmov %v494
            %v496 = vlaneseq
            %v497 = vshrl.u32 %v496, 7
            %v498 = vmov %v497
            %v499 = vld [vmem:[%s491] sm:$0x3]
            %vm502 = vcmp.eq.s32.totalorder %v498, %v495
            %v503 = vsel %vm502, %v499, 0.0
            %v504 = vrot.slane %v503, 4
            %v505 = vadd.f32 %v503, %v504
            %v506 = vrot.slane %v505, 2
            %v507 = vadd.f32 %v505, %v506
            %v508 = vrot.slane %v507, 1
            %v509 = vadd.f32 %v507, %v508
            %510 = vst [vmem:[%s492] sm:$0x1] %v509
            %s511 = smov [#allocation22]
            %s512 = smov [#allocation26]
            %v513 = vlaneseq
            %v514 = vand.u32 %v513, 127
            %v515 = vmov %v514
            %v516 = vlaneseq
            %v517 = vshrl.u32 %v516, 7
            %v518 = vmov %v517
            %v519 = vld [vmem:[%s511] sm:$0x3]
            %vm522 = vcmp.eq.s32.totalorder %v518, %v515
            %v523 = vsel %vm522, %v519, 0.0
            %v524 = vrot.slane %v523, 4
            %v525 = vadd.f32 %v523, %v524
            %v526 = vrot.slane %v525, 2
            %v527 = vadd.f32 %v525, %v526
            %v528 = vrot.slane %v527, 1
            %v529 = vadd.f32 %v527, %v528
            %530 = vst [vmem:[%s512] sm:$0x1] %v529
            %s531 = smov [#allocation24]
            %s532 = smov [#allocation27]
            %v533 = vlaneseq
            %v534 = vand.u32 %v533, 127
            %v535 = vmov %v534
            %v536 = vlaneseq
            %v537 = vshrl.u32 %v536, 7
            %v538 = vmov %v537
            %v539 = vld [vmem:[%s531] sm:$0x3]
            %vm542 = vcmp.eq.s32.totalorder %v538, %v535
            %v543 = vsel %vm542, %v539, 0.0
            %v544 = vrot.slane %v543, 4
            %v545 = vadd.f32 %v543, %v544
            %v546 = vrot.slane %v545, 2
            %v547 = vadd.f32 %v545, %v546
            %v548 = vrot.slane %v547, 1
            %v549 = vadd.f32 %v547, %v548
            %550 = vst [vmem:[%s532] sm:$0x1] %v549
            %s551 = smov [#allocation30]
            %s552 = smov [#allocation31]
            %s553 = smov [#allocation25]
            %v554 = vld [vmem:[%s553] sm:$0xff]
            %s555 = smov [#allocation26]
            %v556 = vld [vmem:[%s555] sm:$0xff]
            %s557 = smov [#allocation27]
            %v558 = vld [vmem:[%s557] sm:$0xff]
            %v559 = vsub.f32 %v558, %v554
            %v560 = vmul.f32 2.0, %v556
            %v561 = vrcp.pop %v560
            %v562 = vmul.f32 %v559, %v561
            %vm563 = vcmp.ge.f32.partialorder %v562, 0.0
            %v564 = vmul.f32 %v562, %v562
            %v565 = vadd.f32 1.0, %v564
            %v566 = vrsqrt.pop %v565
            %v567 = vmul.f32 %v565, %v566
            %vm568 = vcmp.eq.f32.partialorder %v565, inf
            %v569 = vsel %vm568, %v565, %v567
            %vm570 = vcmp.eq.f32.partialorder %v565, 0.0
            %v571 = vand.u32 %v565, 2147483648
            %v572 = vsel %vm570, %v571, %v569
            %v573 = vxor.u32 %v572, 2147483648
            %v574 = vsel %vm563, %v572, %v573
            %v575 = vadd.f32 %v562, %v574
            %v576 = vrcp.pop %v575
            %v577 = vand.u32 2147483647, %v554
            %v578 = vand.u32 2147483647, %v556
            %v579 = vand.u32 2147483647, %v558
            %v580 = vmin.f32 %v577, %v579
            %v581 = vmul.f32 1.1920929e-08, %v580
            %vm582 = vcmp.le.f32.partialorder %v578, %v581
            %v583 = vsel %vm582, 0.0, %v576
            %v584 = vmul.f32 %v583, %v583
            %v585 = vadd.f32 1.0, %v584
            %v586 = vrsqrt.pop %v585
            %v587 = vmul.f32 %v583, %v586
            %v588 = vmul.f32 %v583, %v556
            %v589 = vsub.f32 %v554, %v588
            %v590 = vmul.f32 %v583, %v556
            %v591 = vadd.f32 %v558, %v590
            %s592 = smov [#allocation28]
            %593 = vst [vmem:[%s592] sm:$0xff] %v589
            %s594 = smov [#allocation29]
            %595 = vst [vmem:[%s594] sm:$0xff] %v591
            %s596 = smov %s551
            %597 = vst [vmem:[%s596] sm:$0xff] %v586
            %s598 = smov %s552
            %599 = vst [vmem:[%s598] sm:$0xff] %v587
            %s600 = smov [#allocation30]
            %v601 = vld [vmem:[%s600] ss:$0 sm:$0xff]
            %v602 = vlaneseq
            %v603 = vand.u32 %v602, 127
            %v604 = vmov %v603
            %v605 = vlaneseq
            %v606 = vshrl.u32 %v605, 7
            %v607 = vmov %v606
            %vm609 = vcmp.eq.s32.totalorder %v607, %v604
            %v610 = vsel %vm609, %v601, 0.0
            %611 = vadd.xlane.f32.xlu0 %v610
            %v612 = vpop.xlane.xlu0 %611
            %s613 = smov [#allocation32]
            %614 = vst [vmem:[%s613] sm:$0xff] %v612
            %s615 = smov [#allocation31]
            %v616 = vld [vmem:[%s615] ss:$0 sm:$0xff]
            %v617 = vlaneseq
            %v618 = vand.u32 %v617, 127
            %v619 = vmov %v618
            %v620 = vlaneseq
            %v621 = vshrl.u32 %v620, 7
            %v622 = vmov %v621
            %vm624 = vcmp.eq.s32.totalorder %v622, %v619
            %v625 = vsel %vm624, %v616, 0.0
            %626 = vadd.xlane.f32.xlu0 %v625
            %v627 = vpop.xlane.xlu0 %626
            %s628 = smov [#allocation33]
            %629 = vst [vmem:[%s628] sm:$0xff] %v627
            %s630 = smov [#allocation32]
            %v631 = vld [vmem:[%s630] sm:$0xff]
            %s632 = smov [#allocation33]
            %v633 = vld [vmem:[%s632] sm:$0xff]
            %s634 = smov [#allocation21]
            %s635 = smov [#allocation22]
            %s636 = smov [#allocation23]
            %s637 = smov [#allocation24]
            %v638 = vld [vmem:[%s634] sm:$0x3]
            %v639 = vld [vmem:[%s635] sm:$0x3]
            %v640 = vld [vmem:[%s636] sm:$0x3]
            %v641 = vld [vmem:[%s637] sm:$0x3]
            %v642 = vmul.f32 %v631, %v638
            %v643 = vmul.f32 %v633, %v640
            %v644 = vsub.f32 %v642, %v643
            %v645 = vmul.f32 %v631, %v639
            %v646 = vmul.f32 %v633, %v641
            %v647 = vsub.f32 %v645, %v646
            %v648 = vmul.f32 %v633, %v638
            %v649 = vmul.f32 %v631, %v640
            %v650 = vadd.f32 %v648, %v649
            %v651 = vmul.f32 %v633, %v639
            %v652 = vmul.f32 %v631, %v641
            %v653 = vadd.f32 %v651, %v652
            %654 = vst [vmem:[%s634] sm:$0x3] %v644
            %655 = vst [vmem:[%s635] sm:$0x3] %v647
            %656 = vst [vmem:[%s636] sm:$0x3] %v650
            %657 = vst [vmem:[%s637] sm:$0x3] %v653
            %s658 = smov [#allocation30]
            %v659 = vld [vmem:[%s658] ss:$0 sm:$0xff]
            %s660 = smov [#allocation31]
            %v661 = vld [vmem:[%s660] ss:$0 sm:$0xff]
            %s662 = smov [#allocation21]
            %s663 = smov [#allocation22]
            %s664 = smov [#allocation23]
            %s665 = smov [#allocation24]
            %v666 = vld [vmem:[%s662] sm:$0x3]
            %v667 = vld [vmem:[%s663] sm:$0x3]
            %v668 = vld [vmem:[%s664] sm:$0x3]
            %v669 = vld [vmem:[%s665] sm:$0x3]
            %v670 = vmul.f32 %v659, %v666
            %v671 = vmul.f32 %v661, %v667
            %v672 = vsub.f32 %v670, %v671
            %v673 = vmul.f32 %v661, %v666
            %v674 = vmul.f32 %v659, %v667
            %v675 = vadd.f32 %v673, %v674
            %v676 = vmul.f32 %v659, %v668
            %v677 = vmul.f32 %v661, %v669
            %v678 = vsub.f32 %v676, %v677
            %v679 = vmul.f32 %v661, %v668
            %v680 = vmul.f32 %v659, %v669
            %v681 = vadd.f32 %v679, %v680
            %682 = vst [vmem:[%s662] sm:$0x3] %v672
            %683 = vst [vmem:[%s663] sm:$0x3] %v675
            %684 = vst [vmem:[%s664] sm:$0x3] %v678
            %685 = vst [vmem:[%s665] sm:$0x3] %v681
            %s686 = smov [#allocation21]
            %s687 = smov [#allocation28]
            %v688 = vlaneseq
            %v689 = vand.u32 %v688, 127
            %v690 = vmov %v689
            %v691 = vlaneseq
            %v692 = vshrl.u32 %v691, 7
            %v693 = vmov %v692
            %v694 = vld [vmem:[%s687] ss:$0 sm:$0xff]
            %v695 = vld [vmem:[%s686] sm:$0x3]
            %vm698 = vcmp.eq.s32.totalorder %v693, %v690
            %v699 = vsel %vm698, %v694, %v695
            %700 = vst [vmem:[%s686] sm:$0x3] %v699
            %s701 = smov [#allocation22]
            %v702 = vlaneseq
            %v703 = vand.u32 %v702, 127
            %v704 = vmov %v703
            %v705 = vlaneseq
            %v706 = vshrl.u32 %v705, 7
            %v707 = vmov %v706
            %v708 = vld [vmem:[%s701] sm:$0x3]
            %vm711 = vcmp.eq.s32.totalorder %v707, %v704
            %v712 = vsel %vm711, 0.0, %v708
            %713 = vst [vmem:[%s701] sm:$0x3] %v712
            %s714 = smov [#allocation23]
            %v715 = vlaneseq
            %v716 = vand.u32 %v715, 127
            %v717 = vmov %v716
            %v718 = vlaneseq
            %v719 = vshrl.u32 %v718, 7
            %v720 = vmov %v719
            %v721 = vld [vmem:[%s714] sm:$0x3]
            %vm724 = vcmp.eq.s32.totalorder %v720, %v717
            %v725 = vsel %vm724, 0.0, %v721
            %726 = vst [vmem:[%s714] sm:$0x3] %v725
            %s727 = smov [#allocation24]
            %s728 = smov [#allocation29]
            %v729 = vlaneseq
            %v730 = vand.u32 %v729, 127
            %v731 = vmov %v730
            %v732 = vlaneseq
            %v733 = vshrl.u32 %v732, 7
            %v734 = vmov %v733
            %v735 = vld [vmem:[%s728] ss:$0 sm:$0xff]
            %v736 = vld [vmem:[%s727] sm:$0x3]
            %vm739 = vcmp.eq.s32.totalorder %v734, %v731
            %v740 = vsel %vm739, %v735, %v736
            %741 = vst [vmem:[%s727] sm:$0x3] %v740
            %s742 = smov [#allocation21]
            %s743 = smov [#allocation22]
            %v744 = vld [vmem:[%s743] sm:$0x3]
            %745 = vrot.lane.b32.xlu0 %v744, 1
            %v746 = vpop.permute.xlu0 %745
            %v747 = vld [vmem:[%s742] sm:$0x3]
            %v748 = vld [vmem:[%s742] sm:$0x3]
            %749 = vrot.lane.b32.xlu0 %v748, 1
            %v750 = vpop.permute.xlu0 %749
            %v751 = vlaneseq
            %v752 = vand.u32 %v751, 127
            %vm753 = vcmp.eq.s32.totalorder %v752, 0
            %v754 = vsel %vm753, %v748, %v750
            %v755 = vlaneseq
            %v756 = vand.u32 %v755, 127
            %vm757 = vcmp.eq.s32.totalorder %v756, 1
            %v758 = vsel %vm757, %v746, %v754
            %v759 = vlaneseq
            %v760 = vand.u32 %v759, 127
            %vm761 = vcmp.ge.s32.totalorder %v760, 0
            %vm762 = vcmp.lt.s32.totalorder %v760, 2
            %vm763 = vmand %vm761, %vm762
            %v764 = vsel %vm763, %v758, 0.0
            %v765 = vld [vmem:[%s743] sm:$0x3]
            %766 = vrot.lane.b32.xlu0 %v765, 127
            %v767 = vpop.permute.xlu0 %766
            %v768 = vlaneseq
            %v769 = vand.u32 %v768, 127
            %vm770 = vcmp.eq.s32.totalorder %v769, 1
            %v771 = vsel %vm770, %v747, %v767
            %772 = vst [vmem:[%s742] sm:$0x3] %v764
            %773 = vst [vmem:[%s743] sm:$0x3] %v771
            %s774 = smov [#allocation23]
            %s775 = smov [#allocation24]
            %v776 = vld [vmem:[%s775] sm:$0x3]
            %777 = vrot.lane.b32.xlu0 %v776, 1
            %v778 = vpop.permute.xlu0 %777
            %v779 = vld [vmem:[%s774] sm:$0x3]
            %v780 = vld [vmem:[%s774] sm:$0x3]
            %781 = vrot.lane.b32.xlu0 %v780, 1
            %v782 = vpop.permute.xlu0 %781
            %v783 = vlaneseq
            %v784 = vand.u32 %v783, 127
            %vm785 = vcmp.eq.s32.totalorder %v784, 0
            %v786 = vsel %vm785, %v780, %v782
            %v787 = vlaneseq
            %v788 = vand.u32 %v787, 127
            %vm789 = vcmp.eq.s32.totalorder %v788, 1
            %v790 = vsel %vm789, %v778, %v786
            %v791 = vlaneseq
            %v792 = vand.u32 %v791, 127
            %vm793 = vcmp.ge.s32.totalorder %v792, 0
            %vm794 = vcmp.lt.s32.totalorder %v792, 2
            %vm795 = vmand %vm793, %vm794
            %v796 = vsel %vm795, %v790, 0.0
            %v797 = vld [vmem:[%s775] sm:$0x3]
            %798 = vrot.lane.b32.xlu0 %v797, 127
            %v799 = vpop.permute.xlu0 %798
            %v800 = vlaneseq
            %v801 = vand.u32 %v800, 127
            %vm802 = vcmp.eq.s32.totalorder %v801, 1
            %v803 = vsel %vm802, %v779, %v799
            %804 = vst [vmem:[%s774] sm:$0x3] %v796
            %805 = vst [vmem:[%s775] sm:$0x3] %v803
            %s806 = smov [#allocation21]
            %s807 = smov [#allocation23]
            %v808 = vld [vmem:[%s806] ss:$0 sm:$0xff]
            %s810 = scalar_lea.vmem %s806, 4294967295
            %v811 = vld [vmem:[%s810] sm:$0x2]
            %v812 = vlaneseq
            %v813 = vshrl.u32 %v812, 7
            %vm814 = vcmp.eq.s32.totalorder %v813, 0
            %v815 = vsel %vm814, %v808, %v811
            %s816 = scalar_lea.vmem %s806, 1
            %v817 = vld [vmem:[%s816] ss:$0 sm:$0xff]
            %818 = vst [vmem:[%s806] sm:$0x3] %v815
            %v819 = vld [vmem:[%s807] ss:$0 sm:$0xff]
            %s820 = scalar_lea.vmem %s806, 1
            %821 = vst [vmem:[%s820] sm:$0x1] %v819
            %s822 = scalar_lea.vmem %s807, 1
            %v823 = vld [vmem:[%s822] sm:$0x1]
            %v824 = vlaneseq
            %v825 = vshrl.u32 %v824, 7
            %vm826 = vcmp.eq.s32.totalorder %v825, 1
            %v827 = vsel %vm826, %v817, %v823
            %v828 = vld [vmem:[%s807] ss:$0 sm:$0xff]
            %829 = vst [vmem:[%s807] sm:$0x3] %v827
            %s830 = smov [#allocation22]
            %s831 = smov [#allocation24]
            %v832 = vld [vmem:[%s830] ss:$0 sm:$0xff]
            %s834 = scalar_lea.vmem %s830, 4294967295
            %v835 = vld [vmem:[%s834] sm:$0x2]
            %v836 = vlaneseq
            %v837 = vshrl.u32 %v836, 7
            %vm838 = vcmp.eq.s32.totalorder %v837, 0
            %v839 = vsel %vm838, %v832, %v835
            %s840 = scalar_lea.vmem %s830, 1
            %v841 = vld [vmem:[%s840] ss:$0 sm:$0xff]
            %842 = vst [vmem:[%s830] sm:$0x3] %v839
            %v843 = vld [vmem:[%s831] ss:$0 sm:$0xff]
            %s844 = scalar_lea.vmem %s830, 1
            %845 = vst [vmem:[%s844] sm:$0x1] %v843
            %s846 = scalar_lea.vmem %s831, 1
            %v847 = vld [vmem:[%s846] sm:$0x1]
            %v848 = vlaneseq
            %v849 = vshrl.u32 %v848, 7
            %vm850 = vcmp.eq.s32.totalorder %v849, 1
            %v851 = vsel %vm850, %v841, %v847
            %v852 = vld [vmem:[%s831] ss:$0 sm:$0xff]
            %853 = vst [vmem:[%s831] sm:$0x3] %v851
            %s854 = smov [#allocation32]
            %v855 = vld [vmem:[%s854] sm:$0xff]
            %s856 = smov [#allocation33]
            %v857 = vld [vmem:[%s856] sm:$0xff]
            %s858 = smov [#allocation10]
            %s859 = smov [#allocation13]
            %s860 = smov [#allocation16]
            %s861 = smov [#allocation18]
            %v862 = vld [vmem:[%s858] sm:$0x3]
            %v863 = vld [vmem:[%s859] sm:$0x3]
            %v864 = vld [vmem:[%s860] sm:$0x3]
            %v865 = vld [vmem:[%s861] sm:$0x3]
            %v866 = vmul.f32 %v855, %v862
            %v867 = vmul.f32 %v857, %v864
            %v868 = vsub.f32 %v866, %v867
            %v869 = vmul.f32 %v855, %v863
            %v870 = vmul.f32 %v857, %v865
            %v871 = vsub.f32 %v869, %v870
            %v872 = vmul.f32 %v857, %v862
            %v873 = vmul.f32 %v855, %v864
            %v874 = vadd.f32 %v872, %v873
            %v875 = vmul.f32 %v857, %v863
            %v876 = vmul.f32 %v855, %v865
            %v877 = vadd.f32 %v875, %v876
            %878 = vst [vmem:[%s858] sm:$0x3] %v868
            %879 = vst [vmem:[%s859] sm:$0x3] %v871
            %880 = vst [vmem:[%s860] sm:$0x3] %v874
            %881 = vst [vmem:[%s861] sm:$0x3] %v877
            %s882 = smov [#allocation10]
            %s883 = smov [#allocation16]
            %v884 = vld [vmem:[%s882] ss:$0 sm:$0xff]
            %s886 = scalar_lea.vmem %s882, 4294967295
            %v887 = vld [vmem:[%s886] sm:$0x2]
            %v888 = vlaneseq
            %v889 = vshrl.u32 %v888, 7
            %vm890 = vcmp.eq.s32.totalorder %v889, 0
            %v891 = vsel %vm890, %v884, %v887
            %s892 = scalar_lea.vmem %s882, 1
            %v893 = vld [vmem:[%s892] ss:$0 sm:$0xff]
            %894 = vst [vmem:[%s882] sm:$0x3] %v891
            %v895 = vld [vmem:[%s883] ss:$0 sm:$0xff]
            %s896 = scalar_lea.vmem %s882, 1
            %897 = vst [vmem:[%s896] sm:$0x1] %v895
            %s898 = scalar_lea.vmem %s883, 1
            %v899 = vld [vmem:[%s898] sm:$0x1]
            %v900 = vlaneseq
            %v901 = vshrl.u32 %v900, 7
            %vm902 = vcmp.eq.s32.totalorder %v901, 1
            %v903 = vsel %vm902, %v893, %v899
            %v904 = vld [vmem:[%s883] ss:$0 sm:$0xff]
            %905 = vst [vmem:[%s883] sm:$0x3] %v903
            %s906 = smov [#allocation13]
            %s907 = smov [#allocation18]
            %v908 = vld [vmem:[%s906] ss:$0 sm:$0xff]
            %s910 = scalar_lea.vmem %s906, 4294967295
            %v911 = vld [vmem:[%s910] sm:$0x2]
            %v912 = vlaneseq
            %v913 = vshrl.u32 %v912, 7
            %vm914 = vcmp.eq.s32.totalorder %v913, 0
            %v915 = vsel %vm914, %v908, %v911
            %s916 = scalar_lea.vmem %s906, 1
            %v917 = vld [vmem:[%s916] ss:$0 sm:$0xff]
            %918 = vst [vmem:[%s906] sm:$0x3] %v915
            %v919 = vld [vmem:[%s907] ss:$0 sm:$0xff]
            %s920 = scalar_lea.vmem %s906, 1
            %921 = vst [vmem:[%s920] sm:$0x1] %v919
            %s922 = scalar_lea.vmem %s907, 1
            %v923 = vld [vmem:[%s922] sm:$0x1]
            %v924 = vlaneseq
            %v925 = vshrl.u32 %v924, 7
            %vm926 = vcmp.eq.s32.totalorder %v925, 1
            %v927 = vsel %vm926, %v917, %v923
            %v928 = vld [vmem:[%s907] ss:$0 sm:$0xff]
            %929 = vst [vmem:[%s907] sm:$0x3] %v927
          $region152: #{custom-call.28} parent=144 // loop_footer
            %s490 = sadd.s32 1, %s486
          $region153: #{custom-call.28} parent=144 // loop_footer_branch
            %485 = sbr.rel target = $region149
          $region154: #{custom-call.28} parent=144 // loop_exit
            _
          %s930 = sadd.s32 %s388, 1
        $region145: #{custom-call.28} parent=139 // loop_footer
          _
        $region146: #{custom-call.28} parent=139 // loop_footer_branch
          %387 = sbr.rel target = $region142
        $region147: #{custom-call.28} parent=139 // loop_exit
          _
        %s933 = sand.u32 %s26, 7
        %s934 = scalar_lea.vmem %s296, %s933 [#allocation8]
        %s935 = sand.u32 %s26, 7
        %s936 = scalar_lea.vmem %s302, %s935 [#allocation9]
        %s937 = smov [#allocation21]
        %s938 = smov %s934
        %v939 = vlaneseq
        %v940 = vand.u32 %v939, 127
        %v941 = vmov %v940
        %v942 = vlaneseq
        %v943 = vshrl.u32 %v942, 7
        %v944 = vmov %v943
        %v945 = vld [vmem:[%s937] sm:$0x3]
        %vm948 = vcmp.eq.s32.totalorder %v944, %v941
        %v949 = vsel %vm948, %v945, 0.0
        %v950 = vrot.slane %v949, 4
        %v951 = vadd.f32 %v949, %v950
        %v952 = vrot.slane %v951, 2
        %v953 = vadd.f32 %v951, %v952
        %v954 = vrot.slane %v953, 1
        %v955 = vadd.f32 %v953, %v954
        %956 = vst [vmem:[%s938] sm:$0x1] %v955
        %s957 = smov [#allocation24]
        %s958 = smov %s936
        %v959 = vlaneseq
        %v960 = vand.u32 %v959, 127
        %v961 = vmov %v960
        %v962 = vlaneseq
        %v963 = vshrl.u32 %v962, 7
        %v964 = vmov %v963
        %v965 = vld [vmem:[%s957] sm:$0x3]
        %vm968 = vcmp.eq.s32.totalorder %v964, %v961
        %v969 = vsel %vm968, %v965, 0.0
        %v970 = vrot.slane %v969, 4
        %v971 = vadd.f32 %v969, %v970
        %v972 = vrot.slane %v971, 2
        %v973 = vadd.f32 %v971, %v972
        %v974 = vrot.slane %v973, 1
        %v975 = vadd.f32 %v973, %v974
        %976 = vst [vmem:[%s958] sm:$0x1] %v975
        %s978 = sshll.u32 1, 2
        %s979 = ssub.s32 %s978, 1
        %v981 = vld [vmem:[#allocation10] sm:%s979]
        %s982 = sshll.u32 1, 2
        %s983 = ssub.s32 %s982, 1
        %984 = vst [vmem:[%s307] sm:%s983] %v981
        %s986 = sshll.u32 1, 2
        %s987 = ssub.s32 %s986, 1
        %v989 = vld [vmem:[#allocation13] sm:%s987]
        %s990 = sshll.u32 1, 2
        %s991 = ssub.s32 %s990, 1
        %992 = vst [vmem:[%s312] sm:%s991] %v989
        %s994 = sshll.u32 1, 2
        %s995 = ssub.s32 %s994, 1
        %v997 = vld [vmem:[#allocation16] sm:%s995]
        %s998 = sshll.u32 1, 2
        %s999 = ssub.s32 %s998, 1
        %1000 = vst [vmem:[%s317] sm:%s999] %v997
        %s1002 = sshll.u32 1, 2
        %s1003 = ssub.s32 %s1002, 1
        %v1005 = vld [vmem:[#allocation18] sm:%s1003]
        %s1006 = sshll.u32 1, 2
        %s1007 = ssub.s32 %s1006, 1
        %1008 = vst [vmem:[%s322] sm:%s1007] %v1005
        %s1009 = sand.u32 %s36, 1
        %s1010 = sand.u32 %s36, 1
        %s1011 = smul.addr %s1010, 8
        %s1012 = scalar_lea.vmem [#allocation8], %s1011
        %s1013 = sand.u32 %s64, 1
        %s1014 = sand.u32 %s64, 1
        %s1015 = smul.addr %s1014, 8
        %s1016 = scalar_lea.vmem [#allocation9], %s1015
        %s1017 = sand.u32 %s26, 1
        %s1018 = scalar_lea.sflag [#allocation12], %s1017
        %s1019 = sand.u32 %s26, 1
        %s1020 = smul.addr %s1019, 2
        %s1021 = scalar_lea.vmem [#allocation11], %s1020
        %s1022 = sand.u32 %s26, 1
        %s1023 = scalar_lea.sflag [#allocation15], %s1022
        %s1024 = sand.u32 %s26, 1
        %s1025 = smul.addr %s1024, 2
        %s1026 = scalar_lea.vmem [#allocation14], %s1025
        %s1027 = sand.u32 %s26, 1
        %s1028 = scalar_lea.sflag [#allocation15], %s1027
        %s1029 = sand.u32 %s26, 1
        %s1030 = smul.addr %s1029, 2
        %s1031 = scalar_lea.vmem [#allocation17], %s1030
        %s1032 = sand.u32 %s26, 1
        %s1033 = scalar_lea.sflag [#allocation20], %s1032
        %s1034 = sand.u32 %s26, 1
        %s1035 = smul.addr %s1034, 2
        %s1036 = scalar_lea.vmem [#allocation19], %s1035
        // Predicated region
        $region155: #{custom-call.28} parent=139 // pred_check
          %p1037 = pneg %p46
        $region156: #{custom-call.28} parent=139 // pred_check_branch
          %1039 = sbr.rel (%p1037) target = $region158
        $region157: #{custom-call.28} parent=139 // pred_region
          %s1040 = sshrl.u32 %s26, 3
          %s1041 = smul.addr %s1040, 8
          %s1042 = scalar_lea.vmem %s4, %s1041
          // Predicated region
          $region159: #{custom-call.28} parent=157 // pred_check
            _
          $region160: #{custom-call.28} parent=157 // pred_check_branch
            %1044 = sbr.rel (0) target = $region162
          $region161: #{custom-call.28} parent=157 // pred_region
            // Predicated region
            $region163: #{custom-call.28} parent=161 // pred_check
              _
            $region164: #{custom-call.28} parent=161 // pred_check_branch
              %1046 = sbr.rel (0) target = $region166
            $region165: #{custom-call.28} parent=161 // pred_region
              // Predicated region
              $region178: #{custom-call.28} parent=165 // pred_check
                _
              $region179: #{custom-call.28} parent=165 // pred_check_branch
                %1062 = sbr.rel (0) target = $region181
              $region180: #{custom-call.28} parent=165 // pred_region
                loop: start=0, step=1, limit=1
                $region182: #{custom-call.28} parent=180 // loop_pre_header
                  _
                $region183: #{custom-call.28} parent=180 // loop_header
                  %s1064 = sphi 0, %s1068
                  %p1065 = scmp.ge.s32.totalorder %s1064, 1
                  %s1069 = sphi %s1012, %s1012
                  %s1070 = sphi %s1042, %s1042
                $region184: #{custom-call.28} parent=180 // loop_header_branch
                  %1067 = sbr.rel (%p1065) target = $region188
                $region185: #{custom-call.28} parent=180 // loop_body
                  %v1071 = vld [vmem:[%s1069] sm:$0xff]
                  %1072 = vst [vmem:[%s1070] sm:$0xff] %v1071
                $region186: #{custom-call.28} parent=180 // loop_footer
                  %s1068 = sadd.s32 1, %s1064
                $region187: #{custom-call.28} parent=180 // loop_footer_branch
                  %1063 = sbr.rel target = $region183
                $region188: #{custom-call.28} parent=180 // loop_exit
                  _
              $region181: #{custom-call.28} parent=165 // pred_fallthru
                _
              // Predicated region
              $region189: #{custom-call.28} parent=165 // pred_check
                _
              $region190: #{custom-call.28} parent=165 // pred_check_branch
                %1074 = sbr.rel target = $region192
              $region191: #{custom-call.28} parent=165 // pred_region
                _
              $region192: #{custom-call.28} parent=165 // pred_fallthru
                _
            $region166: #{custom-call.28} parent=161 // pred_fallthru
              _
            // Predicated region
            $region167: #{custom-call.28} parent=161 // pred_check
              _
            $region168: #{custom-call.28} parent=161 // pred_check_branch
              %1048 = sbr.rel target = $region170
            $region169: #{custom-call.28} parent=161 // pred_region
              %s1050 = ssub.s32 256, 1
              loop: start=0, step=1, limit=1
              $region171: #{custom-call.28} parent=169 // loop_pre_header
                _
              $region172: #{custom-call.28} parent=169 // loop_header
                %s1052 = sphi 0, %s1056
                %p1053 = scmp.ge.s32.totalorder %s1052, 1
                %s1057 = sphi %s1012, %s1012
                %s1058 = sphi %s1042, %s1042
              $region173: #{custom-call.28} parent=169 // loop_header_branch
                %1055 = sbr.rel (%p1053) target = $region177
              $region174: #{custom-call.28} parent=169 // loop_body
                %v1059 = vld [vmem:[%s1057] sm:%s1050]
                %1060 = vst [vmem:[%s1058] sm:%s1050] %v1059
              $region175: #{custom-call.28} parent=169 // loop_footer
                %s1056 = sadd.s32 1, %s1052
              $region176: #{custom-call.28} parent=169 // loop_footer_branch
                %1051 = sbr.rel target = $region172
              $region177: #{custom-call.28} parent=169 // loop_exit
                _
            $region170: #{custom-call.28} parent=161 // pred_fallthru
              _
          $region162: #{custom-call.28} parent=157 // pred_fallthru
            _
          %1075 = vnop
        $region158: #{custom-call.28} parent=139 // pred_fallthru
          _
        // Predicated region
        $region193: #{custom-call.28} parent=139 // pred_check
          %p1076 = pneg %p74
        $region194: #{custom-call.28} parent=139 // pred_check_branch
          %1078 = sbr.rel (%p1076) target = $region196
        $region195: #{custom-call.28} parent=139 // pred_region
          %s1079 = sshrl.u32 %s26, 3
          %s1080 = smul.addr %s1079, 8
          %s1081 = scalar_lea.vmem %s5, %s1080
          // Predicated region
          $region197: #{custom-call.28} parent=195 // pred_check
            _
          $region198: #{custom-call.28} parent=195 // pred_check_branch
            %1083 = sbr.rel (0) target = $region200
          $region199: #{custom-call.28} parent=195 // pred_region
            // Predicated region
            $region201: #{custom-call.28} parent=199 // pred_check
              _
            $region202: #{custom-call.28} parent=199 // pred_check_branch
              %1085 = sbr.rel (0) target = $region204
            $region203: #{custom-call.28} parent=199 // pred_region
              // Predicated region
              $region216: #{custom-call.28} parent=203 // pred_check
                _
              $region217: #{custom-call.28} parent=203 // pred_check_branch
                %1101 = sbr.rel (0) target = $region219
              $region218: #{custom-call.28} parent=203 // pred_region
                loop: start=0, step=1, limit=1
                $region220: #{custom-call.28} parent=218 // loop_pre_header
                  _
                $region221: #{custom-call.28} parent=218 // loop_header
                  %s1103 = sphi 0, %s1107
                  %p1104 = scmp.ge.s32.totalorder %s1103, 1
                  %s1108 = sphi %s1016, %s1016
                  %s1109 = sphi %s1081, %s1081
                $region222: #{custom-call.28} parent=218 // loop_header_branch
                  %1106 = sbr.rel (%p1104) target = $region226
                $region223: #{custom-call.28} parent=218 // loop_body
                  %v1110 = vld [vmem:[%s1108] sm:$0xff]
                  %1111 = vst [vmem:[%s1109] sm:$0xff] %v1110
                $region224: #{custom-call.28} parent=218 // loop_footer
                  %s1107 = sadd.s32 1, %s1103
                $region225: #{custom-call.28} parent=218 // loop_footer_branch
                  %1102 = sbr.rel target = $region221
                $region226: #{custom-call.28} parent=218 // loop_exit
                  _
              $region219: #{custom-call.28} parent=203 // pred_fallthru
                _
              // Predicated region
              $region227: #{custom-call.28} parent=203 // pred_check
                _
              $region228: #{custom-call.28} parent=203 // pred_check_branch
                %1113 = sbr.rel target = $region230
              $region229: #{custom-call.28} parent=203 // pred_region
                _
              $region230: #{custom-call.28} parent=203 // pred_fallthru
                _
            $region204: #{custom-call.28} parent=199 // pred_fallthru
              _
            // Predicated region
            $region205: #{custom-call.28} parent=199 // pred_check
              _
            $region206: #{custom-call.28} parent=199 // pred_check_branch
              %1087 = sbr.rel target = $region208
            $region207: #{custom-call.28} parent=199 // pred_region
              %s1089 = ssub.s32 256, 1
              loop: start=0, step=1, limit=1
              $region209: #{custom-call.28} parent=207 // loop_pre_header
                _
              $region210: #{custom-call.28} parent=207 // loop_header
                %s1091 = sphi 0, %s1095
                %p1092 = scmp.ge.s32.totalorder %s1091, 1
                %s1096 = sphi %s1016, %s1016
                %s1097 = sphi %s1081, %s1081
              $region211: #{custom-call.28} parent=207 // loop_header_branch
                %1094 = sbr.rel (%p1092) target = $region215
              $region212: #{custom-call.28} parent=207 // loop_body
                %v1098 = vld [vmem:[%s1096] sm:%s1089]
                %1099 = vst [vmem:[%s1097] sm:%s1089] %v1098
              $region213: #{custom-call.28} parent=207 // loop_footer
                %s1095 = sadd.s32 1, %s1091
              $region214: #{custom-call.28} parent=207 // loop_footer_branch
                %1090 = sbr.rel target = $region210
              $region215: #{custom-call.28} parent=207 // loop_exit
                _
            $region208: #{custom-call.28} parent=199 // pred_fallthru
              _
          $region200: #{custom-call.28} parent=195 // pred_fallthru
            _
          %1114 = vnop
        $region196: #{custom-call.28} parent=139 // pred_fallthru
          _
        %s1116 = ssub.s32 32, 32
        %1117 = vsyncadd %s1018, %s1116
        %s1118 = smul.addr %s26, 32
        %s1119 = scalar_lea.hbm %s6, %s1118
        %s1121 = sshll.u32 %s1021, 4
        %s1122 = int_to_ptr.vmem [resolvable:$true] %s1121
        %1124 = dma.vmem_to_hbm [thread:$0]  %s1122, 32, %s1119, %s1018
        %s1126 = ssub.s32 32, 32
        %1127 = vsyncadd %s1023, %s1126
        %s1128 = smul.addr %s26, 32
        %s1129 = scalar_lea.hbm %s7, %s1128
        %s1131 = sshll.u32 %s1026, 4
        %s1132 = int_to_ptr.vmem [resolvable:$true] %s1131
        %1134 = dma.vmem_to_hbm [thread:$0]  %s1132, 32, %s1129, %s1023
        %s1136 = ssub.s32 32, 32
        %1137 = vsyncadd %s1028, %s1136
        %s1138 = smul.addr %s26, 32
        %s1139 = scalar_lea.hbm %s8, %s1138
        %s1141 = sshll.u32 %s1031, 4
        %s1142 = int_to_ptr.vmem [resolvable:$true] %s1141
        %1144 = dma.vmem_to_hbm [thread:$0]  %s1142, 32, %s1139, %s1028
        %s1146 = ssub.s32 32, 32
        %1147 = vsyncadd %s1033, %s1146
        %s1148 = smul.addr %s26, 32
        %s1149 = scalar_lea.hbm %s9, %s1148
        %s1151 = sshll.u32 %s1036, 4
        %s1152 = int_to_ptr.vmem [resolvable:$true] %s1151
        %1154 = dma.vmem_to_hbm [thread:$0]  %s1152, 32, %s1149, %s1033
      $region140: #{custom-call.28} parent=5 // pred_fallthru
        _
      %p1155 = scmp.le.s32.totalorder 2, %s21
      // Predicated region
      $region231: #{custom-call.28} parent=5 // pred_check
        %p1156 = pneg %p1155
      $region232: #{custom-call.28} parent=5 // pred_check_branch
        %1158 = sbr.rel (%p1156) target = $region234
      $region233: #{custom-call.28} parent=5 // pred_region
        %s1159 = ssub.s32 %s21, 2
        // Predicated region
        $region235: #{custom-call.28} parent=233 // pred_check
          %p1160 = pneg %p52
        $region236: #{custom-call.28} parent=233 // pred_check_branch
          %1162 = sbr.rel (%p1160) target = $region238
        $region237: #{custom-call.28} parent=233 // pred_region
          %s1163 = sand.u32 %s37, 1
          %s1164 = sand.u32 %s37, 1
          %s1165 = smul.addr %s1164, 8
          %s1166 = scalar_lea.vmem [#allocation8], %s1165
        $region238: #{custom-call.28} parent=233 // pred_fallthru
          _
        // Predicated region
        $region239: #{custom-call.28} parent=233 // pred_check
          %p1167 = pneg %p80
        $region240: #{custom-call.28} parent=233 // pred_check_branch
          %1169 = sbr.rel (%p1167) target = $region242
        $region241: #{custom-call.28} parent=233 // pred_region
          %s1170 = sand.u32 %s65, 1
          %s1171 = sand.u32 %s65, 1
          %s1172 = smul.addr %s1171, 8
          %s1173 = scalar_lea.vmem [#allocation9], %s1172
        $region242: #{custom-call.28} parent=233 // pred_fallthru
          _
        %s1174 = sand.u32 %s27, 1
        %s1175 = scalar_lea.sflag [#allocation12], %s1174
        %s1176 = sand.u32 %s27, 1
        %s1177 = smul.addr %s1176, 2
        %s1178 = scalar_lea.vmem [#allocation11], %s1177
        %1179 = dma.done %s1175, 32
        %s1180 = sand.u32 %s27, 1
        %s1181 = scalar_lea.sflag [#allocation15], %s1180
        %s1182 = sand.u32 %s27, 1
        %s1183 = smul.addr %s1182, 2
        %s1184 = scalar_lea.vmem [#allocation14], %s1183
        %1185 = dma.done %s1181, 32
        %s1186 = sand.u32 %s27, 1
        %s1187 = scalar_lea.sflag [#allocation15], %s1186
        %s1188 = sand.u32 %s27, 1
        %s1189 = smul.addr %s1188, 2
        %s1190 = scalar_lea.vmem [#allocation17], %s1189
        %1191 = dma.done %s1187, 32
        %s1192 = sand.u32 %s27, 1
        %s1193 = scalar_lea.sflag [#allocation20], %s1192
        %s1194 = sand.u32 %s27, 1
        %s1195 = smul.addr %s1194, 2
        %s1196 = scalar_lea.vmem [#allocation19], %s1195
        %1197 = dma.done %s1193, 32
      $region234: #{custom-call.28} parent=5 // pred_fallthru
        _
    $region6: #{custom-call.28} parent=1 // loop_footer
      %s25 = sadd.s32 1, %s21
    $region7: #{custom-call.28} parent=1 // loop_footer_branch
      %20 = sbr.rel target = $region3
    $region8: #{custom-call.28} parent=1 // loop_exit
      _
    %1198 = vsyncpa [#allocation12], 1
    %s1199 = scalar_lea.sflag [#allocation12], 1
    %1200 = vsyncpa %s1199, 1
    %1201 = vsyncpa [#allocation15], 1
    %s1202 = scalar_lea.sflag [#allocation15], 1
    %1203 = vsyncpa %s1202, 1
    %1204 = vsyncpa [#allocation20], 1
    %s1205 = scalar_lea.sflag [#allocation20], 1
    %1206 = vsyncpa %s1205, 1

</llo_original>
